<compile_context>
chip_gen: v7x
topology: tpu7x:2x2x1
jax: 0.10.0
libtpu: 0.0.40
codegen_flags: <defaults>
</compile_context>

<pallas_src>
import functools

import jax
import jax.numpy as jnp
import numpy as np
from jax.experimental import pallas as pl
from jax.experimental.pallas import tpu as pltpu

C_HIDDEN = 64      # conv1/conv2 output channels
C_IN = 6           # cover(3) + secret(3) input channels
C_IN_PAD = 8       # conv1 input channels zero-padded for clean taps
C_OUT = 3          # conv3 real output channels
C_OUT_PAD = 8      # conv3 output channels zero-padded (compact writeback)


def _fused_hiding_kernel(H, W,
                         x_ref, w1_ref, b1_ref, w2_ref, b2_ref, w3_ref, b3_ref,
                         o_ref, acc_ref, acc3_ref, h1_ref, h2_ref):
    """One batch element per grid step; all intermediates live in VMEM.

    x_ref : (1, H+2, W+2, 8)  bf16  spatially pre-haloed, channel-padded input
    w1_ref: (3, 3, 8, 64)     bf16
    w2_ref: (3, 192, 64)      bf16  per-dy grouped weights (dx-major, then cin)
    w3_ref: (3, 192, 8)       bf16  per-dy grouped, Cout zero-padded 3->8
    b*_ref: (1, Cout)         f32
    o_ref : (1, H, W, 8)      f32
    acc_ref : (H*W, 64)  f32  VMEM accumulator for conv1/conv2
    acc3_ref: (H*W, 8)   f32  VMEM accumulator for conv3
    h1/h2   : (H+2, W+2, 64) bf16 haloed activations (zero ring)
    """
    HW = H * W
    C = C_HIDDEN

    # Scratch persists across grid steps; the interior is fully rewritten every
    # step and the stores below never touch the 1-pixel ring, so the zero halo
    # only has to be established on the first grid step.
    @pl.when(pl.program_id(0) == 0)
    def _init_halo():
        h1_ref[...] = jnp.zeros_like(h1_ref)
        h2_ref[...] = jnp.zeros_like(h2_ref)

    # ---- conv1 + ReLU: 9 small K=8 taps (conv1 FLOPs are negligible) ----
    acc_ref[...] = jnp.broadcast_to(b1_ref[...], (HW, C))
    for dy in range(3):
        for dx in range(3):
            xs = x_ref[0, dy:dy + H, dx:dx + W, :].reshape(HW, C_IN_PAD)
            acc_ref[...] += jnp.dot(xs, w1_ref[dy, dx],
                                    preferred_element_type=jnp.float32)
    h1_ref[1:H + 1, 1:W + 1, :] = (
        jnp.maximum(acc_ref[...], 0.0).astype(h1_ref.dtype).reshape(H, W, C))

    # ---- conv2 + ReLU: 3 per-dy grouped matmuls (K = 3*64 = 192) ----
    acc_ref[...] = jnp.broadcast_to(b2_ref[...], (HW, C))
    for dy in range(3):
        slab = h1_ref[dy:dy + H, :, :]                          # (H, W+2, 64)
        cat = jnp.concatenate(
            [slab[:, 0:W, :], slab[:, 1:W + 1, :], slab[:, 2:W + 2, :]],
            axis=-1)                                            # (H, W, 192)
        acc_ref[...] += jnp.dot(cat.reshape(HW, 3 * C), w2_ref[dy],
                                preferred_element_type=jnp.float32)
    h2_ref[1:H + 1, 1:W + 1, :] = (
        jnp.maximum(acc_ref[...], 0.0).astype(h2_ref.dtype).reshape(H, W, C))

    # ---- conv3 (no ReLU): 3 per-dy grouped matmuls, compact 8-ch output ----
    acc3_ref[...] = jnp.broadcast_to(b3_ref[...], (HW, C_OUT_PAD))
    for dy in range(3):
        slab = h2_ref[dy:dy + H, :, :]
        cat = jnp.concatenate(
            [slab[:, 0:W, :], slab[:, 1:W + 1, :], slab[:, 2:W + 2, :]],
            axis=-1)
        acc3_ref[...] += jnp.dot(cat.reshape(HW, 3 * C), w3_ref[dy],
                                 preferred_element_type=jnp.float32)
    o_ref[0] = acc3_ref[...].reshape(H, W, C_OUT_PAD)


def init_conv_params(key, cin, cout):
    """Deterministic init mimicking PyTorch Conv2d default (uniform, fan_in)."""
    kw, kb = jax.random.split(key)
    fan_in = cin * 3 * 3
    bound = 1.0 / np.sqrt(fan_in)
    w = jax.random.uniform(kw, (3, 3, cin, cout), jnp.float32, -bound, bound)
    b = jax.random.uniform(kb, (cout,), jnp.float32, -bound, bound)
    return w, b


def hiding_network(cover_nchw, secret_nchw, params):
    """Forward pass matching the PyTorch HidingNetwork (inputs NCHW, f32)."""
    (w1, b1), (w2, b2), (w3, b3) = params
    N, _, H, W = cover_nchw.shape

    # Minimal prologue, bf16 early: concat -> NHWC -> spatial halo + channel
    # pad 6 -> 8.  (No wrapper-side im2col.)
    x = jnp.concatenate([cover_nchw, secret_nchw], axis=1).astype(jnp.bfloat16)
    x = jnp.transpose(x, (0, 2, 3, 1))                           # (N, H, W, 6)
    xh = jnp.pad(x, ((0, 0), (1, 1), (1, 1), (0, C_IN_PAD - C_IN)))

    # Weights: bf16 MXU operands.  conv2/conv3 grouped per dy (dx-major, cin),
    # conv1 input channels padded 6->8, conv3 output channels padded 3->8.
    w1b = jnp.pad(w1, ((0, 0), (0, 0), (0, C_IN_PAD - C_IN),
                       (0, 0))).astype(jnp.bfloat16)             # (3,3,8,64)
    w2g = w2.reshape(3, 3 * C_HIDDEN, C_HIDDEN).astype(jnp.bfloat16)
    w3g = jnp.pad(w3, ((0, 0), (0, 0), (0, 0), (0, C_OUT_PAD - C_OUT))
                  ).reshape(3, 3 * C_HIDDEN, C_OUT_PAD).astype(jnp.bfloat16)
    b1r = b1.reshape(1, C_HIDDEN).astype(jnp.float32)
    b2r = b2.reshape(1, C_HIDDEN).astype(jnp.float32)
    b3r = jnp.pad(b3, (0, C_OUT_PAD - C_OUT)).reshape(1, C_OUT_PAD)
    b3r = b3r.astype(jnp.float32)

    kernel = functools.partial(_fused_hiding_kernel, H, W)
    out_pad = pl.pallas_call(
        kernel,
        out_shape=jax.ShapeDtypeStruct((N, H, W, C_OUT_PAD), jnp.float32),
        grid=(N,),
        in_specs=[
            pl.BlockSpec((1, H + 2, W + 2, C_IN_PAD), lambda b: (b, 0, 0, 0)),
            pl.BlockSpec((3, 3, C_IN_PAD, C_HIDDEN), lambda b: (0, 0, 0, 0)),
            pl.BlockSpec((1, C_HIDDEN), lambda b: (0, 0)),
            pl.BlockSpec((3, 3 * C_HIDDEN, C_HIDDEN), lambda b: (0, 0, 0)),
            pl.BlockSpec((1, C_HIDDEN), lambda b: (0, 0)),
            pl.BlockSpec((3, 3 * C_HIDDEN, C_OUT_PAD), lambda b: (0, 0, 0)),
            pl.BlockSpec((1, C_OUT_PAD), lambda b: (0, 0)),
        ],
        out_specs=pl.BlockSpec((1, H, W, C_OUT_PAD), lambda b: (b, 0, 0, 0)),
        scratch_shapes=[
            pltpu.VMEM((H * W, C_HIDDEN), jnp.float32),
            pltpu.VMEM((H * W, C_OUT_PAD), jnp.float32),
            pltpu.VMEM((H + 2, W + 2, C_HIDDEN), jnp.bfloat16),
            pltpu.VMEM((H + 2, W + 2, C_HIDDEN), jnp.bfloat16),
        ],
        compiler_params=pltpu.CompilerParams(
            dimension_semantics=("parallel",)),
    )(xh, w1b, b1r, w2g, b2r, w3g, b3r)

    # Cheap epilogue: drop the 5 zero channels and return NCHW like PyTorch.
    out = out_pad[..., :C_OUT]                                   # (N, H, W, 3)
    return jnp.transpose(out, (0, 3, 1, 2))                      # (N, 3, H, W)


def _conv_ref(x_nhwc, w_hwio, bias, relu):
    """Pure-JAX reference conv for correctness checking."""
    y = jax.lax.conv_general_dilated(
        x_nhwc, w_hwio, window_strides=(1, 1), padding="SAME",
        dimension_numbers=("NHWC", "HWIO", "NHWC"))
    y = y + bias[None, None, None, :]
    return jnp.maximum(y, 0.0) if relu else y


def hiding_network_ref(cover_nchw, secret_nchw, params):
    (w1, b1), (w2, b2), (w3, b3) = params
    cover = jnp.transpose(cover_nchw, (0, 2, 3, 1))
    secret = jnp.transpose(secret_nchw, (0, 2, 3, 1))
    x = jnp.concatenate([cover, secret], axis=-1)
    x = _conv_ref(x, w1, b1, True)
    x = _conv_ref(x, w2, b2, True)
    x = _conv_ref(x, w3, b3, False)
    return jnp.transpose(x, (0, 3, 1, 2))


if __name__ == "__main__":
    key = jax.random.PRNGKey(0)
    k_cov, k_sec, kp1, kp2, kp3 = jax.random.split(key, 5)

    N, H, W = 2, 16, 16
    cover = jax.random.normal(k_cov, (N, 3, H, W), jnp.float32)
    secret = jax.random.normal(k_sec, (N, 3, H, W), jnp.float32)

    params = (
        init_conv_params(kp1, 6, C_HIDDEN),
        init_conv_params(kp2, C_HIDDEN, C_HIDDEN),
        init_conv_params(kp3, C_HIDDEN, C_OUT),
    )

    out = jax.jit(hiding_network)(cover, secret, params)
    out = jax.block_until_ready(out)

    ref = jax.block_until_ready(hiding_network_ref(cover, secret, params))
    assert out.shape == (N, 3, H, W), out.shape
    # bf16 MXU inputs + bf16 inter-layer activations (f32 accumulation).
    np.testing.assert_allclose(np.asarray(out), np.asarray(ref),
                               rtol=2e-2, atol=2e-2)
    print("KERNEL_OK")
</pallas_src>

<mosaic_0001>
module attributes {stable_mosaic.version = 11 : i64} {
  func.func @_fused_hiding_kernel(%arg0: i32, %arg1: memref<1x18x18x8xbf16, #tpu.memory_space<vmem>>, %arg2: memref<3x3x8x64xbf16, #tpu.memory_space<vmem>>, %arg3: memref<1x64xf32, #tpu.memory_space<vmem>>, %arg4: memref<3x192x64xbf16, #tpu.memory_space<vmem>>, %arg5: memref<1x64xf32, #tpu.memory_space<vmem>>, %arg6: memref<3x192x8xbf16, #tpu.memory_space<vmem>>, %arg7: memref<1x8xf32, #tpu.memory_space<vmem>>, %arg8: memref<1x16x16x8xf32, #tpu.memory_space<vmem>>, %arg9: memref<256x64xf32, #tpu.memory_space<vmem>>, %arg10: memref<256x8xf32, #tpu.memory_space<vmem>>, %arg11: memref<18x18x64xbf16, #tpu.memory_space<vmem>>, %arg12: memref<18x18x64xbf16, #tpu.memory_space<vmem>>) attributes {dimension_semantics = [#tpu.dimension_semantics<parallel>], iteration_bounds = array<i64: 2>, scalar_prefetch = 0 : i64, scratch_operands = 4 : i64, tpu.core_type = #tpu.core_type<tc>, window_params = [{transform_indices = @transform_0, window_bounds = array<i64: 1, 18, 18, 8>}, {pipeline_mode = #tpu.pipeline_mode<synchronous>, transform_indices = @transform_1, window_bounds = array<i64: 3, 3, 8, 64>}, {pipeline_mode = #tpu.pipeline_mode<synchronous>, transform_indices = @transform_2, window_bounds = array<i64: 1, 64>}, {pipeline_mode = #tpu.pipeline_mode<synchronous>, transform_indices = @transform_3, window_bounds = array<i64: 3, 192, 64>}, {pipeline_mode = #tpu.pipeline_mode<synchronous>, transform_indices = @transform_4, window_bounds = array<i64: 1, 64>}, {pipeline_mode = #tpu.pipeline_mode<synchronous>, transform_indices = @transform_5, window_bounds = array<i64: 3, 192, 8>}, {pipeline_mode = #tpu.pipeline_mode<synchronous>, transform_indices = @transform_6, window_bounds = array<i64: 1, 8>}, {transform_indices = @transform_7, window_bounds = array<i64: 1, 16, 16, 8>}]} {
    %c0_i32 = arith.constant 0 : i32
    %0 = arith.cmpi eq, %arg0, %c0_i32 : i32
    %1 = arith.extui %0 : i1 to i32
    %c0_i32_0 = arith.constant 0 : i32
    %2 = arith.cmpi ne, %1, %c0_i32_0 : i32
    scf.if %2 {
      %cst_210 = arith.constant 0.000000e+00 : bf16
      %185 = vector.broadcast %cst_210 : bf16 to vector<18x18x64xbf16>
      %c0_211 = arith.constant 0 : index
      %c0_212 = arith.constant 0 : index
      %c0_213 = arith.constant 0 : index
      %186 = vector.load %arg11[%c0_211, %c0_212, %c0_213] : memref<18x18x64xbf16, #tpu.memory_space<vmem>>, vector<18x18x64xbf16>
      tpu.vector_store %arg11[%c0_211, %c0_212, %c0_213], %185 {strides = array<i32>} : memref<18x18x64xbf16, #tpu.memory_space<vmem>>, vector<18x18x64xbf16>,
      %cst_214 = arith.constant 0.000000e+00 : bf16
      %187 = vector.broadcast %cst_214 : bf16 to vector<18x18x64xbf16>
      %c0_215 = arith.constant 0 : index
      %c0_216 = arith.constant 0 : index
      %c0_217 = arith.constant 0 : index
      %188 = vector.load %arg12[%c0_215, %c0_216, %c0_217] : memref<18x18x64xbf16, #tpu.memory_space<vmem>>, vector<18x18x64xbf16>
      tpu.vector_store %arg12[%c0_215, %c0_216, %c0_217], %187 {strides = array<i32>} : memref<18x18x64xbf16, #tpu.memory_space<vmem>>, vector<18x18x64xbf16>,
    } else {
    }
    %c0 = arith.constant 0 : index
    %c0_1 = arith.constant 0 : index
    %3 = vector.load %arg3[%c0, %c0_1] : memref<1x64xf32, #tpu.memory_space<vmem>>, vector<1x64xf32>
    %4 = vector.shape_cast %3 : vector<1x64xf32> to vector<1x64xf32>
    %5 = vector.broadcast %4 : vector<1x64xf32> to vector<256x64xf32>
    %c0_2 = arith.constant 0 : index
    %c0_3 = arith.constant 0 : index
    %6 = vector.load %arg9[%c0_2, %c0_3] : memref<256x64xf32, #tpu.memory_space<vmem>>, vector<256x64xf32>
    tpu.vector_store %arg9[%c0_2, %c0_3], %5 {strides = array<i32>} : memref<256x64xf32, #tpu.memory_space<vmem>>, vector<256x64xf32>,
    %c0_4 = arith.constant 0 : index
    %c0_5 = arith.constant 0 : index
    %c0_6 = arith.constant 0 : index
    %c0_7 = arith.constant 0 : index
    %7 = vector.load %arg1[%c0_4, %c0_5, %c0_6, %c0_7] : memref<1x18x18x8xbf16, #tpu.memory_space<vmem>>, vector<1x16x16x8xbf16>
    %8 = vector.shape_cast %7 : vector<1x16x16x8xbf16> to vector<16x16x8xbf16>
    %9 = vector.shape_cast %8 : vector<16x16x8xbf16> to vector<256x8xbf16>
    %c0_8 = arith.constant 0 : index
    %c0_9 = arith.constant 0 : index
    %10 = vector.load %arg9[%c0_8, %c0_9] : memref<256x64xf32, #tpu.memory_space<vmem>>, vector<256x64xf32>
    %c0_10 = arith.constant 0 : index
    %c0_11 = arith.constant 0 : index
    %c0_12 = arith.constant 0 : index
    %c0_13 = arith.constant 0 : index
    %11 = vector.load %arg2[%c0_10, %c0_11, %c0_12, %c0_13] : memref<3x3x8x64xbf16, #tpu.memory_space<vmem>>, vector<1x1x8x64xbf16>
    %12 = vector.shape_cast %11 : vector<1x1x8x64xbf16> to vector<8x64xbf16>
    %cst = arith.constant dense<0.000000e+00> : vector<256x64xf32>
    %13 = tpu.matmul %9, %12, %cst {dimension_numbers = #tpu.dot_dimension_numbers<[1], [0], [0], [1], [0, 0, 1, 1], [], []>} : vector<256x8xbf16>, vector<8x64xbf16>, vector<256x64xf32> -> vector<256x64xf32>
    %14 = arith.addf %10, %13 : vector<256x64xf32>
    %c0_14 = arith.constant 0 : index
    %c0_15 = arith.constant 0 : index
    %15 = vector.load %arg9[%c0_14, %c0_15] : memref<256x64xf32, #tpu.memory_space<vmem>>, vector<256x64xf32>
    tpu.vector_store %arg9[%c0_14, %c0_15], %14 {strides = array<i32>} : memref<256x64xf32, #tpu.memory_space<vmem>>, vector<256x64xf32>,
    %c0_16 = arith.constant 0 : index
    %c0_17 = arith.constant 0 : index
    %c1 = arith.constant 1 : index
    %c0_18 = arith.constant 0 : index
    %16 = vector.load %arg1[%c0_16, %c0_17, %c1, %c0_18] : memref<1x18x18x8xbf16, #tpu.memory_space<vmem>>, vector<1x16x16x8xbf16>
    %17 = vector.shape_cast %16 : vector<1x16x16x8xbf16> to vector<16x16x8xbf16>
    %18 = vector.shape_cast %17 : vector<16x16x8xbf16> to vector<256x8xbf16>
    %c0_19 = arith.constant 0 : index
    %c0_20 = arith.constant 0 : index
    %19 = vector.load %arg9[%c0_19, %c0_20] : memref<256x64xf32, #tpu.memory_space<vmem>>, vector<256x64xf32>
    %c0_21 = arith.constant 0 : index
    %c1_22 = arith.constant 1 : index
    %c0_23 = arith.constant 0 : index
    %c0_24 = arith.constant 0 : index
    %20 = vector.load %arg2[%c0_21, %c1_22, %c0_23, %c0_24] : memref<3x3x8x64xbf16, #tpu.memory_space<vmem>>, vector<1x1x8x64xbf16>
    %21 = vector.shape_cast %20 : vector<1x1x8x64xbf16> to vector<8x64xbf16>
    %cst_25 = arith.constant dense<0.000000e+00> : vector<256x64xf32>
    %22 = tpu.matmul %18, %21, %cst_25 {dimension_numbers = #tpu.dot_dimension_numbers<[1], [0], [0], [1], [0, 0, 1, 1], [], []>} : vector<256x8xbf16>, vector<8x64xbf16>, vector<256x64xf32> -> vector<256x64xf32>
    %23 = arith.addf %19, %22 : vector<256x64xf32>
    %c0_26 = arith.constant 0 : index
    %c0_27 = arith.constant 0 : index
    %24 = vector.load %arg9[%c0_26, %c0_27] : memref<256x64xf32, #tpu.memory_space<vmem>>, vector<256x64xf32>
    tpu.vector_store %arg9[%c0_26, %c0_27], %23 {strides = array<i32>} : memref<256x64xf32, #tpu.memory_space<vmem>>, vector<256x64xf32>,
    %c0_28 = arith.constant 0 : index
    %c0_29 = arith.constant 0 : index
    %c2 = arith.constant 2 : index
    %c0_30 = arith.constant 0 : index
    %25 = vector.load %arg1[%c0_28, %c0_29, %c2, %c0_30] : memref<1x18x18x8xbf16, #tpu.memory_space<vmem>>, vector<1x16x16x8xbf16>
    %26 = vector.shape_cast %25 : vector<1x16x16x8xbf16> to vector<16x16x8xbf16>
    %27 = vector.shape_cast %26 : vector<16x16x8xbf16> to vector<256x8xbf16>
    %c0_31 = arith.constant 0 : index
    %c0_32 = arith.constant 0 : index
    %28 = vector.load %arg9[%c0_31, %c0_32] : memref<256x64xf32, #tpu.memory_space<vmem>>, vector<256x64xf32>
    %c0_33 = arith.constant 0 : index
    %c2_34 = arith.constant 2 : index
    %c0_35 = arith.constant 0 : index
    %c0_36 = arith.constant 0 : index
    %29 = vector.load %arg2[%c0_33, %c2_34, %c0_35, %c0_36] : memref<3x3x8x64xbf16, #tpu.memory_space<vmem>>, vector<1x1x8x64xbf16>
    %30 = vector.shape_cast %29 : vector<1x1x8x64xbf16> to vector<8x64xbf16>
    %cst_37 = arith.constant dense<0.000000e+00> : vector<256x64xf32>
    %31 = tpu.matmul %27, %30, %cst_37 {dimension_numbers = #tpu.dot_dimension_numbers<[1], [0], [0], [1], [0, 0, 1, 1], [], []>} : vector<256x8xbf16>, vector<8x64xbf16>, vector<256x64xf32> -> vector<256x64xf32>
    %32 = arith.addf %28, %31 : vector<256x64xf32>
    %c0_38 = arith.constant 0 : index
    %c0_39 = arith.constant 0 : index
    %33 = vector.load %arg9[%c0_38, %c0_39] : memref<256x64xf32, #tpu.memory_space<vmem>>, vector<256x64xf32>
    tpu.vector_store %arg9[%c0_38, %c0_39], %32 {strides = array<i32>} : memref<256x64xf32, #tpu.memory_space<vmem>>, vector<256x64xf32>,
    %c0_40 = arith.constant 0 : index
    %c1_41 = arith.constant 1 : index
    %c0_42 = arith.constant 0 : index
    %c0_43 = arith.constant 0 : index
    %34 = vector.load %arg1[%c0_40, %c1_41, %c0_42, %c0_43] : memref<1x18x18x8xbf16, #tpu.memory_space<vmem>>, vector<1x16x16x8xbf16>
    %35 = vector.shape_cast %34 : vector<1x16x16x8xbf16> to vector<16x16x8xbf16>
    %36 = vector.shape_cast %35 : vector<16x16x8xbf16> to vector<256x8xbf16>
    %c0_44 = arith.constant 0 : index
    %c0_45 = arith.constant 0 : index
    %37 = vector.load %arg9[%c0_44, %c0_45] : memref<256x64xf32, #tpu.memory_space<vmem>>, vector<256x64xf32>
    %c1_46 = arith.constant 1 : index
    %c0_47 = arith.constant 0 : index
    %c0_48 = arith.constant 0 : index
    %c0_49 = arith.constant 0 : index
    %38 = vector.load %arg2[%c1_46, %c0_47, %c0_48, %c0_49] : memref<3x3x8x64xbf16, #tpu.memory_space<vmem>>, vector<1x1x8x64xbf16>
    %39 = vector.shape_cast %38 : vector<1x1x8x64xbf16> to vector<8x64xbf16>
    %cst_50 = arith.constant dense<0.000000e+00> : vector<256x64xf32>
    %40 = tpu.matmul %36, %39, %cst_50 {dimension_numbers = #tpu.dot_dimension_numbers<[1], [0], [0], [1], [0, 0, 1, 1], [], []>} : vector<256x8xbf16>, vector<8x64xbf16>, vector<256x64xf32> -> vector<256x64xf32>
    %41 = arith.addf %37, %40 : vector<256x64xf32>
    %c0_51 = arith.constant 0 : index
    %c0_52 = arith.constant 0 : index
    %42 = vector.load %arg9[%c0_51, %c0_52] : memref<256x64xf32, #tpu.memory_space<vmem>>, vector<256x64xf32>
    tpu.vector_store %arg9[%c0_51, %c0_52], %41 {strides = array<i32>} : memref<256x64xf32, #tpu.memory_space<vmem>>, vector<256x64xf32>,
    %c0_53 = arith.constant 0 : index
    %c1_54 = arith.constant 1 : index
    %c1_55 = arith.constant 1 : index
    %c0_56 = arith.constant 0 : index
    %43 = vector.load %arg1[%c0_53, %c1_54, %c1_55, %c0_56] : memref<1x18x18x8xbf16, #tpu.memory_space<vmem>>, vector<1x16x16x8xbf16>
    %44 = vector.shape_cast %43 : vector<1x16x16x8xbf16> to vector<16x16x8xbf16>
    %45 = vector.shape_cast %44 : vector<16x16x8xbf16> to vector<256x8xbf16>
    %c0_57 = arith.constant 0 : index
    %c0_58 = arith.constant 0 : index
    %46 = vector.load %arg9[%c0_57, %c0_58] : memref<256x64xf32, #tpu.memory_space<vmem>>, vector<256x64xf32>
    %c1_59 = arith.constant 1 : index
    %c1_60 = arith.constant 1 : index
    %c0_61 = arith.constant 0 : index
    %c0_62 = arith.constant 0 : index
    %47 = vector.load %arg2[%c1_59, %c1_60, %c0_61, %c0_62] : memref<3x3x8x64xbf16, #tpu.memory_space<vmem>>, vector<1x1x8x64xbf16>
    %48 = vector.shape_cast %47 : vector<1x1x8x64xbf16> to vector<8x64xbf16>
    %cst_63 = arith.constant dense<0.000000e+00> : vector<256x64xf32>
    %49 = tpu.matmul %45, %48, %cst_63 {dimension_numbers = #tpu.dot_dimension_numbers<[1], [0], [0], [1], [0, 0, 1, 1], [], []>} : vector<256x8xbf16>, vector<8x64xbf16>, vector<256x64xf32> -> vector<256x64xf32>
    %50 = arith.addf %46, %49 : vector<256x64xf32>
    %c0_64 = arith.constant 0 : index
    %c0_65 = arith.constant 0 : index
    %51 = vector.load %arg9[%c0_64, %c0_65] : memref<256x64xf32, #tpu.memory_space<vmem>>, vector<256x64xf32>
    tpu.vector_store %arg9[%c0_64, %c0_65], %50 {strides = array<i32>} : memref<256x64xf32, #tpu.memory_space<vmem>>, vector<256x64xf32>,
    %c0_66 = arith.constant 0 : index
    %c1_67 = arith.constant 1 : index
    %c2_68 = arith.constant 2 : index
    %c0_69 = arith.constant 0 : index
    %52 = vector.load %arg1[%c0_66, %c1_67, %c2_68, %c0_69] : memref<1x18x18x8xbf16, #tpu.memory_space<vmem>>, vector<1x16x16x8xbf16>
    %53 = vector.shape_cast %52 : vector<1x16x16x8xbf16> to vector<16x16x8xbf16>
    %54 = vector.shape_cast %53 : vector<16x16x8xbf16> to vector<256x8xbf16>
    %c0_70 = arith.constant 0 : index
    %c0_71 = arith.constant 0 : index
    %55 = vector.load %arg9[%c0_70, %c0_71] : memref<256x64xf32, #tpu.memory_space<vmem>>, vector<256x64xf32>
    %c1_72 = arith.constant 1 : index
    %c2_73 = arith.constant 2 : index
    %c0_74 = arith.constant 0 : index
    %c0_75 = arith.constant 0 : index
    %56 = vector.load %arg2[%c1_72, %c2_73, %c0_74, %c0_75] : memref<3x3x8x64xbf16, #tpu.memory_space<vmem>>, vector<1x1x8x64xbf16>
    %57 = vector.shape_cast %56 : vector<1x1x8x64xbf16> to vector<8x64xbf16>
    %cst_76 = arith.constant dense<0.000000e+00> : vector<256x64xf32>
    %58 = tpu.matmul %54, %57, %cst_76 {dimension_numbers = #tpu.dot_dimension_numbers<[1], [0], [0], [1], [0, 0, 1, 1], [], []>} : vector<256x8xbf16>, vector<8x64xbf16>, vector<256x64xf32> -> vector<256x64xf32>
    %59 = arith.addf %55, %58 : vector<256x64xf32>
    %c0_77 = arith.constant 0 : index
    %c0_78 = arith.constant 0 : index
    %60 = vector.load %arg9[%c0_77, %c0_78] : memref<256x64xf32, #tpu.memory_space<vmem>>, vector<256x64xf32>
    tpu.vector_store %arg9[%c0_77, %c0_78], %59 {strides = array<i32>} : memref<256x64xf32, #tpu.memory_space<vmem>>, vector<256x64xf32>,
    %c0_79 = arith.constant 0 : index
    %c2_80 = arith.constant 2 : index
    %c0_81 = arith.constant 0 : index
    %c0_82 = arith.constant 0 : index
    %61 = vector.load %arg1[%c0_79, %c2_80, %c0_81, %c0_82] : memref<1x18x18x8xbf16, #tpu.memory_space<vmem>>, vector<1x16x16x8xbf16>
    %62 = vector.shape_cast %61 : vector<1x16x16x8xbf16> to vector<16x16x8xbf16>
    %63 = vector.shape_cast %62 : vector<16x16x8xbf16> to vector<256x8xbf16>
    %c0_83 = arith.constant 0 : index
    %c0_84 = arith.constant 0 : index
    %64 = vector.load %arg9[%c0_83, %c0_84] : memref<256x64xf32, #tpu.memory_space<vmem>>, vector<256x64xf32>
    %c2_85 = arith.constant 2 : index
    %c0_86 = arith.constant 0 : index
    %c0_87 = arith.constant 0 : index
    %c0_88 = arith.constant 0 : index
    %65 = vector.load %arg2[%c2_85, %c0_86, %c0_87, %c0_88] : memref<3x3x8x64xbf16, #tpu.memory_space<vmem>>, vector<1x1x8x64xbf16>
    %66 = vector.shape_cast %65 : vector<1x1x8x64xbf16> to vector<8x64xbf16>
    %cst_89 = arith.constant dense<0.000000e+00> : vector<256x64xf32>
    %67 = tpu.matmul %63, %66, %cst_89 {dimension_numbers = #tpu.dot_dimension_numbers<[1], [0], [0], [1], [0, 0, 1, 1], [], []>} : vector<256x8xbf16>, vector<8x64xbf16>, vector<256x64xf32> -> vector<256x64xf32>
    %68 = arith.addf %64, %67 : vector<256x64xf32>
    %c0_90 = arith.constant 0 : index
    %c0_91 = arith.constant 0 : index
    %69 = vector.load %arg9[%c0_90, %c0_91] : memref<256x64xf32, #tpu.memory_space<vmem>>, vector<256x64xf32>
    tpu.vector_store %arg9[%c0_90, %c0_91], %68 {strides = array<i32>} : memref<256x64xf32, #tpu.memory_space<vmem>>, vector<256x64xf32>,
    %c0_92 = arith.constant 0 : index
    %c2_93 = arith.constant 2 : index
    %c1_94 = arith.constant 1 : index
    %c0_95 = arith.constant 0 : index
    %70 = vector.load %arg1[%c0_92, %c2_93, %c1_94, %c0_95] : memref<1x18x18x8xbf16, #tpu.memory_space<vmem>>, vector<1x16x16x8xbf16>
    %71 = vector.shape_cast %70 : vector<1x16x16x8xbf16> to vector<16x16x8xbf16>
    %72 = vector.shape_cast %71 : vector<16x16x8xbf16> to vector<256x8xbf16>
    %c0_96 = arith.constant 0 : index
    %c0_97 = arith.constant 0 : index
    %73 = vector.load %arg9[%c0_96, %c0_97] : memref<256x64xf32, #tpu.memory_space<vmem>>, vector<256x64xf32>
    %c2_98 = arith.constant 2 : index
    %c1_99 = arith.constant 1 : index
    %c0_100 = arith.constant 0 : index
    %c0_101 = arith.constant 0 : index
    %74 = vector.load %arg2[%c2_98, %c1_99, %c0_100, %c0_101] : memref<3x3x8x64xbf16, #tpu.memory_space<vmem>>, vector<1x1x8x64xbf16>
    %75 = vector.shape_cast %74 : vector<1x1x8x64xbf16> to vector<8x64xbf16>
    %cst_102 = arith.constant dense<0.000000e+00> : vector<256x64xf32>
    %76 = tpu.matmul %72, %75, %cst_102 {dimension_numbers = #tpu.dot_dimension_numbers<[1], [0], [0], [1], [0, 0, 1, 1], [], []>} : vector<256x8xbf16>, vector<8x64xbf16>, vector<256x64xf32> -> vector<256x64xf32>
    %77 = arith.addf %73, %76 : vector<256x64xf32>
    %c0_103 = arith.constant 0 : index
    %c0_104 = arith.constant 0 : index
    %78 = vector.load %arg9[%c0_103, %c0_104] : memref<256x64xf32, #tpu.memory_space<vmem>>, vector<256x64xf32>
    tpu.vector_store %arg9[%c0_103, %c0_104], %77 {strides = array<i32>} : memref<256x64xf32, #tpu.memory_space<vmem>>, vector<256x64xf32>,
    %c0_105 = arith.constant 0 : index
    %c2_106 = arith.constant 2 : index
    %c2_107 = arith.constant 2 : index
    %c0_108 = arith.constant 0 : index
    %79 = vector.load %arg1[%c0_105, %c2_106, %c2_107, %c0_108] : memref<1x18x18x8xbf16, #tpu.memory_space<vmem>>, vector<1x16x16x8xbf16>
    %80 = vector.shape_cast %79 : vector<1x16x16x8xbf16> to vector<16x16x8xbf16>
    %81 = vector.shape_cast %80 : vector<16x16x8xbf16> to vector<256x8xbf16>
    %c0_109 = arith.constant 0 : index
    %c0_110 = arith.constant 0 : index
    %82 = vector.load %arg9[%c0_109, %c0_110] : memref<256x64xf32, #tpu.memory_space<vmem>>, vector<256x64xf32>
    %c2_111 = arith.constant 2 : index
    %c2_112 = arith.constant 2 : index
    %c0_113 = arith.constant 0 : index
    %c0_114 = arith.constant 0 : index
    %83 = vector.load %arg2[%c2_111, %c2_112, %c0_113, %c0_114] : memref<3x3x8x64xbf16, #tpu.memory_space<vmem>>, vector<1x1x8x64xbf16>
    %84 = vector.shape_cast %83 : vector<1x1x8x64xbf16> to vector<8x64xbf16>
    %cst_115 = arith.constant dense<0.000000e+00> : vector<256x64xf32>
    %85 = tpu.matmul %81, %84, %cst_115 {dimension_numbers = #tpu.dot_dimension_numbers<[1], [0], [0], [1], [0, 0, 1, 1], [], []>} : vector<256x8xbf16>, vector<8x64xbf16>, vector<256x64xf32> -> vector<256x64xf32>
    %86 = arith.addf %82, %85 : vector<256x64xf32>
    %c0_116 = arith.constant 0 : index
    %c0_117 = arith.constant 0 : index
    %87 = vector.load %arg9[%c0_116, %c0_117] : memref<256x64xf32, #tpu.memory_space<vmem>>, vector<256x64xf32>
    tpu.vector_store %arg9[%c0_116, %c0_117], %86 {strides = array<i32>} : memref<256x64xf32, #tpu.memory_space<vmem>>, vector<256x64xf32>,
    %c0_118 = arith.constant 0 : index
    %c0_119 = arith.constant 0 : index
    %88 = vector.load %arg9[%c0_118, %c0_119] : memref<256x64xf32, #tpu.memory_space<vmem>>, vector<256x64xf32>
    %cst_120 = arith.constant 0.000000e+00 : f32
    %89 = vector.broadcast %cst_120 : f32 to vector<256x64xf32>
    %90 = arith.maximumf %88, %89 : vector<256x64xf32>
    %91 = arith.truncf %90 : vector<256x64xf32> to vector<256x64xbf16>
    %92 = vector.shape_cast %91 : vector<256x64xbf16> to vector<16x16x64xbf16>
    %c1_121 = arith.constant 1 : index
    %c1_122 = arith.constant 1 : index
    %c0_123 = arith.constant 0 : index
    %93 = vector.load %arg11[%c1_121, %c1_122, %c0_123] : memref<18x18x64xbf16, #tpu.memory_space<vmem>>, vector<16x16x64xbf16>
    tpu.vector_store %arg11[%c1_121, %c1_122, %c0_123], %92 {strides = array<i32>} : memref<18x18x64xbf16, #tpu.memory_space<vmem>>, vector<16x16x64xbf16>,
    %c0_124 = arith.constant 0 : index
    %c0_125 = arith.constant 0 : index
    %94 = vector.load %arg5[%c0_124, %c0_125] : memref<1x64xf32, #tpu.memory_space<vmem>>, vector<1x64xf32>
    %95 = vector.shape_cast %94 : vector<1x64xf32> to vector<1x64xf32>
    %96 = vector.broadcast %95 : vector<1x64xf32> to vector<256x64xf32>
    %c0_126 = arith.constant 0 : index
    %c0_127 = arith.constant 0 : index
    %97 = vector.load %arg9[%c0_126, %c0_127] : memref<256x64xf32, #tpu.memory_space<vmem>>, vector<256x64xf32>
    tpu.vector_store %arg9[%c0_126, %c0_127], %96 {strides = array<i32>} : memref<256x64xf32, #tpu.memory_space<vmem>>, vector<256x64xf32>,
    %c0_128 = arith.constant 0 : index
    %c0_129 = arith.constant 0 : index
    %c0_130 = arith.constant 0 : index
    %98 = vector.load %arg11[%c0_128, %c0_129, %c0_130] : memref<18x18x64xbf16, #tpu.memory_space<vmem>>, vector<16x18x64xbf16>
    %99 = vector.extract_strided_slice %98 {offsets = [0, 0, 0], sizes = [16, 16, 64], strides = [1, 1, 1]} : vector<16x18x64xbf16> to vector<16x16x64xbf16>
    %100 = vector.extract_strided_slice %98 {offsets = [0, 1, 0], sizes = [16, 16, 64], strides = [1, 1, 1]} : vector<16x18x64xbf16> to vector<16x16x64xbf16>
    %101 = vector.extract_strided_slice %98 {offsets = [0, 2, 0], sizes = [16, 16, 64], strides = [1, 1, 1]} : vector<16x18x64xbf16> to vector<16x16x64xbf16>
    %102 = tpu.concatenate %99, %100, %101 in 2 : vector<16x16x64xbf16>, vector<16x16x64xbf16>, vector<16x16x64xbf16> -> vector<16x16x192xbf16>
    %c0_131 = arith.constant 0 : index
    %c0_132 = arith.constant 0 : index
    %103 = vector.load %arg9[%c0_131, %c0_132] : memref<256x64xf32, #tpu.memory_space<vmem>>, vector<256x64xf32>
    %104 = vector.shape_cast %102 : vector<16x16x192xbf16> to vector<256x192xbf16>
    %c0_133 = arith.constant 0 : index
    %c0_134 = arith.constant 0 : index
    %c0_135 = arith.constant 0 : index
    %105 = vector.load %arg4[%c0_133, %c0_134, %c0_135] : memref<3x192x64xbf16, #tpu.memory_space<vmem>>, vector<1x192x64xbf16>
    %106 = vector.shape_cast %105 : vector<1x192x64xbf16> to vector<192x64xbf16>
    %cst_136 = arith.constant dense<0.000000e+00> : vector<256x64xf32>
    %107 = tpu.matmul %104, %106, %cst_136 {dimension_numbers = #tpu.dot_dimension_numbers<[1], [0], [0], [1], [0, 0, 1, 1], [], []>} : vector<256x192xbf16>, vector<192x64xbf16>, vector<256x64xf32> -> vector<256x64xf32>
    %108 = arith.addf %103, %107 : vector<256x64xf32>
    %c0_137 = arith.constant 0 : index
    %c0_138 = arith.constant 0 : index
    %109 = vector.load %arg9[%c0_137, %c0_138] : memref<256x64xf32, #tpu.memory_space<vmem>>, vector<256x64xf32>
    tpu.vector_store %arg9[%c0_137, %c0_138], %108 {strides = array<i32>} : memref<256x64xf32, #tpu.memory_space<vmem>>, vector<256x64xf32>,
    %c1_139 = arith.constant 1 : index
    %c0_140 = arith.constant 0 : index
    %c0_141 = arith.constant 0 : index
    %110 = vector.load %arg11[%c1_139, %c0_140, %c0_141] : memref<18x18x64xbf16, #tpu.memory_space<vmem>>, vector<16x18x64xbf16>
    %111 = vector.extract_strided_slice %110 {offsets = [0, 0, 0], sizes = [16, 16, 64], strides = [1, 1, 1]} : vector<16x18x64xbf16> to vector<16x16x64xbf16>
    %112 = vector.extract_strided_slice %110 {offsets = [0, 1, 0], sizes = [16, 16, 64], strides = [1, 1, 1]} : vector<16x18x64xbf16> to vector<16x16x64xbf16>
    %113 = vector.extract_strided_slice %110 {offsets = [0, 2, 0], sizes = [16, 16, 64], strides = [1, 1, 1]} : vector<16x18x64xbf16> to vector<16x16x64xbf16>
    %114 = tpu.concatenate %111, %112, %113 in 2 : vector<16x16x64xbf16>, vector<16x16x64xbf16>, vector<16x16x64xbf16> -> vector<16x16x192xbf16>
    %c0_142 = arith.constant 0 : index
    %c0_143 = arith.constant 0 : index
    %115 = vector.load %arg9[%c0_142, %c0_143] : memref<256x64xf32, #tpu.memory_space<vmem>>, vector<256x64xf32>
    %116 = vector.shape_cast %114 : vector<16x16x192xbf16> to vector<256x192xbf16>
    %c1_144 = arith.constant 1 : index
    %c0_145 = arith.constant 0 : index
    %c0_146 = arith.constant 0 : index
    %117 = vector.load %arg4[%c1_144, %c0_145, %c0_146] : memref<3x192x64xbf16, #tpu.memory_space<vmem>>, vector<1x192x64xbf16>
    %118 = vector.shape_cast %117 : vector<1x192x64xbf16> to vector<192x64xbf16>
    %cst_147 = arith.constant dense<0.000000e+00> : vector<256x64xf32>
    %119 = tpu.matmul %116, %118, %cst_147 {dimension_numbers = #tpu.dot_dimension_numbers<[1], [0], [0], [1], [0, 0, 1, 1], [], []>} : vector<256x192xbf16>, vector<192x64xbf16>, vector<256x64xf32> -> vector<256x64xf32>
    %120 = arith.addf %115, %119 : vector<256x64xf32>
    %c0_148 = arith.constant 0 : index
    %c0_149 = arith.constant 0 : index
    %121 = vector.load %arg9[%c0_148, %c0_149] : memref<256x64xf32, #tpu.memory_space<vmem>>, vector<256x64xf32>
    tpu.vector_store %arg9[%c0_148, %c0_149], %120 {strides = array<i32>} : memref<256x64xf32, #tpu.memory_space<vmem>>, vector<256x64xf32>,
    %c2_150 = arith.constant 2 : index
    %c0_151 = arith.constant 0 : index
    %c0_152 = arith.constant 0 : index
    %122 = vector.load %arg11[%c2_150, %c0_151, %c0_152] : memref<18x18x64xbf16, #tpu.memory_space<vmem>>, vector<16x18x64xbf16>
    %123 = vector.extract_strided_slice %122 {offsets = [0, 0, 0], sizes = [16, 16, 64], strides = [1, 1, 1]} : vector<16x18x64xbf16> to vector<16x16x64xbf16>
    %124 = vector.extract_strided_slice %122 {offsets = [0, 1, 0], sizes = [16, 16, 64], strides = [1, 1, 1]} : vector<16x18x64xbf16> to vector<16x16x64xbf16>
    %125 = vector.extract_strided_slice %122 {offsets = [0, 2, 0], sizes = [16, 16, 64], strides = [1, 1, 1]} : vector<16x18x64xbf16> to vector<16x16x64xbf16>
    %126 = tpu.concatenate %123, %124, %125 in 2 : vector<16x16x64xbf16>, vector<16x16x64xbf16>, vector<16x16x64xbf16> -> vector<16x16x192xbf16>
    %c0_153 = arith.constant 0 : index
    %c0_154 = arith.constant 0 : index
    %127 = vector.load %arg9[%c0_153, %c0_154] : memref<256x64xf32, #tpu.memory_space<vmem>>, vector<256x64xf32>
    %128 = vector.shape_cast %126 : vector<16x16x192xbf16> to vector<256x192xbf16>
    %c2_155 = arith.constant 2 : index
    %c0_156 = arith.constant 0 : index
    %c0_157 = arith.constant 0 : index
    %129 = vector.load %arg4[%c2_155, %c0_156, %c0_157] : memref<3x192x64xbf16, #tpu.memory_space<vmem>>, vector<1x192x64xbf16>
    %130 = vector.shape_cast %129 : vector<1x192x64xbf16> to vector<192x64xbf16>
    %cst_158 = arith.constant dense<0.000000e+00> : vector<256x64xf32>
    %131 = tpu.matmul %128, %130, %cst_158 {dimension_numbers = #tpu.dot_dimension_numbers<[1], [0], [0], [1], [0, 0, 1, 1], [], []>} : vector<256x192xbf16>, vector<192x64xbf16>, vector<256x64xf32> -> vector<256x64xf32>
    %132 = arith.addf %127, %131 : vector<256x64xf32>
    %c0_159 = arith.constant 0 : index
    %c0_160 = arith.constant 0 : index
    %133 = vector.load %arg9[%c0_159, %c0_160] : memref<256x64xf32, #tpu.memory_space<vmem>>, vector<256x64xf32>
    tpu.vector_store %arg9[%c0_159, %c0_160], %132 {strides = array<i32>} : memref<256x64xf32, #tpu.memory_space<vmem>>, vector<256x64xf32>,
    %c0_161 = arith.constant 0 : index
    %c0_162 = arith.constant 0 : index
    %134 = vector.load %arg9[%c0_161, %c0_162] : memref<256x64xf32, #tpu.memory_space<vmem>>, vector<256x64xf32>
    %cst_163 = arith.constant 0.000000e+00 : f32
    %135 = vector.broadcast %cst_163 : f32 to vector<256x64xf32>
    %136 = arith.maximumf %134, %135 : vector<256x64xf32>
    %137 = arith.truncf %136 : vector<256x64xf32> to vector<256x64xbf16>
    %138 = vector.shape_cast %137 : vector<256x64xbf16> to vector<16x16x64xbf16>
    %c1_164 = arith.constant 1 : index
    %c1_165 = arith.constant 1 : index
    %c0_166 = arith.constant 0 : index
    %139 = vector.load %arg12[%c1_164, %c1_165, %c0_166] : memref<18x18x64xbf16, #tpu.memory_space<vmem>>, vector<16x16x64xbf16>
    tpu.vector_store %arg12[%c1_164, %c1_165, %c0_166], %138 {strides = array<i32>} : memref<18x18x64xbf16, #tpu.memory_space<vmem>>, vector<16x16x64xbf16>,
    %c0_167 = arith.constant 0 : index
    %c0_168 = arith.constant 0 : index
    %140 = vector.load %arg7[%c0_167, %c0_168] : memref<1x8xf32, #tpu.memory_space<vmem>>, vector<1x8xf32>
    %141 = vector.shape_cast %140 : vector<1x8xf32> to vector<1x8xf32>
    %142 = vector.broadcast %141 : vector<1x8xf32> to vector<256x8xf32>
    %c0_169 = arith.constant 0 : index
    %c0_170 = arith.constant 0 : index
    %143 = vector.load %arg10[%c0_169, %c0_170] : memref<256x8xf32, #tpu.memory_space<vmem>>, vector<256x8xf32>
    tpu.vector_store %arg10[%c0_169, %c0_170], %142 {strides = array<i32>} : memref<256x8xf32, #tpu.memory_space<vmem>>, vector<256x8xf32>,
    %c0_171 = arith.constant 0 : index
    %c0_172 = arith.constant 0 : index
    %c0_173 = arith.constant 0 : index
    %144 = vector.load %arg12[%c0_171, %c0_172, %c0_173] : memref<18x18x64xbf16, #tpu.memory_space<vmem>>, vector<16x18x64xbf16>
    %145 = vector.extract_strided_slice %144 {offsets = [0, 0, 0], sizes = [16, 16, 64], strides = [1, 1, 1]} : vector<16x18x64xbf16> to vector<16x16x64xbf16>
    %146 = vector.extract_strided_slice %144 {offsets = [0, 1, 0], sizes = [16, 16, 64], strides = [1, 1, 1]} : vector<16x18x64xbf16> to vector<16x16x64xbf16>
    %147 = vector.extract_strided_slice %144 {offsets = [0, 2, 0], sizes = [16, 16, 64], strides = [1, 1, 1]} : vector<16x18x64xbf16> to vector<16x16x64xbf16>
    %148 = tpu.concatenate %145, %146, %147 in 2 : vector<16x16x64xbf16>, vector<16x16x64xbf16>, vector<16x16x64xbf16> -> vector<16x16x192xbf16>
    %c0_174 = arith.constant 0 : index
    %c0_175 = arith.constant 0 : index
    %149 = vector.load %arg10[%c0_174, %c0_175] : memref<256x8xf32, #tpu.memory_space<vmem>>, vector<256x8xf32>
    %150 = vector.shape_cast %148 : vector<16x16x192xbf16> to vector<256x192xbf16>
    %c0_176 = arith.constant 0 : index
    %c0_177 = arith.constant 0 : index
    %c0_178 = arith.constant 0 : index
    %151 = vector.load %arg6[%c0_176, %c0_177, %c0_178] : memref<3x192x8xbf16, #tpu.memory_space<vmem>>, vector<1x192x8xbf16>
    %152 = vector.shape_cast %151 : vector<1x192x8xbf16> to vector<192x8xbf16>
    %cst_179 = arith.constant dense<0.000000e+00> : vector<256x8xf32>
    %153 = tpu.matmul %150, %152, %cst_179 {dimension_numbers = #tpu.dot_dimension_numbers<[1], [0], [0], [1], [0, 0, 1, 1], [], []>} : vector<256x192xbf16>, vector<192x8xbf16>, vector<256x8xf32> -> vector<256x8xf32>
    %154 = arith.addf %149, %153 : vector<256x8xf32>
    %c0_180 = arith.constant 0 : index
    %c0_181 = arith.constant 0 : index
    %155 = vector.load %arg10[%c0_180, %c0_181] : memref<256x8xf32, #tpu.memory_space<vmem>>, vector<256x8xf32>
    tpu.vector_store %arg10[%c0_180, %c0_181], %154 {strides = array<i32>} : memref<256x8xf32, #tpu.memory_space<vmem>>, vector<256x8xf32>,
    %c1_182 = arith.constant 1 : index
    %c0_183 = arith.constant 0 : index
    %c0_184 = arith.constant 0 : index
    %156 = vector.load %arg12[%c1_182, %c0_183, %c0_184] : memref<18x18x64xbf16, #tpu.memory_space<vmem>>, vector<16x18x64xbf16>
    %157 = vector.extract_strided_slice %156 {offsets = [0, 0, 0], sizes = [16, 16, 64], strides = [1, 1, 1]} : vector<16x18x64xbf16> to vector<16x16x64xbf16>
    %158 = vector.extract_strided_slice %156 {offsets = [0, 1, 0], sizes = [16, 16, 64], strides = [1, 1, 1]} : vector<16x18x64xbf16> to vector<16x16x64xbf16>
    %159 = vector.extract_strided_slice %156 {offsets = [0, 2, 0], sizes = [16, 16, 64], strides = [1, 1, 1]} : vector<16x18x64xbf16> to vector<16x16x64xbf16>
    %160 = tpu.concatenate %157, %158, %159 in 2 : vector<16x16x64xbf16>, vector<16x16x64xbf16>, vector<16x16x64xbf16> -> vector<16x16x192xbf16>
    %c0_185 = arith.constant 0 : index
    %c0_186 = arith.constant 0 : index
    %161 = vector.load %arg10[%c0_185, %c0_186] : memref<256x8xf32, #tpu.memory_space<vmem>>, vector<256x8xf32>
    %162 = vector.shape_cast %160 : vector<16x16x192xbf16> to vector<256x192xbf16>
    %c1_187 = arith.constant 1 : index
    %c0_188 = arith.constant 0 : index
    %c0_189 = arith.constant 0 : index
    %163 = vector.load %arg6[%c1_187, %c0_188, %c0_189] : memref<3x192x8xbf16, #tpu.memory_space<vmem>>, vector<1x192x8xbf16>
    %164 = vector.shape_cast %163 : vector<1x192x8xbf16> to vector<192x8xbf16>
    %cst_190 = arith.constant dense<0.000000e+00> : vector<256x8xf32>
    %165 = tpu.matmul %162, %164, %cst_190 {dimension_numbers = #tpu.dot_dimension_numbers<[1], [0], [0], [1], [0, 0, 1, 1], [], []>} : vector<256x192xbf16>, vector<192x8xbf16>, vector<256x8xf32> -> vector<256x8xf32>
    %166 = arith.addf %161, %165 : vector<256x8xf32>
    %c0_191 = arith.constant 0 : index
    %c0_192 = arith.constant 0 : index
    %167 = vector.load %arg10[%c0_191, %c0_192] : memref<256x8xf32, #tpu.memory_space<vmem>>, vector<256x8xf32>
    tpu.vector_store %arg10[%c0_191, %c0_192], %166 {strides = array<i32>} : memref<256x8xf32, #tpu.memory_space<vmem>>, vector<256x8xf32>,
    %c2_193 = arith.constant 2 : index
    %c0_194 = arith.constant 0 : index
    %c0_195 = arith.constant 0 : index
    %168 = vector.load %arg12[%c2_193, %c0_194, %c0_195] : memref<18x18x64xbf16, #tpu.memory_space<vmem>>, vector<16x18x64xbf16>
    %169 = vector.extract_strided_slice %168 {offsets = [0, 0, 0], sizes = [16, 16, 64], strides = [1, 1, 1]} : vector<16x18x64xbf16> to vector<16x16x64xbf16>
    %170 = vector.extract_strided_slice %168 {offsets = [0, 1, 0], sizes = [16, 16, 64], strides = [1, 1, 1]} : vector<16x18x64xbf16> to vector<16x16x64xbf16>
    %171 = vector.extract_strided_slice %168 {offsets = [0, 2, 0], sizes = [16, 16, 64], strides = [1, 1, 1]} : vector<16x18x64xbf16> to vector<16x16x64xbf16>
    %172 = tpu.concatenate %169, %170, %171 in 2 : vector<16x16x64xbf16>, vector<16x16x64xbf16>, vector<16x16x64xbf16> -> vector<16x16x192xbf16>
    %c0_196 = arith.constant 0 : index
    %c0_197 = arith.constant 0 : index
    %173 = vector.load %arg10[%c0_196, %c0_197] : memref<256x8xf32, #tpu.memory_space<vmem>>, vector<256x8xf32>
    %174 = vector.shape_cast %172 : vector<16x16x192xbf16> to vector<256x192xbf16>
    %c2_198 = arith.constant 2 : index
    %c0_199 = arith.constant 0 : index
    %c0_200 = arith.constant 0 : index
    %175 = vector.load %arg6[%c2_198, %c0_199, %c0_200] : memref<3x192x8xbf16, #tpu.memory_space<vmem>>, vector<1x192x8xbf16>
    %176 = vector.shape_cast %175 : vector<1x192x8xbf16> to vector<192x8xbf16>
    %cst_201 = arith.constant dense<0.000000e+00> : vector<256x8xf32>
    %177 = tpu.matmul %174, %176, %cst_201 {dimension_numbers = #tpu.dot_dimension_numbers<[1], [0], [0], [1], [0, 0, 1, 1], [], []>} : vector<256x192xbf16>, vector<192x8xbf16>, vector<256x8xf32> -> vector<256x8xf32>
    %178 = arith.addf %173, %177 : vector<256x8xf32>
    %c0_202 = arith.constant 0 : index
    %c0_203 = arith.constant 0 : index
    %179 = vector.load %arg10[%c0_202, %c0_203] : memref<256x8xf32, #tpu.memory_space<vmem>>, vector<256x8xf32>
    tpu.vector_store %arg10[%c0_202, %c0_203], %178 {strides = array<i32>} : memref<256x8xf32, #tpu.memory_space<vmem>>, vector<256x8xf32>,
    %c0_204 = arith.constant 0 : index
    %c0_205 = arith.constant 0 : index
    %180 = vector.load %arg10[%c0_204, %c0_205] : memref<256x8xf32, #tpu.memory_space<vmem>>, vector<256x8xf32>
    %181 = vector.shape_cast %180 : vector<256x8xf32> to vector<16x16x8xf32>
    %c0_206 = arith.constant 0 : index
    %c0_207 = arith.constant 0 : index
    %c0_208 = arith.constant 0 : index
    %c0_209 = arith.constant 0 : index
    %182 = vector.load %arg8[%c0_206, %c0_207, %c0_208, %c0_209] : memref<1x16x16x8xf32, #tpu.memory_space<vmem>>, vector<1x16x16x8xf32>
    %183 = vector.shape_cast %182 : vector<1x16x16x8xf32> to vector<16x16x8xf32>
    %184 = vector.shape_cast %181 : vector<16x16x8xf32> to vector<1x16x16x8xf32>
    tpu.vector_store %arg8[%c0_206, %c0_207, %c0_208, %c0_209], %184 {strides = array<i32>} : memref<1x16x16x8xf32, #tpu.memory_space<vmem>>, vector<1x16x16x8xf32>,
    return
  }
  func.func @transform_0(%arg0: i32) -> (i32, i32, i32, i32) {
    %c0_i32 = arith.constant 0 : i32
    %c0_i32_0 = arith.constant 0 : i32
    %c0_i32_1 = arith.constant 0 : i32
    %c0_i32_2 = arith.constant 0 : i32
    return %arg0, %c0_i32, %c0_i32_0, %c0_i32_1 : i32, i32, i32, i32
  }
  func.func @transform_1(%arg0: i32) -> (i32, i32, i32, i32) {
    %c0_i32 = arith.constant 0 : i32
    %c0_i32_0 = arith.constant 0 : i32
    %c0_i32_1 = arith.constant 0 : i32
    %c0_i32_2 = arith.constant 0 : i32
    %c0_i32_3 = arith.constant 0 : i32
    return %c0_i32, %c0_i32_0, %c0_i32_1, %c0_i32_2 : i32, i32, i32, i32
  }
  func.func @transform_2(%arg0: i32) -> (i32, i32) {
    %c0_i32 = arith.constant 0 : i32
    %c0_i32_0 = arith.constant 0 : i32
    %c0_i32_1 = arith.constant 0 : i32
    return %c0_i32, %c0_i32_0 : i32, i32
  }
  func.func @transform_3(%arg0: i32) -> (i32, i32, i32) {
    %c0_i32 = arith.constant 0 : i32
    %c0_i32_0 = arith.constant 0 : i32
    %c0_i32_1 = arith.constant 0 : i32
    %c0_i32_2 = arith.constant 0 : i32
    return %c0_i32, %c0_i32_0, %c0_i32_1 : i32, i32, i32
  }
  func.func @transform_4(%arg0: i32) -> (i32, i32) {
    %c0_i32 = arith.constant 0 : i32
    %c0_i32_0 = arith.constant 0 : i32
    %c0_i32_1 = arith.constant 0 : i32
    return %c0_i32, %c0_i32_0 : i32, i32
  }
  func.func @transform_5(%arg0: i32) -> (i32, i32, i32) {
    %c0_i32 = arith.constant 0 : i32
    %c0_i32_0 = arith.constant 0 : i32
    %c0_i32_1 = arith.constant 0 : i32
    %c0_i32_2 = arith.constant 0 : i32
    return %c0_i32, %c0_i32_0, %c0_i32_1 : i32, i32, i32
  }
  func.func @transform_6(%arg0: i32) -> (i32, i32) {
    %c0_i32 = arith.constant 0 : i32
    %c0_i32_0 = arith.constant 0 : i32
    %c0_i32_1 = arith.constant 0 : i32
    return %c0_i32, %c0_i32_0 : i32, i32
  }
  func.func @transform_7(%arg0: i32) -> (i32, i32, i32, i32) {
    %c0_i32 = arith.constant 0 : i32
    %c0_i32_0 = arith.constant 0 : i32
    %c0_i32_1 = arith.constant 0 : i32
    %c0_i32_2 = arith.constant 0 : i32
    return %arg0, %c0_i32, %c0_i32_0, %c0_i32_1 : i32, i32, i32, i32
  }
}

</mosaic_0001>

<llo_original>
// kernel: hiding_network.1
$region0: #{hiding_network.1}
  #allocation0 [shape = 'u32[]', space=smem, size = 0x4, offset = 0x4, fixed_abs, tag = 'smem constant byte address 0x4 - core index']
  #allocation1 [shape = 'u32[144,128]{1,0:T(1,128)}', space=vmem, size = 0x12000, scoped, tag = 'internal scratch']
  #allocation2 [shape = 'f32[256,64]{1,0:T(8,128)}', space=vmem, size = 0x20000, scoped, tag = 'scratch operand']
  #allocation3 [shape = 'f32[256,8]{1,0:T(8,128)}', space=vmem, size = 0x20000, scoped, tag = 'scratch operand']
  #allocation4 [shape = 'bf16[18,18,64]{2,1,0:T(8,128)(2,1)}', space=vmem, size = 0x1b000, scoped, tag = 'scratch operand']
  #allocation5 [shape = 'bf16[18,18,64]{2,1,0:T(8,128)(2,1)}', space=vmem, size = 0x1b000, scoped, tag = 'scratch operand']
  %s0 = inlined_call_operand.vmem [shape: bf16[2,18,18,8], index: 0, kind: input, shape index: {}]
  %s1 = inlined_call_operand.vmem [shape: bf16[3,3,8,64], index: 1, kind: input, shape index: {}]
  %s2 = inlined_call_operand.vmem [shape: f32[1,64], index: 2, kind: input, shape index: {}]
  %s3 = inlined_call_operand.vmem [shape: bf16[3,192,64], index: 3, kind: input, shape index: {}]
  %s4 = inlined_call_operand.vmem [shape: f32[1,64], index: 4, kind: input, shape index: {}]
  %s5 = inlined_call_operand.vmem [shape: bf16[3,192,8], index: 5, kind: input, shape index: {}]
  %s6 = inlined_call_operand.vmem [shape: f32[1,8], index: 6, kind: input, shape index: {}]
  %s7 = inlined_call_operand.vmem [shape: f32[2,16,16,8], index: 7, kind: output, shape index: {}]
  %s8 = sld [smem:[#allocation0]]
  $region65: #{hiding_network.1} parent=0
    _
  %s10 = ssub.s32 1, %s8
  %s11 = scalar_select 0, %s10, %s8
  loop: start=0, step=1, limit=4
  $region2: #{hiding_network.1} parent=0 // loop_pre_header
    _
  $region3: #{hiding_network.1} parent=0 // loop_header
    %s13 = sphi 0, %s17
    %p14 = scmp.ge.s32.totalorder %s13, 4
    %s23 = sphi 0, %s25
    %s26 = sphi 0, %s23
    %s27 = sphi 0, %s26
    %s43 = sphi 0, %s27
    %s47 = sphi 0, %s47
    %s49 = sphi 0, %s47
    %s50 = sphi 0, %s49
    %s64 = sphi 0, %s50
    %s68 = sphi 0, %s68
    %s70 = sphi 0, %s68
    %s71 = sphi 0, %s70
    %s85 = sphi 0, %s71
    %s89 = sphi 0, %s89
    %s91 = sphi 0, %s89
    %s92 = sphi 0, %s91
    %s106 = sphi 0, %s92
    %s110 = sphi 0, %s110
    %s112 = sphi 0, %s110
    %s113 = sphi 0, %s112
    %s127 = sphi 0, %s113
    %s131 = sphi 0, %s131
    %s133 = sphi 0, %s131
    %s134 = sphi 0, %s133
    %s148 = sphi 0, %s134
    %s152 = sphi 0, %s152
    %s154 = sphi 0, %s152
    %s155 = sphi 0, %s154
    %s169 = sphi 0, %s155
    %s175 = sphi 0, %s177
    %s178 = sphi 0, %s175
    %s179 = sphi 0, %s178
    %s195 = sphi 0, %s179
  $region4: #{hiding_network.1} parent=0 // loop_header_branch
    %16 = sbr.rel (%p14) target = $region8
  $region5: #{hiding_network.1} parent=0 // loop_body
    %s18 = ssub.s32 %s13, 1
    %s19 = ssub.s32 %s13, 2
    %s20 = sadd.s32 %s13, 1
    %s21 = ssub.s32 %s13, %s20
    %p22 = scmp.eq.s32.totalorder %s21, 0
    %s24 = sadd.s32 %s23, 1
    %s25 = scalar_select %p22, %s23, %s24
    %p28 = pneg %p22
    %p29 = scmp.eq.s32.totalorder %s13, 1
    %p30 = por %p28, %p29
    %p31 = scmp.ne.s32.totalorder %s23, %s26
    %p32 = scmp.eq.s32.totalorder %s13, 0
    %p33 = por %p31, %p32
    %p34 = scmp.ne.s32.totalorder %s23, %s26
    %p35 = scmp.eq.s32.totalorder %s18, 1
    %p36 = por %p34, %p35
    %p37 = scmp.ne.s32.totalorder %s26, %s27
    %p38 = scmp.eq.s32.totalorder %s18, 0
    %p39 = por %p37, %p38
    %p40 = scmp.ne.s32.totalorder %s26, %s27
    %p41 = scmp.eq.s32.totalorder %s19, 1
    %p42 = por %p40, %p41
    %p44 = scmp.ne.s32.totalorder %s27, %s43
    %p45 = scmp.eq.s32.totalorder %s19, 0
    %p46 = por %p44, %p45
    %s48 = sadd.s32 %s47, 1
    %p51 = scmp.eq.s32.totalorder %s13, 1
    %p52 = scmp.ne.s32.totalorder %s47, %s49
    %p53 = scmp.eq.s32.totalorder %s13, 0
    %p54 = por %p52, %p53
    %p55 = scmp.ne.s32.totalorder %s47, %s49
    %p56 = scmp.eq.s32.totalorder %s18, 1
    %p57 = por %p55, %p56
    %p58 = scmp.ne.s32.totalorder %s49, %s50
    %p59 = scmp.eq.s32.totalorder %s18, 0
    %p60 = por %p58, %p59
    %p61 = scmp.ne.s32.totalorder %s49, %s50
    %p62 = scmp.eq.s32.totalorder %s19, 1
    %p63 = por %p61, %p62
    %p65 = scmp.ne.s32.totalorder %s50, %s64
    %p66 = scmp.eq.s32.totalorder %s19, 0
    %p67 = por %p65, %p66
    %s69 = sadd.s32 %s68, 1
    %p72 = scmp.eq.s32.totalorder %s13, 1
    %p73 = scmp.ne.s32.totalorder %s68, %s70
    %p74 = scmp.eq.s32.totalorder %s13, 0
    %p75 = por %p73, %p74
    %p76 = scmp.ne.s32.totalorder %s68, %s70
    %p77 = scmp.eq.s32.totalorder %s18, 1
    %p78 = por %p76, %p77
    %p79 = scmp.ne.s32.totalorder %s70, %s71
    %p80 = scmp.eq.s32.totalorder %s18, 0
    %p81 = por %p79, %p80
    %p82 = scmp.ne.s32.totalorder %s70, %s71
    %p83 = scmp.eq.s32.totalorder %s19, 1
    %p84 = por %p82, %p83
    %p86 = scmp.ne.s32.totalorder %s71, %s85
    %p87 = scmp.eq.s32.totalorder %s19, 0
    %p88 = por %p86, %p87
    %s90 = sadd.s32 %s89, 1
    %p93 = scmp.eq.s32.totalorder %s13, 1
    %p94 = scmp.ne.s32.totalorder %s89, %s91
    %p95 = scmp.eq.s32.totalorder %s13, 0
    %p96 = por %p94, %p95
    %p97 = scmp.ne.s32.totalorder %s89, %s91
    %p98 = scmp.eq.s32.totalorder %s18, 1
    %p99 = por %p97, %p98
    %p100 = scmp.ne.s32.totalorder %s91, %s92
    %p101 = scmp.eq.s32.totalorder %s18, 0
    %p102 = por %p100, %p101
    %p103 = scmp.ne.s32.totalorder %s91, %s92
    %p104 = scmp.eq.s32.totalorder %s19, 1
    %p105 = por %p103, %p104
    %p107 = scmp.ne.s32.totalorder %s92, %s106
    %p108 = scmp.eq.s32.totalorder %s19, 0
    %p109 = por %p107, %p108
    %s111 = sadd.s32 %s110, 1
    %p114 = scmp.eq.s32.totalorder %s13, 1
    %p115 = scmp.ne.s32.totalorder %s110, %s112
    %p116 = scmp.eq.s32.totalorder %s13, 0
    %p117 = por %p115, %p116
    %p118 = scmp.ne.s32.totalorder %s110, %s112
    %p119 = scmp.eq.s32.totalorder %s18, 1
    %p120 = por %p118, %p119
    %p121 = scmp.ne.s32.totalorder %s112, %s113
    %p122 = scmp.eq.s32.totalorder %s18, 0
    %p123 = por %p121, %p122
    %p124 = scmp.ne.s32.totalorder %s112, %s113
    %p125 = scmp.eq.s32.totalorder %s19, 1
    %p126 = por %p124, %p125
    %p128 = scmp.ne.s32.totalorder %s113, %s127
    %p129 = scmp.eq.s32.totalorder %s19, 0
    %p130 = por %p128, %p129
    %s132 = sadd.s32 %s131, 1
    %p135 = scmp.eq.s32.totalorder %s13, 1
    %p136 = scmp.ne.s32.totalorder %s131, %s133
    %p137 = scmp.eq.s32.totalorder %s13, 0
    %p138 = por %p136, %p137
    %p139 = scmp.ne.s32.totalorder %s131, %s133
    %p140 = scmp.eq.s32.totalorder %s18, 1
    %p141 = por %p139, %p140
    %p142 = scmp.ne.s32.totalorder %s133, %s134
    %p143 = scmp.eq.s32.totalorder %s18, 0
    %p144 = por %p142, %p143
    %p145 = scmp.ne.s32.totalorder %s133, %s134
    %p146 = scmp.eq.s32.totalorder %s19, 1
    %p147 = por %p145, %p146
    %p149 = scmp.ne.s32.totalorder %s134, %s148
    %p150 = scmp.eq.s32.totalorder %s19, 0
    %p151 = por %p149, %p150
    %s153 = sadd.s32 %s152, 1
    %p156 = scmp.eq.s32.totalorder %s13, 1
    %p157 = scmp.ne.s32.totalorder %s152, %s154
    %p158 = scmp.eq.s32.totalorder %s13, 0
    %p159 = por %p157, %p158
    %p160 = scmp.ne.s32.totalorder %s152, %s154
    %p161 = scmp.eq.s32.totalorder %s18, 1
    %p162 = por %p160, %p161
    %p163 = scmp.ne.s32.totalorder %s154, %s155
    %p164 = scmp.eq.s32.totalorder %s18, 0
    %p165 = por %p163, %p164
    %p166 = scmp.ne.s32.totalorder %s154, %s155
    %p167 = scmp.eq.s32.totalorder %s19, 1
    %p168 = por %p166, %p167
    %p170 = scmp.ne.s32.totalorder %s155, %s169
    %p171 = scmp.eq.s32.totalorder %s19, 0
    %p172 = por %p170, %p171
    %s173 = ssub.s32 %s13, %s20
    %p174 = scmp.eq.s32.totalorder %s173, 0
    %s176 = sadd.s32 %s175, 1
    %s177 = scalar_select %p174, %s175, %s176
    %p180 = pneg %p174
    %p181 = scmp.eq.s32.totalorder %s13, 1
    %p182 = por %p180, %p181
    %p183 = scmp.ne.s32.totalorder %s175, %s178
    %p184 = scmp.eq.s32.totalorder %s13, 0
    %p185 = por %p183, %p184
    %p186 = scmp.ne.s32.totalorder %s175, %s178
    %p187 = scmp.eq.s32.totalorder %s18, 1
    %p188 = por %p186, %p187
    %p189 = scmp.ne.s32.totalorder %s178, %s179
    %p190 = scmp.eq.s32.totalorder %s18, 0
    %p191 = por %p189, %p190
    %p192 = scmp.ne.s32.totalorder %s178, %s179
    %p193 = scmp.eq.s32.totalorder %s19, 1
    %p194 = por %p192, %p193
    %p196 = scmp.ne.s32.totalorder %s179, %s195
    %p197 = scmp.eq.s32.totalorder %s19, 0
    %p198 = por %p196, %p197
    %p199 = scmp.le.s32.totalorder 1, %s13
    %p200 = scmp.lt.s32.totalorder %s13, 3
    %p201 = pnand %p199, %p200
    %p202 = pneg %p201
    // Predicated region
    $region9: #{hiding_network.1} parent=5 // pred_check
      _
    $region10: #{hiding_network.1} parent=5 // pred_check_branch
      %204 = sbr.rel (%p201) target = $region12
    $region11: #{hiding_network.1} parent=5 // pred_region
      %s205 = ssub.s32 %s13, 1
      // Predicated region
      $region13: #{hiding_network.1} parent=11 // pred_check
        %p206 = pneg %p60
      $region14: #{hiding_network.1} parent=11 // pred_check_branch
        %208 = sbr.rel (%p206) target = $region16
      $region15: #{hiding_network.1} parent=11 // pred_region
        _
      $region16: #{hiding_network.1} parent=11 // pred_fallthru
        _
      // Predicated region
      $region17: #{hiding_network.1} parent=11 // pred_check
        %p209 = pneg %p81
      $region18: #{hiding_network.1} parent=11 // pred_check_branch
        %211 = sbr.rel (%p209) target = $region20
      $region19: #{hiding_network.1} parent=11 // pred_region
        _
      $region20: #{hiding_network.1} parent=11 // pred_fallthru
        _
      // Predicated region
      $region21: #{hiding_network.1} parent=11 // pred_check
        %p212 = pneg %p102
      $region22: #{hiding_network.1} parent=11 // pred_check_branch
        %214 = sbr.rel (%p212) target = $region24
      $region23: #{hiding_network.1} parent=11 // pred_region
        _
      $region24: #{hiding_network.1} parent=11 // pred_fallthru
        _
      // Predicated region
      $region25: #{hiding_network.1} parent=11 // pred_check
        %p215 = pneg %p123
      $region26: #{hiding_network.1} parent=11 // pred_check_branch
        %217 = sbr.rel (%p215) target = $region28
      $region27: #{hiding_network.1} parent=11 // pred_region
        _
      $region28: #{hiding_network.1} parent=11 // pred_fallthru
        _
      // Predicated region
      $region29: #{hiding_network.1} parent=11 // pred_check
        %p218 = pneg %p144
      $region30: #{hiding_network.1} parent=11 // pred_check_branch
        %220 = sbr.rel (%p218) target = $region32
      $region31: #{hiding_network.1} parent=11 // pred_region
        _
      $region32: #{hiding_network.1} parent=11 // pred_fallthru
        _
      // Predicated region
      $region33: #{hiding_network.1} parent=11 // pred_check
        %p221 = pneg %p165
      $region34: #{hiding_network.1} parent=11 // pred_check_branch
        %223 = sbr.rel (%p221) target = $region36
      $region35: #{hiding_network.1} parent=11 // pred_region
        _
      $region36: #{hiding_network.1} parent=11 // pred_fallthru
        _
    $region12: #{hiding_network.1} parent=5 // pred_fallthru
      _
    %p224 = scmp.lt.s32.totalorder %s13, 2
    // Predicated region
    $region37: #{hiding_network.1} parent=5 // pred_check
      %p225 = pneg %p224
    $region38: #{hiding_network.1} parent=5 // pred_check_branch
      %227 = sbr.rel (%p225) target = $region40
    $region39: #{hiding_network.1} parent=5 // pred_region
      // Predicated region
      $region41: #{hiding_network.1} parent=39 // pred_check
        %p228 = pneg %p33
      $region42: #{hiding_network.1} parent=39 // pred_check_branch
        %230 = sbr.rel (%p228) target = $region44
      $region43: #{hiding_network.1} parent=39 // pred_region
        %p231 = scmp.lt.s32.totalorder %s13, 1
        %s232 = scalar_select %p231, %s13, 1
        %s233 = smul.addr %s232, 54
        %s234 = smul.addr %s233, 4
        %s235 = scalar_lea.vmem %s0, %s234
      $region44: #{hiding_network.1} parent=39 // pred_fallthru
        _
    $region40: #{hiding_network.1} parent=5 // pred_fallthru
      _
    %p236 = scmp.le.s32.totalorder 1, %s13
    %p237 = scmp.lt.s32.totalorder %s13, 3
    %p238 = pnand %p236, %p237
    %p239 = pneg %p238
    // Predicated region
    $region45: #{hiding_network.1} parent=5 // pred_check
      _
    $region46: #{hiding_network.1} parent=5 // pred_check_branch
      %241 = sbr.rel (%p238) target = $region48
    $region47: #{hiding_network.1} parent=5 // pred_region
      %s242 = ssub.s32 %s13, 1
      %p243 = scmp.lt.s32.totalorder %s18, 1
      %s244 = scalar_select %p243, %s18, 1
      %s245 = smul.addr %s244, 54
      %s246 = smul.addr %s245, 4
      %s247 = scalar_lea.vmem %s0, %s246
      %p248 = pneg %p39
      %p249 = pneg %p36
      %p250 = pneg %p60
      %p251 = pneg %p57
      %p252 = pneg %p81
      %p253 = pneg %p78
      %p254 = pneg %p102
      %p255 = pneg %p99
      %p256 = pneg %p123
      %p257 = pneg %p120
      %p258 = pneg %p144
      %p259 = pneg %p141
      %p260 = pneg %p165
      %p261 = pneg %p162
      %p262 = pneg %p191
      %p263 = pneg %p188
      %p264 = scmp.lt.s32.totalorder %s18, 1
      %s265 = scalar_select %p264, %s18, 1
      %s266 = smul.addr %s265, 32
      %s267 = smul.addr %s266, 8
      %s268 = scalar_lea.vmem %s7, %s267
      %p269 = scmp.lt.s32.totalorder %s18, 1
      %s270 = scalar_select %p269, %s18, 1
      %s271 = smul.addr %s270, 54
      %s272 = smul.addr %s271, 4
      %s273 = scalar_lea.vmem %s0, %s272
      %p274 = scmp.lt.s32.totalorder %s18, 1
      %s275 = scalar_select %p274, %s18, 1
      %s276 = smul.addr %s275, 32
      %s277 = smul.addr %s276, 8
      %s278 = scalar_lea.vmem %s7, %s277
      %p280 = scmp.eq.s32.totalorder %s18, 0
      // Predicated region
      $region49: #{hiding_network.1} parent=47 // pred_check
        %p281 = pneg %p280
      $region50: #{hiding_network.1} parent=47 // pred_check_branch
        %283 = sbr.rel (%p281) target = $region52
      $region51: #{hiding_network.1} parent=47 // pred_region
        %vm284 = vcmask 519168
        %285 = vst.msk [vmem:[#allocation4] sm:$0xf] %vm284, 0
        %286 = vst.msk [vmem:[#allocation4 + $0x4] sm:$0xf] %vm284, 0
        %vm287 = vcmask 516096
        %288 = vst.msk [vmem:[#allocation4 + $0x8] sm:$0x1] %vm287, 0
        %289 = vst.msk [vmem:[#allocation4 + $0xc] sm:$0xf] %vm284, 0
        %290 = vst.msk [vmem:[#allocation4 + $0x10] sm:$0xf] %vm284, 0
        %291 = vst.msk [vmem:[#allocation4 + $0x14] sm:$0x1] %vm287, 0
        %292 = vst.msk [vmem:[#allocation4 + $0x18] sm:$0xf] %vm284, 0
        %293 = vst.msk [vmem:[#allocation4 + $0x1c] sm:$0xf] %vm284, 0
        %294 = vst.msk [vmem:[#allocation4 + $0x20] sm:$0x1] %vm287, 0
        %295 = vst.msk [vmem:[#allocation4 + $0x24] sm:$0xf] %vm284, 0
        %296 = vst.msk [vmem:[#allocation4 + $0x28] sm:$0xf] %vm284, 0
        %297 = vst.msk [vmem:[#allocation4 + $0x2c] sm:$0x1] %vm287, 0
        %298 = vst.msk [vmem:[#allocation4 + $0x30] sm:$0xf] %vm284, 0
        %299 = vst.msk [vmem:[#allocation4 + $0x34] sm:$0xf] %vm284, 0
        %300 = vst.msk [vmem:[#allocation4 + $0x38] sm:$0x1] %vm287, 0
        %301 = vst.msk [vmem:[#allocation4 + $0x3c] sm:$0xf] %vm284, 0
        %302 = vst.msk [vmem:[#allocation4 + $0x40] sm:$0xf] %vm284, 0
        %303 = vst.msk [vmem:[#allocation4 + $0x44] sm:$0x1] %vm287, 0
        %304 = vst.msk [vmem:[#allocation4 + $0x48] sm:$0xf] %vm284, 0
        %305 = vst.msk [vmem:[#allocation4 + $0x4c] sm:$0xf] %vm284, 0
        %306 = vst.msk [vmem:[#allocation4 + $0x50] sm:$0x1] %vm287, 0
        %307 = vst.msk [vmem:[#allocation4 + $0x54] sm:$0xf] %vm284, 0
        %308 = vst.msk [vmem:[#allocation4 + $0x58] sm:$0xf] %vm284, 0
        %309 = vst.msk [vmem:[#allocation4 + $0x5c] sm:$0x1] %vm287, 0
        %310 = vst.msk [vmem:[#allocation4 + $0x60] sm:$0xf] %vm284, 0
        %311 = vst.msk [vmem:[#allocation4 + $0x64] sm:$0xf] %vm284, 0
        %312 = vst.msk [vmem:[#allocation4 + $0x68] sm:$0x1] %vm287, 0
        %313 = vst.msk [vmem:[#allocation4 + $0x6c] sm:$0xf] %vm284, 0
        %314 = vst.msk [vmem:[#allocation4 + $0x70] sm:$0xf] %vm284, 0
        %315 = vst.msk [vmem:[#allocation4 + $0x74] sm:$0x1] %vm287, 0
        %316 = vst.msk [vmem:[#allocation4 + $0x78] sm:$0xf] %vm284, 0
        %317 = vst.msk [vmem:[#allocation4 + $0x7c] sm:$0xf] %vm284, 0
        %318 = vst.msk [vmem:[#allocation4 + $0x80] sm:$0x1] %vm287, 0
        %319 = vst.msk [vmem:[#allocation4 + $0x84] sm:$0xf] %vm284, 0
        %320 = vst.msk [vmem:[#allocation4 + $0x88] sm:$0xf] %vm284, 0
        %321 = vst.msk [vmem:[#allocation4 + $0x8c] sm:$0x1] %vm287, 0
        %322 = vst.msk [vmem:[#allocation4 + $0x90] sm:$0xf] %vm284, 0
        %323 = vst.msk [vmem:[#allocation4 + $0x94] sm:$0xf] %vm284, 0
        %324 = vst.msk [vmem:[#allocation4 + $0x98] sm:$0x1] %vm287, 0
        %325 = vst.msk [vmem:[#allocation4 + $0x9c] sm:$0xf] %vm284, 0
        %326 = vst.msk [vmem:[#allocation4 + $0xa0] sm:$0xf] %vm284, 0
        %327 = vst.msk [vmem:[#allocation4 + $0xa4] sm:$0x1] %vm287, 0
        %328 = vst.msk [vmem:[#allocation4 + $0xa8] sm:$0xf] %vm284, 0
        %329 = vst.msk [vmem:[#allocation4 + $0xac] sm:$0xf] %vm284, 0
        %330 = vst.msk [vmem:[#allocation4 + $0xb0] sm:$0x1] %vm287, 0
        %331 = vst.msk [vmem:[#allocation4 + $0xb4] sm:$0xf] %vm284, 0
        %332 = vst.msk [vmem:[#allocation4 + $0xb8] sm:$0xf] %vm284, 0
        %333 = vst.msk [vmem:[#allocation4 + $0xbc] sm:$0x1] %vm287, 0
        %334 = vst.msk [vmem:[#allocation4 + $0xc0] sm:$0xf] %vm284, 0
        %335 = vst.msk [vmem:[#allocation4 + $0xc4] sm:$0xf] %vm284, 0
        %336 = vst.msk [vmem:[#allocation4 + $0xc8] sm:$0x1] %vm287, 0
        %337 = vst.msk [vmem:[#allocation4 + $0xcc] sm:$0xf] %vm284, 0
        %338 = vst.msk [vmem:[#allocation4 + $0xd0] sm:$0xf] %vm284, 0
        %339 = vst.msk [vmem:[#allocation4 + $0xd4] sm:$0x1] %vm287, 0
        %340 = vst.msk [vmem:[#allocation5] sm:$0xf] %vm284, 0
        %341 = vst.msk [vmem:[#allocation5 + $0x4] sm:$0xf] %vm284, 0
        %342 = vst.msk [vmem:[#allocation5 + $0x8] sm:$0x1] %vm287, 0
        %343 = vst.msk [vmem:[#allocation5 + $0xc] sm:$0xf] %vm284, 0
        %344 = vst.msk [vmem:[#allocation5 + $0x10] sm:$0xf] %vm284, 0
        %345 = vst.msk [vmem:[#allocation5 + $0x14] sm:$0x1] %vm287, 0
        %346 = vst.msk [vmem:[#allocation5 + $0x18] sm:$0xf] %vm284, 0
        %347 = vst.msk [vmem:[#allocation5 + $0x1c] sm:$0xf] %vm284, 0
        %348 = vst.msk [vmem:[#allocation5 + $0x20] sm:$0x1] %vm287, 0
        %349 = vst.msk [vmem:[#allocation5 + $0x24] sm:$0xf] %vm284, 0
        %350 = vst.msk [vmem:[#allocation5 + $0x28] sm:$0xf] %vm284, 0
        %351 = vst.msk [vmem:[#allocation5 + $0x2c] sm:$0x1] %vm287, 0
        %352 = vst.msk [vmem:[#allocation5 + $0x30] sm:$0xf] %vm284, 0
        %353 = vst.msk [vmem:[#allocation5 + $0x34] sm:$0xf] %vm284, 0
        %354 = vst.msk [vmem:[#allocation5 + $0x38] sm:$0x1] %vm287, 0
        %355 = vst.msk [vmem:[#allocation5 + $0x3c] sm:$0xf] %vm284, 0
        %356 = vst.msk [vmem:[#allocation5 + $0x40] sm:$0xf] %vm284, 0
        %357 = vst.msk [vmem:[#allocation5 + $0x44] sm:$0x1] %vm287, 0
        %358 = vst.msk [vmem:[#allocation5 + $0x48] sm:$0xf] %vm284, 0
        %359 = vst.msk [vmem:[#allocation5 + $0x4c] sm:$0xf] %vm284, 0
        %360 = vst.msk [vmem:[#allocation5 + $0x50] sm:$0x1] %vm287, 0
        %361 = vst.msk [vmem:[#allocation5 + $0x54] sm:$0xf] %vm284, 0
        %362 = vst.msk [vmem:[#allocation5 + $0x58] sm:$0xf] %vm284, 0
        %363 = vst.msk [vmem:[#allocation5 + $0x5c] sm:$0x1] %vm287, 0
        %364 = vst.msk [vmem:[#allocation5 + $0x60] sm:$0xf] %vm284, 0
        %365 = vst.msk [vmem:[#allocation5 + $0x64] sm:$0xf] %vm284, 0
        %366 = vst.msk [vmem:[#allocation5 + $0x68] sm:$0x1] %vm287, 0
        %367 = vst.msk [vmem:[#allocation5 + $0x6c] sm:$0xf] %vm284, 0
        %368 = vst.msk [vmem:[#allocation5 + $0x70] sm:$0xf] %vm284, 0
        %369 = vst.msk [vmem:[#allocation5 + $0x74] sm:$0x1] %vm287, 0
        %370 = vst.msk [vmem:[#allocation5 + $0x78] sm:$0xf] %vm284, 0
        %371 = vst.msk [vmem:[#allocation5 + $0x7c] sm:$0xf] %vm284, 0
        %372 = vst.msk [vmem:[#allocation5 + $0x80] sm:$0x1] %vm287, 0
        %373 = vst.msk [vmem:[#allocation5 + $0x84] sm:$0xf] %vm284, 0
        %374 = vst.msk [vmem:[#allocation5 + $0x88] sm:$0xf] %vm284, 0
        %375 = vst.msk [vmem:[#allocation5 + $0x8c] sm:$0x1] %vm287, 0
        %376 = vst.msk [vmem:[#allocation5 + $0x90] sm:$0xf] %vm284, 0
        %377 = vst.msk [vmem:[#allocation5 + $0x94] sm:$0xf] %vm284, 0
        %378 = vst.msk [vmem:[#allocation5 + $0x98] sm:$0x1] %vm287, 0
        %379 = vst.msk [vmem:[#allocation5 + $0x9c] sm:$0xf] %vm284, 0
        %380 = vst.msk [vmem:[#allocation5 + $0xa0] sm:$0xf] %vm284, 0
        %381 = vst.msk [vmem:[#allocation5 + $0xa4] sm:$0x1] %vm287, 0
        %382 = vst.msk [vmem:[#allocation5 + $0xa8] sm:$0xf] %vm284, 0
        %383 = vst.msk [vmem:[#allocation5 + $0xac] sm:$0xf] %vm284, 0
        %384 = vst.msk [vmem:[#allocation5 + $0xb0] sm:$0x1] %vm287, 0
        %385 = vst.msk [vmem:[#allocation5 + $0xb4] sm:$0xf] %vm284, 0
        %386 = vst.msk [vmem:[#allocation5 + $0xb8] sm:$0xf] %vm284, 0
        %387 = vst.msk [vmem:[#allocation5 + $0xbc] sm:$0x1] %vm287, 0
        %388 = vst.msk [vmem:[#allocation5 + $0xc0] sm:$0xf] %vm284, 0
        %389 = vst.msk [vmem:[#allocation5 + $0xc4] sm:$0xf] %vm284, 0
        %390 = vst.msk [vmem:[#allocation5 + $0xc8] sm:$0x1] %vm287, 0
        %391 = vst.msk [vmem:[#allocation5 + $0xcc] sm:$0xf] %vm284, 0
        %392 = vst.msk [vmem:[#allocation5 + $0xd0] sm:$0xf] %vm284, 0
        %393 = vst.msk [vmem:[#allocation5 + $0xd4] sm:$0x1] %vm287, 0
      $region52: #{hiding_network.1} parent=47 // pred_fallthru
        _
      %v394 = vld [vmem:[%s2] sm:$0x1]
      %v396 = vlaneseq
      %v397 = vshrl.u32 %v396, 7
      %v398 = vsub.s32 0, %v397
      %v399 = vrot.slane %v394, %v398
      %vm401 = vcmask 523264
      %402 = vst.msk [vmem:[#allocation2] sm:$0xff] %vm401, %v399
      %403 = vst.msk [vmem:[#allocation2 + $0x8] sm:$0xff] %vm401, %v399
      %404 = vst.msk [vmem:[#allocation2 + $0x10] sm:$0xff] %vm401, %v399
      %405 = vst.msk [vmem:[#allocation2 + $0x18] sm:$0xff] %vm401, %v399
      %406 = vst.msk [vmem:[#allocation2 + $0x20] sm:$0xff] %vm401, %v399
      %407 = vst.msk [vmem:[#allocation2 + $0x28] sm:$0xff] %vm401, %v399
      %408 = vst.msk [vmem:[#allocation2 + $0x30] sm:$0xff] %vm401, %v399
      %409 = vst.msk [vmem:[#allocation2 + $0x38] sm:$0xff] %vm401, %v399
      %410 = vst.msk [vmem:[#allocation2 + $0x40] sm:$0xff] %vm401, %v399
      %411 = vst.msk [vmem:[#allocation2 + $0x48] sm:$0xff] %vm401, %v399
      %412 = vst.msk [vmem:[#allocation2 + $0x50] sm:$0xff] %vm401, %v399
      %413 = vst.msk [vmem:[#allocation2 + $0x58] sm:$0xff] %vm401, %v399
      %414 = vst.msk [vmem:[#allocation2 + $0x60] sm:$0xff] %vm401, %v399
      %415 = vst.msk [vmem:[#allocation2 + $0x68] sm:$0xff] %vm401, %v399
      %416 = vst.msk [vmem:[#allocation2 + $0x70] sm:$0xff] %vm401, %v399
      %417 = vst.msk [vmem:[#allocation2 + $0x78] sm:$0xff] %vm401, %v399
      %418 = vst.msk [vmem:[#allocation2 + $0x80] sm:$0xff] %vm401, %v399
      %419 = vst.msk [vmem:[#allocation2 + $0x88] sm:$0xff] %vm401, %v399
      %420 = vst.msk [vmem:[#allocation2 + $0x90] sm:$0xff] %vm401, %v399
      %421 = vst.msk [vmem:[#allocation2 + $0x98] sm:$0xff] %vm401, %v399
      %422 = vst.msk [vmem:[#allocation2 + $0xa0] sm:$0xff] %vm401, %v399
      %423 = vst.msk [vmem:[#allocation2 + $0xa8] sm:$0xff] %vm401, %v399
      %424 = vst.msk [vmem:[#allocation2 + $0xb0] sm:$0xff] %vm401, %v399
      %425 = vst.msk [vmem:[#allocation2 + $0xb8] sm:$0xff] %vm401, %v399
      %426 = vst.msk [vmem:[#allocation2 + $0xc0] sm:$0xff] %vm401, %v399
      %427 = vst.msk [vmem:[#allocation2 + $0xc8] sm:$0xff] %vm401, %v399
      %428 = vst.msk [vmem:[#allocation2 + $0xd0] sm:$0xff] %vm401, %v399
      %429 = vst.msk [vmem:[#allocation2 + $0xd8] sm:$0xff] %vm401, %v399
      %430 = vst.msk [vmem:[#allocation2 + $0xe0] sm:$0xff] %vm401, %v399
      %431 = vst.msk [vmem:[#allocation2 + $0xe8] sm:$0xff] %vm401, %v399
      %432 = vst.msk [vmem:[#allocation2 + $0xf0] sm:$0xff] %vm401, %v399
      %433 = vst.msk [vmem:[#allocation2 + $0xf8] sm:$0xff] %vm401, %v399
      %v434 = vld [vmem:[%s273] sm:$0xf]
      %v435 = vld [vmem:[%s273 + $0x4] sm:$0xf]
      %v436 = vld [vmem:[%s273 + $0xc] sm:$0xf]
      %v437 = vld [vmem:[%s273 + $0x10] sm:$0xf]
      %v438 = vld [vmem:[%s273 + $0x18] sm:$0xf]
      %v439 = vld [vmem:[%s273 + $0x1c] sm:$0xf]
      %v440 = vld [vmem:[%s273 + $0x24] sm:$0xf]
      %v441 = vld [vmem:[%s273 + $0x28] sm:$0xf]
      %v442 = vld [vmem:[%s273 + $0x30] sm:$0xf]
      %v443 = vld [vmem:[%s273 + $0x34] sm:$0xf]
      %v444 = vld [vmem:[%s273 + $0x3c] sm:$0xf]
      %v445 = vld [vmem:[%s273 + $0x40] sm:$0xf]
      %v446 = vld [vmem:[%s273 + $0x48] sm:$0xf]
      %v447 = vld [vmem:[%s273 + $0x4c] sm:$0xf]
      %v448 = vld [vmem:[%s273 + $0x54] sm:$0xf]
      %v449 = vld [vmem:[%s273 + $0x58] sm:$0xf]
      %v450 = vld [vmem:[%s273 + $0x60] sm:$0xf]
      %v451 = vld [vmem:[%s273 + $0x64] sm:$0xf]
      %v452 = vld [vmem:[%s273 + $0x6c] sm:$0xf]
      %v453 = vld [vmem:[%s273 + $0x70] sm:$0xf]
      %v454 = vld [vmem:[%s273 + $0x78] sm:$0xf]
      %v455 = vld [vmem:[%s273 + $0x7c] sm:$0xf]
      %v456 = vld [vmem:[%s273 + $0x84] sm:$0xf]
      %v457 = vld [vmem:[%s273 + $0x88] sm:$0xf]
      %v458 = vld [vmem:[%s273 + $0x90] sm:$0xf]
      %v459 = vld [vmem:[%s273 + $0x94] sm:$0xf]
      %v460 = vld [vmem:[%s273 + $0x9c] sm:$0xf]
      %v461 = vld [vmem:[%s273 + $0xa0] sm:$0xf]
      %v462 = vld [vmem:[%s273 + $0xa8] sm:$0xf]
      %v463 = vld [vmem:[%s273 + $0xac] sm:$0xf]
      %v464 = vld [vmem:[%s273 + $0xb4] sm:$0xf]
      %v465 = vld [vmem:[%s273 + $0xb8] sm:$0xf]
      %v466 = vld [vmem:[#allocation2] sm:$0xff]
      %v467 = vld [vmem:[#allocation2 + $0x8] sm:$0xff]
      %v468 = vld [vmem:[#allocation2 + $0x10] sm:$0xff]
      %v469 = vld [vmem:[#allocation2 + $0x18] sm:$0xff]
      %v470 = vld [vmem:[#allocation2 + $0x20] sm:$0xff]
      %v471 = vld [vmem:[#allocation2 + $0x28] sm:$0xff]
      %v472 = vld [vmem:[#allocation2 + $0x30] sm:$0xff]
      %v473 = vld [vmem:[#allocation2 + $0x38] sm:$0xff]
      %v474 = vld [vmem:[#allocation2 + $0x40] sm:$0xff]
      %v475 = vld [vmem:[#allocation2 + $0x48] sm:$0xff]
      %v476 = vld [vmem:[#allocation2 + $0x50] sm:$0xff]
      %v477 = vld [vmem:[#allocation2 + $0x58] sm:$0xff]
      %v478 = vld [vmem:[#allocation2 + $0x60] sm:$0xff]
      %v479 = vld [vmem:[#allocation2 + $0x68] sm:$0xff]
      %v480 = vld [vmem:[#allocation2 + $0x70] sm:$0xff]
      %v481 = vld [vmem:[#allocation2 + $0x78] sm:$0xff]
      %v482 = vld [vmem:[#allocation2 + $0x80] sm:$0xff]
      %v483 = vld [vmem:[#allocation2 + $0x88] sm:$0xff]
      %v484 = vld [vmem:[#allocation2 + $0x90] sm:$0xff]
      %v485 = vld [vmem:[#allocation2 + $0x98] sm:$0xff]
      %v486 = vld [vmem:[#allocation2 + $0xa0] sm:$0xff]
      %v487 = vld [vmem:[#allocation2 + $0xa8] sm:$0xff]
      %v488 = vld [vmem:[#allocation2 + $0xb0] sm:$0xff]
      %v489 = vld [vmem:[#allocation2 + $0xb8] sm:$0xff]
      %v490 = vld [vmem:[#allocation2 + $0xc0] sm:$0xff]
      %v491 = vld [vmem:[#allocation2 + $0xc8] sm:$0xff]
      %v492 = vld [vmem:[#allocation2 + $0xd0] sm:$0xff]
      %v493 = vld [vmem:[#allocation2 + $0xd8] sm:$0xff]
      %v494 = vld [vmem:[#allocation2 + $0xe0] sm:$0xff]
      %v495 = vld [vmem:[#allocation2 + $0xe8] sm:$0xff]
      %v496 = vld [vmem:[#allocation2 + $0xf0] sm:$0xff]
      %v497 = vld [vmem:[#allocation2 + $0xf8] sm:$0xff]
      %v498 = vld [vmem:[%s1] sm:$0xf]
      %v531 = vunpack.c.l.b16 %v434
      %v532 = vunpack.c.l.b16 %v435
      %v533 = vunpack.c.l.b16 %v436
      %v534 = vunpack.c.l.b16 %v437
      %v535 = vunpack.c.l.b16 %v438
      %v536 = vunpack.c.l.b16 %v439
      %v537 = vunpack.c.l.b16 %v440
      %v538 = vunpack.c.l.b16 %v441
      %v539 = vunpack.c.l.b16 %v442
      %v540 = vunpack.c.l.b16 %v443
      %v541 = vunpack.c.l.b16 %v444
      %v542 = vunpack.c.l.b16 %v445
      %v543 = vunpack.c.l.b16 %v446
      %v544 = vunpack.c.l.b16 %v447
      %v545 = vunpack.c.l.b16 %v448
      %v546 = vunpack.c.l.b16 %v449
      %v547 = vunpack.c.l.b16 %v450
      %v548 = vunpack.c.l.b16 %v451
      %v549 = vunpack.c.l.b16 %v452
      %v550 = vunpack.c.l.b16 %v453
      %v551 = vunpack.c.l.b16 %v454
      %v552 = vunpack.c.l.b16 %v455
      %v553 = vunpack.c.l.b16 %v456
      %v554 = vunpack.c.l.b16 %v457
      %v555 = vunpack.c.l.b16 %v458
      %v556 = vunpack.c.l.b16 %v459
      %v557 = vunpack.c.l.b16 %v460
      %v558 = vunpack.c.l.b16 %v461
      %v559 = vunpack.c.l.b16 %v462
      %v560 = vunpack.c.l.b16 %v463
      %v561 = vunpack.c.l.b16 %v464
      %v562 = vunpack.c.l.b16 %v465
      %v563 = vpack.c.b16 %v532, %v531
      %v564 = vpack.c.b16 %v534, %v533
      %v565 = vpack.c.b16 %v536, %v535
      %v566 = vpack.c.b16 %v538, %v537
      %v567 = vpack.c.b16 %v540, %v539
      %v568 = vpack.c.b16 %v542, %v541
      %v569 = vpack.c.b16 %v544, %v543
      %v570 = vpack.c.b16 %v546, %v545
      %v571 = vpack.c.b16 %v548, %v547
      %v572 = vpack.c.b16 %v550, %v549
      %v573 = vpack.c.b16 %v552, %v551
      %v574 = vpack.c.b16 %v554, %v553
      %v575 = vpack.c.b16 %v556, %v555
      %v576 = vpack.c.b16 %v558, %v557
      %v577 = vpack.c.b16 %v560, %v559
      %v578 = vpack.c.b16 %v562, %v561
      %vm579 = vcmask 64512
      %v581 = vsel %vm579, %v563, 0
      %v584 = vsel %vm579, %v564, 0
      %v587 = vsel %vm579, %v565, 0
      %v590 = vsel %vm579, %v566, 0
      %v593 = vsel %vm579, %v567, 0
      %v596 = vsel %vm579, %v568, 0
      %v599 = vsel %vm579, %v569, 0
      %v602 = vsel %vm579, %v570, 0
      %v605 = vsel %vm579, %v571, 0
      %v608 = vsel %vm579, %v572, 0
      %v611 = vsel %vm579, %v573, 0
      %v614 = vsel %vm579, %v574, 0
      %v617 = vsel %vm579, %v575, 0
      %v620 = vsel %vm579, %v576, 0
      %v623 = vsel %vm579, %v577, 0
      %v626 = vsel %vm579, %v578, 0
      %vm628 = vcmask 1043456
      %v630 = vsel %vm628, %v498, 0
      %632 = vmatprep.subr.bf16.mxu0 0
      %633 = vmatpush1.bf16.msra.mxu0 %v630
      %634 = vmatprep.subr.bf16.mxu0 0
      %635 = vmatpush1.bf16.msra.mxu0 0
      %636 = vmatprep.subr.bf16.mxu0 0
      %637 = vmatpush1.bf16.msra.mxu0 0
      %638 = vmatprep.subr.bf16.mxu0 0
      %639 = vmatpush1.bf16.msra.mxu0 0
      %640 = vmatprep.subr.bf16.mxu0 0
      %641 = vmatpush1.bf16.msra.mxu0 0
      %642 = vmatprep.subr.bf16.mxu0 0
      %643 = vmatpush1.bf16.msra.mxu0 0
      %644 = vmatprep.subr.bf16.mxu0 0
      %645 = vmatpush1.bf16.msra.mxu0 0
      %646 = vmatprep.subr.bf16.mxu0 0
      %647 = vmatpush1.bf16.msra.mxu0 0
      %648 = vmatprep.subr.bf16.mxu0 0
      %649 = vmatpush1.bf16.msra.mxu0 0
      %650 = vmatprep.subr.bf16.mxu0 0
      %651 = vmatpush1.bf16.msra.mxu0 0
      %652 = vmatprep.subr.bf16.mxu0 0
      %653 = vmatpush1.bf16.msra.mxu0 0
      %654 = vmatprep.subr.bf16.mxu0 0
      %655 = vmatpush1.bf16.msra.mxu0 0
      %656 = vmatprep.subr.bf16.mxu0 0
      %657 = vmatpush1.bf16.msra.mxu0 0
      %658 = vmatprep.subr.bf16.mxu0 0
      %659 = vmatpush1.bf16.msra.mxu0 0
      %660 = vmatprep.subr.bf16.mxu0 0
      %661 = vmatpush1.bf16.msra.mxu0 0
      %662 = vmatprep.subr.bf16.mxu0 0
      %663 = vmatpush1.bf16.msra.mxu0 0
      %664 = vmatprep.mubr.bf16.mxu0 0
      %665 = vmatmul.mubr.bf16.gmra.mrb[0].mxu0 %v581
      %v666 = vpop.f32.mrb[0].mxu0
      %v667 = vadd.f32 0.0, %v666
      %v668 = vpop.f32.mrb[0].mxu0
      %v669 = vpop.f32.mrb[0].mxu0
      %v670 = vadd.f32 0.0, %v669
      %v671 = vpop.f32.mrb[0].mxu0
      %672 = vmatprep.mubr.bf16.mxu0 0
      %673 = vmatmul.mubr.bf16.gmra.mrb[0].mxu0 %v584
      %v674 = vpop.f32.mrb[0].mxu0
      %v675 = vadd.f32 0.0, %v674
      %v676 = vpop.f32.mrb[0].mxu0
      %v677 = vpop.f32.mrb[0].mxu0
      %v678 = vadd.f32 0.0, %v677
      %v679 = vpop.f32.mrb[0].mxu0
      %680 = vmatprep.mubr.bf16.mxu0 0
      %681 = vmatmul.mubr.bf16.gmra.mrb[0].mxu0 %v587
      %v682 = vpop.f32.mrb[0].mxu0
      %v683 = vadd.f32 0.0, %v682
      %v684 = vpop.f32.mrb[0].mxu0
      %v685 = vpop.f32.mrb[0].mxu0
      %v686 = vadd.f32 0.0, %v685
      %v687 = vpop.f32.mrb[0].mxu0
      %688 = vmatprep.mubr.bf16.mxu0 0
      %689 = vmatmul.mubr.bf16.gmra.mrb[0].mxu0 %v590
      %v690 = vpop.f32.mrb[0].mxu0
      %v691 = vadd.f32 0.0, %v690
      %v692 = vpop.f32.mrb[0].mxu0
      %v693 = vpop.f32.mrb[0].mxu0
      %v694 = vadd.f32 0.0, %v693
      %v695 = vpop.f32.mrb[0].mxu0
      %696 = vmatprep.mubr.bf16.mxu0 0
      %697 = vmatmul.mubr.bf16.gmra.mrb[0].mxu0 %v593
      %v698 = vpop.f32.mrb[0].mxu0
      %v699 = vadd.f32 0.0, %v698
      %v700 = vpop.f32.mrb[0].mxu0
      %v701 = vpop.f32.mrb[0].mxu0
      %v702 = vadd.f32 0.0, %v701
      %v703 = vpop.f32.mrb[0].mxu0
      %704 = vmatprep.mubr.bf16.mxu0 0
      %705 = vmatmul.mubr.bf16.gmra.mrb[0].mxu0 %v596
      %v706 = vpop.f32.mrb[0].mxu0
      %v707 = vadd.f32 0.0, %v706
      %v708 = vpop.f32.mrb[0].mxu0
      %v709 = vpop.f32.mrb[0].mxu0
      %v710 = vadd.f32 0.0, %v709
      %v711 = vpop.f32.mrb[0].mxu0
      %712 = vmatprep.mubr.bf16.mxu0 0
      %713 = vmatmul.mubr.bf16.gmra.mrb[0].mxu0 %v599
      %v714 = vpop.f32.mrb[0].mxu0
      %v715 = vadd.f32 0.0, %v714
      %v716 = vpop.f32.mrb[0].mxu0
      %v717 = vpop.f32.mrb[0].mxu0
      %v718 = vadd.f32 0.0, %v717
      %v719 = vpop.f32.mrb[0].mxu0
      %720 = vmatprep.mubr.bf16.mxu0 0
      %721 = vmatmul.mubr.bf16.gmra.mrb[0].mxu0 %v602
      %v722 = vpop.f32.mrb[0].mxu0
      %v723 = vadd.f32 0.0, %v722
      %v724 = vpop.f32.mrb[0].mxu0
      %v725 = vpop.f32.mrb[0].mxu0
      %v726 = vadd.f32 0.0, %v725
      %v727 = vpop.f32.mrb[0].mxu0
      %728 = vmatprep.mubr.bf16.mxu0 0
      %729 = vmatmul.mubr.bf16.gmra.mrb[0].mxu0 %v605
      %v730 = vpop.f32.mrb[0].mxu0
      %v731 = vadd.f32 0.0, %v730
      %v732 = vpop.f32.mrb[0].mxu0
      %v733 = vpop.f32.mrb[0].mxu0
      %v734 = vadd.f32 0.0, %v733
      %v735 = vpop.f32.mrb[0].mxu0
      %736 = vmatprep.mubr.bf16.mxu0 0
      %737 = vmatmul.mubr.bf16.gmra.mrb[0].mxu0 %v608
      %v738 = vpop.f32.mrb[0].mxu0
      %v739 = vadd.f32 0.0, %v738
      %v740 = vpop.f32.mrb[0].mxu0
      %v741 = vpop.f32.mrb[0].mxu0
      %v742 = vadd.f32 0.0, %v741
      %v743 = vpop.f32.mrb[0].mxu0
      %744 = vmatprep.mubr.bf16.mxu0 0
      %745 = vmatmul.mubr.bf16.gmra.mrb[0].mxu0 %v611
      %v746 = vpop.f32.mrb[0].mxu0
      %v747 = vadd.f32 0.0, %v746
      %v748 = vpop.f32.mrb[0].mxu0
      %v749 = vpop.f32.mrb[0].mxu0
      %v750 = vadd.f32 0.0, %v749
      %v751 = vpop.f32.mrb[0].mxu0
      %752 = vmatprep.mubr.bf16.mxu0 0
      %753 = vmatmul.mubr.bf16.gmra.mrb[0].mxu0 %v614
      %v754 = vpop.f32.mrb[0].mxu0
      %v755 = vadd.f32 0.0, %v754
      %v756 = vpop.f32.mrb[0].mxu0
      %v757 = vpop.f32.mrb[0].mxu0
      %v758 = vadd.f32 0.0, %v757
      %v759 = vpop.f32.mrb[0].mxu0
      %760 = vmatprep.mubr.bf16.mxu0 0
      %761 = vmatmul.mubr.bf16.gmra.mrb[0].mxu0 %v617
      %v762 = vpop.f32.mrb[0].mxu0
      %v763 = vadd.f32 0.0, %v762
      %v764 = vpop.f32.mrb[0].mxu0
      %v765 = vpop.f32.mrb[0].mxu0
      %v766 = vadd.f32 0.0, %v765
      %v767 = vpop.f32.mrb[0].mxu0
      %768 = vmatprep.mubr.bf16.mxu0 0
      %769 = vmatmul.mubr.bf16.gmra.mrb[0].mxu0 %v620
      %v770 = vpop.f32.mrb[0].mxu0
      %v771 = vadd.f32 0.0, %v770
      %v772 = vpop.f32.mrb[0].mxu0
      %v773 = vpop.f32.mrb[0].mxu0
      %v774 = vadd.f32 0.0, %v773
      %v775 = vpop.f32.mrb[0].mxu0
      %776 = vmatprep.mubr.bf16.mxu0 0
      %777 = vmatmul.mubr.bf16.gmra.mrb[0].mxu0 %v623
      %v778 = vpop.f32.mrb[0].mxu0
      %v779 = vadd.f32 0.0, %v778
      %v780 = vpop.f32.mrb[0].mxu0
      %v781 = vpop.f32.mrb[0].mxu0
      %v782 = vadd.f32 0.0, %v781
      %v783 = vpop.f32.mrb[0].mxu0
      %784 = vmatprep.mubr.bf16.mxu0 0
      %785 = vmatmul.mubr.bf16.gmra.mrb[0].mxu0 %v626
      %v786 = vpop.f32.mrb[0].mxu0
      %v787 = vadd.f32 0.0, %v786
      %v788 = vpop.f32.mrb[0].mxu0
      %v789 = vpop.f32.mrb[0].mxu0
      %v790 = vadd.f32 0.0, %v789
      %v791 = vpop.f32.mrb[0].mxu0
      %792 = vdwg.mxu0
      %v793 = vadd.f32 %v466, %v667
      %v794 = vadd.f32 %v467, %v670
      %v795 = vadd.f32 %v468, %v675
      %v796 = vadd.f32 %v469, %v678
      %v797 = vadd.f32 %v470, %v683
      %v798 = vadd.f32 %v471, %v686
      %v799 = vadd.f32 %v472, %v691
      %v800 = vadd.f32 %v473, %v694
      %v801 = vadd.f32 %v474, %v699
      %v802 = vadd.f32 %v475, %v702
      %v803 = vadd.f32 %v476, %v707
      %v804 = vadd.f32 %v477, %v710
      %v805 = vadd.f32 %v478, %v715
      %v806 = vadd.f32 %v479, %v718
      %v807 = vadd.f32 %v480, %v723
      %v808 = vadd.f32 %v481, %v726
      %v809 = vadd.f32 %v482, %v731
      %v810 = vadd.f32 %v483, %v734
      %v811 = vadd.f32 %v484, %v739
      %v812 = vadd.f32 %v485, %v742
      %v813 = vadd.f32 %v486, %v747
      %v814 = vadd.f32 %v487, %v750
      %v815 = vadd.f32 %v488, %v755
      %v816 = vadd.f32 %v489, %v758
      %v817 = vadd.f32 %v490, %v763
      %v818 = vadd.f32 %v491, %v766
      %v819 = vadd.f32 %v492, %v771
      %v820 = vadd.f32 %v493, %v774
      %v821 = vadd.f32 %v494, %v779
      %v822 = vadd.f32 %v495, %v782
      %v823 = vadd.f32 %v496, %v787
      %v824 = vadd.f32 %v497, %v790
      %825 = vst.msk [vmem:[#allocation2] sm:$0xff] %vm401, %v793
      %826 = vst.msk [vmem:[#allocation2 + $0x8] sm:$0xff] %vm401, %v794
      %827 = vst.msk [vmem:[#allocation2 + $0x10] sm:$0xff] %vm401, %v795
      %828 = vst.msk [vmem:[#allocation2 + $0x18] sm:$0xff] %vm401, %v796
      %829 = vst.msk [vmem:[#allocation2 + $0x20] sm:$0xff] %vm401, %v797
      %830 = vst.msk [vmem:[#allocation2 + $0x28] sm:$0xff] %vm401, %v798
      %831 = vst.msk [vmem:[#allocation2 + $0x30] sm:$0xff] %vm401, %v799
      %832 = vst.msk [vmem:[#allocation2 + $0x38] sm:$0xff] %vm401, %v800
      %833 = vst.msk [vmem:[#allocation2 + $0x40] sm:$0xff] %vm401, %v801
      %834 = vst.msk [vmem:[#allocation2 + $0x48] sm:$0xff] %vm401, %v802
      %835 = vst.msk [vmem:[#allocation2 + $0x50] sm:$0xff] %vm401, %v803
      %836 = vst.msk [vmem:[#allocation2 + $0x58] sm:$0xff] %vm401, %v804
      %837 = vst.msk [vmem:[#allocation2 + $0x60] sm:$0xff] %vm401, %v805
      %838 = vst.msk [vmem:[#allocation2 + $0x68] sm:$0xff] %vm401, %v806
      %839 = vst.msk [vmem:[#allocation2 + $0x70] sm:$0xff] %vm401, %v807
      %840 = vst.msk [vmem:[#allocation2 + $0x78] sm:$0xff] %vm401, %v808
      %841 = vst.msk [vmem:[#allocation2 + $0x80] sm:$0xff] %vm401, %v809
      %842 = vst.msk [vmem:[#allocation2 + $0x88] sm:$0xff] %vm401, %v810
      %843 = vst.msk [vmem:[#allocation2 + $0x90] sm:$0xff] %vm401, %v811
      %844 = vst.msk [vmem:[#allocation2 + $0x98] sm:$0xff] %vm401, %v812
      %845 = vst.msk [vmem:[#allocation2 + $0xa0] sm:$0xff] %vm401, %v813
      %846 = vst.msk [vmem:[#allocation2 + $0xa8] sm:$0xff] %vm401, %v814
      %847 = vst.msk [vmem:[#allocation2 + $0xb0] sm:$0xff] %vm401, %v815
      %848 = vst.msk [vmem:[#allocation2 + $0xb8] sm:$0xff] %vm401, %v816
      %849 = vst.msk [vmem:[#allocation2 + $0xc0] sm:$0xff] %vm401, %v817
      %850 = vst.msk [vmem:[#allocation2 + $0xc8] sm:$0xff] %vm401, %v818
      %851 = vst.msk [vmem:[#allocation2 + $0xd0] sm:$0xff] %vm401, %v819
      %852 = vst.msk [vmem:[#allocation2 + $0xd8] sm:$0xff] %vm401, %v820
      %853 = vst.msk [vmem:[#allocation2 + $0xe0] sm:$0xff] %vm401, %v821
      %854 = vst.msk [vmem:[#allocation2 + $0xe8] sm:$0xff] %vm401, %v822
      %855 = vst.msk [vmem:[#allocation2 + $0xf0] sm:$0xff] %vm401, %v823
      %856 = vst.msk [vmem:[#allocation2 + $0xf8] sm:$0xff] %vm401, %v824
      %v857 = vld [vmem:[%s273] sm:$0xf]
      %v858 = vld [vmem:[%s273 + $0x4] sm:$0xf]
      %v859 = vld [vmem:[%s273 + $0x8] sm:$0x1]
      %v860 = vld [vmem:[%s273 + $0xc] sm:$0xf]
      %v861 = vld [vmem:[%s273 + $0x10] sm:$0xf]
      %v862 = vld [vmem:[%s273 + $0x14] sm:$0x1]
      %v863 = vld [vmem:[%s273 + $0x18] sm:$0xf]
      %v864 = vld [vmem:[%s273 + $0x1c] sm:$0xf]
      %v865 = vld [vmem:[%s273 + $0x20] sm:$0x1]
      %v866 = vld [vmem:[%s273 + $0x24] sm:$0xf]
      %v867 = vld [vmem:[%s273 + $0x28] sm:$0xf]
      %v868 = vld [vmem:[%s273 + $0x2c] sm:$0x1]
      %v869 = vld [vmem:[%s273 + $0x30] sm:$0xf]
      %v870 = vld [vmem:[%s273 + $0x34] sm:$0xf]
      %v871 = vld [vmem:[%s273 + $0x38] sm:$0x1]
      %v872 = vld [vmem:[%s273 + $0x3c] sm:$0xf]
      %v873 = vld [vmem:[%s273 + $0x40] sm:$0xf]
      %v874 = vld [vmem:[%s273 + $0x44] sm:$0x1]
      %v875 = vld [vmem:[%s273 + $0x48] sm:$0xf]
      %v876 = vld [vmem:[%s273 + $0x4c] sm:$0xf]
      %v877 = vld [vmem:[%s273 + $0x50] sm:$0x1]
      %v878 = vld [vmem:[%s273 + $0x54] sm:$0xf]
      %v879 = vld [vmem:[%s273 + $0x58] sm:$0xf]
      %v880 = vld [vmem:[%s273 + $0x5c] sm:$0x1]
      %v881 = vld [vmem:[%s273 + $0x60] sm:$0xf]
      %v882 = vld [vmem:[%s273 + $0x64] sm:$0xf]
      %v883 = vld [vmem:[%s273 + $0x68] sm:$0x1]
      %v884 = vld [vmem:[%s273 + $0x6c] sm:$0xf]
      %v885 = vld [vmem:[%s273 + $0x70] sm:$0xf]
      %v886 = vld [vmem:[%s273 + $0x74] sm:$0x1]
      %v887 = vld [vmem:[%s273 + $0x78] sm:$0xf]
      %v888 = vld [vmem:[%s273 + $0x7c] sm:$0xf]
      %v889 = vld [vmem:[%s273 + $0x80] sm:$0x1]
      %v890 = vld [vmem:[%s273 + $0x84] sm:$0xf]
      %v891 = vld [vmem:[%s273 + $0x88] sm:$0xf]
      %v892 = vld [vmem:[%s273 + $0x8c] sm:$0x1]
      %v893 = vld [vmem:[%s273 + $0x90] sm:$0xf]
      %v894 = vld [vmem:[%s273 + $0x94] sm:$0xf]
      %v895 = vld [vmem:[%s273 + $0x98] sm:$0x1]
      %v896 = vld [vmem:[%s273 + $0x9c] sm:$0xf]
      %v897 = vld [vmem:[%s273 + $0xa0] sm:$0xf]
      %v898 = vld [vmem:[%s273 + $0xa4] sm:$0x1]
      %v899 = vld [vmem:[%s273 + $0xa8] sm:$0xf]
      %v900 = vld [vmem:[%s273 + $0xac] sm:$0xf]
      %v901 = vld [vmem:[%s273 + $0xb0] sm:$0x1]
      %v902 = vld [vmem:[%s273 + $0xb4] sm:$0xf]
      %v903 = vld [vmem:[%s273 + $0xb8] sm:$0xf]
      %v904 = vld [vmem:[%s273 + $0xbc] sm:$0x1]
      %vm905 = vsmask.f32 3328
      %vm906 = vsmask.f32 7440
      %vm907 = vmor %vm905, %vm906
      %v909 = vshrl.u32 %v857, 16
      %v911 = vrot.slane %v909, 4
      %v912 = vshll.u32 %v857, 16
      %v914 = vrot.slane %v912, 5
      %v915 = vor.u32 %v911, %v914
      %v916 = vrot.slane %v915, 4
      %v918 = vshll.u32 %v858, 16
      %v920 = vrot.slane %v918, 5
      %v921 = vsel %vm907, %v916, %v920
      %v922 = vshrl.u32 %v858, 16
      %v924 = vrot.slane %v922, 4
      %v925 = vor.u32 %v924, %v920
      %v926 = vrot.slane %v925, 4
      %v928 = vshll.u32 %v859, 16
      %v930 = vrot.slane %v928, 5
      %v931 = vsel %vm907, %v926, %v930
      %v933 = vshrl.u32 %v860, 16
      %v935 = vrot.slane %v933, 4
      %v936 = vshll.u32 %v860, 16
      %v938 = vrot.slane %v936, 5
      %v939 = vor.u32 %v935, %v938
      %v940 = vrot.slane %v939, 4
      %v942 = vshll.u32 %v861, 16
      %v944 = vrot.slane %v942, 5
      %v945 = vsel %vm907, %v940, %v944
      %v946 = vshrl.u32 %v861, 16
      %v948 = vrot.slane %v946, 4
      %v949 = vor.u32 %v948, %v944
      %v950 = vrot.slane %v949, 4
      %v952 = vshll.u32 %v862, 16
      %v954 = vrot.slane %v952, 5
      %v955 = vsel %vm907, %v950, %v954
      %v957 = vshrl.u32 %v863, 16
      %v959 = vrot.slane %v957, 4
      %v960 = vshll.u32 %v863, 16
      %v962 = vrot.slane %v960, 5
      %v963 = vor.u32 %v959, %v962
      %v964 = vrot.slane %v963, 4
      %v966 = vshll.u32 %v864, 16
      %v968 = vrot.slane %v966, 5
      %v969 = vsel %vm907, %v964, %v968
      %v970 = vshrl.u32 %v864, 16
      %v972 = vrot.slane %v970, 4
      %v973 = vor.u32 %v972, %v968
      %v974 = vrot.slane %v973, 4
      %v976 = vshll.u32 %v865, 16
      %v978 = vrot.slane %v976, 5
      %v979 = vsel %vm907, %v974, %v978
      %v981 = vshrl.u32 %v866, 16
      %v983 = vrot.slane %v981, 4
      %v984 = vshll.u32 %v866, 16
      %v986 = vrot.slane %v984, 5
      %v987 = vor.u32 %v983, %v986
      %v988 = vrot.slane %v987, 4
      %v990 = vshll.u32 %v867, 16
      %v992 = vrot.slane %v990, 5
      %v993 = vsel %vm907, %v988, %v992
      %v994 = vshrl.u32 %v867, 16
      %v996 = vrot.slane %v994, 4
      %v997 = vor.u32 %v996, %v992
      %v998 = vrot.slane %v997, 4
      %v1000 = vshll.u32 %v868, 16
      %v1002 = vrot.slane %v1000, 5
      %v1003 = vsel %vm907, %v998, %v1002
      %v1005 = vshrl.u32 %v869, 16
      %v1007 = vrot.slane %v1005, 4
      %v1008 = vshll.u32 %v869, 16
      %v1010 = vrot.slane %v1008, 5
      %v1011 = vor.u32 %v1007, %v1010
      %v1012 = vrot.slane %v1011, 4
      %v1014 = vshll.u32 %v870, 16
      %v1016 = vrot.slane %v1014, 5
      %v1017 = vsel %vm907, %v1012, %v1016
      %v1018 = vshrl.u32 %v870, 16
      %v1020 = vrot.slane %v1018, 4
      %v1021 = vor.u32 %v1020, %v1016
      %v1022 = vrot.slane %v1021, 4
      %v1024 = vshll.u32 %v871, 16
      %v1026 = vrot.slane %v1024, 5
      %v1027 = vsel %vm907, %v1022, %v1026
      %v1029 = vshrl.u32 %v872, 16
      %v1031 = vrot.slane %v1029, 4
      %v1032 = vshll.u32 %v872, 16
      %v1034 = vrot.slane %v1032, 5
      %v1035 = vor.u32 %v1031, %v1034
      %v1036 = vrot.slane %v1035, 4
      %v1038 = vshll.u32 %v873, 16
      %v1040 = vrot.slane %v1038, 5
      %v1041 = vsel %vm907, %v1036, %v1040
      %v1042 = vshrl.u32 %v873, 16
      %v1044 = vrot.slane %v1042, 4
      %v1045 = vor.u32 %v1044, %v1040
      %v1046 = vrot.slane %v1045, 4
      %v1048 = vshll.u32 %v874, 16
      %v1050 = vrot.slane %v1048, 5
      %v1051 = vsel %vm907, %v1046, %v1050
      %v1053 = vshrl.u32 %v875, 16
      %v1055 = vrot.slane %v1053, 4
      %v1056 = vshll.u32 %v875, 16
      %v1058 = vrot.slane %v1056, 5
      %v1059 = vor.u32 %v1055, %v1058
      %v1060 = vrot.slane %v1059, 4
      %v1062 = vshll.u32 %v876, 16
      %v1064 = vrot.slane %v1062, 5
      %v1065 = vsel %vm907, %v1060, %v1064
      %v1066 = vshrl.u32 %v876, 16
      %v1068 = vrot.slane %v1066, 4
      %v1069 = vor.u32 %v1068, %v1064
      %v1070 = vrot.slane %v1069, 4
      %v1072 = vshll.u32 %v877, 16
      %v1074 = vrot.slane %v1072, 5
      %v1075 = vsel %vm907, %v1070, %v1074
      %v1077 = vshrl.u32 %v878, 16
      %v1079 = vrot.slane %v1077, 4
      %v1080 = vshll.u32 %v878, 16
      %v1082 = vrot.slane %v1080, 5
      %v1083 = vor.u32 %v1079, %v1082
      %v1084 = vrot.slane %v1083, 4
      %v1086 = vshll.u32 %v879, 16
      %v1088 = vrot.slane %v1086, 5
      %v1089 = vsel %vm907, %v1084, %v1088
      %v1090 = vshrl.u32 %v879, 16
      %v1092 = vrot.slane %v1090, 4
      %v1093 = vor.u32 %v1092, %v1088
      %v1094 = vrot.slane %v1093, 4
      %v1096 = vshll.u32 %v880, 16
      %v1098 = vrot.slane %v1096, 5
      %v1099 = vsel %vm907, %v1094, %v1098
      %v1101 = vshrl.u32 %v881, 16
      %v1103 = vrot.slane %v1101, 4
      %v1104 = vshll.u32 %v881, 16
      %v1106 = vrot.slane %v1104, 5
      %v1107 = vor.u32 %v1103, %v1106
      %v1108 = vrot.slane %v1107, 4
      %v1110 = vshll.u32 %v882, 16
      %v1112 = vrot.slane %v1110, 5
      %v1113 = vsel %vm907, %v1108, %v1112
      %v1114 = vshrl.u32 %v882, 16
      %v1116 = vrot.slane %v1114, 4
      %v1117 = vor.u32 %v1116, %v1112
      %v1118 = vrot.slane %v1117, 4
      %v1120 = vshll.u32 %v883, 16
      %v1122 = vrot.slane %v1120, 5
      %v1123 = vsel %vm907, %v1118, %v1122
      %v1125 = vshrl.u32 %v884, 16
      %v1127 = vrot.slane %v1125, 4
      %v1128 = vshll.u32 %v884, 16
      %v1130 = vrot.slane %v1128, 5
      %v1131 = vor.u32 %v1127, %v1130
      %v1132 = vrot.slane %v1131, 4
      %v1134 = vshll.u32 %v885, 16
      %v1136 = vrot.slane %v1134, 5
      %v1137 = vsel %vm907, %v1132, %v1136
      %v1138 = vshrl.u32 %v885, 16
      %v1140 = vrot.slane %v1138, 4
      %v1141 = vor.u32 %v1140, %v1136
      %v1142 = vrot.slane %v1141, 4
      %v1144 = vshll.u32 %v886, 16
      %v1146 = vrot.slane %v1144, 5
      %v1147 = vsel %vm907, %v1142, %v1146
      %v1149 = vshrl.u32 %v887, 16
      %v1151 = vrot.slane %v1149, 4
      %v1152 = vshll.u32 %v887, 16
      %v1154 = vrot.slane %v1152, 5
      %v1155 = vor.u32 %v1151, %v1154
      %v1156 = vrot.slane %v1155, 4
      %v1158 = vshll.u32 %v888, 16
      %v1160 = vrot.slane %v1158, 5
      %v1161 = vsel %vm907, %v1156, %v1160
      %v1162 = vshrl.u32 %v888, 16
      %v1164 = vrot.slane %v1162, 4
      %v1165 = vor.u32 %v1164, %v1160
      %v1166 = vrot.slane %v1165, 4
      %v1168 = vshll.u32 %v889, 16
      %v1170 = vrot.slane %v1168, 5
      %v1171 = vsel %vm907, %v1166, %v1170
      %v1173 = vshrl.u32 %v890, 16
      %v1175 = vrot.slane %v1173, 4
      %v1176 = vshll.u32 %v890, 16
      %v1178 = vrot.slane %v1176, 5
      %v1179 = vor.u32 %v1175, %v1178
      %v1180 = vrot.slane %v1179, 4
      %v1182 = vshll.u32 %v891, 16
      %v1184 = vrot.slane %v1182, 5
      %v1185 = vsel %vm907, %v1180, %v1184
      %v1186 = vshrl.u32 %v891, 16
      %v1188 = vrot.slane %v1186, 4
      %v1189 = vor.u32 %v1188, %v1184
      %v1190 = vrot.slane %v1189, 4
      %v1192 = vshll.u32 %v892, 16
      %v1194 = vrot.slane %v1192, 5
      %v1195 = vsel %vm907, %v1190, %v1194
      %v1197 = vshrl.u32 %v893, 16
      %v1199 = vrot.slane %v1197, 4
      %v1200 = vshll.u32 %v893, 16
      %v1202 = vrot.slane %v1200, 5
      %v1203 = vor.u32 %v1199, %v1202
      %v1204 = vrot.slane %v1203, 4
      %v1206 = vshll.u32 %v894, 16
      %v1208 = vrot.slane %v1206, 5
      %v1209 = vsel %vm907, %v1204, %v1208
      %v1210 = vshrl.u32 %v894, 16
      %v1212 = vrot.slane %v1210, 4
      %v1213 = vor.u32 %v1212, %v1208
      %v1214 = vrot.slane %v1213, 4
      %v1216 = vshll.u32 %v895, 16
      %v1218 = vrot.slane %v1216, 5
      %v1219 = vsel %vm907, %v1214, %v1218
      %v1221 = vshrl.u32 %v896, 16
      %v1223 = vrot.slane %v1221, 4
      %v1224 = vshll.u32 %v896, 16
      %v1226 = vrot.slane %v1224, 5
      %v1227 = vor.u32 %v1223, %v1226
      %v1228 = vrot.slane %v1227, 4
      %v1230 = vshll.u32 %v897, 16
      %v1232 = vrot.slane %v1230, 5
      %v1233 = vsel %vm907, %v1228, %v1232
      %v1234 = vshrl.u32 %v897, 16
      %v1236 = vrot.slane %v1234, 4
      %v1237 = vor.u32 %v1236, %v1232
      %v1238 = vrot.slane %v1237, 4
      %v1240 = vshll.u32 %v898, 16
      %v1242 = vrot.slane %v1240, 5
      %v1243 = vsel %vm907, %v1238, %v1242
      %v1245 = vshrl.u32 %v899, 16
      %v1247 = vrot.slane %v1245, 4
      %v1248 = vshll.u32 %v899, 16
      %v1250 = vrot.slane %v1248, 5
      %v1251 = vor.u32 %v1247, %v1250
      %v1252 = vrot.slane %v1251, 4
      %v1254 = vshll.u32 %v900, 16
      %v1256 = vrot.slane %v1254, 5
      %v1257 = vsel %vm907, %v1252, %v1256
      %v1258 = vshrl.u32 %v900, 16
      %v1260 = vrot.slane %v1258, 4
      %v1261 = vor.u32 %v1260, %v1256
      %v1262 = vrot.slane %v1261, 4
      %v1264 = vshll.u32 %v901, 16
      %v1266 = vrot.slane %v1264, 5
      %v1267 = vsel %vm907, %v1262, %v1266
      %v1269 = vshrl.u32 %v902, 16
      %v1271 = vrot.slane %v1269, 4
      %v1272 = vshll.u32 %v902, 16
      %v1274 = vrot.slane %v1272, 5
      %v1275 = vor.u32 %v1271, %v1274
      %v1276 = vrot.slane %v1275, 4
      %v1278 = vshll.u32 %v903, 16
      %v1280 = vrot.slane %v1278, 5
      %v1281 = vsel %vm907, %v1276, %v1280
      %v1282 = vshrl.u32 %v903, 16
      %v1284 = vrot.slane %v1282, 4
      %v1285 = vor.u32 %v1284, %v1280
      %v1286 = vrot.slane %v1285, 4
      %v1288 = vshll.u32 %v904, 16
      %v1290 = vrot.slane %v1288, 5
      %v1291 = vsel %vm907, %v1286, %v1290
      %v1292 = vld [vmem:[#allocation2] sm:$0xff]
      %v1293 = vld [vmem:[#allocation2 + $0x8] sm:$0xff]
      %v1294 = vld [vmem:[#allocation2 + $0x10] sm:$0xff]
      %v1295 = vld [vmem:[#allocation2 + $0x18] sm:$0xff]
      %v1296 = vld [vmem:[#allocation2 + $0x20] sm:$0xff]
      %v1297 = vld [vmem:[#allocation2 + $0x28] sm:$0xff]
      %v1298 = vld [vmem:[#allocation2 + $0x30] sm:$0xff]
      %v1299 = vld [vmem:[#allocation2 + $0x38] sm:$0xff]
      %v1300 = vld [vmem:[#allocation2 + $0x40] sm:$0xff]
      %v1301 = vld [vmem:[#allocation2 + $0x48] sm:$0xff]
      %v1302 = vld [vmem:[#allocation2 + $0x50] sm:$0xff]
      %v1303 = vld [vmem:[#allocation2 + $0x58] sm:$0xff]
      %v1304 = vld [vmem:[#allocation2 + $0x60] sm:$0xff]
      %v1305 = vld [vmem:[#allocation2 + $0x68] sm:$0xff]
      %v1306 = vld [vmem:[#allocation2 + $0x70] sm:$0xff]
      %v1307 = vld [vmem:[#allocation2 + $0x78] sm:$0xff]
      %v1308 = vld [vmem:[#allocation2 + $0x80] sm:$0xff]
      %v1309 = vld [vmem:[#allocation2 + $0x88] sm:$0xff]
      %v1310 = vld [vmem:[#allocation2 + $0x90] sm:$0xff]
      %v1311 = vld [vmem:[#allocation2 + $0x98] sm:$0xff]
      %v1312 = vld [vmem:[#allocation2 + $0xa0] sm:$0xff]
      %v1313 = vld [vmem:[#allocation2 + $0xa8] sm:$0xff]
      %v1314 = vld [vmem:[#allocation2 + $0xb0] sm:$0xff]
      %v1315 = vld [vmem:[#allocation2 + $0xb8] sm:$0xff]
      %v1316 = vld [vmem:[#allocation2 + $0xc0] sm:$0xff]
      %v1317 = vld [vmem:[#allocation2 + $0xc8] sm:$0xff]
      %v1318 = vld [vmem:[#allocation2 + $0xd0] sm:$0xff]
      %v1319 = vld [vmem:[#allocation2 + $0xd8] sm:$0xff]
      %v1320 = vld [vmem:[#allocation2 + $0xe0] sm:$0xff]
      %v1321 = vld [vmem:[#allocation2 + $0xe8] sm:$0xff]
      %v1322 = vld [vmem:[#allocation2 + $0xf0] sm:$0xff]
      %v1323 = vld [vmem:[#allocation2 + $0xf8] sm:$0xff]
      %s1324 = scalar_lea.vmem %s1, 4
      %v1325 = vld [vmem:[%s1324] sm:$0xf]
      %v1326 = vunpack.c.l.b16 %v921
      %v1327 = vunpack.c.l.b16 %v931
      %v1328 = vunpack.c.l.b16 %v945
      %v1329 = vunpack.c.l.b16 %v955
      %v1330 = vunpack.c.l.b16 %v969
      %v1331 = vunpack.c.l.b16 %v979
      %v1332 = vunpack.c.l.b16 %v993
      %v1333 = vunpack.c.l.b16 %v1003
      %v1334 = vunpack.c.l.b16 %v1017
      %v1335 = vunpack.c.l.b16 %v1027
      %v1336 = vunpack.c.l.b16 %v1041
      %v1337 = vunpack.c.l.b16 %v1051
      %v1338 = vunpack.c.l.b16 %v1065
      %v1339 = vunpack.c.l.b16 %v1075
      %v1340 = vunpack.c.l.b16 %v1089
      %v1341 = vunpack.c.l.b16 %v1099
      %v1342 = vunpack.c.l.b16 %v1113
      %v1343 = vunpack.c.l.b16 %v1123
      %v1344 = vunpack.c.l.b16 %v1137
      %v1345 = vunpack.c.l.b16 %v1147
      %v1346 = vunpack.c.l.b16 %v1161
      %v1347 = vunpack.c.l.b16 %v1171
      %v1348 = vunpack.c.l.b16 %v1185
      %v1349 = vunpack.c.l.b16 %v1195
      %v1350 = vunpack.c.l.b16 %v1209
      %v1351 = vunpack.c.l.b16 %v1219
      %v1352 = vunpack.c.l.b16 %v1233
      %v1353 = vunpack.c.l.b16 %v1243
      %v1354 = vunpack.c.l.b16 %v1257
      %v1355 = vunpack.c.l.b16 %v1267
      %v1356 = vunpack.c.l.b16 %v1281
      %v1357 = vunpack.c.l.b16 %v1291
      %v1358 = vpack.c.b16 %v1327, %v1326
      %v1359 = vpack.c.b16 %v1329, %v1328
      %v1360 = vpack.c.b16 %v1331, %v1330
      %v1361 = vpack.c.b16 %v1333, %v1332
      %v1362 = vpack.c.b16 %v1335, %v1334
      %v1363 = vpack.c.b16 %v1337, %v1336
      %v1364 = vpack.c.b16 %v1339, %v1338
      %v1365 = vpack.c.b16 %v1341, %v1340
      %v1366 = vpack.c.b16 %v1343, %v1342
      %v1367 = vpack.c.b16 %v1345, %v1344
      %v1368 = vpack.c.b16 %v1347, %v1346
      %v1369 = vpack.c.b16 %v1349, %v1348
      %v1370 = vpack.c.b16 %v1351, %v1350
      %v1371 = vpack.c.b16 %v1353, %v1352
      %v1372 = vpack.c.b16 %v1355, %v1354
      %v1373 = vpack.c.b16 %v1357, %v1356
      %v1375 = vsel %vm579, %v1358, 0
      %v1378 = vsel %vm579, %v1359, 0
      %v1381 = vsel %vm579, %v1360, 0
      %v1384 = vsel %vm579, %v1361, 0
      %v1387 = vsel %vm579, %v1362, 0
      %v1390 = vsel %vm579, %v1363, 0
      %v1393 = vsel %vm579, %v1364, 0
      %v1396 = vsel %vm579, %v1365, 0
      %v1399 = vsel %vm579, %v1366, 0
      %v1402 = vsel %vm579, %v1367, 0
      %v1405 = vsel %vm579, %v1368, 0
      %v1408 = vsel %vm579, %v1369, 0
      %v1411 = vsel %vm579, %v1370, 0
      %v1414 = vsel %vm579, %v1371, 0
      %v1417 = vsel %vm579, %v1372, 0
      %v1420 = vsel %vm579, %v1373, 0
      %v1423 = vsel %vm628, %v1325, 0
      %1425 = vmatprep.subr.bf16.mxu0 0
      %1426 = vmatpush1.bf16.msra.mxu0 %v1423
      %1427 = vmatprep.subr.bf16.mxu0 0
      %1428 = vmatpush1.bf16.msra.mxu0 0
      %1429 = vmatprep.subr.bf16.mxu0 0
      %1430 = vmatpush1.bf16.msra.mxu0 0
      %1431 = vmatprep.subr.bf16.mxu0 0
      %1432 = vmatpush1.bf16.msra.mxu0 0
      %1433 = vmatprep.subr.bf16.mxu0 0
      %1434 = vmatpush1.bf16.msra.mxu0 0
      %1435 = vmatprep.subr.bf16.mxu0 0
      %1436 = vmatpush1.bf16.msra.mxu0 0
      %1437 = vmatprep.subr.bf16.mxu0 0
      %1438 = vmatpush1.bf16.msra.mxu0 0
      %1439 = vmatprep.subr.bf16.mxu0 0
      %1440 = vmatpush1.bf16.msra.mxu0 0
      %1441 = vmatprep.subr.bf16.mxu0 0
      %1442 = vmatpush1.bf16.msra.mxu0 0
      %1443 = vmatprep.subr.bf16.mxu0 0
      %1444 = vmatpush1.bf16.msra.mxu0 0
      %1445 = vmatprep.subr.bf16.mxu0 0
      %1446 = vmatpush1.bf16.msra.mxu0 0
      %1447 = vmatprep.subr.bf16.mxu0 0
      %1448 = vmatpush1.bf16.msra.mxu0 0
      %1449 = vmatprep.subr.bf16.mxu0 0
      %1450 = vmatpush1.bf16.msra.mxu0 0
      %1451 = vmatprep.subr.bf16.mxu0 0
      %1452 = vmatpush1.bf16.msra.mxu0 0
      %1453 = vmatprep.subr.bf16.mxu0 0
      %1454 = vmatpush1.bf16.msra.mxu0 0
      %1455 = vmatprep.subr.bf16.mxu0 0
      %1456 = vmatpush1.bf16.msra.mxu0 0
      %1457 = vmatprep.mubr.bf16.mxu0 0
      %1458 = vmatmul.mubr.bf16.gmra.mrb[0].mxu0 %v1375
      %v1459 = vpop.f32.mrb[0].mxu0
      %v1460 = vadd.f32 0.0, %v1459
      %v1461 = vpop.f32.mrb[0].mxu0
      %v1462 = vpop.f32.mrb[0].mxu0
      %v1463 = vadd.f32 0.0, %v1462
      %v1464 = vpop.f32.mrb[0].mxu0
      %1465 = vmatprep.mubr.bf16.mxu0 0
      %1466 = vmatmul.mubr.bf16.gmra.mrb[0].mxu0 %v1378
      %v1467 = vpop.f32.mrb[0].mxu0
      %v1468 = vadd.f32 0.0, %v1467
      %v1469 = vpop.f32.mrb[0].mxu0
      %v1470 = vpop.f32.mrb[0].mxu0
      %v1471 = vadd.f32 0.0, %v1470
      %v1472 = vpop.f32.mrb[0].mxu0
      %1473 = vmatprep.mubr.bf16.mxu0 0
      %1474 = vmatmul.mubr.bf16.gmra.mrb[0].mxu0 %v1381
      %v1475 = vpop.f32.mrb[0].mxu0
      %v1476 = vadd.f32 0.0, %v1475
      %v1477 = vpop.f32.mrb[0].mxu0
      %v1478 = vpop.f32.mrb[0].mxu0
      %v1479 = vadd.f32 0.0, %v1478
      %v1480 = vpop.f32.mrb[0].mxu0
      %1481 = vmatprep.mubr.bf16.mxu0 0
      %1482 = vmatmul.mubr.bf16.gmra.mrb[0].mxu0 %v1384
      %v1483 = vpop.f32.mrb[0].mxu0
      %v1484 = vadd.f32 0.0, %v1483
      %v1485 = vpop.f32.mrb[0].mxu0
      %v1486 = vpop.f32.mrb[0].mxu0
      %v1487 = vadd.f32 0.0, %v1486
      %v1488 = vpop.f32.mrb[0].mxu0
      %1489 = vmatprep.mubr.bf16.mxu0 0
      %1490 = vmatmul.mubr.bf16.gmra.mrb[0].mxu0 %v1387
      %v1491 = vpop.f32.mrb[0].mxu0
      %v1492 = vadd.f32 0.0, %v1491
      %v1493 = vpop.f32.mrb[0].mxu0
      %v1494 = vpop.f32.mrb[0].mxu0
      %v1495 = vadd.f32 0.0, %v1494
      %v1496 = vpop.f32.mrb[0].mxu0
      %1497 = vmatprep.mubr.bf16.mxu0 0
      %1498 = vmatmul.mubr.bf16.gmra.mrb[0].mxu0 %v1390
      %v1499 = vpop.f32.mrb[0].mxu0
      %v1500 = vadd.f32 0.0, %v1499
      %v1501 = vpop.f32.mrb[0].mxu0
      %v1502 = vpop.f32.mrb[0].mxu0
      %v1503 = vadd.f32 0.0, %v1502
      %v1504 = vpop.f32.mrb[0].mxu0
      %1505 = vmatprep.mubr.bf16.mxu0 0
      %1506 = vmatmul.mubr.bf16.gmra.mrb[0].mxu0 %v1393
      %v1507 = vpop.f32.mrb[0].mxu0
      %v1508 = vadd.f32 0.0, %v1507
      %v1509 = vpop.f32.mrb[0].mxu0
      %v1510 = vpop.f32.mrb[0].mxu0
      %v1511 = vadd.f32 0.0, %v1510
      %v1512 = vpop.f32.mrb[0].mxu0
      %1513 = vmatprep.mubr.bf16.mxu0 0
      %1514 = vmatmul.mubr.bf16.gmra.mrb[0].mxu0 %v1396
      %v1515 = vpop.f32.mrb[0].mxu0
      %v1516 = vadd.f32 0.0, %v1515
      %v1517 = vpop.f32.mrb[0].mxu0
      %v1518 = vpop.f32.mrb[0].mxu0
      %v1519 = vadd.f32 0.0, %v1518
      %v1520 = vpop.f32.mrb[0].mxu0
      %1521 = vmatprep.mubr.bf16.mxu0 0
      %1522 = vmatmul.mubr.bf16.gmra.mrb[0].mxu0 %v1399
      %v1523 = vpop.f32.mrb[0].mxu0
      %v1524 = vadd.f32 0.0, %v1523
      %v1525 = vpop.f32.mrb[0].mxu0
      %v1526 = vpop.f32.mrb[0].mxu0
      %v1527 = vadd.f32 0.0, %v1526
      %v1528 = vpop.f32.mrb[0].mxu0
      %1529 = vmatprep.mubr.bf16.mxu0 0
      %1530 = vmatmul.mubr.bf16.gmra.mrb[0].mxu0 %v1402
      %v1531 = vpop.f32.mrb[0].mxu0
      %v1532 = vadd.f32 0.0, %v1531
      %v1533 = vpop.f32.mrb[0].mxu0
      %v1534 = vpop.f32.mrb[0].mxu0
      %v1535 = vadd.f32 0.0, %v1534
      %v1536 = vpop.f32.mrb[0].mxu0
      %1537 = vmatprep.mubr.bf16.mxu0 0
      %1538 = vmatmul.mubr.bf16.gmra.mrb[0].mxu0 %v1405
      %v1539 = vpop.f32.mrb[0].mxu0
      %v1540 = vadd.f32 0.0, %v1539
      %v1541 = vpop.f32.mrb[0].mxu0
      %v1542 = vpop.f32.mrb[0].mxu0
      %v1543 = vadd.f32 0.0, %v1542
      %v1544 = vpop.f32.mrb[0].mxu0
      %1545 = vmatprep.mubr.bf16.mxu0 0
      %1546 = vmatmul.mubr.bf16.gmra.mrb[0].mxu0 %v1408
      %v1547 = vpop.f32.mrb[0].mxu0
      %v1548 = vadd.f32 0.0, %v1547
      %v1549 = vpop.f32.mrb[0].mxu0
      %v1550 = vpop.f32.mrb[0].mxu0
      %v1551 = vadd.f32 0.0, %v1550
      %v1552 = vpop.f32.mrb[0].mxu0
      %1553 = vmatprep.mubr.bf16.mxu0 0
      %1554 = vmatmul.mubr.bf16.gmra.mrb[0].mxu0 %v1411
      %v1555 = vpop.f32.mrb[0].mxu0
      %v1556 = vadd.f32 0.0, %v1555
      %v1557 = vpop.f32.mrb[0].mxu0
      %v1558 = vpop.f32.mrb[0].mxu0
      %v1559 = vadd.f32 0.0, %v1558
      %v1560 = vpop.f32.mrb[0].mxu0
      %1561 = vmatprep.mubr.bf16.mxu0 0
      %1562 = vmatmul.mubr.bf16.gmra.mrb[0].mxu0 %v1414
      %v1563 = vpop.f32.mrb[0].mxu0
      %v1564 = vadd.f32 0.0, %v1563
      %v1565 = vpop.f32.mrb[0].mxu0
      %v1566 = vpop.f32.mrb[0].mxu0
      %v1567 = vadd.f32 0.0, %v1566
      %v1568 = vpop.f32.mrb[0].mxu0
      %1569 = vmatprep.mubr.bf16.mxu0 0
      %1570 = vmatmul.mubr.bf16.gmra.mrb[0].mxu0 %v1417
      %v1571 = vpop.f32.mrb[0].mxu0
      %v1572 = vadd.f32 0.0, %v1571
      %v1573 = vpop.f32.mrb[0].mxu0
      %v1574 = vpop.f32.mrb[0].mxu0
      %v1575 = vadd.f32 0.0, %v1574
      %v1576 = vpop.f32.mrb[0].mxu0
      %1577 = vmatprep.mubr.bf16.mxu0 0
      %1578 = vmatmul.mubr.bf16.gmra.mrb[0].mxu0 %v1420
      %v1579 = vpop.f32.mrb[0].mxu0
      %v1580 = vadd.f32 0.0, %v1579
      %v1581 = vpop.f32.mrb[0].mxu0
      %v1582 = vpop.f32.mrb[0].mxu0
      %v1583 = vadd.f32 0.0, %v1582
      %v1584 = vpop.f32.mrb[0].mxu0
      %1585 = vdwg.mxu0
      %v1586 = vadd.f32 %v1292, %v1460
      %v1587 = vadd.f32 %v1293, %v1463
      %v1588 = vadd.f32 %v1294, %v1468
      %v1589 = vadd.f32 %v1295, %v1471
      %v1590 = vadd.f32 %v1296, %v1476
      %v1591 = vadd.f32 %v1297, %v1479
      %v1592 = vadd.f32 %v1298, %v1484
      %v1593 = vadd.f32 %v1299, %v1487
      %v1594 = vadd.f32 %v1300, %v1492
      %v1595 = vadd.f32 %v1301, %v1495
      %v1596 = vadd.f32 %v1302, %v1500
      %v1597 = vadd.f32 %v1303, %v1503
      %v1598 = vadd.f32 %v1304, %v1508
      %v1599 = vadd.f32 %v1305, %v1511
      %v1600 = vadd.f32 %v1306, %v1516
      %v1601 = vadd.f32 %v1307, %v1519
      %v1602 = vadd.f32 %v1308, %v1524
      %v1603 = vadd.f32 %v1309, %v1527
      %v1604 = vadd.f32 %v1310, %v1532
      %v1605 = vadd.f32 %v1311, %v1535
      %v1606 = vadd.f32 %v1312, %v1540
      %v1607 = vadd.f32 %v1313, %v1543
      %v1608 = vadd.f32 %v1314, %v1548
      %v1609 = vadd.f32 %v1315, %v1551
      %v1610 = vadd.f32 %v1316, %v1556
      %v1611 = vadd.f32 %v1317, %v1559
      %v1612 = vadd.f32 %v1318, %v1564
      %v1613 = vadd.f32 %v1319, %v1567
      %v1614 = vadd.f32 %v1320, %v1572
      %v1615 = vadd.f32 %v1321, %v1575
      %v1616 = vadd.f32 %v1322, %v1580
      %v1617 = vadd.f32 %v1323, %v1583
      %1618 = vst.msk [vmem:[#allocation2] sm:$0xff] %vm401, %v1586
      %1619 = vst.msk [vmem:[#allocation2 + $0x8] sm:$0xff] %vm401, %v1587
      %1620 = vst.msk [vmem:[#allocation2 + $0x10] sm:$0xff] %vm401, %v1588
      %1621 = vst.msk [vmem:[#allocation2 + $0x18] sm:$0xff] %vm401, %v1589
      %1622 = vst.msk [vmem:[#allocation2 + $0x20] sm:$0xff] %vm401, %v1590
      %1623 = vst.msk [vmem:[#allocation2 + $0x28] sm:$0xff] %vm401, %v1591
      %1624 = vst.msk [vmem:[#allocation2 + $0x30] sm:$0xff] %vm401, %v1592
      %1625 = vst.msk [vmem:[#allocation2 + $0x38] sm:$0xff] %vm401, %v1593
      %1626 = vst.msk [vmem:[#allocation2 + $0x40] sm:$0xff] %vm401, %v1594
      %1627 = vst.msk [vmem:[#allocation2 + $0x48] sm:$0xff] %vm401, %v1595
      %1628 = vst.msk [vmem:[#allocation2 + $0x50] sm:$0xff] %vm401, %v1596
      %1629 = vst.msk [vmem:[#allocation2 + $0x58] sm:$0xff] %vm401, %v1597
      %1630 = vst.msk [vmem:[#allocation2 + $0x60] sm:$0xff] %vm401, %v1598
      %1631 = vst.msk [vmem:[#allocation2 + $0x68] sm:$0xff] %vm401, %v1599
      %1632 = vst.msk [vmem:[#allocation2 + $0x70] sm:$0xff] %vm401, %v1600
      %1633 = vst.msk [vmem:[#allocation2 + $0x78] sm:$0xff] %vm401, %v1601
      %1634 = vst.msk [vmem:[#allocation2 + $0x80] sm:$0xff] %vm401, %v1602
      %1635 = vst.msk [vmem:[#allocation2 + $0x88] sm:$0xff] %vm401, %v1603
      %1636 = vst.msk [vmem:[#allocation2 + $0x90] sm:$0xff] %vm401, %v1604
      %1637 = vst.msk [vmem:[#allocation2 + $0x98] sm:$0xff] %vm401, %v1605
      %1638 = vst.msk [vmem:[#allocation2 + $0xa0] sm:$0xff] %vm401, %v1606
      %1639 = vst.msk [vmem:[#allocation2 + $0xa8] sm:$0xff] %vm401, %v1607
      %1640 = vst.msk [vmem:[#allocation2 + $0xb0] sm:$0xff] %vm401, %v1608
      %1641 = vst.msk [vmem:[#allocation2 + $0xb8] sm:$0xff] %vm401, %v1609
      %1642 = vst.msk [vmem:[#allocation2 + $0xc0] sm:$0xff] %vm401, %v1610
      %1643 = vst.msk [vmem:[#allocation2 + $0xc8] sm:$0xff] %vm401, %v1611
      %1644 = vst.msk [vmem:[#allocation2 + $0xd0] sm:$0xff] %vm401, %v1612
      %1645 = vst.msk [vmem:[#allocation2 + $0xd8] sm:$0xff] %vm401, %v1613
      %1646 = vst.msk [vmem:[#allocation2 + $0xe0] sm:$0xff] %vm401, %v1614
      %1647 = vst.msk [vmem:[#allocation2 + $0xe8] sm:$0xff] %vm401, %v1615
      %1648 = vst.msk [vmem:[#allocation2 + $0xf0] sm:$0xff] %vm401, %v1616
      %1649 = vst.msk [vmem:[#allocation2 + $0xf8] sm:$0xff] %vm401, %v1617
      %v1650 = vld [vmem:[%s273] sm:$0xe]
      %v1651 = vld [vmem:[%s273 + $0x4] sm:$0xf]
      %v1652 = vld [vmem:[%s273 + $0x8] sm:$0x1]
      %v1653 = vld [vmem:[%s273 + $0xc] sm:$0xe]
      %v1654 = vld [vmem:[%s273 + $0x10] sm:$0xf]
      %v1655 = vld [vmem:[%s273 + $0x14] sm:$0x1]
      %v1656 = vld [vmem:[%s273 + $0x18] sm:$0xe]
      %v1657 = vld [vmem:[%s273 + $0x1c] sm:$0xf]
      %v1658 = vld [vmem:[%s273 + $0x20] sm:$0x1]
      %v1659 = vld [vmem:[%s273 + $0x24] sm:$0xe]
      %v1660 = vld [vmem:[%s273 + $0x28] sm:$0xf]
      %v1661 = vld [vmem:[%s273 + $0x2c] sm:$0x1]
      %v1662 = vld [vmem:[%s273 + $0x30] sm:$0xe]
      %v1663 = vld [vmem:[%s273 + $0x34] sm:$0xf]
      %v1664 = vld [vmem:[%s273 + $0x38] sm:$0x1]
      %v1665 = vld [vmem:[%s273 + $0x3c] sm:$0xe]
      %v1666 = vld [vmem:[%s273 + $0x40] sm:$0xf]
      %v1667 = vld [vmem:[%s273 + $0x44] sm:$0x1]
      %v1668 = vld [vmem:[%s273 + $0x48] sm:$0xe]
      %v1669 = vld [vmem:[%s273 + $0x4c] sm:$0xf]
      %v1670 = vld [vmem:[%s273 + $0x50] sm:$0x1]
      %v1671 = vld [vmem:[%s273 + $0x54] sm:$0xe]
      %v1672 = vld [vmem:[%s273 + $0x58] sm:$0xf]
      %v1673 = vld [vmem:[%s273 + $0x5c] sm:$0x1]
      %v1674 = vld [vmem:[%s273 + $0x60] sm:$0xe]
      %v1675 = vld [vmem:[%s273 + $0x64] sm:$0xf]
      %v1676 = vld [vmem:[%s273 + $0x68] sm:$0x1]
      %v1677 = vld [vmem:[%s273 + $0x6c] sm:$0xe]
      %v1678 = vld [vmem:[%s273 + $0x70] sm:$0xf]
      %v1679 = vld [vmem:[%s273 + $0x74] sm:$0x1]
      %v1680 = vld [vmem:[%s273 + $0x78] sm:$0xe]
      %v1681 = vld [vmem:[%s273 + $0x7c] sm:$0xf]
      %v1682 = vld [vmem:[%s273 + $0x80] sm:$0x1]
      %v1683 = vld [vmem:[%s273 + $0x84] sm:$0xe]
      %v1684 = vld [vmem:[%s273 + $0x88] sm:$0xf]
      %v1685 = vld [vmem:[%s273 + $0x8c] sm:$0x1]
      %v1686 = vld [vmem:[%s273 + $0x90] sm:$0xe]
      %v1687 = vld [vmem:[%s273 + $0x94] sm:$0xf]
      %v1688 = vld [vmem:[%s273 + $0x98] sm:$0x1]
      %v1689 = vld [vmem:[%s273 + $0x9c] sm:$0xe]
      %v1690 = vld [vmem:[%s273 + $0xa0] sm:$0xf]
      %v1691 = vld [vmem:[%s273 + $0xa4] sm:$0x1]
      %v1692 = vld [vmem:[%s273 + $0xa8] sm:$0xe]
      %v1693 = vld [vmem:[%s273 + $0xac] sm:$0xf]
      %v1694 = vld [vmem:[%s273 + $0xb0] sm:$0x1]
      %v1695 = vld [vmem:[%s273 + $0xb4] sm:$0xe]
      %v1696 = vld [vmem:[%s273 + $0xb8] sm:$0xf]
      %v1697 = vld [vmem:[%s273 + $0xbc] sm:$0x1]
      %vm1746 = vcmask 1042432
      %vm1747 = vcmask 1046532
      %vm1748 = vmor %vm1746, %vm1747
      %v1749 = vrot.slane %v1650, 5
      %v1750 = vrot.slane %v1749, 4
      %v1751 = vrot.slane %v1651, 5
      %v1752 = vsel %vm1748, %v1750, %v1751
      %v1753 = vrot.slane %v1751, 4
      %v1754 = vrot.slane %v1652, 5
      %v1755 = vsel %vm1748, %v1753, %v1754
      %v1756 = vrot.slane %v1653, 5
      %v1757 = vrot.slane %v1756, 4
      %v1758 = vrot.slane %v1654, 5
      %v1759 = vsel %vm1748, %v1757, %v1758
      %v1760 = vrot.slane %v1758, 4
      %v1761 = vrot.slane %v1655, 5
      %v1762 = vsel %vm1748, %v1760, %v1761
      %v1763 = vrot.slane %v1656, 5
      %v1764 = vrot.slane %v1763, 4
      %v1765 = vrot.slane %v1657, 5
      %v1766 = vsel %vm1748, %v1764, %v1765
      %v1767 = vrot.slane %v1765, 4
      %v1768 = vrot.slane %v1658, 5
      %v1769 = vsel %vm1748, %v1767, %v1768
      %v1770 = vrot.slane %v1659, 5
      %v1771 = vrot.slane %v1770, 4
      %v1772 = vrot.slane %v1660, 5
      %v1773 = vsel %vm1748, %v1771, %v1772
      %v1774 = vrot.slane %v1772, 4
      %v1775 = vrot.slane %v1661, 5
      %v1776 = vsel %vm1748, %v1774, %v1775
      %v1777 = vrot.slane %v1662, 5
      %v1778 = vrot.slane %v1777, 4
      %v1779 = vrot.slane %v1663, 5
      %v1780 = vsel %vm1748, %v1778, %v1779
      %v1781 = vrot.slane %v1779, 4
      %v1782 = vrot.slane %v1664, 5
      %v1783 = vsel %vm1748, %v1781, %v1782
      %v1784 = vrot.slane %v1665, 5
      %v1785 = vrot.slane %v1784, 4
      %v1786 = vrot.slane %v1666, 5
      %v1787 = vsel %vm1748, %v1785, %v1786
      %v1788 = vrot.slane %v1786, 4
      %v1789 = vrot.slane %v1667, 5
      %v1790 = vsel %vm1748, %v1788, %v1789
      %v1791 = vrot.slane %v1668, 5
      %v1792 = vrot.slane %v1791, 4
      %v1793 = vrot.slane %v1669, 5
      %v1794 = vsel %vm1748, %v1792, %v1793
      %v1795 = vrot.slane %v1793, 4
      %v1796 = vrot.slane %v1670, 5
      %v1797 = vsel %vm1748, %v1795, %v1796
      %v1798 = vrot.slane %v1671, 5
      %v1799 = vrot.slane %v1798, 4
      %v1800 = vrot.slane %v1672, 5
      %v1801 = vsel %vm1748, %v1799, %v1800
      %v1802 = vrot.slane %v1800, 4
      %v1803 = vrot.slane %v1673, 5
      %v1804 = vsel %vm1748, %v1802, %v1803
      %v1805 = vrot.slane %v1674, 5
      %v1806 = vrot.slane %v1805, 4
      %v1807 = vrot.slane %v1675, 5
      %v1808 = vsel %vm1748, %v1806, %v1807
      %v1809 = vrot.slane %v1807, 4
      %v1810 = vrot.slane %v1676, 5
      %v1811 = vsel %vm1748, %v1809, %v1810
      %v1812 = vrot.slane %v1677, 5
      %v1813 = vrot.slane %v1812, 4
      %v1814 = vrot.slane %v1678, 5
      %v1815 = vsel %vm1748, %v1813, %v1814
      %v1816 = vrot.slane %v1814, 4
      %v1817 = vrot.slane %v1679, 5
      %v1818 = vsel %vm1748, %v1816, %v1817
      %v1819 = vrot.slane %v1680, 5
      %v1820 = vrot.slane %v1819, 4
      %v1821 = vrot.slane %v1681, 5
      %v1822 = vsel %vm1748, %v1820, %v1821
      %v1823 = vrot.slane %v1821, 4
      %v1824 = vrot.slane %v1682, 5
      %v1825 = vsel %vm1748, %v1823, %v1824
      %v1826 = vrot.slane %v1683, 5
      %v1827 = vrot.slane %v1826, 4
      %v1828 = vrot.slane %v1684, 5
      %v1829 = vsel %vm1748, %v1827, %v1828
      %v1830 = vrot.slane %v1828, 4
      %v1831 = vrot.slane %v1685, 5
      %v1832 = vsel %vm1748, %v1830, %v1831
      %v1833 = vrot.slane %v1686, 5
      %v1834 = vrot.slane %v1833, 4
      %v1835 = vrot.slane %v1687, 5
      %v1836 = vsel %vm1748, %v1834, %v1835
      %v1837 = vrot.slane %v1835, 4
      %v1838 = vrot.slane %v1688, 5
      %v1839 = vsel %vm1748, %v1837, %v1838
      %v1840 = vrot.slane %v1689, 5
      %v1841 = vrot.slane %v1840, 4
      %v1842 = vrot.slane %v1690, 5
      %v1843 = vsel %vm1748, %v1841, %v1842
      %v1844 = vrot.slane %v1842, 4
      %v1845 = vrot.slane %v1691, 5
      %v1846 = vsel %vm1748, %v1844, %v1845
      %v1847 = vrot.slane %v1692, 5
      %v1848 = vrot.slane %v1847, 4
      %v1849 = vrot.slane %v1693, 5
      %v1850 = vsel %vm1748, %v1848, %v1849
      %v1851 = vrot.slane %v1849, 4
      %v1852 = vrot.slane %v1694, 5
      %v1853 = vsel %vm1748, %v1851, %v1852
      %v1854 = vrot.slane %v1695, 5
      %v1855 = vrot.slane %v1854, 4
      %v1856 = vrot.slane %v1696, 5
      %v1857 = vsel %vm1748, %v1855, %v1856
      %v1858 = vrot.slane %v1856, 4
      %v1859 = vrot.slane %v1697, 5
      %v1860 = vsel %vm1748, %v1858, %v1859
      %v1861 = vld [vmem:[#allocation2] sm:$0xff]
      %v1862 = vld [vmem:[#allocation2 + $0x8] sm:$0xff]
      %v1863 = vld [vmem:[#allocation2 + $0x10] sm:$0xff]
      %v1864 = vld [vmem:[#allocation2 + $0x18] sm:$0xff]
      %v1865 = vld [vmem:[#allocation2 + $0x20] sm:$0xff]
      %v1866 = vld [vmem:[#allocation2 + $0x28] sm:$0xff]
      %v1867 = vld [vmem:[#allocation2 + $0x30] sm:$0xff]
      %v1868 = vld [vmem:[#allocation2 + $0x38] sm:$0xff]
      %v1869 = vld [vmem:[#allocation2 + $0x40] sm:$0xff]
      %v1870 = vld [vmem:[#allocation2 + $0x48] sm:$0xff]
      %v1871 = vld [vmem:[#allocation2 + $0x50] sm:$0xff]
      %v1872 = vld [vmem:[#allocation2 + $0x58] sm:$0xff]
      %v1873 = vld [vmem:[#allocation2 + $0x60] sm:$0xff]
      %v1874 = vld [vmem:[#allocation2 + $0x68] sm:$0xff]
      %v1875 = vld [vmem:[#allocation2 + $0x70] sm:$0xff]
      %v1876 = vld [vmem:[#allocation2 + $0x78] sm:$0xff]
      %v1877 = vld [vmem:[#allocation2 + $0x80] sm:$0xff]
      %v1878 = vld [vmem:[#allocation2 + $0x88] sm:$0xff]
      %v1879 = vld [vmem:[#allocation2 + $0x90] sm:$0xff]
      %v1880 = vld [vmem:[#allocation2 + $0x98] sm:$0xff]
      %v1881 = vld [vmem:[#allocation2 + $0xa0] sm:$0xff]
      %v1882 = vld [vmem:[#allocation2 + $0xa8] sm:$0xff]
      %v1883 = vld [vmem:[#allocation2 + $0xb0] sm:$0xff]
      %v1884 = vld [vmem:[#allocation2 + $0xb8] sm:$0xff]
      %v1885 = vld [vmem:[#allocation2 + $0xc0] sm:$0xff]
      %v1886 = vld [vmem:[#allocation2 + $0xc8] sm:$0xff]
      %v1887 = vld [vmem:[#allocation2 + $0xd0] sm:$0xff]
      %v1888 = vld [vmem:[#allocation2 + $0xd8] sm:$0xff]
      %v1889 = vld [vmem:[#allocation2 + $0xe0] sm:$0xff]
      %v1890 = vld [vmem:[#allocation2 + $0xe8] sm:$0xff]
      %v1891 = vld [vmem:[#allocation2 + $0xf0] sm:$0xff]
      %v1892 = vld [vmem:[#allocation2 + $0xf8] sm:$0xff]
      %s1893 = scalar_lea.vmem %s1, 8
      %v1894 = vld [vmem:[%s1893] sm:$0xf]
      %v1895 = vunpack.c.l.b16 %v1752
      %v1896 = vunpack.c.l.b16 %v1755
      %v1897 = vunpack.c.l.b16 %v1759
      %v1898 = vunpack.c.l.b16 %v1762
      %v1899 = vunpack.c.l.b16 %v1766
      %v1900 = vunpack.c.l.b16 %v1769
      %v1901 = vunpack.c.l.b16 %v1773
      %v1902 = vunpack.c.l.b16 %v1776
      %v1903 = vunpack.c.l.b16 %v1780
      %v1904 = vunpack.c.l.b16 %v1783
      %v1905 = vunpack.c.l.b16 %v1787
      %v1906 = vunpack.c.l.b16 %v1790
      %v1907 = vunpack.c.l.b16 %v1794
      %v1908 = vunpack.c.l.b16 %v1797
      %v1909 = vunpack.c.l.b16 %v1801
      %v1910 = vunpack.c.l.b16 %v1804
      %v1911 = vunpack.c.l.b16 %v1808
      %v1912 = vunpack.c.l.b16 %v1811
      %v1913 = vunpack.c.l.b16 %v1815
      %v1914 = vunpack.c.l.b16 %v1818
      %v1915 = vunpack.c.l.b16 %v1822
      %v1916 = vunpack.c.l.b16 %v1825
      %v1917 = vunpack.c.l.b16 %v1829
      %v1918 = vunpack.c.l.b16 %v1832
      %v1919 = vunpack.c.l.b16 %v1836
      %v1920 = vunpack.c.l.b16 %v1839
      %v1921 = vunpack.c.l.b16 %v1843
      %v1922 = vunpack.c.l.b16 %v1846
      %v1923 = vunpack.c.l.b16 %v1850
      %v1924 = vunpack.c.l.b16 %v1853
      %v1925 = vunpack.c.l.b16 %v1857
      %v1926 = vunpack.c.l.b16 %v1860
      %v1927 = vpack.c.b16 %v1896, %v1895
      %v1928 = vpack.c.b16 %v1898, %v1897
      %v1929 = vpack.c.b16 %v1900, %v1899
      %v1930 = vpack.c.b16 %v1902, %v1901
      %v1931 = vpack.c.b16 %v1904, %v1903
      %v1932 = vpack.c.b16 %v1906, %v1905
      %v1933 = vpack.c.b16 %v1908, %v1907
      %v1934 = vpack.c.b16 %v1910, %v1909
      %v1935 = vpack.c.b16 %v1912, %v1911
      %v1936 = vpack.c.b16 %v1914, %v1913
      %v1937 = vpack.c.b16 %v1916, %v1915
      %v1938 = vpack.c.b16 %v1918, %v1917
      %v1939 = vpack.c.b16 %v1920, %v1919
      %v1940 = vpack.c.b16 %v1922, %v1921
      %v1941 = vpack.c.b16 %v1924, %v1923
      %v1942 = vpack.c.b16 %v1926, %v1925
      %v1944 = vsel %vm579, %v1927, 0
      %v1947 = vsel %vm579, %v1928, 0
      %v1950 = vsel %vm579, %v1929, 0
      %v1953 = vsel %vm579, %v1930, 0
      %v1956 = vsel %vm579, %v1931, 0
      %v1959 = vsel %vm579, %v1932, 0
      %v1962 = vsel %vm579, %v1933, 0
      %v1965 = vsel %vm579, %v1934, 0
      %v1968 = vsel %vm579, %v1935, 0
      %v1971 = vsel %vm579, %v1936, 0
      %v1974 = vsel %vm579, %v1937, 0
      %v1977 = vsel %vm579, %v1938, 0
      %v1980 = vsel %vm579, %v1939, 0
      %v1983 = vsel %vm579, %v1940, 0
      %v1986 = vsel %vm579, %v1941, 0
      %v1989 = vsel %vm579, %v1942, 0
      %v1992 = vsel %vm628, %v1894, 0
      %1994 = vmatprep.subr.bf16.mxu0 0
      %1995 = vmatpush1.bf16.msra.mxu0 %v1992
      %1996 = vmatprep.subr.bf16.mxu0 0
      %1997 = vmatpush1.bf16.msra.mxu0 0
      %1998 = vmatprep.subr.bf16.mxu0 0
      %1999 = vmatpush1.bf16.msra.mxu0 0
      %2000 = vmatprep.subr.bf16.mxu0 0
      %2001 = vmatpush1.bf16.msra.mxu0 0
      %2002 = vmatprep.subr.bf16.mxu0 0
      %2003 = vmatpush1.bf16.msra.mxu0 0
      %2004 = vmatprep.subr.bf16.mxu0 0
      %2005 = vmatpush1.bf16.msra.mxu0 0
      %2006 = vmatprep.subr.bf16.mxu0 0
      %2007 = vmatpush1.bf16.msra.mxu0 0
      %2008 = vmatprep.subr.bf16.mxu0 0
      %2009 = vmatpush1.bf16.msra.mxu0 0
      %2010 = vmatprep.subr.bf16.mxu0 0
      %2011 = vmatpush1.bf16.msra.mxu0 0
      %2012 = vmatprep.subr.bf16.mxu0 0
      %2013 = vmatpush1.bf16.msra.mxu0 0
      %2014 = vmatprep.subr.bf16.mxu0 0
      %2015 = vmatpush1.bf16.msra.mxu0 0
      %2016 = vmatprep.subr.bf16.mxu0 0
      %2017 = vmatpush1.bf16.msra.mxu0 0
      %2018 = vmatprep.subr.bf16.mxu0 0
      %2019 = vmatpush1.bf16.msra.mxu0 0
      %2020 = vmatprep.subr.bf16.mxu0 0
      %2021 = vmatpush1.bf16.msra.mxu0 0
      %2022 = vmatprep.subr.bf16.mxu0 0
      %2023 = vmatpush1.bf16.msra.mxu0 0
      %2024 = vmatprep.subr.bf16.mxu0 0
      %2025 = vmatpush1.bf16.msra.mxu0 0
      %2026 = vmatprep.mubr.bf16.mxu0 0
      %2027 = vmatmul.mubr.bf16.gmra.mrb[0].mxu0 %v1944
      %v2028 = vpop.f32.mrb[0].mxu0
      %v2029 = vadd.f32 0.0, %v2028
      %v2030 = vpop.f32.mrb[0].mxu0
      %v2031 = vpop.f32.mrb[0].mxu0
      %v2032 = vadd.f32 0.0, %v2031
      %v2033 = vpop.f32.mrb[0].mxu0
      %2034 = vmatprep.mubr.bf16.mxu0 0
      %2035 = vmatmul.mubr.bf16.gmra.mrb[0].mxu0 %v1947
      %v2036 = vpop.f32.mrb[0].mxu0
      %v2037 = vadd.f32 0.0, %v2036
      %v2038 = vpop.f32.mrb[0].mxu0
      %v2039 = vpop.f32.mrb[0].mxu0
      %v2040 = vadd.f32 0.0, %v2039
      %v2041 = vpop.f32.mrb[0].mxu0
      %2042 = vmatprep.mubr.bf16.mxu0 0
      %2043 = vmatmul.mubr.bf16.gmra.mrb[0].mxu0 %v1950
      %v2044 = vpop.f32.mrb[0].mxu0
      %v2045 = vadd.f32 0.0, %v2044
      %v2046 = vpop.f32.mrb[0].mxu0
      %v2047 = vpop.f32.mrb[0].mxu0
      %v2048 = vadd.f32 0.0, %v2047
      %v2049 = vpop.f32.mrb[0].mxu0
      %2050 = vmatprep.mubr.bf16.mxu0 0
      %2051 = vmatmul.mubr.bf16.gmra.mrb[0].mxu0 %v1953
      %v2052 = vpop.f32.mrb[0].mxu0
      %v2053 = vadd.f32 0.0, %v2052
      %v2054 = vpop.f32.mrb[0].mxu0
      %v2055 = vpop.f32.mrb[0].mxu0
      %v2056 = vadd.f32 0.0, %v2055
      %v2057 = vpop.f32.mrb[0].mxu0
      %2058 = vmatprep.mubr.bf16.mxu0 0
      %2059 = vmatmul.mubr.bf16.gmra.mrb[0].mxu0 %v1956
      %v2060 = vpop.f32.mrb[0].mxu0
      %v2061 = vadd.f32 0.0, %v2060
      %v2062 = vpop.f32.mrb[0].mxu0
      %v2063 = vpop.f32.mrb[0].mxu0
      %v2064 = vadd.f32 0.0, %v2063
      %v2065 = vpop.f32.mrb[0].mxu0
      %2066 = vmatprep.mubr.bf16.mxu0 0
      %2067 = vmatmul.mubr.bf16.gmra.mrb[0].mxu0 %v1959
      %v2068 = vpop.f32.mrb[0].mxu0
      %v2069 = vadd.f32 0.0, %v2068
      %v2070 = vpop.f32.mrb[0].mxu0
      %v2071 = vpop.f32.mrb[0].mxu0
      %v2072 = vadd.f32 0.0, %v2071
      %v2073 = vpop.f32.mrb[0].mxu0
      %2074 = vmatprep.mubr.bf16.mxu0 0
      %2075 = vmatmul.mubr.bf16.gmra.mrb[0].mxu0 %v1962
      %v2076 = vpop.f32.mrb[0].mxu0
      %v2077 = vadd.f32 0.0, %v2076
      %v2078 = vpop.f32.mrb[0].mxu0
      %v2079 = vpop.f32.mrb[0].mxu0
      %v2080 = vadd.f32 0.0, %v2079
      %v2081 = vpop.f32.mrb[0].mxu0
      %2082 = vmatprep.mubr.bf16.mxu0 0
      %2083 = vmatmul.mubr.bf16.gmra.mrb[0].mxu0 %v1965
      %v2084 = vpop.f32.mrb[0].mxu0
      %v2085 = vadd.f32 0.0, %v2084
      %v2086 = vpop.f32.mrb[0].mxu0
      %v2087 = vpop.f32.mrb[0].mxu0
      %v2088 = vadd.f32 0.0, %v2087
      %v2089 = vpop.f32.mrb[0].mxu0
      %2090 = vmatprep.mubr.bf16.mxu0 0
      %2091 = vmatmul.mubr.bf16.gmra.mrb[0].mxu0 %v1968
      %v2092 = vpop.f32.mrb[0].mxu0
      %v2093 = vadd.f32 0.0, %v2092
      %v2094 = vpop.f32.mrb[0].mxu0
      %v2095 = vpop.f32.mrb[0].mxu0
      %v2096 = vadd.f32 0.0, %v2095
      %v2097 = vpop.f32.mrb[0].mxu0
      %2098 = vmatprep.mubr.bf16.mxu0 0
      %2099 = vmatmul.mubr.bf16.gmra.mrb[0].mxu0 %v1971
      %v2100 = vpop.f32.mrb[0].mxu0
      %v2101 = vadd.f32 0.0, %v2100
      %v2102 = vpop.f32.mrb[0].mxu0
      %v2103 = vpop.f32.mrb[0].mxu0
      %v2104 = vadd.f32 0.0, %v2103
      %v2105 = vpop.f32.mrb[0].mxu0
      %2106 = vmatprep.mubr.bf16.mxu0 0
      %2107 = vmatmul.mubr.bf16.gmra.mrb[0].mxu0 %v1974
      %v2108 = vpop.f32.mrb[0].mxu0
      %v2109 = vadd.f32 0.0, %v2108
      %v2110 = vpop.f32.mrb[0].mxu0
      %v2111 = vpop.f32.mrb[0].mxu0
      %v2112 = vadd.f32 0.0, %v2111
      %v2113 = vpop.f32.mrb[0].mxu0
      %2114 = vmatprep.mubr.bf16.mxu0 0
      %2115 = vmatmul.mubr.bf16.gmra.mrb[0].mxu0 %v1977
      %v2116 = vpop.f32.mrb[0].mxu0
      %v2117 = vadd.f32 0.0, %v2116
      %v2118 = vpop.f32.mrb[0].mxu0
      %v2119 = vpop.f32.mrb[0].mxu0
      %v2120 = vadd.f32 0.0, %v2119
      %v2121 = vpop.f32.mrb[0].mxu0
      %2122 = vmatprep.mubr.bf16.mxu0 0
      %2123 = vmatmul.mubr.bf16.gmra.mrb[0].mxu0 %v1980
      %v2124 = vpop.f32.mrb[0].mxu0
      %v2125 = vadd.f32 0.0, %v2124
      %v2126 = vpop.f32.mrb[0].mxu0
      %v2127 = vpop.f32.mrb[0].mxu0
      %v2128 = vadd.f32 0.0, %v2127
      %v2129 = vpop.f32.mrb[0].mxu0
      %2130 = vmatprep.mubr.bf16.mxu0 0
      %2131 = vmatmul.mubr.bf16.gmra.mrb[0].mxu0 %v1983
      %v2132 = vpop.f32.mrb[0].mxu0
      %v2133 = vadd.f32 0.0, %v2132
      %v2134 = vpop.f32.mrb[0].mxu0
      %v2135 = vpop.f32.mrb[0].mxu0
      %v2136 = vadd.f32 0.0, %v2135
      %v2137 = vpop.f32.mrb[0].mxu0
      %2138 = vmatprep.mubr.bf16.mxu0 0
      %2139 = vmatmul.mubr.bf16.gmra.mrb[0].mxu0 %v1986
      %v2140 = vpop.f32.mrb[0].mxu0
      %v2141 = vadd.f32 0.0, %v2140
      %v2142 = vpop.f32.mrb[0].mxu0
      %v2143 = vpop.f32.mrb[0].mxu0
      %v2144 = vadd.f32 0.0, %v2143
      %v2145 = vpop.f32.mrb[0].mxu0
      %2146 = vmatprep.mubr.bf16.mxu0 0
      %2147 = vmatmul.mubr.bf16.gmra.mrb[0].mxu0 %v1989
      %v2148 = vpop.f32.mrb[0].mxu0
      %v2149 = vadd.f32 0.0, %v2148
      %v2150 = vpop.f32.mrb[0].mxu0
      %v2151 = vpop.f32.mrb[0].mxu0
      %v2152 = vadd.f32 0.0, %v2151
      %v2153 = vpop.f32.mrb[0].mxu0
      %2154 = vdwg.mxu0
      %v2155 = vadd.f32 %v1861, %v2029
      %v2156 = vadd.f32 %v1862, %v2032
      %v2157 = vadd.f32 %v1863, %v2037
      %v2158 = vadd.f32 %v1864, %v2040
      %v2159 = vadd.f32 %v1865, %v2045
      %v2160 = vadd.f32 %v1866, %v2048
      %v2161 = vadd.f32 %v1867, %v2053
      %v2162 = vadd.f32 %v1868, %v2056
      %v2163 = vadd.f32 %v1869, %v2061
      %v2164 = vadd.f32 %v1870, %v2064
      %v2165 = vadd.f32 %v1871, %v2069
      %v2166 = vadd.f32 %v1872, %v2072
      %v2167 = vadd.f32 %v1873, %v2077
      %v2168 = vadd.f32 %v1874, %v2080
      %v2169 = vadd.f32 %v1875, %v2085
      %v2170 = vadd.f32 %v1876, %v2088
      %v2171 = vadd.f32 %v1877, %v2093
      %v2172 = vadd.f32 %v1878, %v2096
      %v2173 = vadd.f32 %v1879, %v2101
      %v2174 = vadd.f32 %v1880, %v2104
      %v2175 = vadd.f32 %v1881, %v2109
      %v2176 = vadd.f32 %v1882, %v2112
      %v2177 = vadd.f32 %v1883, %v2117
      %v2178 = vadd.f32 %v1884, %v2120
      %v2179 = vadd.f32 %v1885, %v2125
      %v2180 = vadd.f32 %v1886, %v2128
      %v2181 = vadd.f32 %v1887, %v2133
      %v2182 = vadd.f32 %v1888, %v2136
      %v2183 = vadd.f32 %v1889, %v2141
      %v2184 = vadd.f32 %v1890, %v2144
      %v2185 = vadd.f32 %v1891, %v2149
      %v2186 = vadd.f32 %v1892, %v2152
      %2187 = vst.msk [vmem:[#allocation2] sm:$0xff] %vm401, %v2155
      %2188 = vst.msk [vmem:[#allocation2 + $0x8] sm:$0xff] %vm401, %v2156
      %2189 = vst.msk [vmem:[#allocation2 + $0x10] sm:$0xff] %vm401, %v2157
      %2190 = vst.msk [vmem:[#allocation2 + $0x18] sm:$0xff] %vm401, %v2158
      %2191 = vst.msk [vmem:[#allocation2 + $0x20] sm:$0xff] %vm401, %v2159
      %2192 = vst.msk [vmem:[#allocation2 + $0x28] sm:$0xff] %vm401, %v2160
      %2193 = vst.msk [vmem:[#allocation2 + $0x30] sm:$0xff] %vm401, %v2161
      %2194 = vst.msk [vmem:[#allocation2 + $0x38] sm:$0xff] %vm401, %v2162
      %2195 = vst.msk [vmem:[#allocation2 + $0x40] sm:$0xff] %vm401, %v2163
      %2196 = vst.msk [vmem:[#allocation2 + $0x48] sm:$0xff] %vm401, %v2164
      %2197 = vst.msk [vmem:[#allocation2 + $0x50] sm:$0xff] %vm401, %v2165
      %2198 = vst.msk [vmem:[#allocation2 + $0x58] sm:$0xff] %vm401, %v2166
      %2199 = vst.msk [vmem:[#allocation2 + $0x60] sm:$0xff] %vm401, %v2167
      %2200 = vst.msk [vmem:[#allocation2 + $0x68] sm:$0xff] %vm401, %v2168
      %2201 = vst.msk [vmem:[#allocation2 + $0x70] sm:$0xff] %vm401, %v2169
      %2202 = vst.msk [vmem:[#allocation2 + $0x78] sm:$0xff] %vm401, %v2170
      %2203 = vst.msk [vmem:[#allocation2 + $0x80] sm:$0xff] %vm401, %v2171
      %2204 = vst.msk [vmem:[#allocation2 + $0x88] sm:$0xff] %vm401, %v2172
      %2205 = vst.msk [vmem:[#allocation2 + $0x90] sm:$0xff] %vm401, %v2173
      %2206 = vst.msk [vmem:[#allocation2 + $0x98] sm:$0xff] %vm401, %v2174
      %2207 = vst.msk [vmem:[#allocation2 + $0xa0] sm:$0xff] %vm401, %v2175
      %2208 = vst.msk [vmem:[#allocation2 + $0xa8] sm:$0xff] %vm401, %v2176
      %2209 = vst.msk [vmem:[#allocation2 + $0xb0] sm:$0xff] %vm401, %v2177
      %2210 = vst.msk [vmem:[#allocation2 + $0xb8] sm:$0xff] %vm401, %v2178
      %2211 = vst.msk [vmem:[#allocation2 + $0xc0] sm:$0xff] %vm401, %v2179
      %2212 = vst.msk [vmem:[#allocation2 + $0xc8] sm:$0xff] %vm401, %v2180
      %2213 = vst.msk [vmem:[#allocation2 + $0xd0] sm:$0xff] %vm401, %v2181
      %2214 = vst.msk [vmem:[#allocation2 + $0xd8] sm:$0xff] %vm401, %v2182
      %2215 = vst.msk [vmem:[#allocation2 + $0xe0] sm:$0xff] %vm401, %v2183
      %2216 = vst.msk [vmem:[#allocation2 + $0xe8] sm:$0xff] %vm401, %v2184
      %2217 = vst.msk [vmem:[#allocation2 + $0xf0] sm:$0xff] %vm401, %v2185
      %2218 = vst.msk [vmem:[#allocation2 + $0xf8] sm:$0xff] %vm401, %v2186
      %s2219 = scalar_lea.vmem %s273, 12
      %v2220 = vld [vmem:[%s2219] sm:$0xf]
      %v2221 = vld [vmem:[%s2219 + $0x4] sm:$0xf]
      %v2222 = vld [vmem:[%s2219 + $0xc] sm:$0xf]
      %v2223 = vld [vmem:[%s2219 + $0x10] sm:$0xf]
      %v2224 = vld [vmem:[%s2219 + $0x18] sm:$0xf]
      %v2225 = vld [vmem:[%s2219 + $0x1c] sm:$0xf]
      %v2226 = vld [vmem:[%s2219 + $0x24] sm:$0xf]
      %v2227 = vld [vmem:[%s2219 + $0x28] sm:$0xf]
      %v2228 = vld [vmem:[%s2219 + $0x30] sm:$0xf]
      %v2229 = vld [vmem:[%s2219 + $0x34] sm:$0xf]
      %v2230 = vld [vmem:[%s2219 + $0x3c] sm:$0xf]
      %v2231 = vld [vmem:[%s2219 + $0x40] sm:$0xf]
      %v2232 = vld [vmem:[%s2219 + $0x48] sm:$0xf]
      %v2233 = vld [vmem:[%s2219 + $0x4c] sm:$0xf]
      %v2234 = vld [vmem:[%s2219 + $0x54] sm:$0xf]
      %v2235 = vld [vmem:[%s2219 + $0x58] sm:$0xf]
      %v2236 = vld [vmem:[%s2219 + $0x60] sm:$0xf]
      %v2237 = vld [vmem:[%s2219 + $0x64] sm:$0xf]
      %v2238 = vld [vmem:[%s2219 + $0x6c] sm:$0xf]
      %v2239 = vld [vmem:[%s2219 + $0x70] sm:$0xf]
      %v2240 = vld [vmem:[%s2219 + $0x78] sm:$0xf]
      %v2241 = vld [vmem:[%s2219 + $0x7c] sm:$0xf]
      %v2242 = vld [vmem:[%s2219 + $0x84] sm:$0xf]
      %v2243 = vld [vmem:[%s2219 + $0x88] sm:$0xf]
      %v2244 = vld [vmem:[%s2219 + $0x90] sm:$0xf]
      %v2245 = vld [vmem:[%s2219 + $0x94] sm:$0xf]
      %v2246 = vld [vmem:[%s2219 + $0x9c] sm:$0xf]
      %v2247 = vld [vmem:[%s2219 + $0xa0] sm:$0xf]
      %v2248 = vld [vmem:[%s2219 + $0xa8] sm:$0xf]
      %v2249 = vld [vmem:[%s2219 + $0xac] sm:$0xf]
      %v2250 = vld [vmem:[%s2219 + $0xb4] sm:$0xf]
      %v2251 = vld [vmem:[%s2219 + $0xb8] sm:$0xf]
      %v2252 = vld [vmem:[#allocation2] sm:$0xff]
      %v2253 = vld [vmem:[#allocation2 + $0x8] sm:$0xff]
      %v2254 = vld [vmem:[#allocation2 + $0x10] sm:$0xff]
      %v2255 = vld [vmem:[#allocation2 + $0x18] sm:$0xff]
      %v2256 = vld [vmem:[#allocation2 + $0x20] sm:$0xff]
      %v2257 = vld [vmem:[#allocation2 + $0x28] sm:$0xff]
      %v2258 = vld [vmem:[#allocation2 + $0x30] sm:$0xff]
      %v2259 = vld [vmem:[#allocation2 + $0x38] sm:$0xff]
      %v2260 = vld [vmem:[#allocation2 + $0x40] sm:$0xff]
      %v2261 = vld [vmem:[#allocation2 + $0x48] sm:$0xff]
      %v2262 = vld [vmem:[#allocation2 + $0x50] sm:$0xff]
      %v2263 = vld [vmem:[#allocation2 + $0x58] sm:$0xff]
      %v2264 = vld [vmem:[#allocation2 + $0x60] sm:$0xff]
      %v2265 = vld [vmem:[#allocation2 + $0x68] sm:$0xff]
      %v2266 = vld [vmem:[#allocation2 + $0x70] sm:$0xff]
      %v2267 = vld [vmem:[#allocation2 + $0x78] sm:$0xff]
      %v2268 = vld [vmem:[#allocation2 + $0x80] sm:$0xff]
      %v2269 = vld [vmem:[#allocation2 + $0x88] sm:$0xff]
      %v2270 = vld [vmem:[#allocation2 + $0x90] sm:$0xff]
      %v2271 = vld [vmem:[#allocation2 + $0x98] sm:$0xff]
      %v2272 = vld [vmem:[#allocation2 + $0xa0] sm:$0xff]
      %v2273 = vld [vmem:[#allocation2 + $0xa8] sm:$0xff]
      %v2274 = vld [vmem:[#allocation2 + $0xb0] sm:$0xff]
      %v2275 = vld [vmem:[#allocation2 + $0xb8] sm:$0xff]
      %v2276 = vld [vmem:[#allocation2 + $0xc0] sm:$0xff]
      %v2277 = vld [vmem:[#allocation2 + $0xc8] sm:$0xff]
      %v2278 = vld [vmem:[#allocation2 + $0xd0] sm:$0xff]
      %v2279 = vld [vmem:[#allocation2 + $0xd8] sm:$0xff]
      %v2280 = vld [vmem:[#allocation2 + $0xe0] sm:$0xff]
      %v2281 = vld [vmem:[#allocation2 + $0xe8] sm:$0xff]
      %v2282 = vld [vmem:[#allocation2 + $0xf0] sm:$0xff]
      %v2283 = vld [vmem:[#allocation2 + $0xf8] sm:$0xff]
      %s2284 = scalar_lea.vmem %s1, 12
      %v2285 = vld [vmem:[%s2284] sm:$0xf]
      %v2318 = vunpack.c.l.b16 %v2220
      %v2319 = vunpack.c.l.b16 %v2221
      %v2320 = vunpack.c.l.b16 %v2222
      %v2321 = vunpack.c.l.b16 %v2223
      %v2322 = vunpack.c.l.b16 %v2224
      %v2323 = vunpack.c.l.b16 %v2225
      %v2324 = vunpack.c.l.b16 %v2226
      %v2325 = vunpack.c.l.b16 %v2227
      %v2326 = vunpack.c.l.b16 %v2228
      %v2327 = vunpack.c.l.b16 %v2229
      %v2328 = vunpack.c.l.b16 %v2230
      %v2329 = vunpack.c.l.b16 %v2231
      %v2330 = vunpack.c.l.b16 %v2232
      %v2331 = vunpack.c.l.b16 %v2233
      %v2332 = vunpack.c.l.b16 %v2234
      %v2333 = vunpack.c.l.b16 %v2235
      %v2334 = vunpack.c.l.b16 %v2236
      %v2335 = vunpack.c.l.b16 %v2237
      %v2336 = vunpack.c.l.b16 %v2238
      %v2337 = vunpack.c.l.b16 %v2239
      %v2338 = vunpack.c.l.b16 %v2240
      %v2339 = vunpack.c.l.b16 %v2241
      %v2340 = vunpack.c.l.b16 %v2242
      %v2341 = vunpack.c.l.b16 %v2243
      %v2342 = vunpack.c.l.b16 %v2244
      %v2343 = vunpack.c.l.b16 %v2245
      %v2344 = vunpack.c.l.b16 %v2246
      %v2345 = vunpack.c.l.b16 %v2247
      %v2346 = vunpack.c.l.b16 %v2248
      %v2347 = vunpack.c.l.b16 %v2249
      %v2348 = vunpack.c.l.b16 %v2250
      %v2349 = vunpack.c.l.b16 %v2251
      %v2350 = vpack.c.b16 %v2319, %v2318
      %v2351 = vpack.c.b16 %v2321, %v2320
      %v2352 = vpack.c.b16 %v2323, %v2322
      %v2353 = vpack.c.b16 %v2325, %v2324
      %v2354 = vpack.c.b16 %v2327, %v2326
      %v2355 = vpack.c.b16 %v2329, %v2328
      %v2356 = vpack.c.b16 %v2331, %v2330
      %v2357 = vpack.c.b16 %v2333, %v2332
      %v2358 = vpack.c.b16 %v2335, %v2334
      %v2359 = vpack.c.b16 %v2337, %v2336
      %v2360 = vpack.c.b16 %v2339, %v2338
      %v2361 = vpack.c.b16 %v2341, %v2340
      %v2362 = vpack.c.b16 %v2343, %v2342
      %v2363 = vpack.c.b16 %v2345, %v2344
      %v2364 = vpack.c.b16 %v2347, %v2346
      %v2365 = vpack.c.b16 %v2349, %v2348
      %v2367 = vsel %vm579, %v2350, 0
      %v2370 = vsel %vm579, %v2351, 0
      %v2373 = vsel %vm579, %v2352, 0
      %v2376 = vsel %vm579, %v2353, 0
      %v2379 = vsel %vm579, %v2354, 0
      %v2382 = vsel %vm579, %v2355, 0
      %v2385 = vsel %vm579, %v2356, 0
      %v2388 = vsel %vm579, %v2357, 0
      %v2391 = vsel %vm579, %v2358, 0
      %v2394 = vsel %vm579, %v2359, 0
      %v2397 = vsel %vm579, %v2360, 0
      %v2400 = vsel %vm579, %v2361, 0
      %v2403 = vsel %vm579, %v2362, 0
      %v2406 = vsel %vm579, %v2363, 0
      %v2409 = vsel %vm579, %v2364, 0
      %v2412 = vsel %vm579, %v2365, 0
      %v2415 = vsel %vm628, %v2285, 0
      %2417 = vmatprep.subr.bf16.mxu0 0
      %2418 = vmatpush1.bf16.msra.mxu0 %v2415
      %2419 = vmatprep.subr.bf16.mxu0 0
      %2420 = vmatpush1.bf16.msra.mxu0 0
      %2421 = vmatprep.subr.bf16.mxu0 0
      %2422 = vmatpush1.bf16.msra.mxu0 0
      %2423 = vmatprep.subr.bf16.mxu0 0
      %2424 = vmatpush1.bf16.msra.mxu0 0
      %2425 = vmatprep.subr.bf16.mxu0 0
      %2426 = vmatpush1.bf16.msra.mxu0 0
      %2427 = vmatprep.subr.bf16.mxu0 0
      %2428 = vmatpush1.bf16.msra.mxu0 0
      %2429 = vmatprep.subr.bf16.mxu0 0
      %2430 = vmatpush1.bf16.msra.mxu0 0
      %2431 = vmatprep.subr.bf16.mxu0 0
      %2432 = vmatpush1.bf16.msra.mxu0 0
      %2433 = vmatprep.subr.bf16.mxu0 0
      %2434 = vmatpush1.bf16.msra.mxu0 0
      %2435 = vmatprep.subr.bf16.mxu0 0
      %2436 = vmatpush1.bf16.msra.mxu0 0
      %2437 = vmatprep.subr.bf16.mxu0 0
      %2438 = vmatpush1.bf16.msra.mxu0 0
      %2439 = vmatprep.subr.bf16.mxu0 0
      %2440 = vmatpush1.bf16.msra.mxu0 0
      %2441 = vmatprep.subr.bf16.mxu0 0
      %2442 = vmatpush1.bf16.msra.mxu0 0
      %2443 = vmatprep.subr.bf16.mxu0 0
      %2444 = vmatpush1.bf16.msra.mxu0 0
      %2445 = vmatprep.subr.bf16.mxu0 0
      %2446 = vmatpush1.bf16.msra.mxu0 0
      %2447 = vmatprep.subr.bf16.mxu0 0
      %2448 = vmatpush1.bf16.msra.mxu0 0
      %2449 = vmatprep.mubr.bf16.mxu0 0
      %2450 = vmatmul.mubr.bf16.gmra.mrb[0].mxu0 %v2367
      %v2451 = vpop.f32.mrb[0].mxu0
      %v2452 = vadd.f32 0.0, %v2451
      %v2453 = vpop.f32.mrb[0].mxu0
      %v2454 = vpop.f32.mrb[0].mxu0
      %v2455 = vadd.f32 0.0, %v2454
      %v2456 = vpop.f32.mrb[0].mxu0
      %2457 = vmatprep.mubr.bf16.mxu0 0
      %2458 = vmatmul.mubr.bf16.gmra.mrb[0].mxu0 %v2370
      %v2459 = vpop.f32.mrb[0].mxu0
      %v2460 = vadd.f32 0.0, %v2459
      %v2461 = vpop.f32.mrb[0].mxu0
      %v2462 = vpop.f32.mrb[0].mxu0
      %v2463 = vadd.f32 0.0, %v2462
      %v2464 = vpop.f32.mrb[0].mxu0
      %2465 = vmatprep.mubr.bf16.mxu0 0
      %2466 = vmatmul.mubr.bf16.gmra.mrb[0].mxu0 %v2373
      %v2467 = vpop.f32.mrb[0].mxu0
      %v2468 = vadd.f32 0.0, %v2467
      %v2469 = vpop.f32.mrb[0].mxu0
      %v2470 = vpop.f32.mrb[0].mxu0
      %v2471 = vadd.f32 0.0, %v2470
      %v2472 = vpop.f32.mrb[0].mxu0
      %2473 = vmatprep.mubr.bf16.mxu0 0
      %2474 = vmatmul.mubr.bf16.gmra.mrb[0].mxu0 %v2376
      %v2475 = vpop.f32.mrb[0].mxu0
      %v2476 = vadd.f32 0.0, %v2475
      %v2477 = vpop.f32.mrb[0].mxu0
      %v2478 = vpop.f32.mrb[0].mxu0
      %v2479 = vadd.f32 0.0, %v2478
      %v2480 = vpop.f32.mrb[0].mxu0
      %2481 = vmatprep.mubr.bf16.mxu0 0
      %2482 = vmatmul.mubr.bf16.gmra.mrb[0].mxu0 %v2379
      %v2483 = vpop.f32.mrb[0].mxu0
      %v2484 = vadd.f32 0.0, %v2483
      %v2485 = vpop.f32.mrb[0].mxu0
      %v2486 = vpop.f32.mrb[0].mxu0
      %v2487 = vadd.f32 0.0, %v2486
      %v2488 = vpop.f32.mrb[0].mxu0
      %2489 = vmatprep.mubr.bf16.mxu0 0
      %2490 = vmatmul.mubr.bf16.gmra.mrb[0].mxu0 %v2382
      %v2491 = vpop.f32.mrb[0].mxu0
      %v2492 = vadd.f32 0.0, %v2491
      %v2493 = vpop.f32.mrb[0].mxu0
      %v2494 = vpop.f32.mrb[0].mxu0
      %v2495 = vadd.f32 0.0, %v2494
      %v2496 = vpop.f32.mrb[0].mxu0
      %2497 = vmatprep.mubr.bf16.mxu0 0
      %2498 = vmatmul.mubr.bf16.gmra.mrb[0].mxu0 %v2385
      %v2499 = vpop.f32.mrb[0].mxu0
      %v2500 = vadd.f32 0.0, %v2499
      %v2501 = vpop.f32.mrb[0].mxu0
      %v2502 = vpop.f32.mrb[0].mxu0
      %v2503 = vadd.f32 0.0, %v2502
      %v2504 = vpop.f32.mrb[0].mxu0
      %2505 = vmatprep.mubr.bf16.mxu0 0
      %2506 = vmatmul.mubr.bf16.gmra.mrb[0].mxu0 %v2388
      %v2507 = vpop.f32.mrb[0].mxu0
      %v2508 = vadd.f32 0.0, %v2507
      %v2509 = vpop.f32.mrb[0].mxu0
      %v2510 = vpop.f32.mrb[0].mxu0
      %v2511 = vadd.f32 0.0, %v2510
      %v2512 = vpop.f32.mrb[0].mxu0
      %2513 = vmatprep.mubr.bf16.mxu0 0
      %2514 = vmatmul.mubr.bf16.gmra.mrb[0].mxu0 %v2391
      %v2515 = vpop.f32.mrb[0].mxu0
      %v2516 = vadd.f32 0.0, %v2515
      %v2517 = vpop.f32.mrb[0].mxu0
      %v2518 = vpop.f32.mrb[0].mxu0
      %v2519 = vadd.f32 0.0, %v2518
      %v2520 = vpop.f32.mrb[0].mxu0
      %2521 = vmatprep.mubr.bf16.mxu0 0
      %2522 = vmatmul.mubr.bf16.gmra.mrb[0].mxu0 %v2394
      %v2523 = vpop.f32.mrb[0].mxu0
      %v2524 = vadd.f32 0.0, %v2523
      %v2525 = vpop.f32.mrb[0].mxu0
      %v2526 = vpop.f32.mrb[0].mxu0
      %v2527 = vadd.f32 0.0, %v2526
      %v2528 = vpop.f32.mrb[0].mxu0
      %2529 = vmatprep.mubr.bf16.mxu0 0
      %2530 = vmatmul.mubr.bf16.gmra.mrb[0].mxu0 %v2397
      %v2531 = vpop.f32.mrb[0].mxu0
      %v2532 = vadd.f32 0.0, %v2531
      %v2533 = vpop.f32.mrb[0].mxu0
      %v2534 = vpop.f32.mrb[0].mxu0
      %v2535 = vadd.f32 0.0, %v2534
      %v2536 = vpop.f32.mrb[0].mxu0
      %2537 = vmatprep.mubr.bf16.mxu0 0
      %2538 = vmatmul.mubr.bf16.gmra.mrb[0].mxu0 %v2400
      %v2539 = vpop.f32.mrb[0].mxu0
      %v2540 = vadd.f32 0.0, %v2539
      %v2541 = vpop.f32.mrb[0].mxu0
      %v2542 = vpop.f32.mrb[0].mxu0
      %v2543 = vadd.f32 0.0, %v2542
      %v2544 = vpop.f32.mrb[0].mxu0
      %2545 = vmatprep.mubr.bf16.mxu0 0
      %2546 = vmatmul.mubr.bf16.gmra.mrb[0].mxu0 %v2403
      %v2547 = vpop.f32.mrb[0].mxu0
      %v2548 = vadd.f32 0.0, %v2547
      %v2549 = vpop.f32.mrb[0].mxu0
      %v2550 = vpop.f32.mrb[0].mxu0
      %v2551 = vadd.f32 0.0, %v2550
      %v2552 = vpop.f32.mrb[0].mxu0
      %2553 = vmatprep.mubr.bf16.mxu0 0
      %2554 = vmatmul.mubr.bf16.gmra.mrb[0].mxu0 %v2406
      %v2555 = vpop.f32.mrb[0].mxu0
      %v2556 = vadd.f32 0.0, %v2555
      %v2557 = vpop.f32.mrb[0].mxu0
      %v2558 = vpop.f32.mrb[0].mxu0
      %v2559 = vadd.f32 0.0, %v2558
      %v2560 = vpop.f32.mrb[0].mxu0
      %2561 = vmatprep.mubr.bf16.mxu0 0
      %2562 = vmatmul.mubr.bf16.gmra.mrb[0].mxu0 %v2409
      %v2563 = vpop.f32.mrb[0].mxu0
      %v2564 = vadd.f32 0.0, %v2563
      %v2565 = vpop.f32.mrb[0].mxu0
      %v2566 = vpop.f32.mrb[0].mxu0
      %v2567 = vadd.f32 0.0, %v2566
      %v2568 = vpop.f32.mrb[0].mxu0
      %2569 = vmatprep.mubr.bf16.mxu0 0
      %2570 = vmatmul.mubr.bf16.gmra.mrb[0].mxu0 %v2412
      %v2571 = vpop.f32.mrb[0].mxu0
      %v2572 = vadd.f32 0.0, %v2571
      %v2573 = vpop.f32.mrb[0].mxu0
      %v2574 = vpop.f32.mrb[0].mxu0
      %v2575 = vadd.f32 0.0, %v2574
      %v2576 = vpop.f32.mrb[0].mxu0
      %2577 = vdwg.mxu0
      %v2578 = vadd.f32 %v2252, %v2452
      %v2579 = vadd.f32 %v2253, %v2455
      %v2580 = vadd.f32 %v2254, %v2460
      %v2581 = vadd.f32 %v2255, %v2463
      %v2582 = vadd.f32 %v2256, %v2468
      %v2583 = vadd.f32 %v2257, %v2471
      %v2584 = vadd.f32 %v2258, %v2476
      %v2585 = vadd.f32 %v2259, %v2479
      %v2586 = vadd.f32 %v2260, %v2484
      %v2587 = vadd.f32 %v2261, %v2487
      %v2588 = vadd.f32 %v2262, %v2492
      %v2589 = vadd.f32 %v2263, %v2495
      %v2590 = vadd.f32 %v2264, %v2500
      %v2591 = vadd.f32 %v2265, %v2503
      %v2592 = vadd.f32 %v2266, %v2508
      %v2593 = vadd.f32 %v2267, %v2511
      %v2594 = vadd.f32 %v2268, %v2516
      %v2595 = vadd.f32 %v2269, %v2519
      %v2596 = vadd.f32 %v2270, %v2524
      %v2597 = vadd.f32 %v2271, %v2527
      %v2598 = vadd.f32 %v2272, %v2532
      %v2599 = vadd.f32 %v2273, %v2535
      %v2600 = vadd.f32 %v2274, %v2540
      %v2601 = vadd.f32 %v2275, %v2543
      %v2602 = vadd.f32 %v2276, %v2548
      %v2603 = vadd.f32 %v2277, %v2551
      %v2604 = vadd.f32 %v2278, %v2556
      %v2605 = vadd.f32 %v2279, %v2559
      %v2606 = vadd.f32 %v2280, %v2564
      %v2607 = vadd.f32 %v2281, %v2567
      %v2608 = vadd.f32 %v2282, %v2572
      %v2609 = vadd.f32 %v2283, %v2575
      %2610 = vst.msk [vmem:[#allocation2] sm:$0xff] %vm401, %v2578
      %2611 = vst.msk [vmem:[#allocation2 + $0x8] sm:$0xff] %vm401, %v2579
      %2612 = vst.msk [vmem:[#allocation2 + $0x10] sm:$0xff] %vm401, %v2580
      %2613 = vst.msk [vmem:[#allocation2 + $0x18] sm:$0xff] %vm401, %v2581
      %2614 = vst.msk [vmem:[#allocation2 + $0x20] sm:$0xff] %vm401, %v2582
      %2615 = vst.msk [vmem:[#allocation2 + $0x28] sm:$0xff] %vm401, %v2583
      %2616 = vst.msk [vmem:[#allocation2 + $0x30] sm:$0xff] %vm401, %v2584
      %2617 = vst.msk [vmem:[#allocation2 + $0x38] sm:$0xff] %vm401, %v2585
      %2618 = vst.msk [vmem:[#allocation2 + $0x40] sm:$0xff] %vm401, %v2586
      %2619 = vst.msk [vmem:[#allocation2 + $0x48] sm:$0xff] %vm401, %v2587
      %2620 = vst.msk [vmem:[#allocation2 + $0x50] sm:$0xff] %vm401, %v2588
      %2621 = vst.msk [vmem:[#allocation2 + $0x58] sm:$0xff] %vm401, %v2589
      %2622 = vst.msk [vmem:[#allocation2 + $0x60] sm:$0xff] %vm401, %v2590
      %2623 = vst.msk [vmem:[#allocation2 + $0x68] sm:$0xff] %vm401, %v2591
      %2624 = vst.msk [vmem:[#allocation2 + $0x70] sm:$0xff] %vm401, %v2592
      %2625 = vst.msk [vmem:[#allocation2 + $0x78] sm:$0xff] %vm401, %v2593
      %2626 = vst.msk [vmem:[#allocation2 + $0x80] sm:$0xff] %vm401, %v2594
      %2627 = vst.msk [vmem:[#allocation2 + $0x88] sm:$0xff] %vm401, %v2595
      %2628 = vst.msk [vmem:[#allocation2 + $0x90] sm:$0xff] %vm401, %v2596
      %2629 = vst.msk [vmem:[#allocation2 + $0x98] sm:$0xff] %vm401, %v2597
      %2630 = vst.msk [vmem:[#allocation2 + $0xa0] sm:$0xff] %vm401, %v2598
      %2631 = vst.msk [vmem:[#allocation2 + $0xa8] sm:$0xff] %vm401, %v2599
      %2632 = vst.msk [vmem:[#allocation2 + $0xb0] sm:$0xff] %vm401, %v2600
      %2633 = vst.msk [vmem:[#allocation2 + $0xb8] sm:$0xff] %vm401, %v2601
      %2634 = vst.msk [vmem:[#allocation2 + $0xc0] sm:$0xff] %vm401, %v2602
      %2635 = vst.msk [vmem:[#allocation2 + $0xc8] sm:$0xff] %vm401, %v2603
      %2636 = vst.msk [vmem:[#allocation2 + $0xd0] sm:$0xff] %vm401, %v2604
      %2637 = vst.msk [vmem:[#allocation2 + $0xd8] sm:$0xff] %vm401, %v2605
      %2638 = vst.msk [vmem:[#allocation2 + $0xe0] sm:$0xff] %vm401, %v2606
      %2639 = vst.msk [vmem:[#allocation2 + $0xe8] sm:$0xff] %vm401, %v2607
      %2640 = vst.msk [vmem:[#allocation2 + $0xf0] sm:$0xff] %vm401, %v2608
      %2641 = vst.msk [vmem:[#allocation2 + $0xf8] sm:$0xff] %vm401, %v2609
      %v2642 = vld [vmem:[%s2219] sm:$0xf]
      %v2643 = vld [vmem:[%s2219 + $0x4] sm:$0xf]
      %v2644 = vld [vmem:[%s2219 + $0x8] sm:$0x1]
      %v2645 = vld [vmem:[%s2219 + $0xc] sm:$0xf]
      %v2646 = vld [vmem:[%s2219 + $0x10] sm:$0xf]
      %v2647 = vld [vmem:[%s2219 + $0x14] sm:$0x1]
      %v2648 = vld [vmem:[%s2219 + $0x18] sm:$0xf]
      %v2649 = vld [vmem:[%s2219 + $0x1c] sm:$0xf]
      %v2650 = vld [vmem:[%s2219 + $0x20] sm:$0x1]
      %v2651 = vld [vmem:[%s2219 + $0x24] sm:$0xf]
      %v2652 = vld [vmem:[%s2219 + $0x28] sm:$0xf]
      %v2653 = vld [vmem:[%s2219 + $0x2c] sm:$0x1]
      %v2654 = vld [vmem:[%s2219 + $0x30] sm:$0xf]
      %v2655 = vld [vmem:[%s2219 + $0x34] sm:$0xf]
      %v2656 = vld [vmem:[%s2219 + $0x38] sm:$0x1]
      %v2657 = vld [vmem:[%s2219 + $0x3c] sm:$0xf]
      %v2658 = vld [vmem:[%s2219 + $0x40] sm:$0xf]
      %v2659 = vld [vmem:[%s2219 + $0x44] sm:$0x1]
      %v2660 = vld [vmem:[%s2219 + $0x48] sm:$0xf]
      %v2661 = vld [vmem:[%s2219 + $0x4c] sm:$0xf]
      %v2662 = vld [vmem:[%s2219 + $0x50] sm:$0x1]
      %v2663 = vld [vmem:[%s2219 + $0x54] sm:$0xf]
      %v2664 = vld [vmem:[%s2219 + $0x58] sm:$0xf]
      %v2665 = vld [vmem:[%s2219 + $0x5c] sm:$0x1]
      %v2666 = vld [vmem:[%s2219 + $0x60] sm:$0xf]
      %v2667 = vld [vmem:[%s2219 + $0x64] sm:$0xf]
      %v2668 = vld [vmem:[%s2219 + $0x68] sm:$0x1]
      %v2669 = vld [vmem:[%s2219 + $0x6c] sm:$0xf]
      %v2670 = vld [vmem:[%s2219 + $0x70] sm:$0xf]
      %v2671 = vld [vmem:[%s2219 + $0x74] sm:$0x1]
      %v2672 = vld [vmem:[%s2219 + $0x78] sm:$0xf]
      %v2673 = vld [vmem:[%s2219 + $0x7c] sm:$0xf]
      %v2674 = vld [vmem:[%s2219 + $0x80] sm:$0x1]
      %v2675 = vld [vmem:[%s2219 + $0x84] sm:$0xf]
      %v2676 = vld [vmem:[%s2219 + $0x88] sm:$0xf]
      %v2677 = vld [vmem:[%s2219 + $0x8c] sm:$0x1]
      %v2678 = vld [vmem:[%s2219 + $0x90] sm:$0xf]
      %v2679 = vld [vmem:[%s2219 + $0x94] sm:$0xf]
      %v2680 = vld [vmem:[%s2219 + $0x98] sm:$0x1]
      %v2681 = vld [vmem:[%s2219 + $0x9c] sm:$0xf]
      %v2682 = vld [vmem:[%s2219 + $0xa0] sm:$0xf]
      %v2683 = vld [vmem:[%s2219 + $0xa4] sm:$0x1]
      %v2684 = vld [vmem:[%s2219 + $0xa8] sm:$0xf]
      %v2685 = vld [vmem:[%s2219 + $0xac] sm:$0xf]
      %v2686 = vld [vmem:[%s2219 + $0xb0] sm:$0x1]
      %v2687 = vld [vmem:[%s2219 + $0xb4] sm:$0xf]
      %v2688 = vld [vmem:[%s2219 + $0xb8] sm:$0xf]
      %v2689 = vld [vmem:[%s2219 + $0xbc] sm:$0x1]
      %v2691 = vshrl.u32 %v2642, 16
      %v2693 = vrot.slane %v2691, 4
      %v2694 = vshll.u32 %v2642, 16
      %v2696 = vrot.slane %v2694, 5
      %v2697 = vor.u32 %v2693, %v2696
      %v2698 = vrot.slane %v2697, 4
      %v2700 = vshll.u32 %v2643, 16
      %v2702 = vrot.slane %v2700, 5
      %v2703 = vsel %vm907, %v2698, %v2702
      %v2704 = vshrl.u32 %v2643, 16
      %v2706 = vrot.slane %v2704, 4
      %v2707 = vor.u32 %v2706, %v2702
      %v2708 = vrot.slane %v2707, 4
      %v2710 = vshll.u32 %v2644, 16
      %v2712 = vrot.slane %v2710, 5
      %v2713 = vsel %vm907, %v2708, %v2712
      %v2715 = vshrl.u32 %v2645, 16
      %v2717 = vrot.slane %v2715, 4
      %v2718 = vshll.u32 %v2645, 16
      %v2720 = vrot.slane %v2718, 5
      %v2721 = vor.u32 %v2717, %v2720
      %v2722 = vrot.slane %v2721, 4
      %v2724 = vshll.u32 %v2646, 16
      %v2726 = vrot.slane %v2724, 5
      %v2727 = vsel %vm907, %v2722, %v2726
      %v2728 = vshrl.u32 %v2646, 16
      %v2730 = vrot.slane %v2728, 4
      %v2731 = vor.u32 %v2730, %v2726
      %v2732 = vrot.slane %v2731, 4
      %v2734 = vshll.u32 %v2647, 16
      %v2736 = vrot.slane %v2734, 5
      %v2737 = vsel %vm907, %v2732, %v2736
      %v2739 = vshrl.u32 %v2648, 16
      %v2741 = vrot.slane %v2739, 4
      %v2742 = vshll.u32 %v2648, 16
      %v2744 = vrot.slane %v2742, 5
      %v2745 = vor.u32 %v2741, %v2744
      %v2746 = vrot.slane %v2745, 4
      %v2748 = vshll.u32 %v2649, 16
      %v2750 = vrot.slane %v2748, 5
      %v2751 = vsel %vm907, %v2746, %v2750
      %v2752 = vshrl.u32 %v2649, 16
      %v2754 = vrot.slane %v2752, 4
      %v2755 = vor.u32 %v2754, %v2750
      %v2756 = vrot.slane %v2755, 4
      %v2758 = vshll.u32 %v2650, 16
      %v2760 = vrot.slane %v2758, 5
      %v2761 = vsel %vm907, %v2756, %v2760
      %v2763 = vshrl.u32 %v2651, 16
      %v2765 = vrot.slane %v2763, 4
      %v2766 = vshll.u32 %v2651, 16
      %v2768 = vrot.slane %v2766, 5
      %v2769 = vor.u32 %v2765, %v2768
      %v2770 = vrot.slane %v2769, 4
      %v2772 = vshll.u32 %v2652, 16
      %v2774 = vrot.slane %v2772, 5
      %v2775 = vsel %vm907, %v2770, %v2774
      %v2776 = vshrl.u32 %v2652, 16
      %v2778 = vrot.slane %v2776, 4
      %v2779 = vor.u32 %v2778, %v2774
      %v2780 = vrot.slane %v2779, 4
      %v2782 = vshll.u32 %v2653, 16
      %v2784 = vrot.slane %v2782, 5
      %v2785 = vsel %vm907, %v2780, %v2784
      %v2787 = vshrl.u32 %v2654, 16
      %v2789 = vrot.slane %v2787, 4
      %v2790 = vshll.u32 %v2654, 16
      %v2792 = vrot.slane %v2790, 5
      %v2793 = vor.u32 %v2789, %v2792
      %v2794 = vrot.slane %v2793, 4
      %v2796 = vshll.u32 %v2655, 16
      %v2798 = vrot.slane %v2796, 5
      %v2799 = vsel %vm907, %v2794, %v2798
      %v2800 = vshrl.u32 %v2655, 16
      %v2802 = vrot.slane %v2800, 4
      %v2803 = vor.u32 %v2802, %v2798
      %v2804 = vrot.slane %v2803, 4
      %v2806 = vshll.u32 %v2656, 16
      %v2808 = vrot.slane %v2806, 5
      %v2809 = vsel %vm907, %v2804, %v2808
      %v2811 = vshrl.u32 %v2657, 16
      %v2813 = vrot.slane %v2811, 4
      %v2814 = vshll.u32 %v2657, 16
      %v2816 = vrot.slane %v2814, 5
      %v2817 = vor.u32 %v2813, %v2816
      %v2818 = vrot.slane %v2817, 4
      %v2820 = vshll.u32 %v2658, 16
      %v2822 = vrot.slane %v2820, 5
      %v2823 = vsel %vm907, %v2818, %v2822
      %v2824 = vshrl.u32 %v2658, 16
      %v2826 = vrot.slane %v2824, 4
      %v2827 = vor.u32 %v2826, %v2822
      %v2828 = vrot.slane %v2827, 4
      %v2830 = vshll.u32 %v2659, 16
      %v2832 = vrot.slane %v2830, 5
      %v2833 = vsel %vm907, %v2828, %v2832
      %v2835 = vshrl.u32 %v2660, 16
      %v2837 = vrot.slane %v2835, 4
      %v2838 = vshll.u32 %v2660, 16
      %v2840 = vrot.slane %v2838, 5
      %v2841 = vor.u32 %v2837, %v2840
      %v2842 = vrot.slane %v2841, 4
      %v2844 = vshll.u32 %v2661, 16
      %v2846 = vrot.slane %v2844, 5
      %v2847 = vsel %vm907, %v2842, %v2846
      %v2848 = vshrl.u32 %v2661, 16
      %v2850 = vrot.slane %v2848, 4
      %v2851 = vor.u32 %v2850, %v2846
      %v2852 = vrot.slane %v2851, 4
      %v2854 = vshll.u32 %v2662, 16
      %v2856 = vrot.slane %v2854, 5
      %v2857 = vsel %vm907, %v2852, %v2856
      %v2859 = vshrl.u32 %v2663, 16
      %v2861 = vrot.slane %v2859, 4
      %v2862 = vshll.u32 %v2663, 16
      %v2864 = vrot.slane %v2862, 5
      %v2865 = vor.u32 %v2861, %v2864
      %v2866 = vrot.slane %v2865, 4
      %v2868 = vshll.u32 %v2664, 16
      %v2870 = vrot.slane %v2868, 5
      %v2871 = vsel %vm907, %v2866, %v2870
      %v2872 = vshrl.u32 %v2664, 16
      %v2874 = vrot.slane %v2872, 4
      %v2875 = vor.u32 %v2874, %v2870
      %v2876 = vrot.slane %v2875, 4
      %v2878 = vshll.u32 %v2665, 16
      %v2880 = vrot.slane %v2878, 5
      %v2881 = vsel %vm907, %v2876, %v2880
      %v2883 = vshrl.u32 %v2666, 16
      %v2885 = vrot.slane %v2883, 4
      %v2886 = vshll.u32 %v2666, 16
      %v2888 = vrot.slane %v2886, 5
      %v2889 = vor.u32 %v2885, %v2888
      %v2890 = vrot.slane %v2889, 4
      %v2892 = vshll.u32 %v2667, 16
      %v2894 = vrot.slane %v2892, 5
      %v2895 = vsel %vm907, %v2890, %v2894
      %v2896 = vshrl.u32 %v2667, 16
      %v2898 = vrot.slane %v2896, 4
      %v2899 = vor.u32 %v2898, %v2894
      %v2900 = vrot.slane %v2899, 4
      %v2902 = vshll.u32 %v2668, 16
      %v2904 = vrot.slane %v2902, 5
      %v2905 = vsel %vm907, %v2900, %v2904
      %v2907 = vshrl.u32 %v2669, 16
      %v2909 = vrot.slane %v2907, 4
      %v2910 = vshll.u32 %v2669, 16
      %v2912 = vrot.slane %v2910, 5
      %v2913 = vor.u32 %v2909, %v2912
      %v2914 = vrot.slane %v2913, 4
      %v2916 = vshll.u32 %v2670, 16
      %v2918 = vrot.slane %v2916, 5
      %v2919 = vsel %vm907, %v2914, %v2918
      %v2920 = vshrl.u32 %v2670, 16
      %v2922 = vrot.slane %v2920, 4
      %v2923 = vor.u32 %v2922, %v2918
      %v2924 = vrot.slane %v2923, 4
      %v2926 = vshll.u32 %v2671, 16
      %v2928 = vrot.slane %v2926, 5
      %v2929 = vsel %vm907, %v2924, %v2928
      %v2931 = vshrl.u32 %v2672, 16
      %v2933 = vrot.slane %v2931, 4
      %v2934 = vshll.u32 %v2672, 16
      %v2936 = vrot.slane %v2934, 5
      %v2937 = vor.u32 %v2933, %v2936
      %v2938 = vrot.slane %v2937, 4
      %v2940 = vshll.u32 %v2673, 16
      %v2942 = vrot.slane %v2940, 5
      %v2943 = vsel %vm907, %v2938, %v2942
      %v2944 = vshrl.u32 %v2673, 16
      %v2946 = vrot.slane %v2944, 4
      %v2947 = vor.u32 %v2946, %v2942
      %v2948 = vrot.slane %v2947, 4
      %v2950 = vshll.u32 %v2674, 16
      %v2952 = vrot.slane %v2950, 5
      %v2953 = vsel %vm907, %v2948, %v2952
      %v2955 = vshrl.u32 %v2675, 16
      %v2957 = vrot.slane %v2955, 4
      %v2958 = vshll.u32 %v2675, 16
      %v2960 = vrot.slane %v2958, 5
      %v2961 = vor.u32 %v2957, %v2960
      %v2962 = vrot.slane %v2961, 4
      %v2964 = vshll.u32 %v2676, 16
      %v2966 = vrot.slane %v2964, 5
      %v2967 = vsel %vm907, %v2962, %v2966
      %v2968 = vshrl.u32 %v2676, 16
      %v2970 = vrot.slane %v2968, 4
      %v2971 = vor.u32 %v2970, %v2966
      %v2972 = vrot.slane %v2971, 4
      %v2974 = vshll.u32 %v2677, 16
      %v2976 = vrot.slane %v2974, 5
      %v2977 = vsel %vm907, %v2972, %v2976
      %v2979 = vshrl.u32 %v2678, 16
      %v2981 = vrot.slane %v2979, 4
      %v2982 = vshll.u32 %v2678, 16
      %v2984 = vrot.slane %v2982, 5
      %v2985 = vor.u32 %v2981, %v2984
      %v2986 = vrot.slane %v2985, 4
      %v2988 = vshll.u32 %v2679, 16
      %v2990 = vrot.slane %v2988, 5
      %v2991 = vsel %vm907, %v2986, %v2990
      %v2992 = vshrl.u32 %v2679, 16
      %v2994 = vrot.slane %v2992, 4
      %v2995 = vor.u32 %v2994, %v2990
      %v2996 = vrot.slane %v2995, 4
      %v2998 = vshll.u32 %v2680, 16
      %v3000 = vrot.slane %v2998, 5
      %v3001 = vsel %vm907, %v2996, %v3000
      %v3003 = vshrl.u32 %v2681, 16
      %v3005 = vrot.slane %v3003, 4
      %v3006 = vshll.u32 %v2681, 16
      %v3008 = vrot.slane %v3006, 5
      %v3009 = vor.u32 %v3005, %v3008
      %v3010 = vrot.slane %v3009, 4
      %v3012 = vshll.u32 %v2682, 16
      %v3014 = vrot.slane %v3012, 5
      %v3015 = vsel %vm907, %v3010, %v3014
      %v3016 = vshrl.u32 %v2682, 16
      %v3018 = vrot.slane %v3016, 4
      %v3019 = vor.u32 %v3018, %v3014
      %v3020 = vrot.slane %v3019, 4
      %v3022 = vshll.u32 %v2683, 16
      %v3024 = vrot.slane %v3022, 5
      %v3025 = vsel %vm907, %v3020, %v3024
      %v3027 = vshrl.u32 %v2684, 16
      %v3029 = vrot.slane %v3027, 4
      %v3030 = vshll.u32 %v2684, 16
      %v3032 = vrot.slane %v3030, 5
      %v3033 = vor.u32 %v3029, %v3032
      %v3034 = vrot.slane %v3033, 4
      %v3036 = vshll.u32 %v2685, 16
      %v3038 = vrot.slane %v3036, 5
      %v3039 = vsel %vm907, %v3034, %v3038
      %v3040 = vshrl.u32 %v2685, 16
      %v3042 = vrot.slane %v3040, 4
      %v3043 = vor.u32 %v3042, %v3038
      %v3044 = vrot.slane %v3043, 4
      %v3046 = vshll.u32 %v2686, 16
      %v3048 = vrot.slane %v3046, 5
      %v3049 = vsel %vm907, %v3044, %v3048
      %v3051 = vshrl.u32 %v2687, 16
      %v3053 = vrot.slane %v3051, 4
      %v3054 = vshll.u32 %v2687, 16
      %v3056 = vrot.slane %v3054, 5
      %v3057 = vor.u32 %v3053, %v3056
      %v3058 = vrot.slane %v3057, 4
      %v3060 = vshll.u32 %v2688, 16
      %v3062 = vrot.slane %v3060, 5
      %v3063 = vsel %vm907, %v3058, %v3062
      %v3064 = vshrl.u32 %v2688, 16
      %v3066 = vrot.slane %v3064, 4
      %v3067 = vor.u32 %v3066, %v3062
      %v3068 = vrot.slane %v3067, 4
      %v3070 = vshll.u32 %v2689, 16
      %v3072 = vrot.slane %v3070, 5
      %v3073 = vsel %vm907, %v3068, %v3072
      %v3074 = vld [vmem:[#allocation2] sm:$0xff]
      %v3075 = vld [vmem:[#allocation2 + $0x8] sm:$0xff]
      %v3076 = vld [vmem:[#allocation2 + $0x10] sm:$0xff]
      %v3077 = vld [vmem:[#allocation2 + $0x18] sm:$0xff]
      %v3078 = vld [vmem:[#allocation2 + $0x20] sm:$0xff]
      %v3079 = vld [vmem:[#allocation2 + $0x28] sm:$0xff]
      %v3080 = vld [vmem:[#allocation2 + $0x30] sm:$0xff]
      %v3081 = vld [vmem:[#allocation2 + $0x38] sm:$0xff]
      %v3082 = vld [vmem:[#allocation2 + $0x40] sm:$0xff]
      %v3083 = vld [vmem:[#allocation2 + $0x48] sm:$0xff]
      %v3084 = vld [vmem:[#allocation2 + $0x50] sm:$0xff]
      %v3085 = vld [vmem:[#allocation2 + $0x58] sm:$0xff]
      %v3086 = vld [vmem:[#allocation2 + $0x60] sm:$0xff]
      %v3087 = vld [vmem:[#allocation2 + $0x68] sm:$0xff]
      %v3088 = vld [vmem:[#allocation2 + $0x70] sm:$0xff]
      %v3089 = vld [vmem:[#allocation2 + $0x78] sm:$0xff]
      %v3090 = vld [vmem:[#allocation2 + $0x80] sm:$0xff]
      %v3091 = vld [vmem:[#allocation2 + $0x88] sm:$0xff]
      %v3092 = vld [vmem:[#allocation2 + $0x90] sm:$0xff]
      %v3093 = vld [vmem:[#allocation2 + $0x98] sm:$0xff]
      %v3094 = vld [vmem:[#allocation2 + $0xa0] sm:$0xff]
      %v3095 = vld [vmem:[#allocation2 + $0xa8] sm:$0xff]
      %v3096 = vld [vmem:[#allocation2 + $0xb0] sm:$0xff]
      %v3097 = vld [vmem:[#allocation2 + $0xb8] sm:$0xff]
      %v3098 = vld [vmem:[#allocation2 + $0xc0] sm:$0xff]
      %v3099 = vld [vmem:[#allocation2 + $0xc8] sm:$0xff]
      %v3100 = vld [vmem:[#allocation2 + $0xd0] sm:$0xff]
      %v3101 = vld [vmem:[#allocation2 + $0xd8] sm:$0xff]
      %v3102 = vld [vmem:[#allocation2 + $0xe0] sm:$0xff]
      %v3103 = vld [vmem:[#allocation2 + $0xe8] sm:$0xff]
      %v3104 = vld [vmem:[#allocation2 + $0xf0] sm:$0xff]
      %v3105 = vld [vmem:[#allocation2 + $0xf8] sm:$0xff]
      %s3106 = scalar_lea.vmem %s1, 16
      %v3107 = vld [vmem:[%s3106] sm:$0xf]
      %v3108 = vunpack.c.l.b16 %v2703
      %v3109 = vunpack.c.l.b16 %v2713
      %v3110 = vunpack.c.l.b16 %v2727
      %v3111 = vunpack.c.l.b16 %v2737
      %v3112 = vunpack.c.l.b16 %v2751
      %v3113 = vunpack.c.l.b16 %v2761
      %v3114 = vunpack.c.l.b16 %v2775
      %v3115 = vunpack.c.l.b16 %v2785
      %v3116 = vunpack.c.l.b16 %v2799
      %v3117 = vunpack.c.l.b16 %v2809
      %v3118 = vunpack.c.l.b16 %v2823
      %v3119 = vunpack.c.l.b16 %v2833
      %v3120 = vunpack.c.l.b16 %v2847
      %v3121 = vunpack.c.l.b16 %v2857
      %v3122 = vunpack.c.l.b16 %v2871
      %v3123 = vunpack.c.l.b16 %v2881
      %v3124 = vunpack.c.l.b16 %v2895
      %v3125 = vunpack.c.l.b16 %v2905
      %v3126 = vunpack.c.l.b16 %v2919
      %v3127 = vunpack.c.l.b16 %v2929
      %v3128 = vunpack.c.l.b16 %v2943
      %v3129 = vunpack.c.l.b16 %v2953
      %v3130 = vunpack.c.l.b16 %v2967
      %v3131 = vunpack.c.l.b16 %v2977
      %v3132 = vunpack.c.l.b16 %v2991
      %v3133 = vunpack.c.l.b16 %v3001
      %v3134 = vunpack.c.l.b16 %v3015
      %v3135 = vunpack.c.l.b16 %v3025
      %v3136 = vunpack.c.l.b16 %v3039
      %v3137 = vunpack.c.l.b16 %v3049
      %v3138 = vunpack.c.l.b16 %v3063
      %v3139 = vunpack.c.l.b16 %v3073
      %v3140 = vpack.c.b16 %v3109, %v3108
      %v3141 = vpack.c.b16 %v3111, %v3110
      %v3142 = vpack.c.b16 %v3113, %v3112
      %v3143 = vpack.c.b16 %v3115, %v3114
      %v3144 = vpack.c.b16 %v3117, %v3116
      %v3145 = vpack.c.b16 %v3119, %v3118
      %v3146 = vpack.c.b16 %v3121, %v3120
      %v3147 = vpack.c.b16 %v3123, %v3122
      %v3148 = vpack.c.b16 %v3125, %v3124
      %v3149 = vpack.c.b16 %v3127, %v3126
      %v3150 = vpack.c.b16 %v3129, %v3128
      %v3151 = vpack.c.b16 %v3131, %v3130
      %v3152 = vpack.c.b16 %v3133, %v3132
      %v3153 = vpack.c.b16 %v3135, %v3134
      %v3154 = vpack.c.b16 %v3137, %v3136
      %v3155 = vpack.c.b16 %v3139, %v3138
      %v3157 = vsel %vm579, %v3140, 0
      %v3160 = vsel %vm579, %v3141, 0
      %v3163 = vsel %vm579, %v3142, 0
      %v3166 = vsel %vm579, %v3143, 0
      %v3169 = vsel %vm579, %v3144, 0
      %v3172 = vsel %vm579, %v3145, 0
      %v3175 = vsel %vm579, %v3146, 0
      %v3178 = vsel %vm579, %v3147, 0
      %v3181 = vsel %vm579, %v3148, 0
      %v3184 = vsel %vm579, %v3149, 0
      %v3187 = vsel %vm579, %v3150, 0
      %v3190 = vsel %vm579, %v3151, 0
      %v3193 = vsel %vm579, %v3152, 0
      %v3196 = vsel %vm579, %v3153, 0
      %v3199 = vsel %vm579, %v3154, 0
      %v3202 = vsel %vm579, %v3155, 0
      %v3205 = vsel %vm628, %v3107, 0
      %3207 = vmatprep.subr.bf16.mxu0 0
      %3208 = vmatpush1.bf16.msra.mxu0 %v3205
      %3209 = vmatprep.subr.bf16.mxu0 0
      %3210 = vmatpush1.bf16.msra.mxu0 0
      %3211 = vmatprep.subr.bf16.mxu0 0
      %3212 = vmatpush1.bf16.msra.mxu0 0
      %3213 = vmatprep.subr.bf16.mxu0 0
      %3214 = vmatpush1.bf16.msra.mxu0 0
      %3215 = vmatprep.subr.bf16.mxu0 0
      %3216 = vmatpush1.bf16.msra.mxu0 0
      %3217 = vmatprep.subr.bf16.mxu0 0
      %3218 = vmatpush1.bf16.msra.mxu0 0
      %3219 = vmatprep.subr.bf16.mxu0 0
      %3220 = vmatpush1.bf16.msra.mxu0 0
      %3221 = vmatprep.subr.bf16.mxu0 0
      %3222 = vmatpush1.bf16.msra.mxu0 0
      %3223 = vmatprep.subr.bf16.mxu0 0
      %3224 = vmatpush1.bf16.msra.mxu0 0
      %3225 = vmatprep.subr.bf16.mxu0 0
      %3226 = vmatpush1.bf16.msra.mxu0 0
      %3227 = vmatprep.subr.bf16.mxu0 0
      %3228 = vmatpush1.bf16.msra.mxu0 0
      %3229 = vmatprep.subr.bf16.mxu0 0
      %3230 = vmatpush1.bf16.msra.mxu0 0
      %3231 = vmatprep.subr.bf16.mxu0 0
      %3232 = vmatpush1.bf16.msra.mxu0 0
      %3233 = vmatprep.subr.bf16.mxu0 0
      %3234 = vmatpush1.bf16.msra.mxu0 0
      %3235 = vmatprep.subr.bf16.mxu0 0
      %3236 = vmatpush1.bf16.msra.mxu0 0
      %3237 = vmatprep.subr.bf16.mxu0 0
      %3238 = vmatpush1.bf16.msra.mxu0 0
      %3239 = vmatprep.mubr.bf16.mxu0 0
      %3240 = vmatmul.mubr.bf16.gmra.mrb[0].mxu0 %v3157
      %v3241 = vpop.f32.mrb[0].mxu0
      %v3242 = vadd.f32 0.0, %v3241
      %v3243 = vpop.f32.mrb[0].mxu0
      %v3244 = vpop.f32.mrb[0].mxu0
      %v3245 = vadd.f32 0.0, %v3244
      %v3246 = vpop.f32.mrb[0].mxu0
      %3247 = vmatprep.mubr.bf16.mxu0 0
      %3248 = vmatmul.mubr.bf16.gmra.mrb[0].mxu0 %v3160
      %v3249 = vpop.f32.mrb[0].mxu0
      %v3250 = vadd.f32 0.0, %v3249
      %v3251 = vpop.f32.mrb[0].mxu0
      %v3252 = vpop.f32.mrb[0].mxu0
      %v3253 = vadd.f32 0.0, %v3252
      %v3254 = vpop.f32.mrb[0].mxu0
      %3255 = vmatprep.mubr.bf16.mxu0 0
      %3256 = vmatmul.mubr.bf16.gmra.mrb[0].mxu0 %v3163
      %v3257 = vpop.f32.mrb[0].mxu0
      %v3258 = vadd.f32 0.0, %v3257
      %v3259 = vpop.f32.mrb[0].mxu0
      %v3260 = vpop.f32.mrb[0].mxu0
      %v3261 = vadd.f32 0.0, %v3260
      %v3262 = vpop.f32.mrb[0].mxu0
      %3263 = vmatprep.mubr.bf16.mxu0 0
      %3264 = vmatmul.mubr.bf16.gmra.mrb[0].mxu0 %v3166
      %v3265 = vpop.f32.mrb[0].mxu0
      %v3266 = vadd.f32 0.0, %v3265
      %v3267 = vpop.f32.mrb[0].mxu0
      %v3268 = vpop.f32.mrb[0].mxu0
      %v3269 = vadd.f32 0.0, %v3268
      %v3270 = vpop.f32.mrb[0].mxu0
      %3271 = vmatprep.mubr.bf16.mxu0 0
      %3272 = vmatmul.mubr.bf16.gmra.mrb[0].mxu0 %v3169
      %v3273 = vpop.f32.mrb[0].mxu0
      %v3274 = vadd.f32 0.0, %v3273
      %v3275 = vpop.f32.mrb[0].mxu0
      %v3276 = vpop.f32.mrb[0].mxu0
      %v3277 = vadd.f32 0.0, %v3276
      %v3278 = vpop.f32.mrb[0].mxu0
      %3279 = vmatprep.mubr.bf16.mxu0 0
      %3280 = vmatmul.mubr.bf16.gmra.mrb[0].mxu0 %v3172
      %v3281 = vpop.f32.mrb[0].mxu0
      %v3282 = vadd.f32 0.0, %v3281
      %v3283 = vpop.f32.mrb[0].mxu0
      %v3284 = vpop.f32.mrb[0].mxu0
      %v3285 = vadd.f32 0.0, %v3284
      %v3286 = vpop.f32.mrb[0].mxu0
      %3287 = vmatprep.mubr.bf16.mxu0 0
      %3288 = vmatmul.mubr.bf16.gmra.mrb[0].mxu0 %v3175
      %v3289 = vpop.f32.mrb[0].mxu0
      %v3290 = vadd.f32 0.0, %v3289
      %v3291 = vpop.f32.mrb[0].mxu0
      %v3292 = vpop.f32.mrb[0].mxu0
      %v3293 = vadd.f32 0.0, %v3292
      %v3294 = vpop.f32.mrb[0].mxu0
      %3295 = vmatprep.mubr.bf16.mxu0 0
      %3296 = vmatmul.mubr.bf16.gmra.mrb[0].mxu0 %v3178
      %v3297 = vpop.f32.mrb[0].mxu0
      %v3298 = vadd.f32 0.0, %v3297
      %v3299 = vpop.f32.mrb[0].mxu0
      %v3300 = vpop.f32.mrb[0].mxu0
      %v3301 = vadd.f32 0.0, %v3300
      %v3302 = vpop.f32.mrb[0].mxu0
      %3303 = vmatprep.mubr.bf16.mxu0 0
      %3304 = vmatmul.mubr.bf16.gmra.mrb[0].mxu0 %v3181
      %v3305 = vpop.f32.mrb[0].mxu0
      %v3306 = vadd.f32 0.0, %v3305
      %v3307 = vpop.f32.mrb[0].mxu0
      %v3308 = vpop.f32.mrb[0].mxu0
      %v3309 = vadd.f32 0.0, %v3308
      %v3310 = vpop.f32.mrb[0].mxu0
      %3311 = vmatprep.mubr.bf16.mxu0 0
      %3312 = vmatmul.mubr.bf16.gmra.mrb[0].mxu0 %v3184
      %v3313 = vpop.f32.mrb[0].mxu0
      %v3314 = vadd.f32 0.0, %v3313
      %v3315 = vpop.f32.mrb[0].mxu0
      %v3316 = vpop.f32.mrb[0].mxu0
      %v3317 = vadd.f32 0.0, %v3316
      %v3318 = vpop.f32.mrb[0].mxu0
      %3319 = vmatprep.mubr.bf16.mxu0 0
      %3320 = vmatmul.mubr.bf16.gmra.mrb[0].mxu0 %v3187
      %v3321 = vpop.f32.mrb[0].mxu0
      %v3322 = vadd.f32 0.0, %v3321
      %v3323 = vpop.f32.mrb[0].mxu0
      %v3324 = vpop.f32.mrb[0].mxu0
      %v3325 = vadd.f32 0.0, %v3324
      %v3326 = vpop.f32.mrb[0].mxu0
      %3327 = vmatprep.mubr.bf16.mxu0 0
      %3328 = vmatmul.mubr.bf16.gmra.mrb[0].mxu0 %v3190
      %v3329 = vpop.f32.mrb[0].mxu0
      %v3330 = vadd.f32 0.0, %v3329
      %v3331 = vpop.f32.mrb[0].mxu0
      %v3332 = vpop.f32.mrb[0].mxu0
      %v3333 = vadd.f32 0.0, %v3332
      %v3334 = vpop.f32.mrb[0].mxu0
      %3335 = vmatprep.mubr.bf16.mxu0 0
      %3336 = vmatmul.mubr.bf16.gmra.mrb[0].mxu0 %v3193
      %v3337 = vpop.f32.mrb[0].mxu0
      %v3338 = vadd.f32 0.0, %v3337
      %v3339 = vpop.f32.mrb[0].mxu0
      %v3340 = vpop.f32.mrb[0].mxu0
      %v3341 = vadd.f32 0.0, %v3340
      %v3342 = vpop.f32.mrb[0].mxu0
      %3343 = vmatprep.mubr.bf16.mxu0 0
      %3344 = vmatmul.mubr.bf16.gmra.mrb[0].mxu0 %v3196
      %v3345 = vpop.f32.mrb[0].mxu0
      %v3346 = vadd.f32 0.0, %v3345
      %v3347 = vpop.f32.mrb[0].mxu0
      %v3348 = vpop.f32.mrb[0].mxu0
      %v3349 = vadd.f32 0.0, %v3348
      %v3350 = vpop.f32.mrb[0].mxu0
      %3351 = vmatprep.mubr.bf16.mxu0 0
      %3352 = vmatmul.mubr.bf16.gmra.mrb[0].mxu0 %v3199
      %v3353 = vpop.f32.mrb[0].mxu0
      %v3354 = vadd.f32 0.0, %v3353
      %v3355 = vpop.f32.mrb[0].mxu0
      %v3356 = vpop.f32.mrb[0].mxu0
      %v3357 = vadd.f32 0.0, %v3356
      %v3358 = vpop.f32.mrb[0].mxu0
      %3359 = vmatprep.mubr.bf16.mxu0 0
      %3360 = vmatmul.mubr.bf16.gmra.mrb[0].mxu0 %v3202
      %v3361 = vpop.f32.mrb[0].mxu0
      %v3362 = vadd.f32 0.0, %v3361
      %v3363 = vpop.f32.mrb[0].mxu0
      %v3364 = vpop.f32.mrb[0].mxu0
      %v3365 = vadd.f32 0.0, %v3364
      %v3366 = vpop.f32.mrb[0].mxu0
      %3367 = vdwg.mxu0
      %v3368 = vadd.f32 %v3074, %v3242
      %v3369 = vadd.f32 %v3075, %v3245
      %v3370 = vadd.f32 %v3076, %v3250
      %v3371 = vadd.f32 %v3077, %v3253
      %v3372 = vadd.f32 %v3078, %v3258
      %v3373 = vadd.f32 %v3079, %v3261
      %v3374 = vadd.f32 %v3080, %v3266
      %v3375 = vadd.f32 %v3081, %v3269
      %v3376 = vadd.f32 %v3082, %v3274
      %v3377 = vadd.f32 %v3083, %v3277
      %v3378 = vadd.f32 %v3084, %v3282
      %v3379 = vadd.f32 %v3085, %v3285
      %v3380 = vadd.f32 %v3086, %v3290
      %v3381 = vadd.f32 %v3087, %v3293
      %v3382 = vadd.f32 %v3088, %v3298
      %v3383 = vadd.f32 %v3089, %v3301
      %v3384 = vadd.f32 %v3090, %v3306
      %v3385 = vadd.f32 %v3091, %v3309
      %v3386 = vadd.f32 %v3092, %v3314
      %v3387 = vadd.f32 %v3093, %v3317
      %v3388 = vadd.f32 %v3094, %v3322
      %v3389 = vadd.f32 %v3095, %v3325
      %v3390 = vadd.f32 %v3096, %v3330
      %v3391 = vadd.f32 %v3097, %v3333
      %v3392 = vadd.f32 %v3098, %v3338
      %v3393 = vadd.f32 %v3099, %v3341
      %v3394 = vadd.f32 %v3100, %v3346
      %v3395 = vadd.f32 %v3101, %v3349
      %v3396 = vadd.f32 %v3102, %v3354
      %v3397 = vadd.f32 %v3103, %v3357
      %v3398 = vadd.f32 %v3104, %v3362
      %v3399 = vadd.f32 %v3105, %v3365
      %3400 = vst.msk [vmem:[#allocation2] sm:$0xff] %vm401, %v3368
      %3401 = vst.msk [vmem:[#allocation2 + $0x8] sm:$0xff] %vm401, %v3369
      %3402 = vst.msk [vmem:[#allocation2 + $0x10] sm:$0xff] %vm401, %v3370
      %3403 = vst.msk [vmem:[#allocation2 + $0x18] sm:$0xff] %vm401, %v3371
      %3404 = vst.msk [vmem:[#allocation2 + $0x20] sm:$0xff] %vm401, %v3372
      %3405 = vst.msk [vmem:[#allocation2 + $0x28] sm:$0xff] %vm401, %v3373
      %3406 = vst.msk [vmem:[#allocation2 + $0x30] sm:$0xff] %vm401, %v3374
      %3407 = vst.msk [vmem:[#allocation2 + $0x38] sm:$0xff] %vm401, %v3375
      %3408 = vst.msk [vmem:[#allocation2 + $0x40] sm:$0xff] %vm401, %v3376
      %3409 = vst.msk [vmem:[#allocation2 + $0x48] sm:$0xff] %vm401, %v3377
      %3410 = vst.msk [vmem:[#allocation2 + $0x50] sm:$0xff] %vm401, %v3378
      %3411 = vst.msk [vmem:[#allocation2 + $0x58] sm:$0xff] %vm401, %v3379
      %3412 = vst.msk [vmem:[#allocation2 + $0x60] sm:$0xff] %vm401, %v3380
      %3413 = vst.msk [vmem:[#allocation2 + $0x68] sm:$0xff] %vm401, %v3381
      %3414 = vst.msk [vmem:[#allocation2 + $0x70] sm:$0xff] %vm401, %v3382
      %3415 = vst.msk [vmem:[#allocation2 + $0x78] sm:$0xff] %vm401, %v3383
      %3416 = vst.msk [vmem:[#allocation2 + $0x80] sm:$0xff] %vm401, %v3384
      %3417 = vst.msk [vmem:[#allocation2 + $0x88] sm:$0xff] %vm401, %v3385
      %3418 = vst.msk [vmem:[#allocation2 + $0x90] sm:$0xff] %vm401, %v3386
      %3419 = vst.msk [vmem:[#allocation2 + $0x98] sm:$0xff] %vm401, %v3387
      %3420 = vst.msk [vmem:[#allocation2 + $0xa0] sm:$0xff] %vm401, %v3388
      %3421 = vst.msk [vmem:[#allocation2 + $0xa8] sm:$0xff] %vm401, %v3389
      %3422 = vst.msk [vmem:[#allocation2 + $0xb0] sm:$0xff] %vm401, %v3390
      %3423 = vst.msk [vmem:[#allocation2 + $0xb8] sm:$0xff] %vm401, %v3391
      %3424 = vst.msk [vmem:[#allocation2 + $0xc0] sm:$0xff] %vm401, %v3392
      %3425 = vst.msk [vmem:[#allocation2 + $0xc8] sm:$0xff] %vm401, %v3393
      %3426 = vst.msk [vmem:[#allocation2 + $0xd0] sm:$0xff] %vm401, %v3394
      %3427 = vst.msk [vmem:[#allocation2 + $0xd8] sm:$0xff] %vm401, %v3395
      %3428 = vst.msk [vmem:[#allocation2 + $0xe0] sm:$0xff] %vm401, %v3396
      %3429 = vst.msk [vmem:[#allocation2 + $0xe8] sm:$0xff] %vm401, %v3397
      %3430 = vst.msk [vmem:[#allocation2 + $0xf0] sm:$0xff] %vm401, %v3398
      %3431 = vst.msk [vmem:[#allocation2 + $0xf8] sm:$0xff] %vm401, %v3399
      %v3432 = vld [vmem:[%s2219] sm:$0xe]
      %v3433 = vld [vmem:[%s2219 + $0x4] sm:$0xf]
      %v3434 = vld [vmem:[%s2219 + $0x8] sm:$0x1]
      %v3435 = vld [vmem:[%s2219 + $0xc] sm:$0xe]
      %v3436 = vld [vmem:[%s2219 + $0x10] sm:$0xf]
      %v3437 = vld [vmem:[%s2219 + $0x14] sm:$0x1]
      %v3438 = vld [vmem:[%s2219 + $0x18] sm:$0xe]
      %v3439 = vld [vmem:[%s2219 + $0x1c] sm:$0xf]
      %v3440 = vld [vmem:[%s2219 + $0x20] sm:$0x1]
      %v3441 = vld [vmem:[%s2219 + $0x24] sm:$0xe]
      %v3442 = vld [vmem:[%s2219 + $0x28] sm:$0xf]
      %v3443 = vld [vmem:[%s2219 + $0x2c] sm:$0x1]
      %v3444 = vld [vmem:[%s2219 + $0x30] sm:$0xe]
      %v3445 = vld [vmem:[%s2219 + $0x34] sm:$0xf]
      %v3446 = vld [vmem:[%s2219 + $0x38] sm:$0x1]
      %v3447 = vld [vmem:[%s2219 + $0x3c] sm:$0xe]
      %v3448 = vld [vmem:[%s2219 + $0x40] sm:$0xf]
      %v3449 = vld [vmem:[%s2219 + $0x44] sm:$0x1]
      %v3450 = vld [vmem:[%s2219 + $0x48] sm:$0xe]
      %v3451 = vld [vmem:[%s2219 + $0x4c] sm:$0xf]
      %v3452 = vld [vmem:[%s2219 + $0x50] sm:$0x1]
      %v3453 = vld [vmem:[%s2219 + $0x54] sm:$0xe]
      %v3454 = vld [vmem:[%s2219 + $0x58] sm:$0xf]
      %v3455 = vld [vmem:[%s2219 + $0x5c] sm:$0x1]
      %v3456 = vld [vmem:[%s2219 + $0x60] sm:$0xe]
      %v3457 = vld [vmem:[%s2219 + $0x64] sm:$0xf]
      %v3458 = vld [vmem:[%s2219 + $0x68] sm:$0x1]
      %v3459 = vld [vmem:[%s2219 + $0x6c] sm:$0xe]
      %v3460 = vld [vmem:[%s2219 + $0x70] sm:$0xf]
      %v3461 = vld [vmem:[%s2219 + $0x74] sm:$0x1]
      %v3462 = vld [vmem:[%s2219 + $0x78] sm:$0xe]
      %v3463 = vld [vmem:[%s2219 + $0x7c] sm:$0xf]
      %v3464 = vld [vmem:[%s2219 + $0x80] sm:$0x1]
      %v3465 = vld [vmem:[%s2219 + $0x84] sm:$0xe]
      %v3466 = vld [vmem:[%s2219 + $0x88] sm:$0xf]
      %v3467 = vld [vmem:[%s2219 + $0x8c] sm:$0x1]
      %v3468 = vld [vmem:[%s2219 + $0x90] sm:$0xe]
      %v3469 = vld [vmem:[%s2219 + $0x94] sm:$0xf]
      %v3470 = vld [vmem:[%s2219 + $0x98] sm:$0x1]
      %v3471 = vld [vmem:[%s2219 + $0x9c] sm:$0xe]
      %v3472 = vld [vmem:[%s2219 + $0xa0] sm:$0xf]
      %v3473 = vld [vmem:[%s2219 + $0xa4] sm:$0x1]
      %v3474 = vld [vmem:[%s2219 + $0xa8] sm:$0xe]
      %v3475 = vld [vmem:[%s2219 + $0xac] sm:$0xf]
      %v3476 = vld [vmem:[%s2219 + $0xb0] sm:$0x1]
      %v3477 = vld [vmem:[%s2219 + $0xb4] sm:$0xe]
      %v3478 = vld [vmem:[%s2219 + $0xb8] sm:$0xf]
      %v3479 = vld [vmem:[%s2219 + $0xbc] sm:$0x1]
      %v3528 = vrot.slane %v3432, 5
      %v3529 = vrot.slane %v3528, 4
      %v3530 = vrot.slane %v3433, 5
      %v3531 = vsel %vm1748, %v3529, %v3530
      %v3532 = vrot.slane %v3530, 4
      %v3533 = vrot.slane %v3434, 5
      %v3534 = vsel %vm1748, %v3532, %v3533
      %v3535 = vrot.slane %v3435, 5
      %v3536 = vrot.slane %v3535, 4
      %v3537 = vrot.slane %v3436, 5
      %v3538 = vsel %vm1748, %v3536, %v3537
      %v3539 = vrot.slane %v3537, 4
      %v3540 = vrot.slane %v3437, 5
      %v3541 = vsel %vm1748, %v3539, %v3540
      %v3542 = vrot.slane %v3438, 5
      %v3543 = vrot.slane %v3542, 4
      %v3544 = vrot.slane %v3439, 5
      %v3545 = vsel %vm1748, %v3543, %v3544
      %v3546 = vrot.slane %v3544, 4
      %v3547 = vrot.slane %v3440, 5
      %v3548 = vsel %vm1748, %v3546, %v3547
      %v3549 = vrot.slane %v3441, 5
      %v3550 = vrot.slane %v3549, 4
      %v3551 = vrot.slane %v3442, 5
      %v3552 = vsel %vm1748, %v3550, %v3551
      %v3553 = vrot.slane %v3551, 4
      %v3554 = vrot.slane %v3443, 5
      %v3555 = vsel %vm1748, %v3553, %v3554
      %v3556 = vrot.slane %v3444, 5
      %v3557 = vrot.slane %v3556, 4
      %v3558 = vrot.slane %v3445, 5
      %v3559 = vsel %vm1748, %v3557, %v3558
      %v3560 = vrot.slane %v3558, 4
      %v3561 = vrot.slane %v3446, 5
      %v3562 = vsel %vm1748, %v3560, %v3561
      %v3563 = vrot.slane %v3447, 5
      %v3564 = vrot.slane %v3563, 4
      %v3565 = vrot.slane %v3448, 5
      %v3566 = vsel %vm1748, %v3564, %v3565
      %v3567 = vrot.slane %v3565, 4
      %v3568 = vrot.slane %v3449, 5
      %v3569 = vsel %vm1748, %v3567, %v3568
      %v3570 = vrot.slane %v3450, 5
      %v3571 = vrot.slane %v3570, 4
      %v3572 = vrot.slane %v3451, 5
      %v3573 = vsel %vm1748, %v3571, %v3572
      %v3574 = vrot.slane %v3572, 4
      %v3575 = vrot.slane %v3452, 5
      %v3576 = vsel %vm1748, %v3574, %v3575
      %v3577 = vrot.slane %v3453, 5
      %v3578 = vrot.slane %v3577, 4
      %v3579 = vrot.slane %v3454, 5
      %v3580 = vsel %vm1748, %v3578, %v3579
      %v3581 = vrot.slane %v3579, 4
      %v3582 = vrot.slane %v3455, 5
      %v3583 = vsel %vm1748, %v3581, %v3582
      %v3584 = vrot.slane %v3456, 5
      %v3585 = vrot.slane %v3584, 4
      %v3586 = vrot.slane %v3457, 5
      %v3587 = vsel %vm1748, %v3585, %v3586
      %v3588 = vrot.slane %v3586, 4
      %v3589 = vrot.slane %v3458, 5
      %v3590 = vsel %vm1748, %v3588, %v3589
      %v3591 = vrot.slane %v3459, 5
      %v3592 = vrot.slane %v3591, 4
      %v3593 = vrot.slane %v3460, 5
      %v3594 = vsel %vm1748, %v3592, %v3593
      %v3595 = vrot.slane %v3593, 4
      %v3596 = vrot.slane %v3461, 5
      %v3597 = vsel %vm1748, %v3595, %v3596
      %v3598 = vrot.slane %v3462, 5
      %v3599 = vrot.slane %v3598, 4
      %v3600 = vrot.slane %v3463, 5
      %v3601 = vsel %vm1748, %v3599, %v3600
      %v3602 = vrot.slane %v3600, 4
      %v3603 = vrot.slane %v3464, 5
      %v3604 = vsel %vm1748, %v3602, %v3603
      %v3605 = vrot.slane %v3465, 5
      %v3606 = vrot.slane %v3605, 4
      %v3607 = vrot.slane %v3466, 5
      %v3608 = vsel %vm1748, %v3606, %v3607
      %v3609 = vrot.slane %v3607, 4
      %v3610 = vrot.slane %v3467, 5
      %v3611 = vsel %vm1748, %v3609, %v3610
      %v3612 = vrot.slane %v3468, 5
      %v3613 = vrot.slane %v3612, 4
      %v3614 = vrot.slane %v3469, 5
      %v3615 = vsel %vm1748, %v3613, %v3614
      %v3616 = vrot.slane %v3614, 4
      %v3617 = vrot.slane %v3470, 5
      %v3618 = vsel %vm1748, %v3616, %v3617
      %v3619 = vrot.slane %v3471, 5
      %v3620 = vrot.slane %v3619, 4
      %v3621 = vrot.slane %v3472, 5
      %v3622 = vsel %vm1748, %v3620, %v3621
      %v3623 = vrot.slane %v3621, 4
      %v3624 = vrot.slane %v3473, 5
      %v3625 = vsel %vm1748, %v3623, %v3624
      %v3626 = vrot.slane %v3474, 5
      %v3627 = vrot.slane %v3626, 4
      %v3628 = vrot.slane %v3475, 5
      %v3629 = vsel %vm1748, %v3627, %v3628
      %v3630 = vrot.slane %v3628, 4
      %v3631 = vrot.slane %v3476, 5
      %v3632 = vsel %vm1748, %v3630, %v3631
      %v3633 = vrot.slane %v3477, 5
      %v3634 = vrot.slane %v3633, 4
      %v3635 = vrot.slane %v3478, 5
      %v3636 = vsel %vm1748, %v3634, %v3635
      %v3637 = vrot.slane %v3635, 4
      %v3638 = vrot.slane %v3479, 5
      %v3639 = vsel %vm1748, %v3637, %v3638
      %v3640 = vld [vmem:[#allocation2] sm:$0xff]
      %v3641 = vld [vmem:[#allocation2 + $0x8] sm:$0xff]
      %v3642 = vld [vmem:[#allocation2 + $0x10] sm:$0xff]
      %v3643 = vld [vmem:[#allocation2 + $0x18] sm:$0xff]
      %v3644 = vld [vmem:[#allocation2 + $0x20] sm:$0xff]
      %v3645 = vld [vmem:[#allocation2 + $0x28] sm:$0xff]
      %v3646 = vld [vmem:[#allocation2 + $0x30] sm:$0xff]
      %v3647 = vld [vmem:[#allocation2 + $0x38] sm:$0xff]
      %v3648 = vld [vmem:[#allocation2 + $0x40] sm:$0xff]
      %v3649 = vld [vmem:[#allocation2 + $0x48] sm:$0xff]
      %v3650 = vld [vmem:[#allocation2 + $0x50] sm:$0xff]
      %v3651 = vld [vmem:[#allocation2 + $0x58] sm:$0xff]
      %v3652 = vld [vmem:[#allocation2 + $0x60] sm:$0xff]
      %v3653 = vld [vmem:[#allocation2 + $0x68] sm:$0xff]
      %v3654 = vld [vmem:[#allocation2 + $0x70] sm:$0xff]
      %v3655 = vld [vmem:[#allocation2 + $0x78] sm:$0xff]
      %v3656 = vld [vmem:[#allocation2 + $0x80] sm:$0xff]
      %v3657 = vld [vmem:[#allocation2 + $0x88] sm:$0xff]
      %v3658 = vld [vmem:[#allocation2 + $0x90] sm:$0xff]
      %v3659 = vld [vmem:[#allocation2 + $0x98] sm:$0xff]
      %v3660 = vld [vmem:[#allocation2 + $0xa0] sm:$0xff]
      %v3661 = vld [vmem:[#allocation2 + $0xa8] sm:$0xff]
      %v3662 = vld [vmem:[#allocation2 + $0xb0] sm:$0xff]
      %v3663 = vld [vmem:[#allocation2 + $0xb8] sm:$0xff]
      %v3664 = vld [vmem:[#allocation2 + $0xc0] sm:$0xff]
      %v3665 = vld [vmem:[#allocation2 + $0xc8] sm:$0xff]
      %v3666 = vld [vmem:[#allocation2 + $0xd0] sm:$0xff]
      %v3667 = vld [vmem:[#allocation2 + $0xd8] sm:$0xff]
      %v3668 = vld [vmem:[#allocation2 + $0xe0] sm:$0xff]
      %v3669 = vld [vmem:[#allocation2 + $0xe8] sm:$0xff]
      %v3670 = vld [vmem:[#allocation2 + $0xf0] sm:$0xff]
      %v3671 = vld [vmem:[#allocation2 + $0xf8] sm:$0xff]
      %s3672 = scalar_lea.vmem %s1, 20
      %v3673 = vld [vmem:[%s3672] sm:$0xf]
      %v3674 = vunpack.c.l.b16 %v3531
      %v3675 = vunpack.c.l.b16 %v3534
      %v3676 = vunpack.c.l.b16 %v3538
      %v3677 = vunpack.c.l.b16 %v3541
      %v3678 = vunpack.c.l.b16 %v3545
      %v3679 = vunpack.c.l.b16 %v3548
      %v3680 = vunpack.c.l.b16 %v3552
      %v3681 = vunpack.c.l.b16 %v3555
      %v3682 = vunpack.c.l.b16 %v3559
      %v3683 = vunpack.c.l.b16 %v3562
      %v3684 = vunpack.c.l.b16 %v3566
      %v3685 = vunpack.c.l.b16 %v3569
      %v3686 = vunpack.c.l.b16 %v3573
      %v3687 = vunpack.c.l.b16 %v3576
      %v3688 = vunpack.c.l.b16 %v3580
      %v3689 = vunpack.c.l.b16 %v3583
      %v3690 = vunpack.c.l.b16 %v3587
      %v3691 = vunpack.c.l.b16 %v3590
      %v3692 = vunpack.c.l.b16 %v3594
      %v3693 = vunpack.c.l.b16 %v3597
      %v3694 = vunpack.c.l.b16 %v3601
      %v3695 = vunpack.c.l.b16 %v3604
      %v3696 = vunpack.c.l.b16 %v3608
      %v3697 = vunpack.c.l.b16 %v3611
      %v3698 = vunpack.c.l.b16 %v3615
      %v3699 = vunpack.c.l.b16 %v3618
      %v3700 = vunpack.c.l.b16 %v3622
      %v3701 = vunpack.c.l.b16 %v3625
      %v3702 = vunpack.c.l.b16 %v3629
      %v3703 = vunpack.c.l.b16 %v3632
      %v3704 = vunpack.c.l.b16 %v3636
      %v3705 = vunpack.c.l.b16 %v3639
      %v3706 = vpack.c.b16 %v3675, %v3674
      %v3707 = vpack.c.b16 %v3677, %v3676
      %v3708 = vpack.c.b16 %v3679, %v3678
      %v3709 = vpack.c.b16 %v3681, %v3680
      %v3710 = vpack.c.b16 %v3683, %v3682
      %v3711 = vpack.c.b16 %v3685, %v3684
      %v3712 = vpack.c.b16 %v3687, %v3686
      %v3713 = vpack.c.b16 %v3689, %v3688
      %v3714 = vpack.c.b16 %v3691, %v3690
      %v3715 = vpack.c.b16 %v3693, %v3692
      %v3716 = vpack.c.b16 %v3695, %v3694
      %v3717 = vpack.c.b16 %v3697, %v3696
      %v3718 = vpack.c.b16 %v3699, %v3698
      %v3719 = vpack.c.b16 %v3701, %v3700
      %v3720 = vpack.c.b16 %v3703, %v3702
      %v3721 = vpack.c.b16 %v3705, %v3704
      %v3723 = vsel %vm579, %v3706, 0
      %v3726 = vsel %vm579, %v3707, 0
      %v3729 = vsel %vm579, %v3708, 0
      %v3732 = vsel %vm579, %v3709, 0
      %v3735 = vsel %vm579, %v3710, 0
      %v3738 = vsel %vm579, %v3711, 0
      %v3741 = vsel %vm579, %v3712, 0
      %v3744 = vsel %vm579, %v3713, 0
      %v3747 = vsel %vm579, %v3714, 0
      %v3750 = vsel %vm579, %v3715, 0
      %v3753 = vsel %vm579, %v3716, 0
      %v3756 = vsel %vm579, %v3717, 0
      %v3759 = vsel %vm579, %v3718, 0
      %v3762 = vsel %vm579, %v3719, 0
      %v3765 = vsel %vm579, %v3720, 0
      %v3768 = vsel %vm579, %v3721, 0
      %v3771 = vsel %vm628, %v3673, 0
      %3773 = vmatprep.subr.bf16.mxu0 0
      %3774 = vmatpush1.bf16.msra.mxu0 %v3771
      %3775 = vmatprep.subr.bf16.mxu0 0
      %3776 = vmatpush1.bf16.msra.mxu0 0
      %3777 = vmatprep.subr.bf16.mxu0 0
      %3778 = vmatpush1.bf16.msra.mxu0 0
      %3779 = vmatprep.subr.bf16.mxu0 0
      %3780 = vmatpush1.bf16.msra.mxu0 0
      %3781 = vmatprep.subr.bf16.mxu0 0
      %3782 = vmatpush1.bf16.msra.mxu0 0
      %3783 = vmatprep.subr.bf16.mxu0 0
      %3784 = vmatpush1.bf16.msra.mxu0 0
      %3785 = vmatprep.subr.bf16.mxu0 0
      %3786 = vmatpush1.bf16.msra.mxu0 0
      %3787 = vmatprep.subr.bf16.mxu0 0
      %3788 = vmatpush1.bf16.msra.mxu0 0
      %3789 = vmatprep.subr.bf16.mxu0 0
      %3790 = vmatpush1.bf16.msra.mxu0 0
      %3791 = vmatprep.subr.bf16.mxu0 0
      %3792 = vmatpush1.bf16.msra.mxu0 0
      %3793 = vmatprep.subr.bf16.mxu0 0
      %3794 = vmatpush1.bf16.msra.mxu0 0
      %3795 = vmatprep.subr.bf16.mxu0 0
      %3796 = vmatpush1.bf16.msra.mxu0 0
      %3797 = vmatprep.subr.bf16.mxu0 0
      %3798 = vmatpush1.bf16.msra.mxu0 0
      %3799 = vmatprep.subr.bf16.mxu0 0
      %3800 = vmatpush1.bf16.msra.mxu0 0
      %3801 = vmatprep.subr.bf16.mxu0 0
      %3802 = vmatpush1.bf16.msra.mxu0 0
      %3803 = vmatprep.subr.bf16.mxu0 0
      %3804 = vmatpush1.bf16.msra.mxu0 0
      %3805 = vmatprep.mubr.bf16.mxu0 0
      %3806 = vmatmul.mubr.bf16.gmra.mrb[0].mxu0 %v3723
      %v3807 = vpop.f32.mrb[0].mxu0
      %v3808 = vadd.f32 0.0, %v3807
      %v3809 = vpop.f32.mrb[0].mxu0
      %v3810 = vpop.f32.mrb[0].mxu0
      %v3811 = vadd.f32 0.0, %v3810
      %v3812 = vpop.f32.mrb[0].mxu0
      %3813 = vmatprep.mubr.bf16.mxu0 0
      %3814 = vmatmul.mubr.bf16.gmra.mrb[0].mxu0 %v3726
      %v3815 = vpop.f32.mrb[0].mxu0
      %v3816 = vadd.f32 0.0, %v3815
      %v3817 = vpop.f32.mrb[0].mxu0
      %v3818 = vpop.f32.mrb[0].mxu0
      %v3819 = vadd.f32 0.0, %v3818
      %v3820 = vpop.f32.mrb[0].mxu0
      %3821 = vmatprep.mubr.bf16.mxu0 0
      %3822 = vmatmul.mubr.bf16.gmra.mrb[0].mxu0 %v3729
      %v3823 = vpop.f32.mrb[0].mxu0
      %v3824 = vadd.f32 0.0, %v3823
      %v3825 = vpop.f32.mrb[0].mxu0
      %v3826 = vpop.f32.mrb[0].mxu0
      %v3827 = vadd.f32 0.0, %v3826
      %v3828 = vpop.f32.mrb[0].mxu0
      %3829 = vmatprep.mubr.bf16.mxu0 0
      %3830 = vmatmul.mubr.bf16.gmra.mrb[0].mxu0 %v3732
      %v3831 = vpop.f32.mrb[0].mxu0
      %v3832 = vadd.f32 0.0, %v3831
      %v3833 = vpop.f32.mrb[0].mxu0
      %v3834 = vpop.f32.mrb[0].mxu0
      %v3835 = vadd.f32 0.0, %v3834
      %v3836 = vpop.f32.mrb[0].mxu0
      %3837 = vmatprep.mubr.bf16.mxu0 0
      %3838 = vmatmul.mubr.bf16.gmra.mrb[0].mxu0 %v3735
      %v3839 = vpop.f32.mrb[0].mxu0
      %v3840 = vadd.f32 0.0, %v3839
      %v3841 = vpop.f32.mrb[0].mxu0
      %v3842 = vpop.f32.mrb[0].mxu0
      %v3843 = vadd.f32 0.0, %v3842
      %v3844 = vpop.f32.mrb[0].mxu0
      %3845 = vmatprep.mubr.bf16.mxu0 0
      %3846 = vmatmul.mubr.bf16.gmra.mrb[0].mxu0 %v3738
      %v3847 = vpop.f32.mrb[0].mxu0
      %v3848 = vadd.f32 0.0, %v3847
      %v3849 = vpop.f32.mrb[0].mxu0
      %v3850 = vpop.f32.mrb[0].mxu0
      %v3851 = vadd.f32 0.0, %v3850
      %v3852 = vpop.f32.mrb[0].mxu0
      %3853 = vmatprep.mubr.bf16.mxu0 0
      %3854 = vmatmul.mubr.bf16.gmra.mrb[0].mxu0 %v3741
      %v3855 = vpop.f32.mrb[0].mxu0
      %v3856 = vadd.f32 0.0, %v3855
      %v3857 = vpop.f32.mrb[0].mxu0
      %v3858 = vpop.f32.mrb[0].mxu0
      %v3859 = vadd.f32 0.0, %v3858
      %v3860 = vpop.f32.mrb[0].mxu0
      %3861 = vmatprep.mubr.bf16.mxu0 0
      %3862 = vmatmul.mubr.bf16.gmra.mrb[0].mxu0 %v3744
      %v3863 = vpop.f32.mrb[0].mxu0
      %v3864 = vadd.f32 0.0, %v3863
      %v3865 = vpop.f32.mrb[0].mxu0
      %v3866 = vpop.f32.mrb[0].mxu0
      %v3867 = vadd.f32 0.0, %v3866
      %v3868 = vpop.f32.mrb[0].mxu0
      %3869 = vmatprep.mubr.bf16.mxu0 0
      %3870 = vmatmul.mubr.bf16.gmra.mrb[0].mxu0 %v3747
      %v3871 = vpop.f32.mrb[0].mxu0
      %v3872 = vadd.f32 0.0, %v3871
      %v3873 = vpop.f32.mrb[0].mxu0
      %v3874 = vpop.f32.mrb[0].mxu0
      %v3875 = vadd.f32 0.0, %v3874
      %v3876 = vpop.f32.mrb[0].mxu0
      %3877 = vmatprep.mubr.bf16.mxu0 0
      %3878 = vmatmul.mubr.bf16.gmra.mrb[0].mxu0 %v3750
      %v3879 = vpop.f32.mrb[0].mxu0
      %v3880 = vadd.f32 0.0, %v3879
      %v3881 = vpop.f32.mrb[0].mxu0
      %v3882 = vpop.f32.mrb[0].mxu0
      %v3883 = vadd.f32 0.0, %v3882
      %v3884 = vpop.f32.mrb[0].mxu0
      %3885 = vmatprep.mubr.bf16.mxu0 0
      %3886 = vmatmul.mubr.bf16.gmra.mrb[0].mxu0 %v3753
      %v3887 = vpop.f32.mrb[0].mxu0
      %v3888 = vadd.f32 0.0, %v3887
      %v3889 = vpop.f32.mrb[0].mxu0
      %v3890 = vpop.f32.mrb[0].mxu0
      %v3891 = vadd.f32 0.0, %v3890
      %v3892 = vpop.f32.mrb[0].mxu0
      %3893 = vmatprep.mubr.bf16.mxu0 0
      %3894 = vmatmul.mubr.bf16.gmra.mrb[0].mxu0 %v3756
      %v3895 = vpop.f32.mrb[0].mxu0
      %v3896 = vadd.f32 0.0, %v3895
      %v3897 = vpop.f32.mrb[0].mxu0
      %v3898 = vpop.f32.mrb[0].mxu0
      %v3899 = vadd.f32 0.0, %v3898
      %v3900 = vpop.f32.mrb[0].mxu0
      %3901 = vmatprep.mubr.bf16.mxu0 0
      %3902 = vmatmul.mubr.bf16.gmra.mrb[0].mxu0 %v3759
      %v3903 = vpop.f32.mrb[0].mxu0
      %v3904 = vadd.f32 0.0, %v3903
      %v3905 = vpop.f32.mrb[0].mxu0
      %v3906 = vpop.f32.mrb[0].mxu0
      %v3907 = vadd.f32 0.0, %v3906
      %v3908 = vpop.f32.mrb[0].mxu0
      %3909 = vmatprep.mubr.bf16.mxu0 0
      %3910 = vmatmul.mubr.bf16.gmra.mrb[0].mxu0 %v3762
      %v3911 = vpop.f32.mrb[0].mxu0
      %v3912 = vadd.f32 0.0, %v3911
      %v3913 = vpop.f32.mrb[0].mxu0
      %v3914 = vpop.f32.mrb[0].mxu0
      %v3915 = vadd.f32 0.0, %v3914
      %v3916 = vpop.f32.mrb[0].mxu0
      %3917 = vmatprep.mubr.bf16.mxu0 0
      %3918 = vmatmul.mubr.bf16.gmra.mrb[0].mxu0 %v3765
      %v3919 = vpop.f32.mrb[0].mxu0
      %v3920 = vadd.f32 0.0, %v3919
      %v3921 = vpop.f32.mrb[0].mxu0
      %v3922 = vpop.f32.mrb[0].mxu0
      %v3923 = vadd.f32 0.0, %v3922
      %v3924 = vpop.f32.mrb[0].mxu0
      %3925 = vmatprep.mubr.bf16.mxu0 0
      %3926 = vmatmul.mubr.bf16.gmra.mrb[0].mxu0 %v3768
      %v3927 = vpop.f32.mrb[0].mxu0
      %v3928 = vadd.f32 0.0, %v3927
      %v3929 = vpop.f32.mrb[0].mxu0
      %v3930 = vpop.f32.mrb[0].mxu0
      %v3931 = vadd.f32 0.0, %v3930
      %v3932 = vpop.f32.mrb[0].mxu0
      %3933 = vdwg.mxu0
      %v3934 = vadd.f32 %v3640, %v3808
      %v3935 = vadd.f32 %v3641, %v3811
      %v3936 = vadd.f32 %v3642, %v3816
      %v3937 = vadd.f32 %v3643, %v3819
      %v3938 = vadd.f32 %v3644, %v3824
      %v3939 = vadd.f32 %v3645, %v3827
      %v3940 = vadd.f32 %v3646, %v3832
      %v3941 = vadd.f32 %v3647, %v3835
      %v3942 = vadd.f32 %v3648, %v3840
      %v3943 = vadd.f32 %v3649, %v3843
      %v3944 = vadd.f32 %v3650, %v3848
      %v3945 = vadd.f32 %v3651, %v3851
      %v3946 = vadd.f32 %v3652, %v3856
      %v3947 = vadd.f32 %v3653, %v3859
      %v3948 = vadd.f32 %v3654, %v3864
      %v3949 = vadd.f32 %v3655, %v3867
      %v3950 = vadd.f32 %v3656, %v3872
      %v3951 = vadd.f32 %v3657, %v3875
      %v3952 = vadd.f32 %v3658, %v3880
      %v3953 = vadd.f32 %v3659, %v3883
      %v3954 = vadd.f32 %v3660, %v3888
      %v3955 = vadd.f32 %v3661, %v3891
      %v3956 = vadd.f32 %v3662, %v3896
      %v3957 = vadd.f32 %v3663, %v3899
      %v3958 = vadd.f32 %v3664, %v3904
      %v3959 = vadd.f32 %v3665, %v3907
      %v3960 = vadd.f32 %v3666, %v3912
      %v3961 = vadd.f32 %v3667, %v3915
      %v3962 = vadd.f32 %v3668, %v3920
      %v3963 = vadd.f32 %v3669, %v3923
      %v3964 = vadd.f32 %v3670, %v3928
      %v3965 = vadd.f32 %v3671, %v3931
      %3966 = vst.msk [vmem:[#allocation2] sm:$0xff] %vm401, %v3934
      %3967 = vst.msk [vmem:[#allocation2 + $0x8] sm:$0xff] %vm401, %v3935
      %3968 = vst.msk [vmem:[#allocation2 + $0x10] sm:$0xff] %vm401, %v3936
      %3969 = vst.msk [vmem:[#allocation2 + $0x18] sm:$0xff] %vm401, %v3937
      %3970 = vst.msk [vmem:[#allocation2 + $0x20] sm:$0xff] %vm401, %v3938
      %3971 = vst.msk [vmem:[#allocation2 + $0x28] sm:$0xff] %vm401, %v3939
      %3972 = vst.msk [vmem:[#allocation2 + $0x30] sm:$0xff] %vm401, %v3940
      %3973 = vst.msk [vmem:[#allocation2 + $0x38] sm:$0xff] %vm401, %v3941
      %3974 = vst.msk [vmem:[#allocation2 + $0x40] sm:$0xff] %vm401, %v3942
      %3975 = vst.msk [vmem:[#allocation2 + $0x48] sm:$0xff] %vm401, %v3943
      %3976 = vst.msk [vmem:[#allocation2 + $0x50] sm:$0xff] %vm401, %v3944
      %3977 = vst.msk [vmem:[#allocation2 + $0x58] sm:$0xff] %vm401, %v3945
      %3978 = vst.msk [vmem:[#allocation2 + $0x60] sm:$0xff] %vm401, %v3946
      %3979 = vst.msk [vmem:[#allocation2 + $0x68] sm:$0xff] %vm401, %v3947
      %3980 = vst.msk [vmem:[#allocation2 + $0x70] sm:$0xff] %vm401, %v3948
      %3981 = vst.msk [vmem:[#allocation2 + $0x78] sm:$0xff] %vm401, %v3949
      %3982 = vst.msk [vmem:[#allocation2 + $0x80] sm:$0xff] %vm401, %v3950
      %3983 = vst.msk [vmem:[#allocation2 + $0x88] sm:$0xff] %vm401, %v3951
      %3984 = vst.msk [vmem:[#allocation2 + $0x90] sm:$0xff] %vm401, %v3952
      %3985 = vst.msk [vmem:[#allocation2 + $0x98] sm:$0xff] %vm401, %v3953
      %3986 = vst.msk [vmem:[#allocation2 + $0xa0] sm:$0xff] %vm401, %v3954
      %3987 = vst.msk [vmem:[#allocation2 + $0xa8] sm:$0xff] %vm401, %v3955
      %3988 = vst.msk [vmem:[#allocation2 + $0xb0] sm:$0xff] %vm401, %v3956
      %3989 = vst.msk [vmem:[#allocation2 + $0xb8] sm:$0xff] %vm401, %v3957
      %3990 = vst.msk [vmem:[#allocation2 + $0xc0] sm:$0xff] %vm401, %v3958
      %3991 = vst.msk [vmem:[#allocation2 + $0xc8] sm:$0xff] %vm401, %v3959
      %3992 = vst.msk [vmem:[#allocation2 + $0xd0] sm:$0xff] %vm401, %v3960
      %3993 = vst.msk [vmem:[#allocation2 + $0xd8] sm:$0xff] %vm401, %v3961
      %3994 = vst.msk [vmem:[#allocation2 + $0xe0] sm:$0xff] %vm401, %v3962
      %3995 = vst.msk [vmem:[#allocation2 + $0xe8] sm:$0xff] %vm401, %v3963
      %3996 = vst.msk [vmem:[#allocation2 + $0xf0] sm:$0xff] %vm401, %v3964
      %3997 = vst.msk [vmem:[#allocation2 + $0xf8] sm:$0xff] %vm401, %v3965
      %s3998 = scalar_lea.vmem %s273, 24
      %v3999 = vld [vmem:[%s3998] sm:$0xf]
      %v4000 = vld [vmem:[%s3998 + $0x4] sm:$0xf]
      %v4001 = vld [vmem:[%s3998 + $0xc] sm:$0xf]
      %v4002 = vld [vmem:[%s3998 + $0x10] sm:$0xf]
      %v4003 = vld [vmem:[%s3998 + $0x18] sm:$0xf]
      %v4004 = vld [vmem:[%s3998 + $0x1c] sm:$0xf]
      %v4005 = vld [vmem:[%s3998 + $0x24] sm:$0xf]
      %v4006 = vld [vmem:[%s3998 + $0x28] sm:$0xf]
      %v4007 = vld [vmem:[%s3998 + $0x30] sm:$0xf]
      %v4008 = vld [vmem:[%s3998 + $0x34] sm:$0xf]
      %v4009 = vld [vmem:[%s3998 + $0x3c] sm:$0xf]
      %v4010 = vld [vmem:[%s3998 + $0x40] sm:$0xf]
      %v4011 = vld [vmem:[%s3998 + $0x48] sm:$0xf]
      %v4012 = vld [vmem:[%s3998 + $0x4c] sm:$0xf]
      %v4013 = vld [vmem:[%s3998 + $0x54] sm:$0xf]
      %v4014 = vld [vmem:[%s3998 + $0x58] sm:$0xf]
      %v4015 = vld [vmem:[%s3998 + $0x60] sm:$0xf]
      %v4016 = vld [vmem:[%s3998 + $0x64] sm:$0xf]
      %v4017 = vld [vmem:[%s3998 + $0x6c] sm:$0xf]
      %v4018 = vld [vmem:[%s3998 + $0x70] sm:$0xf]
      %v4019 = vld [vmem:[%s3998 + $0x78] sm:$0xf]
      %v4020 = vld [vmem:[%s3998 + $0x7c] sm:$0xf]
      %v4021 = vld [vmem:[%s3998 + $0x84] sm:$0xf]
      %v4022 = vld [vmem:[%s3998 + $0x88] sm:$0xf]
      %v4023 = vld [vmem:[%s3998 + $0x90] sm:$0xf]
      %v4024 = vld [vmem:[%s3998 + $0x94] sm:$0xf]
      %v4025 = vld [vmem:[%s3998 + $0x9c] sm:$0xf]
      %v4026 = vld [vmem:[%s3998 + $0xa0] sm:$0xf]
      %v4027 = vld [vmem:[%s3998 + $0xa8] sm:$0xf]
      %v4028 = vld [vmem:[%s3998 + $0xac] sm:$0xf]
      %v4029 = vld [vmem:[%s3998 + $0xb4] sm:$0xf]
      %v4030 = vld [vmem:[%s3998 + $0xb8] sm:$0xf]
      %v4031 = vld [vmem:[#allocation2] sm:$0xff]
      %v4032 = vld [vmem:[#allocation2 + $0x8] sm:$0xff]
      %v4033 = vld [vmem:[#allocation2 + $0x10] sm:$0xff]
      %v4034 = vld [vmem:[#allocation2 + $0x18] sm:$0xff]
      %v4035 = vld [vmem:[#allocation2 + $0x20] sm:$0xff]
      %v4036 = vld [vmem:[#allocation2 + $0x28] sm:$0xff]
      %v4037 = vld [vmem:[#allocation2 + $0x30] sm:$0xff]
      %v4038 = vld [vmem:[#allocation2 + $0x38] sm:$0xff]
      %v4039 = vld [vmem:[#allocation2 + $0x40] sm:$0xff]
      %v4040 = vld [vmem:[#allocation2 + $0x48] sm:$0xff]
      %v4041 = vld [vmem:[#allocation2 + $0x50] sm:$0xff]
      %v4042 = vld [vmem:[#allocation2 + $0x58] sm:$0xff]
      %v4043 = vld [vmem:[#allocation2 + $0x60] sm:$0xff]
      %v4044 = vld [vmem:[#allocation2 + $0x68] sm:$0xff]
      %v4045 = vld [vmem:[#allocation2 + $0x70] sm:$0xff]
      %v4046 = vld [vmem:[#allocation2 + $0x78] sm:$0xff]
      %v4047 = vld [vmem:[#allocation2 + $0x80] sm:$0xff]
      %v4048 = vld [vmem:[#allocation2 + $0x88] sm:$0xff]
      %v4049 = vld [vmem:[#allocation2 + $0x90] sm:$0xff]
      %v4050 = vld [vmem:[#allocation2 + $0x98] sm:$0xff]
      %v4051 = vld [vmem:[#allocation2 + $0xa0] sm:$0xff]
      %v4052 = vld [vmem:[#allocation2 + $0xa8] sm:$0xff]
      %v4053 = vld [vmem:[#allocation2 + $0xb0] sm:$0xff]
      %v4054 = vld [vmem:[#allocation2 + $0xb8] sm:$0xff]
      %v4055 = vld [vmem:[#allocation2 + $0xc0] sm:$0xff]
      %v4056 = vld [vmem:[#allocation2 + $0xc8] sm:$0xff]
      %v4057 = vld [vmem:[#allocation2 + $0xd0] sm:$0xff]
      %v4058 = vld [vmem:[#allocation2 + $0xd8] sm:$0xff]
      %v4059 = vld [vmem:[#allocation2 + $0xe0] sm:$0xff]
      %v4060 = vld [vmem:[#allocation2 + $0xe8] sm:$0xff]
      %v4061 = vld [vmem:[#allocation2 + $0xf0] sm:$0xff]
      %v4062 = vld [vmem:[#allocation2 + $0xf8] sm:$0xff]
      %s4063 = scalar_lea.vmem %s1, 24
      %v4064 = vld [vmem:[%s4063] sm:$0xf]
      %v4097 = vunpack.c.l.b16 %v3999
      %v4098 = vunpack.c.l.b16 %v4000
      %v4099 = vunpack.c.l.b16 %v4001
      %v4100 = vunpack.c.l.b16 %v4002
      %v4101 = vunpack.c.l.b16 %v4003
      %v4102 = vunpack.c.l.b16 %v4004
      %v4103 = vunpack.c.l.b16 %v4005
      %v4104 = vunpack.c.l.b16 %v4006
      %v4105 = vunpack.c.l.b16 %v4007
      %v4106 = vunpack.c.l.b16 %v4008
      %v4107 = vunpack.c.l.b16 %v4009
      %v4108 = vunpack.c.l.b16 %v4010
      %v4109 = vunpack.c.l.b16 %v4011
      %v4110 = vunpack.c.l.b16 %v4012
      %v4111 = vunpack.c.l.b16 %v4013
      %v4112 = vunpack.c.l.b16 %v4014
      %v4113 = vunpack.c.l.b16 %v4015
      %v4114 = vunpack.c.l.b16 %v4016
      %v4115 = vunpack.c.l.b16 %v4017
      %v4116 = vunpack.c.l.b16 %v4018
      %v4117 = vunpack.c.l.b16 %v4019
      %v4118 = vunpack.c.l.b16 %v4020
      %v4119 = vunpack.c.l.b16 %v4021
      %v4120 = vunpack.c.l.b16 %v4022
      %v4121 = vunpack.c.l.b16 %v4023
      %v4122 = vunpack.c.l.b16 %v4024
      %v4123 = vunpack.c.l.b16 %v4025
      %v4124 = vunpack.c.l.b16 %v4026
      %v4125 = vunpack.c.l.b16 %v4027
      %v4126 = vunpack.c.l.b16 %v4028
      %v4127 = vunpack.c.l.b16 %v4029
      %v4128 = vunpack.c.l.b16 %v4030
      %v4129 = vpack.c.b16 %v4098, %v4097
      %v4130 = vpack.c.b16 %v4100, %v4099
      %v4131 = vpack.c.b16 %v4102, %v4101
      %v4132 = vpack.c.b16 %v4104, %v4103
      %v4133 = vpack.c.b16 %v4106, %v4105
      %v4134 = vpack.c.b16 %v4108, %v4107
      %v4135 = vpack.c.b16 %v4110, %v4109
      %v4136 = vpack.c.b16 %v4112, %v4111
      %v4137 = vpack.c.b16 %v4114, %v4113
      %v4138 = vpack.c.b16 %v4116, %v4115
      %v4139 = vpack.c.b16 %v4118, %v4117
      %v4140 = vpack.c.b16 %v4120, %v4119
      %v4141 = vpack.c.b16 %v4122, %v4121
      %v4142 = vpack.c.b16 %v4124, %v4123
      %v4143 = vpack.c.b16 %v4126, %v4125
      %v4144 = vpack.c.b16 %v4128, %v4127
      %v4146 = vsel %vm579, %v4129, 0
      %v4149 = vsel %vm579, %v4130, 0
      %v4152 = vsel %vm579, %v4131, 0
      %v4155 = vsel %vm579, %v4132, 0
      %v4158 = vsel %vm579, %v4133, 0
      %v4161 = vsel %vm579, %v4134, 0
      %v4164 = vsel %vm579, %v4135, 0
      %v4167 = vsel %vm579, %v4136, 0
      %v4170 = vsel %vm579, %v4137, 0
      %v4173 = vsel %vm579, %v4138, 0
      %v4176 = vsel %vm579, %v4139, 0
      %v4179 = vsel %vm579, %v4140, 0
      %v4182 = vsel %vm579, %v4141, 0
      %v4185 = vsel %vm579, %v4142, 0
      %v4188 = vsel %vm579, %v4143, 0
      %v4191 = vsel %vm579, %v4144, 0
      %v4194 = vsel %vm628, %v4064, 0
      %4196 = vmatprep.subr.bf16.mxu0 0
      %4197 = vmatpush1.bf16.msra.mxu0 %v4194
      %4198 = vmatprep.subr.bf16.mxu0 0
      %4199 = vmatpush1.bf16.msra.mxu0 0
      %4200 = vmatprep.subr.bf16.mxu0 0
      %4201 = vmatpush1.bf16.msra.mxu0 0
      %4202 = vmatprep.subr.bf16.mxu0 0
      %4203 = vmatpush1.bf16.msra.mxu0 0
      %4204 = vmatprep.subr.bf16.mxu0 0
      %4205 = vmatpush1.bf16.msra.mxu0 0
      %4206 = vmatprep.subr.bf16.mxu0 0
      %4207 = vmatpush1.bf16.msra.mxu0 0
      %4208 = vmatprep.subr.bf16.mxu0 0
      %4209 = vmatpush1.bf16.msra.mxu0 0
      %4210 = vmatprep.subr.bf16.mxu0 0
      %4211 = vmatpush1.bf16.msra.mxu0 0
      %4212 = vmatprep.subr.bf16.mxu0 0
      %4213 = vmatpush1.bf16.msra.mxu0 0
      %4214 = vmatprep.subr.bf16.mxu0 0
      %4215 = vmatpush1.bf16.msra.mxu0 0
      %4216 = vmatprep.subr.bf16.mxu0 0
      %4217 = vmatpush1.bf16.msra.mxu0 0
      %4218 = vmatprep.subr.bf16.mxu0 0
      %4219 = vmatpush1.bf16.msra.mxu0 0
      %4220 = vmatprep.subr.bf16.mxu0 0
      %4221 = vmatpush1.bf16.msra.mxu0 0
      %4222 = vmatprep.subr.bf16.mxu0 0
      %4223 = vmatpush1.bf16.msra.mxu0 0
      %4224 = vmatprep.subr.bf16.mxu0 0
      %4225 = vmatpush1.bf16.msra.mxu0 0
      %4226 = vmatprep.subr.bf16.mxu0 0
      %4227 = vmatpush1.bf16.msra.mxu0 0
      %4228 = vmatprep.mubr.bf16.mxu0 0
      %4229 = vmatmul.mubr.bf16.gmra.mrb[0].mxu0 %v4146
      %v4230 = vpop.f32.mrb[0].mxu0
      %v4231 = vadd.f32 0.0, %v4230
      %v4232 = vpop.f32.mrb[0].mxu0
      %v4233 = vpop.f32.mrb[0].mxu0
      %v4234 = vadd.f32 0.0, %v4233
      %v4235 = vpop.f32.mrb[0].mxu0
      %4236 = vmatprep.mubr.bf16.mxu0 0
      %4237 = vmatmul.mubr.bf16.gmra.mrb[0].mxu0 %v4149
      %v4238 = vpop.f32.mrb[0].mxu0
      %v4239 = vadd.f32 0.0, %v4238
      %v4240 = vpop.f32.mrb[0].mxu0
      %v4241 = vpop.f32.mrb[0].mxu0
      %v4242 = vadd.f32 0.0, %v4241
      %v4243 = vpop.f32.mrb[0].mxu0
      %4244 = vmatprep.mubr.bf16.mxu0 0
      %4245 = vmatmul.mubr.bf16.gmra.mrb[0].mxu0 %v4152
      %v4246 = vpop.f32.mrb[0].mxu0
      %v4247 = vadd.f32 0.0, %v4246
      %v4248 = vpop.f32.mrb[0].mxu0
      %v4249 = vpop.f32.mrb[0].mxu0
      %v4250 = vadd.f32 0.0, %v4249
      %v4251 = vpop.f32.mrb[0].mxu0
      %4252 = vmatprep.mubr.bf16.mxu0 0
      %4253 = vmatmul.mubr.bf16.gmra.mrb[0].mxu0 %v4155
      %v4254 = vpop.f32.mrb[0].mxu0
      %v4255 = vadd.f32 0.0, %v4254
      %v4256 = vpop.f32.mrb[0].mxu0
      %v4257 = vpop.f32.mrb[0].mxu0
      %v4258 = vadd.f32 0.0, %v4257
      %v4259 = vpop.f32.mrb[0].mxu0
      %4260 = vmatprep.mubr.bf16.mxu0 0
      %4261 = vmatmul.mubr.bf16.gmra.mrb[0].mxu0 %v4158
      %v4262 = vpop.f32.mrb[0].mxu0
      %v4263 = vadd.f32 0.0, %v4262
      %v4264 = vpop.f32.mrb[0].mxu0
      %v4265 = vpop.f32.mrb[0].mxu0
      %v4266 = vadd.f32 0.0, %v4265
      %v4267 = vpop.f32.mrb[0].mxu0
      %4268 = vmatprep.mubr.bf16.mxu0 0
      %4269 = vmatmul.mubr.bf16.gmra.mrb[0].mxu0 %v4161
      %v4270 = vpop.f32.mrb[0].mxu0
      %v4271 = vadd.f32 0.0, %v4270
      %v4272 = vpop.f32.mrb[0].mxu0
      %v4273 = vpop.f32.mrb[0].mxu0
      %v4274 = vadd.f32 0.0, %v4273
      %v4275 = vpop.f32.mrb[0].mxu0
      %4276 = vmatprep.mubr.bf16.mxu0 0
      %4277 = vmatmul.mubr.bf16.gmra.mrb[0].mxu0 %v4164
      %v4278 = vpop.f32.mrb[0].mxu0
      %v4279 = vadd.f32 0.0, %v4278
      %v4280 = vpop.f32.mrb[0].mxu0
      %v4281 = vpop.f32.mrb[0].mxu0
      %v4282 = vadd.f32 0.0, %v4281
      %v4283 = vpop.f32.mrb[0].mxu0
      %4284 = vmatprep.mubr.bf16.mxu0 0
      %4285 = vmatmul.mubr.bf16.gmra.mrb[0].mxu0 %v4167
      %v4286 = vpop.f32.mrb[0].mxu0
      %v4287 = vadd.f32 0.0, %v4286
      %v4288 = vpop.f32.mrb[0].mxu0
      %v4289 = vpop.f32.mrb[0].mxu0
      %v4290 = vadd.f32 0.0, %v4289
      %v4291 = vpop.f32.mrb[0].mxu0
      %4292 = vmatprep.mubr.bf16.mxu0 0
      %4293 = vmatmul.mubr.bf16.gmra.mrb[0].mxu0 %v4170
      %v4294 = vpop.f32.mrb[0].mxu0
      %v4295 = vadd.f32 0.0, %v4294
      %v4296 = vpop.f32.mrb[0].mxu0
      %v4297 = vpop.f32.mrb[0].mxu0
      %v4298 = vadd.f32 0.0, %v4297
      %v4299 = vpop.f32.mrb[0].mxu0
      %4300 = vmatprep.mubr.bf16.mxu0 0
      %4301 = vmatmul.mubr.bf16.gmra.mrb[0].mxu0 %v4173
      %v4302 = vpop.f32.mrb[0].mxu0
      %v4303 = vadd.f32 0.0, %v4302
      %v4304 = vpop.f32.mrb[0].mxu0
      %v4305 = vpop.f32.mrb[0].mxu0
      %v4306 = vadd.f32 0.0, %v4305
      %v4307 = vpop.f32.mrb[0].mxu0
      %4308 = vmatprep.mubr.bf16.mxu0 0
      %4309 = vmatmul.mubr.bf16.gmra.mrb[0].mxu0 %v4176
      %v4310 = vpop.f32.mrb[0].mxu0
      %v4311 = vadd.f32 0.0, %v4310
      %v4312 = vpop.f32.mrb[0].mxu0
      %v4313 = vpop.f32.mrb[0].mxu0
      %v4314 = vadd.f32 0.0, %v4313
      %v4315 = vpop.f32.mrb[0].mxu0
      %4316 = vmatprep.mubr.bf16.mxu0 0
      %4317 = vmatmul.mubr.bf16.gmra.mrb[0].mxu0 %v4179
      %v4318 = vpop.f32.mrb[0].mxu0
      %v4319 = vadd.f32 0.0, %v4318
      %v4320 = vpop.f32.mrb[0].mxu0
      %v4321 = vpop.f32.mrb[0].mxu0
      %v4322 = vadd.f32 0.0, %v4321
      %v4323 = vpop.f32.mrb[0].mxu0
      %4324 = vmatprep.mubr.bf16.mxu0 0
      %4325 = vmatmul.mubr.bf16.gmra.mrb[0].mxu0 %v4182
      %v4326 = vpop.f32.mrb[0].mxu0
      %v4327 = vadd.f32 0.0, %v4326
      %v4328 = vpop.f32.mrb[0].mxu0
      %v4329 = vpop.f32.mrb[0].mxu0
      %v4330 = vadd.f32 0.0, %v4329
      %v4331 = vpop.f32.mrb[0].mxu0
      %4332 = vmatprep.mubr.bf16.mxu0 0
      %4333 = vmatmul.mubr.bf16.gmra.mrb[0].mxu0 %v4185
      %v4334 = vpop.f32.mrb[0].mxu0
      %v4335 = vadd.f32 0.0, %v4334
      %v4336 = vpop.f32.mrb[0].mxu0
      %v4337 = vpop.f32.mrb[0].mxu0
      %v4338 = vadd.f32 0.0, %v4337
      %v4339 = vpop.f32.mrb[0].mxu0
      %4340 = vmatprep.mubr.bf16.mxu0 0
      %4341 = vmatmul.mubr.bf16.gmra.mrb[0].mxu0 %v4188
      %v4342 = vpop.f32.mrb[0].mxu0
      %v4343 = vadd.f32 0.0, %v4342
      %v4344 = vpop.f32.mrb[0].mxu0
      %v4345 = vpop.f32.mrb[0].mxu0
      %v4346 = vadd.f32 0.0, %v4345
      %v4347 = vpop.f32.mrb[0].mxu0
      %4348 = vmatprep.mubr.bf16.mxu0 0
      %4349 = vmatmul.mubr.bf16.gmra.mrb[0].mxu0 %v4191
      %v4350 = vpop.f32.mrb[0].mxu0
      %v4351 = vadd.f32 0.0, %v4350
      %v4352 = vpop.f32.mrb[0].mxu0
      %v4353 = vpop.f32.mrb[0].mxu0
      %v4354 = vadd.f32 0.0, %v4353
      %v4355 = vpop.f32.mrb[0].mxu0
      %4356 = vdwg.mxu0
      %v4357 = vadd.f32 %v4031, %v4231
      %v4358 = vadd.f32 %v4032, %v4234
      %v4359 = vadd.f32 %v4033, %v4239
      %v4360 = vadd.f32 %v4034, %v4242
      %v4361 = vadd.f32 %v4035, %v4247
      %v4362 = vadd.f32 %v4036, %v4250
      %v4363 = vadd.f32 %v4037, %v4255
      %v4364 = vadd.f32 %v4038, %v4258
      %v4365 = vadd.f32 %v4039, %v4263
      %v4366 = vadd.f32 %v4040, %v4266
      %v4367 = vadd.f32 %v4041, %v4271
      %v4368 = vadd.f32 %v4042, %v4274
      %v4369 = vadd.f32 %v4043, %v4279
      %v4370 = vadd.f32 %v4044, %v4282
      %v4371 = vadd.f32 %v4045, %v4287
      %v4372 = vadd.f32 %v4046, %v4290
      %v4373 = vadd.f32 %v4047, %v4295
      %v4374 = vadd.f32 %v4048, %v4298
      %v4375 = vadd.f32 %v4049, %v4303
      %v4376 = vadd.f32 %v4050, %v4306
      %v4377 = vadd.f32 %v4051, %v4311
      %v4378 = vadd.f32 %v4052, %v4314
      %v4379 = vadd.f32 %v4053, %v4319
      %v4380 = vadd.f32 %v4054, %v4322
      %v4381 = vadd.f32 %v4055, %v4327
      %v4382 = vadd.f32 %v4056, %v4330
      %v4383 = vadd.f32 %v4057, %v4335
      %v4384 = vadd.f32 %v4058, %v4338
      %v4385 = vadd.f32 %v4059, %v4343
      %v4386 = vadd.f32 %v4060, %v4346
      %v4387 = vadd.f32 %v4061, %v4351
      %v4388 = vadd.f32 %v4062, %v4354
      %4389 = vst.msk [vmem:[#allocation2] sm:$0xff] %vm401, %v4357
      %4390 = vst.msk [vmem:[#allocation2 + $0x8] sm:$0xff] %vm401, %v4358
      %4391 = vst.msk [vmem:[#allocation2 + $0x10] sm:$0xff] %vm401, %v4359
      %4392 = vst.msk [vmem:[#allocation2 + $0x18] sm:$0xff] %vm401, %v4360
      %4393 = vst.msk [vmem:[#allocation2 + $0x20] sm:$0xff] %vm401, %v4361
      %4394 = vst.msk [vmem:[#allocation2 + $0x28] sm:$0xff] %vm401, %v4362
      %4395 = vst.msk [vmem:[#allocation2 + $0x30] sm:$0xff] %vm401, %v4363
      %4396 = vst.msk [vmem:[#allocation2 + $0x38] sm:$0xff] %vm401, %v4364
      %4397 = vst.msk [vmem:[#allocation2 + $0x40] sm:$0xff] %vm401, %v4365
      %4398 = vst.msk [vmem:[#allocation2 + $0x48] sm:$0xff] %vm401, %v4366
      %4399 = vst.msk [vmem:[#allocation2 + $0x50] sm:$0xff] %vm401, %v4367
      %4400 = vst.msk [vmem:[#allocation2 + $0x58] sm:$0xff] %vm401, %v4368
      %4401 = vst.msk [vmem:[#allocation2 + $0x60] sm:$0xff] %vm401, %v4369
      %4402 = vst.msk [vmem:[#allocation2 + $0x68] sm:$0xff] %vm401, %v4370
      %4403 = vst.msk [vmem:[#allocation2 + $0x70] sm:$0xff] %vm401, %v4371
      %4404 = vst.msk [vmem:[#allocation2 + $0x78] sm:$0xff] %vm401, %v4372
      %4405 = vst.msk [vmem:[#allocation2 + $0x80] sm:$0xff] %vm401, %v4373
      %4406 = vst.msk [vmem:[#allocation2 + $0x88] sm:$0xff] %vm401, %v4374
      %4407 = vst.msk [vmem:[#allocation2 + $0x90] sm:$0xff] %vm401, %v4375
      %4408 = vst.msk [vmem:[#allocation2 + $0x98] sm:$0xff] %vm401, %v4376
      %4409 = vst.msk [vmem:[#allocation2 + $0xa0] sm:$0xff] %vm401, %v4377
      %4410 = vst.msk [vmem:[#allocation2 + $0xa8] sm:$0xff] %vm401, %v4378
      %4411 = vst.msk [vmem:[#allocation2 + $0xb0] sm:$0xff] %vm401, %v4379
      %4412 = vst.msk [vmem:[#allocation2 + $0xb8] sm:$0xff] %vm401, %v4380
      %4413 = vst.msk [vmem:[#allocation2 + $0xc0] sm:$0xff] %vm401, %v4381
      %4414 = vst.msk [vmem:[#allocation2 + $0xc8] sm:$0xff] %vm401, %v4382
      %4415 = vst.msk [vmem:[#allocation2 + $0xd0] sm:$0xff] %vm401, %v4383
      %4416 = vst.msk [vmem:[#allocation2 + $0xd8] sm:$0xff] %vm401, %v4384
      %4417 = vst.msk [vmem:[#allocation2 + $0xe0] sm:$0xff] %vm401, %v4385
      %4418 = vst.msk [vmem:[#allocation2 + $0xe8] sm:$0xff] %vm401, %v4386
      %4419 = vst.msk [vmem:[#allocation2 + $0xf0] sm:$0xff] %vm401, %v4387
      %4420 = vst.msk [vmem:[#allocation2 + $0xf8] sm:$0xff] %vm401, %v4388
      %v4421 = vld [vmem:[%s3998] sm:$0xf]
      %v4422 = vld [vmem:[%s3998 + $0x4] sm:$0xf]
      %v4423 = vld [vmem:[%s3998 + $0x8] sm:$0x1]
      %v4424 = vld [vmem:[%s3998 + $0xc] sm:$0xf]
      %v4425 = vld [vmem:[%s3998 + $0x10] sm:$0xf]
      %v4426 = vld [vmem:[%s3998 + $0x14] sm:$0x1]
      %v4427 = vld [vmem:[%s3998 + $0x18] sm:$0xf]
      %v4428 = vld [vmem:[%s3998 + $0x1c] sm:$0xf]
      %v4429 = vld [vmem:[%s3998 + $0x20] sm:$0x1]
      %v4430 = vld [vmem:[%s3998 + $0x24] sm:$0xf]
      %v4431 = vld [vmem:[%s3998 + $0x28] sm:$0xf]
      %v4432 = vld [vmem:[%s3998 + $0x2c] sm:$0x1]
      %v4433 = vld [vmem:[%s3998 + $0x30] sm:$0xf]
      %v4434 = vld [vmem:[%s3998 + $0x34] sm:$0xf]
      %v4435 = vld [vmem:[%s3998 + $0x38] sm:$0x1]
      %v4436 = vld [vmem:[%s3998 + $0x3c] sm:$0xf]
      %v4437 = vld [vmem:[%s3998 + $0x40] sm:$0xf]
      %v4438 = vld [vmem:[%s3998 + $0x44] sm:$0x1]
      %v4439 = vld [vmem:[%s3998 + $0x48] sm:$0xf]
      %v4440 = vld [vmem:[%s3998 + $0x4c] sm:$0xf]
      %v4441 = vld [vmem:[%s3998 + $0x50] sm:$0x1]
      %v4442 = vld [vmem:[%s3998 + $0x54] sm:$0xf]
      %v4443 = vld [vmem:[%s3998 + $0x58] sm:$0xf]
      %v4444 = vld [vmem:[%s3998 + $0x5c] sm:$0x1]
      %v4445 = vld [vmem:[%s3998 + $0x60] sm:$0xf]
      %v4446 = vld [vmem:[%s3998 + $0x64] sm:$0xf]
      %v4447 = vld [vmem:[%s3998 + $0x68] sm:$0x1]
      %v4448 = vld [vmem:[%s3998 + $0x6c] sm:$0xf]
      %v4449 = vld [vmem:[%s3998 + $0x70] sm:$0xf]
      %v4450 = vld [vmem:[%s3998 + $0x74] sm:$0x1]
      %v4451 = vld [vmem:[%s3998 + $0x78] sm:$0xf]
      %v4452 = vld [vmem:[%s3998 + $0x7c] sm:$0xf]
      %v4453 = vld [vmem:[%s3998 + $0x80] sm:$0x1]
      %v4454 = vld [vmem:[%s3998 + $0x84] sm:$0xf]
      %v4455 = vld [vmem:[%s3998 + $0x88] sm:$0xf]
      %v4456 = vld [vmem:[%s3998 + $0x8c] sm:$0x1]
      %v4457 = vld [vmem:[%s3998 + $0x90] sm:$0xf]
      %v4458 = vld [vmem:[%s3998 + $0x94] sm:$0xf]
      %v4459 = vld [vmem:[%s3998 + $0x98] sm:$0x1]
      %v4460 = vld [vmem:[%s3998 + $0x9c] sm:$0xf]
      %v4461 = vld [vmem:[%s3998 + $0xa0] sm:$0xf]
      %v4462 = vld [vmem:[%s3998 + $0xa4] sm:$0x1]
      %v4463 = vld [vmem:[%s3998 + $0xa8] sm:$0xf]
      %v4464 = vld [vmem:[%s3998 + $0xac] sm:$0xf]
      %v4465 = vld [vmem:[%s3998 + $0xb0] sm:$0x1]
      %v4466 = vld [vmem:[%s3998 + $0xb4] sm:$0xf]
      %v4467 = vld [vmem:[%s3998 + $0xb8] sm:$0xf]
      %v4468 = vld [vmem:[%s3998 + $0xbc] sm:$0x1]
      %v4470 = vshrl.u32 %v4421, 16
      %v4472 = vrot.slane %v4470, 4
      %v4473 = vshll.u32 %v4421, 16
      %v4475 = vrot.slane %v4473, 5
      %v4476 = vor.u32 %v4472, %v4475
      %v4477 = vrot.slane %v4476, 4
      %v4479 = vshll.u32 %v4422, 16
      %v4481 = vrot.slane %v4479, 5
      %v4482 = vsel %vm907, %v4477, %v4481
      %v4483 = vshrl.u32 %v4422, 16
      %v4485 = vrot.slane %v4483, 4
      %v4486 = vor.u32 %v4485, %v4481
      %v4487 = vrot.slane %v4486, 4
      %v4489 = vshll.u32 %v4423, 16
      %v4491 = vrot.slane %v4489, 5
      %v4492 = vsel %vm907, %v4487, %v4491
      %v4494 = vshrl.u32 %v4424, 16
      %v4496 = vrot.slane %v4494, 4
      %v4497 = vshll.u32 %v4424, 16
      %v4499 = vrot.slane %v4497, 5
      %v4500 = vor.u32 %v4496, %v4499
      %v4501 = vrot.slane %v4500, 4
      %v4503 = vshll.u32 %v4425, 16
      %v4505 = vrot.slane %v4503, 5
      %v4506 = vsel %vm907, %v4501, %v4505
      %v4507 = vshrl.u32 %v4425, 16
      %v4509 = vrot.slane %v4507, 4
      %v4510 = vor.u32 %v4509, %v4505
      %v4511 = vrot.slane %v4510, 4
      %v4513 = vshll.u32 %v4426, 16
      %v4515 = vrot.slane %v4513, 5
      %v4516 = vsel %vm907, %v4511, %v4515
      %v4518 = vshrl.u32 %v4427, 16
      %v4520 = vrot.slane %v4518, 4
      %v4521 = vshll.u32 %v4427, 16
      %v4523 = vrot.slane %v4521, 5
      %v4524 = vor.u32 %v4520, %v4523
      %v4525 = vrot.slane %v4524, 4
      %v4527 = vshll.u32 %v4428, 16
      %v4529 = vrot.slane %v4527, 5
      %v4530 = vsel %vm907, %v4525, %v4529
      %v4531 = vshrl.u32 %v4428, 16
      %v4533 = vrot.slane %v4531, 4
      %v4534 = vor.u32 %v4533, %v4529
      %v4535 = vrot.slane %v4534, 4
      %v4537 = vshll.u32 %v4429, 16
      %v4539 = vrot.slane %v4537, 5
      %v4540 = vsel %vm907, %v4535, %v4539
      %v4542 = vshrl.u32 %v4430, 16
      %v4544 = vrot.slane %v4542, 4
      %v4545 = vshll.u32 %v4430, 16
      %v4547 = vrot.slane %v4545, 5
      %v4548 = vor.u32 %v4544, %v4547
      %v4549 = vrot.slane %v4548, 4
      %v4551 = vshll.u32 %v4431, 16
      %v4553 = vrot.slane %v4551, 5
      %v4554 = vsel %vm907, %v4549, %v4553
      %v4555 = vshrl.u32 %v4431, 16
      %v4557 = vrot.slane %v4555, 4
      %v4558 = vor.u32 %v4557, %v4553
      %v4559 = vrot.slane %v4558, 4
      %v4561 = vshll.u32 %v4432, 16
      %v4563 = vrot.slane %v4561, 5
      %v4564 = vsel %vm907, %v4559, %v4563
      %v4566 = vshrl.u32 %v4433, 16
      %v4568 = vrot.slane %v4566, 4
      %v4569 = vshll.u32 %v4433, 16
      %v4571 = vrot.slane %v4569, 5
      %v4572 = vor.u32 %v4568, %v4571
      %v4573 = vrot.slane %v4572, 4
      %v4575 = vshll.u32 %v4434, 16
      %v4577 = vrot.slane %v4575, 5
      %v4578 = vsel %vm907, %v4573, %v4577
      %v4579 = vshrl.u32 %v4434, 16
      %v4581 = vrot.slane %v4579, 4
      %v4582 = vor.u32 %v4581, %v4577
      %v4583 = vrot.slane %v4582, 4
      %v4585 = vshll.u32 %v4435, 16
      %v4587 = vrot.slane %v4585, 5
      %v4588 = vsel %vm907, %v4583, %v4587
      %v4590 = vshrl.u32 %v4436, 16
      %v4592 = vrot.slane %v4590, 4
      %v4593 = vshll.u32 %v4436, 16
      %v4595 = vrot.slane %v4593, 5
      %v4596 = vor.u32 %v4592, %v4595
      %v4597 = vrot.slane %v4596, 4
      %v4599 = vshll.u32 %v4437, 16
      %v4601 = vrot.slane %v4599, 5
      %v4602 = vsel %vm907, %v4597, %v4601
      %v4603 = vshrl.u32 %v4437, 16
      %v4605 = vrot.slane %v4603, 4
      %v4606 = vor.u32 %v4605, %v4601
      %v4607 = vrot.slane %v4606, 4
      %v4609 = vshll.u32 %v4438, 16
      %v4611 = vrot.slane %v4609, 5
      %v4612 = vsel %vm907, %v4607, %v4611
      %v4614 = vshrl.u32 %v4439, 16
      %v4616 = vrot.slane %v4614, 4
      %v4617 = vshll.u32 %v4439, 16
      %v4619 = vrot.slane %v4617, 5
      %v4620 = vor.u32 %v4616, %v4619
      %v4621 = vrot.slane %v4620, 4
      %v4623 = vshll.u32 %v4440, 16
      %v4625 = vrot.slane %v4623, 5
      %v4626 = vsel %vm907, %v4621, %v4625
      %v4627 = vshrl.u32 %v4440, 16
      %v4629 = vrot.slane %v4627, 4
      %v4630 = vor.u32 %v4629, %v4625
      %v4631 = vrot.slane %v4630, 4
      %v4633 = vshll.u32 %v4441, 16
      %v4635 = vrot.slane %v4633, 5
      %v4636 = vsel %vm907, %v4631, %v4635
      %v4638 = vshrl.u32 %v4442, 16
      %v4640 = vrot.slane %v4638, 4
      %v4641 = vshll.u32 %v4442, 16
      %v4643 = vrot.slane %v4641, 5
      %v4644 = vor.u32 %v4640, %v4643
      %v4645 = vrot.slane %v4644, 4
      %v4647 = vshll.u32 %v4443, 16
      %v4649 = vrot.slane %v4647, 5
      %v4650 = vsel %vm907, %v4645, %v4649
      %v4651 = vshrl.u32 %v4443, 16
      %v4653 = vrot.slane %v4651, 4
      %v4654 = vor.u32 %v4653, %v4649
      %v4655 = vrot.slane %v4654, 4
      %v4657 = vshll.u32 %v4444, 16
      %v4659 = vrot.slane %v4657, 5
      %v4660 = vsel %vm907, %v4655, %v4659
      %v4662 = vshrl.u32 %v4445, 16
      %v4664 = vrot.slane %v4662, 4
      %v4665 = vshll.u32 %v4445, 16
      %v4667 = vrot.slane %v4665, 5
      %v4668 = vor.u32 %v4664, %v4667
      %v4669 = vrot.slane %v4668, 4
      %v4671 = vshll.u32 %v4446, 16
      %v4673 = vrot.slane %v4671, 5
      %v4674 = vsel %vm907, %v4669, %v4673
      %v4675 = vshrl.u32 %v4446, 16
      %v4677 = vrot.slane %v4675, 4
      %v4678 = vor.u32 %v4677, %v4673
      %v4679 = vrot.slane %v4678, 4
      %v4681 = vshll.u32 %v4447, 16
      %v4683 = vrot.slane %v4681, 5
      %v4684 = vsel %vm907, %v4679, %v4683
      %v4686 = vshrl.u32 %v4448, 16
      %v4688 = vrot.slane %v4686, 4
      %v4689 = vshll.u32 %v4448, 16
      %v4691 = vrot.slane %v4689, 5
      %v4692 = vor.u32 %v4688, %v4691
      %v4693 = vrot.slane %v4692, 4
      %v4695 = vshll.u32 %v4449, 16
      %v4697 = vrot.slane %v4695, 5
      %v4698 = vsel %vm907, %v4693, %v4697
      %v4699 = vshrl.u32 %v4449, 16
      %v4701 = vrot.slane %v4699, 4
      %v4702 = vor.u32 %v4701, %v4697
      %v4703 = vrot.slane %v4702, 4
      %v4705 = vshll.u32 %v4450, 16
      %v4707 = vrot.slane %v4705, 5
      %v4708 = vsel %vm907, %v4703, %v4707
      %v4710 = vshrl.u32 %v4451, 16
      %v4712 = vrot.slane %v4710, 4
      %v4713 = vshll.u32 %v4451, 16
      %v4715 = vrot.slane %v4713, 5
      %v4716 = vor.u32 %v4712, %v4715
      %v4717 = vrot.slane %v4716, 4
      %v4719 = vshll.u32 %v4452, 16
      %v4721 = vrot.slane %v4719, 5
      %v4722 = vsel %vm907, %v4717, %v4721
      %v4723 = vshrl.u32 %v4452, 16
      %v4725 = vrot.slane %v4723, 4
      %v4726 = vor.u32 %v4725, %v4721
      %v4727 = vrot.slane %v4726, 4
      %v4729 = vshll.u32 %v4453, 16
      %v4731 = vrot.slane %v4729, 5
      %v4732 = vsel %vm907, %v4727, %v4731
      %v4734 = vshrl.u32 %v4454, 16
      %v4736 = vrot.slane %v4734, 4
      %v4737 = vshll.u32 %v4454, 16
      %v4739 = vrot.slane %v4737, 5
      %v4740 = vor.u32 %v4736, %v4739
      %v4741 = vrot.slane %v4740, 4
      %v4743 = vshll.u32 %v4455, 16
      %v4745 = vrot.slane %v4743, 5
      %v4746 = vsel %vm907, %v4741, %v4745
      %v4747 = vshrl.u32 %v4455, 16
      %v4749 = vrot.slane %v4747, 4
      %v4750 = vor.u32 %v4749, %v4745
      %v4751 = vrot.slane %v4750, 4
      %v4753 = vshll.u32 %v4456, 16
      %v4755 = vrot.slane %v4753, 5
      %v4756 = vsel %vm907, %v4751, %v4755
      %v4758 = vshrl.u32 %v4457, 16
      %v4760 = vrot.slane %v4758, 4
      %v4761 = vshll.u32 %v4457, 16
      %v4763 = vrot.slane %v4761, 5
      %v4764 = vor.u32 %v4760, %v4763
      %v4765 = vrot.slane %v4764, 4
      %v4767 = vshll.u32 %v4458, 16
      %v4769 = vrot.slane %v4767, 5
      %v4770 = vsel %vm907, %v4765, %v4769
      %v4771 = vshrl.u32 %v4458, 16
      %v4773 = vrot.slane %v4771, 4
      %v4774 = vor.u32 %v4773, %v4769
      %v4775 = vrot.slane %v4774, 4
      %v4777 = vshll.u32 %v4459, 16
      %v4779 = vrot.slane %v4777, 5
      %v4780 = vsel %vm907, %v4775, %v4779
      %v4782 = vshrl.u32 %v4460, 16
      %v4784 = vrot.slane %v4782, 4
      %v4785 = vshll.u32 %v4460, 16
      %v4787 = vrot.slane %v4785, 5
      %v4788 = vor.u32 %v4784, %v4787
      %v4789 = vrot.slane %v4788, 4
      %v4791 = vshll.u32 %v4461, 16
      %v4793 = vrot.slane %v4791, 5
      %v4794 = vsel %vm907, %v4789, %v4793
      %v4795 = vshrl.u32 %v4461, 16
      %v4797 = vrot.slane %v4795, 4
      %v4798 = vor.u32 %v4797, %v4793
      %v4799 = vrot.slane %v4798, 4
      %v4801 = vshll.u32 %v4462, 16
      %v4803 = vrot.slane %v4801, 5
      %v4804 = vsel %vm907, %v4799, %v4803
      %v4806 = vshrl.u32 %v4463, 16
      %v4808 = vrot.slane %v4806, 4
      %v4809 = vshll.u32 %v4463, 16
      %v4811 = vrot.slane %v4809, 5
      %v4812 = vor.u32 %v4808, %v4811
      %v4813 = vrot.slane %v4812, 4
      %v4815 = vshll.u32 %v4464, 16
      %v4817 = vrot.slane %v4815, 5
      %v4818 = vsel %vm907, %v4813, %v4817
      %v4819 = vshrl.u32 %v4464, 16
      %v4821 = vrot.slane %v4819, 4
      %v4822 = vor.u32 %v4821, %v4817
      %v4823 = vrot.slane %v4822, 4
      %v4825 = vshll.u32 %v4465, 16
      %v4827 = vrot.slane %v4825, 5
      %v4828 = vsel %vm907, %v4823, %v4827
      %v4830 = vshrl.u32 %v4466, 16
      %v4832 = vrot.slane %v4830, 4
      %v4833 = vshll.u32 %v4466, 16
      %v4835 = vrot.slane %v4833, 5
      %v4836 = vor.u32 %v4832, %v4835
      %v4837 = vrot.slane %v4836, 4
      %v4839 = vshll.u32 %v4467, 16
      %v4841 = vrot.slane %v4839, 5
      %v4842 = vsel %vm907, %v4837, %v4841
      %v4843 = vshrl.u32 %v4467, 16
      %v4845 = vrot.slane %v4843, 4
      %v4846 = vor.u32 %v4845, %v4841
      %v4847 = vrot.slane %v4846, 4
      %v4849 = vshll.u32 %v4468, 16
      %v4851 = vrot.slane %v4849, 5
      %v4852 = vsel %vm907, %v4847, %v4851
      %v4853 = vld [vmem:[#allocation2] sm:$0xff]
      %v4854 = vld [vmem:[#allocation2 + $0x8] sm:$0xff]
      %v4855 = vld [vmem:[#allocation2 + $0x10] sm:$0xff]
      %v4856 = vld [vmem:[#allocation2 + $0x18] sm:$0xff]
      %v4857 = vld [vmem:[#allocation2 + $0x20] sm:$0xff]
      %v4858 = vld [vmem:[#allocation2 + $0x28] sm:$0xff]
      %v4859 = vld [vmem:[#allocation2 + $0x30] sm:$0xff]
      %v4860 = vld [vmem:[#allocation2 + $0x38] sm:$0xff]
      %v4861 = vld [vmem:[#allocation2 + $0x40] sm:$0xff]
      %v4862 = vld [vmem:[#allocation2 + $0x48] sm:$0xff]
      %v4863 = vld [vmem:[#allocation2 + $0x50] sm:$0xff]
      %v4864 = vld [vmem:[#allocation2 + $0x58] sm:$0xff]
      %v4865 = vld [vmem:[#allocation2 + $0x60] sm:$0xff]
      %v4866 = vld [vmem:[#allocation2 + $0x68] sm:$0xff]
      %v4867 = vld [vmem:[#allocation2 + $0x70] sm:$0xff]
      %v4868 = vld [vmem:[#allocation2 + $0x78] sm:$0xff]
      %v4869 = vld [vmem:[#allocation2 + $0x80] sm:$0xff]
      %v4870 = vld [vmem:[#allocation2 + $0x88] sm:$0xff]
      %v4871 = vld [vmem:[#allocation2 + $0x90] sm:$0xff]
      %v4872 = vld [vmem:[#allocation2 + $0x98] sm:$0xff]
      %v4873 = vld [vmem:[#allocation2 + $0xa0] sm:$0xff]
      %v4874 = vld [vmem:[#allocation2 + $0xa8] sm:$0xff]
      %v4875 = vld [vmem:[#allocation2 + $0xb0] sm:$0xff]
      %v4876 = vld [vmem:[#allocation2 + $0xb8] sm:$0xff]
      %v4877 = vld [vmem:[#allocation2 + $0xc0] sm:$0xff]
      %v4878 = vld [vmem:[#allocation2 + $0xc8] sm:$0xff]
      %v4879 = vld [vmem:[#allocation2 + $0xd0] sm:$0xff]
      %v4880 = vld [vmem:[#allocation2 + $0xd8] sm:$0xff]
      %v4881 = vld [vmem:[#allocation2 + $0xe0] sm:$0xff]
      %v4882 = vld [vmem:[#allocation2 + $0xe8] sm:$0xff]
      %v4883 = vld [vmem:[#allocation2 + $0xf0] sm:$0xff]
      %v4884 = vld [vmem:[#allocation2 + $0xf8] sm:$0xff]
      %s4885 = scalar_lea.vmem %s1, 28
      %v4886 = vld [vmem:[%s4885] sm:$0xf]
      %v4887 = vunpack.c.l.b16 %v4482
      %v4888 = vunpack.c.l.b16 %v4492
      %v4889 = vunpack.c.l.b16 %v4506
      %v4890 = vunpack.c.l.b16 %v4516
      %v4891 = vunpack.c.l.b16 %v4530
      %v4892 = vunpack.c.l.b16 %v4540
      %v4893 = vunpack.c.l.b16 %v4554
      %v4894 = vunpack.c.l.b16 %v4564
      %v4895 = vunpack.c.l.b16 %v4578
      %v4896 = vunpack.c.l.b16 %v4588
      %v4897 = vunpack.c.l.b16 %v4602
      %v4898 = vunpack.c.l.b16 %v4612
      %v4899 = vunpack.c.l.b16 %v4626
      %v4900 = vunpack.c.l.b16 %v4636
      %v4901 = vunpack.c.l.b16 %v4650
      %v4902 = vunpack.c.l.b16 %v4660
      %v4903 = vunpack.c.l.b16 %v4674
      %v4904 = vunpack.c.l.b16 %v4684
      %v4905 = vunpack.c.l.b16 %v4698
      %v4906 = vunpack.c.l.b16 %v4708
      %v4907 = vunpack.c.l.b16 %v4722
      %v4908 = vunpack.c.l.b16 %v4732
      %v4909 = vunpack.c.l.b16 %v4746
      %v4910 = vunpack.c.l.b16 %v4756
      %v4911 = vunpack.c.l.b16 %v4770
      %v4912 = vunpack.c.l.b16 %v4780
      %v4913 = vunpack.c.l.b16 %v4794
      %v4914 = vunpack.c.l.b16 %v4804
      %v4915 = vunpack.c.l.b16 %v4818
      %v4916 = vunpack.c.l.b16 %v4828
      %v4917 = vunpack.c.l.b16 %v4842
      %v4918 = vunpack.c.l.b16 %v4852
      %v4919 = vpack.c.b16 %v4888, %v4887
      %v4920 = vpack.c.b16 %v4890, %v4889
      %v4921 = vpack.c.b16 %v4892, %v4891
      %v4922 = vpack.c.b16 %v4894, %v4893
      %v4923 = vpack.c.b16 %v4896, %v4895
      %v4924 = vpack.c.b16 %v4898, %v4897
      %v4925 = vpack.c.b16 %v4900, %v4899
      %v4926 = vpack.c.b16 %v4902, %v4901
      %v4927 = vpack.c.b16 %v4904, %v4903
      %v4928 = vpack.c.b16 %v4906, %v4905
      %v4929 = vpack.c.b16 %v4908, %v4907
      %v4930 = vpack.c.b16 %v4910, %v4909
      %v4931 = vpack.c.b16 %v4912, %v4911
      %v4932 = vpack.c.b16 %v4914, %v4913
      %v4933 = vpack.c.b16 %v4916, %v4915
      %v4934 = vpack.c.b16 %v4918, %v4917
      %v4936 = vsel %vm579, %v4919, 0
      %v4939 = vsel %vm579, %v4920, 0
      %v4942 = vsel %vm579, %v4921, 0
      %v4945 = vsel %vm579, %v4922, 0
      %v4948 = vsel %vm579, %v4923, 0
      %v4951 = vsel %vm579, %v4924, 0
      %v4954 = vsel %vm579, %v4925, 0
      %v4957 = vsel %vm579, %v4926, 0
      %v4960 = vsel %vm579, %v4927, 0
      %v4963 = vsel %vm579, %v4928, 0
      %v4966 = vsel %vm579, %v4929, 0
      %v4969 = vsel %vm579, %v4930, 0
      %v4972 = vsel %vm579, %v4931, 0
      %v4975 = vsel %vm579, %v4932, 0
      %v4978 = vsel %vm579, %v4933, 0
      %v4981 = vsel %vm579, %v4934, 0
      %v4984 = vsel %vm628, %v4886, 0
      %4986 = vmatprep.subr.bf16.mxu0 0
      %4987 = vmatpush1.bf16.msra.mxu0 %v4984
      %4988 = vmatprep.subr.bf16.mxu0 0
      %4989 = vmatpush1.bf16.msra.mxu0 0
      %4990 = vmatprep.subr.bf16.mxu0 0
      %4991 = vmatpush1.bf16.msra.mxu0 0
      %4992 = vmatprep.subr.bf16.mxu0 0
      %4993 = vmatpush1.bf16.msra.mxu0 0
      %4994 = vmatprep.subr.bf16.mxu0 0
      %4995 = vmatpush1.bf16.msra.mxu0 0
      %4996 = vmatprep.subr.bf16.mxu0 0
      %4997 = vmatpush1.bf16.msra.mxu0 0
      %4998 = vmatprep.subr.bf16.mxu0 0
      %4999 = vmatpush1.bf16.msra.mxu0 0
      %5000 = vmatprep.subr.bf16.mxu0 0
      %5001 = vmatpush1.bf16.msra.mxu0 0
      %5002 = vmatprep.subr.bf16.mxu0 0
      %5003 = vmatpush1.bf16.msra.mxu0 0
      %5004 = vmatprep.subr.bf16.mxu0 0
      %5005 = vmatpush1.bf16.msra.mxu0 0
      %5006 = vmatprep.subr.bf16.mxu0 0
      %5007 = vmatpush1.bf16.msra.mxu0 0
      %5008 = vmatprep.subr.bf16.mxu0 0
      %5009 = vmatpush1.bf16.msra.mxu0 0
      %5010 = vmatprep.subr.bf16.mxu0 0
      %5011 = vmatpush1.bf16.msra.mxu0 0
      %5012 = vmatprep.subr.bf16.mxu0 0
      %5013 = vmatpush1.bf16.msra.mxu0 0
      %5014 = vmatprep.subr.bf16.mxu0 0
      %5015 = vmatpush1.bf16.msra.mxu0 0
      %5016 = vmatprep.subr.bf16.mxu0 0
      %5017 = vmatpush1.bf16.msra.mxu0 0
      %5018 = vmatprep.mubr.bf16.mxu0 0
      %5019 = vmatmul.mubr.bf16.gmra.mrb[0].mxu0 %v4936
      %v5020 = vpop.f32.mrb[0].mxu0
      %v5021 = vadd.f32 0.0, %v5020
      %v5022 = vpop.f32.mrb[0].mxu0
      %v5023 = vpop.f32.mrb[0].mxu0
      %v5024 = vadd.f32 0.0, %v5023
      %v5025 = vpop.f32.mrb[0].mxu0
      %5026 = vmatprep.mubr.bf16.mxu0 0
      %5027 = vmatmul.mubr.bf16.gmra.mrb[0].mxu0 %v4939
      %v5028 = vpop.f32.mrb[0].mxu0
      %v5029 = vadd.f32 0.0, %v5028
      %v5030 = vpop.f32.mrb[0].mxu0
      %v5031 = vpop.f32.mrb[0].mxu0
      %v5032 = vadd.f32 0.0, %v5031
      %v5033 = vpop.f32.mrb[0].mxu0
      %5034 = vmatprep.mubr.bf16.mxu0 0
      %5035 = vmatmul.mubr.bf16.gmra.mrb[0].mxu0 %v4942
      %v5036 = vpop.f32.mrb[0].mxu0
      %v5037 = vadd.f32 0.0, %v5036
      %v5038 = vpop.f32.mrb[0].mxu0
      %v5039 = vpop.f32.mrb[0].mxu0
      %v5040 = vadd.f32 0.0, %v5039
      %v5041 = vpop.f32.mrb[0].mxu0
      %5042 = vmatprep.mubr.bf16.mxu0 0
      %5043 = vmatmul.mubr.bf16.gmra.mrb[0].mxu0 %v4945
      %v5044 = vpop.f32.mrb[0].mxu0
      %v5045 = vadd.f32 0.0, %v5044
      %v5046 = vpop.f32.mrb[0].mxu0
      %v5047 = vpop.f32.mrb[0].mxu0
      %v5048 = vadd.f32 0.0, %v5047
      %v5049 = vpop.f32.mrb[0].mxu0
      %5050 = vmatprep.mubr.bf16.mxu0 0
      %5051 = vmatmul.mubr.bf16.gmra.mrb[0].mxu0 %v4948
      %v5052 = vpop.f32.mrb[0].mxu0
      %v5053 = vadd.f32 0.0, %v5052
      %v5054 = vpop.f32.mrb[0].mxu0
      %v5055 = vpop.f32.mrb[0].mxu0
      %v5056 = vadd.f32 0.0, %v5055
      %v5057 = vpop.f32.mrb[0].mxu0
      %5058 = vmatprep.mubr.bf16.mxu0 0
      %5059 = vmatmul.mubr.bf16.gmra.mrb[0].mxu0 %v4951
      %v5060 = vpop.f32.mrb[0].mxu0
      %v5061 = vadd.f32 0.0, %v5060
      %v5062 = vpop.f32.mrb[0].mxu0
      %v5063 = vpop.f32.mrb[0].mxu0
      %v5064 = vadd.f32 0.0, %v5063
      %v5065 = vpop.f32.mrb[0].mxu0
      %5066 = vmatprep.mubr.bf16.mxu0 0
      %5067 = vmatmul.mubr.bf16.gmra.mrb[0].mxu0 %v4954
      %v5068 = vpop.f32.mrb[0].mxu0
      %v5069 = vadd.f32 0.0, %v5068
      %v5070 = vpop.f32.mrb[0].mxu0
      %v5071 = vpop.f32.mrb[0].mxu0
      %v5072 = vadd.f32 0.0, %v5071
      %v5073 = vpop.f32.mrb[0].mxu0
      %5074 = vmatprep.mubr.bf16.mxu0 0
      %5075 = vmatmul.mubr.bf16.gmra.mrb[0].mxu0 %v4957
      %v5076 = vpop.f32.mrb[0].mxu0
      %v5077 = vadd.f32 0.0, %v5076
      %v5078 = vpop.f32.mrb[0].mxu0
      %v5079 = vpop.f32.mrb[0].mxu0
      %v5080 = vadd.f32 0.0, %v5079
      %v5081 = vpop.f32.mrb[0].mxu0
      %5082 = vmatprep.mubr.bf16.mxu0 0
      %5083 = vmatmul.mubr.bf16.gmra.mrb[0].mxu0 %v4960
      %v5084 = vpop.f32.mrb[0].mxu0
      %v5085 = vadd.f32 0.0, %v5084
      %v5086 = vpop.f32.mrb[0].mxu0
      %v5087 = vpop.f32.mrb[0].mxu0
      %v5088 = vadd.f32 0.0, %v5087
      %v5089 = vpop.f32.mrb[0].mxu0
      %5090 = vmatprep.mubr.bf16.mxu0 0
      %5091 = vmatmul.mubr.bf16.gmra.mrb[0].mxu0 %v4963
      %v5092 = vpop.f32.mrb[0].mxu0
      %v5093 = vadd.f32 0.0, %v5092
      %v5094 = vpop.f32.mrb[0].mxu0
      %v5095 = vpop.f32.mrb[0].mxu0
      %v5096 = vadd.f32 0.0, %v5095
      %v5097 = vpop.f32.mrb[0].mxu0
      %5098 = vmatprep.mubr.bf16.mxu0 0
      %5099 = vmatmul.mubr.bf16.gmra.mrb[0].mxu0 %v4966
      %v5100 = vpop.f32.mrb[0].mxu0
      %v5101 = vadd.f32 0.0, %v5100
      %v5102 = vpop.f32.mrb[0].mxu0
      %v5103 = vpop.f32.mrb[0].mxu0
      %v5104 = vadd.f32 0.0, %v5103
      %v5105 = vpop.f32.mrb[0].mxu0
      %5106 = vmatprep.mubr.bf16.mxu0 0
      %5107 = vmatmul.mubr.bf16.gmra.mrb[0].mxu0 %v4969
      %v5108 = vpop.f32.mrb[0].mxu0
      %v5109 = vadd.f32 0.0, %v5108
      %v5110 = vpop.f32.mrb[0].mxu0
      %v5111 = vpop.f32.mrb[0].mxu0
      %v5112 = vadd.f32 0.0, %v5111
      %v5113 = vpop.f32.mrb[0].mxu0
      %5114 = vmatprep.mubr.bf16.mxu0 0
      %5115 = vmatmul.mubr.bf16.gmra.mrb[0].mxu0 %v4972
      %v5116 = vpop.f32.mrb[0].mxu0
      %v5117 = vadd.f32 0.0, %v5116
      %v5118 = vpop.f32.mrb[0].mxu0
      %v5119 = vpop.f32.mrb[0].mxu0
      %v5120 = vadd.f32 0.0, %v5119
      %v5121 = vpop.f32.mrb[0].mxu0
      %5122 = vmatprep.mubr.bf16.mxu0 0
      %5123 = vmatmul.mubr.bf16.gmra.mrb[0].mxu0 %v4975
      %v5124 = vpop.f32.mrb[0].mxu0
      %v5125 = vadd.f32 0.0, %v5124
      %v5126 = vpop.f32.mrb[0].mxu0
      %v5127 = vpop.f32.mrb[0].mxu0
      %v5128 = vadd.f32 0.0, %v5127
      %v5129 = vpop.f32.mrb[0].mxu0
      %5130 = vmatprep.mubr.bf16.mxu0 0
      %5131 = vmatmul.mubr.bf16.gmra.mrb[0].mxu0 %v4978
      %v5132 = vpop.f32.mrb[0].mxu0
      %v5133 = vadd.f32 0.0, %v5132
      %v5134 = vpop.f32.mrb[0].mxu0
      %v5135 = vpop.f32.mrb[0].mxu0
      %v5136 = vadd.f32 0.0, %v5135
      %v5137 = vpop.f32.mrb[0].mxu0
      %5138 = vmatprep.mubr.bf16.mxu0 0
      %5139 = vmatmul.mubr.bf16.gmra.mrb[0].mxu0 %v4981
      %v5140 = vpop.f32.mrb[0].mxu0
      %v5141 = vadd.f32 0.0, %v5140
      %v5142 = vpop.f32.mrb[0].mxu0
      %v5143 = vpop.f32.mrb[0].mxu0
      %v5144 = vadd.f32 0.0, %v5143
      %v5145 = vpop.f32.mrb[0].mxu0
      %5146 = vdwg.mxu0
      %v5147 = vadd.f32 %v4853, %v5021
      %v5148 = vadd.f32 %v4854, %v5024
      %v5149 = vadd.f32 %v4855, %v5029
      %v5150 = vadd.f32 %v4856, %v5032
      %v5151 = vadd.f32 %v4857, %v5037
      %v5152 = vadd.f32 %v4858, %v5040
      %v5153 = vadd.f32 %v4859, %v5045
      %v5154 = vadd.f32 %v4860, %v5048
      %v5155 = vadd.f32 %v4861, %v5053
      %v5156 = vadd.f32 %v4862, %v5056
      %v5157 = vadd.f32 %v4863, %v5061
      %v5158 = vadd.f32 %v4864, %v5064
      %v5159 = vadd.f32 %v4865, %v5069
      %v5160 = vadd.f32 %v4866, %v5072
      %v5161 = vadd.f32 %v4867, %v5077
      %v5162 = vadd.f32 %v4868, %v5080
      %v5163 = vadd.f32 %v4869, %v5085
      %v5164 = vadd.f32 %v4870, %v5088
      %v5165 = vadd.f32 %v4871, %v5093
      %v5166 = vadd.f32 %v4872, %v5096
      %v5167 = vadd.f32 %v4873, %v5101
      %v5168 = vadd.f32 %v4874, %v5104
      %v5169 = vadd.f32 %v4875, %v5109
      %v5170 = vadd.f32 %v4876, %v5112
      %v5171 = vadd.f32 %v4877, %v5117
      %v5172 = vadd.f32 %v4878, %v5120
      %v5173 = vadd.f32 %v4879, %v5125
      %v5174 = vadd.f32 %v4880, %v5128
      %v5175 = vadd.f32 %v4881, %v5133
      %v5176 = vadd.f32 %v4882, %v5136
      %v5177 = vadd.f32 %v4883, %v5141
      %v5178 = vadd.f32 %v4884, %v5144
      %5179 = vst.msk [vmem:[#allocation2] sm:$0xff] %vm401, %v5147
      %5180 = vst.msk [vmem:[#allocation2 + $0x8] sm:$0xff] %vm401, %v5148
      %5181 = vst.msk [vmem:[#allocation2 + $0x10] sm:$0xff] %vm401, %v5149
      %5182 = vst.msk [vmem:[#allocation2 + $0x18] sm:$0xff] %vm401, %v5150
      %5183 = vst.msk [vmem:[#allocation2 + $0x20] sm:$0xff] %vm401, %v5151
      %5184 = vst.msk [vmem:[#allocation2 + $0x28] sm:$0xff] %vm401, %v5152
      %5185 = vst.msk [vmem:[#allocation2 + $0x30] sm:$0xff] %vm401, %v5153
      %5186 = vst.msk [vmem:[#allocation2 + $0x38] sm:$0xff] %vm401, %v5154
      %5187 = vst.msk [vmem:[#allocation2 + $0x40] sm:$0xff] %vm401, %v5155
      %5188 = vst.msk [vmem:[#allocation2 + $0x48] sm:$0xff] %vm401, %v5156
      %5189 = vst.msk [vmem:[#allocation2 + $0x50] sm:$0xff] %vm401, %v5157
      %5190 = vst.msk [vmem:[#allocation2 + $0x58] sm:$0xff] %vm401, %v5158
      %5191 = vst.msk [vmem:[#allocation2 + $0x60] sm:$0xff] %vm401, %v5159
      %5192 = vst.msk [vmem:[#allocation2 + $0x68] sm:$0xff] %vm401, %v5160
      %5193 = vst.msk [vmem:[#allocation2 + $0x70] sm:$0xff] %vm401, %v5161
      %5194 = vst.msk [vmem:[#allocation2 + $0x78] sm:$0xff] %vm401, %v5162
      %5195 = vst.msk [vmem:[#allocation2 + $0x80] sm:$0xff] %vm401, %v5163
      %5196 = vst.msk [vmem:[#allocation2 + $0x88] sm:$0xff] %vm401, %v5164
      %5197 = vst.msk [vmem:[#allocation2 + $0x90] sm:$0xff] %vm401, %v5165
      %5198 = vst.msk [vmem:[#allocation2 + $0x98] sm:$0xff] %vm401, %v5166
      %5199 = vst.msk [vmem:[#allocation2 + $0xa0] sm:$0xff] %vm401, %v5167
      %5200 = vst.msk [vmem:[#allocation2 + $0xa8] sm:$0xff] %vm401, %v5168
      %5201 = vst.msk [vmem:[#allocation2 + $0xb0] sm:$0xff] %vm401, %v5169
      %5202 = vst.msk [vmem:[#allocation2 + $0xb8] sm:$0xff] %vm401, %v5170
      %5203 = vst.msk [vmem:[#allocation2 + $0xc0] sm:$0xff] %vm401, %v5171
      %5204 = vst.msk [vmem:[#allocation2 + $0xc8] sm:$0xff] %vm401, %v5172
      %5205 = vst.msk [vmem:[#allocation2 + $0xd0] sm:$0xff] %vm401, %v5173
      %5206 = vst.msk [vmem:[#allocation2 + $0xd8] sm:$0xff] %vm401, %v5174
      %5207 = vst.msk [vmem:[#allocation2 + $0xe0] sm:$0xff] %vm401, %v5175
      %5208 = vst.msk [vmem:[#allocation2 + $0xe8] sm:$0xff] %vm401, %v5176
      %5209 = vst.msk [vmem:[#allocation2 + $0xf0] sm:$0xff] %vm401, %v5177
      %5210 = vst.msk [vmem:[#allocation2 + $0xf8] sm:$0xff] %vm401, %v5178
      %v5211 = vld [vmem:[%s3998] sm:$0xe]
      %v5212 = vld [vmem:[%s3998 + $0x4] sm:$0xf]
      %v5213 = vld [vmem:[%s3998 + $0x8] sm:$0x1]
      %v5214 = vld [vmem:[%s3998 + $0xc] sm:$0xe]
      %v5215 = vld [vmem:[%s3998 + $0x10] sm:$0xf]
      %v5216 = vld [vmem:[%s3998 + $0x14] sm:$0x1]
      %v5217 = vld [vmem:[%s3998 + $0x18] sm:$0xe]
      %v5218 = vld [vmem:[%s3998 + $0x1c] sm:$0xf]
      %v5219 = vld [vmem:[%s3998 + $0x20] sm:$0x1]
      %v5220 = vld [vmem:[%s3998 + $0x24] sm:$0xe]
      %v5221 = vld [vmem:[%s3998 + $0x28] sm:$0xf]
      %v5222 = vld [vmem:[%s3998 + $0x2c] sm:$0x1]
      %v5223 = vld [vmem:[%s3998 + $0x30] sm:$0xe]
      %v5224 = vld [vmem:[%s3998 + $0x34] sm:$0xf]
      %v5225 = vld [vmem:[%s3998 + $0x38] sm:$0x1]
      %v5226 = vld [vmem:[%s3998 + $0x3c] sm:$0xe]
      %v5227 = vld [vmem:[%s3998 + $0x40] sm:$0xf]
      %v5228 = vld [vmem:[%s3998 + $0x44] sm:$0x1]
      %v5229 = vld [vmem:[%s3998 + $0x48] sm:$0xe]
      %v5230 = vld [vmem:[%s3998 + $0x4c] sm:$0xf]
      %v5231 = vld [vmem:[%s3998 + $0x50] sm:$0x1]
      %v5232 = vld [vmem:[%s3998 + $0x54] sm:$0xe]
      %v5233 = vld [vmem:[%s3998 + $0x58] sm:$0xf]
      %v5234 = vld [vmem:[%s3998 + $0x5c] sm:$0x1]
      %v5235 = vld [vmem:[%s3998 + $0x60] sm:$0xe]
      %v5236 = vld [vmem:[%s3998 + $0x64] sm:$0xf]
      %v5237 = vld [vmem:[%s3998 + $0x68] sm:$0x1]
      %v5238 = vld [vmem:[%s3998 + $0x6c] sm:$0xe]
      %v5239 = vld [vmem:[%s3998 + $0x70] sm:$0xf]
      %v5240 = vld [vmem:[%s3998 + $0x74] sm:$0x1]
      %v5241 = vld [vmem:[%s3998 + $0x78] sm:$0xe]
      %v5242 = vld [vmem:[%s3998 + $0x7c] sm:$0xf]
      %v5243 = vld [vmem:[%s3998 + $0x80] sm:$0x1]
      %v5244 = vld [vmem:[%s3998 + $0x84] sm:$0xe]
      %v5245 = vld [vmem:[%s3998 + $0x88] sm:$0xf]
      %v5246 = vld [vmem:[%s3998 + $0x8c] sm:$0x1]
      %v5247 = vld [vmem:[%s3998 + $0x90] sm:$0xe]
      %v5248 = vld [vmem:[%s3998 + $0x94] sm:$0xf]
      %v5249 = vld [vmem:[%s3998 + $0x98] sm:$0x1]
      %v5250 = vld [vmem:[%s3998 + $0x9c] sm:$0xe]
      %v5251 = vld [vmem:[%s3998 + $0xa0] sm:$0xf]
      %v5252 = vld [vmem:[%s3998 + $0xa4] sm:$0x1]
      %v5253 = vld [vmem:[%s3998 + $0xa8] sm:$0xe]
      %v5254 = vld [vmem:[%s3998 + $0xac] sm:$0xf]
      %v5255 = vld [vmem:[%s3998 + $0xb0] sm:$0x1]
      %v5256 = vld [vmem:[%s3998 + $0xb4] sm:$0xe]
      %v5257 = vld [vmem:[%s3998 + $0xb8] sm:$0xf]
      %v5258 = vld [vmem:[%s3998 + $0xbc] sm:$0x1]
      %v5307 = vrot.slane %v5211, 5
      %v5308 = vrot.slane %v5307, 4
      %v5309 = vrot.slane %v5212, 5
      %v5310 = vsel %vm1748, %v5308, %v5309
      %v5311 = vrot.slane %v5309, 4
      %v5312 = vrot.slane %v5213, 5
      %v5313 = vsel %vm1748, %v5311, %v5312
      %v5314 = vrot.slane %v5214, 5
      %v5315 = vrot.slane %v5314, 4
      %v5316 = vrot.slane %v5215, 5
      %v5317 = vsel %vm1748, %v5315, %v5316
      %v5318 = vrot.slane %v5316, 4
      %v5319 = vrot.slane %v5216, 5
      %v5320 = vsel %vm1748, %v5318, %v5319
      %v5321 = vrot.slane %v5217, 5
      %v5322 = vrot.slane %v5321, 4
      %v5323 = vrot.slane %v5218, 5
      %v5324 = vsel %vm1748, %v5322, %v5323
      %v5325 = vrot.slane %v5323, 4
      %v5326 = vrot.slane %v5219, 5
      %v5327 = vsel %vm1748, %v5325, %v5326
      %v5328 = vrot.slane %v5220, 5
      %v5329 = vrot.slane %v5328, 4
      %v5330 = vrot.slane %v5221, 5
      %v5331 = vsel %vm1748, %v5329, %v5330
      %v5332 = vrot.slane %v5330, 4
      %v5333 = vrot.slane %v5222, 5
      %v5334 = vsel %vm1748, %v5332, %v5333
      %v5335 = vrot.slane %v5223, 5
      %v5336 = vrot.slane %v5335, 4
      %v5337 = vrot.slane %v5224, 5
      %v5338 = vsel %vm1748, %v5336, %v5337
      %v5339 = vrot.slane %v5337, 4
      %v5340 = vrot.slane %v5225, 5
      %v5341 = vsel %vm1748, %v5339, %v5340
      %v5342 = vrot.slane %v5226, 5
      %v5343 = vrot.slane %v5342, 4
      %v5344 = vrot.slane %v5227, 5
      %v5345 = vsel %vm1748, %v5343, %v5344
      %v5346 = vrot.slane %v5344, 4
      %v5347 = vrot.slane %v5228, 5
      %v5348 = vsel %vm1748, %v5346, %v5347
      %v5349 = vrot.slane %v5229, 5
      %v5350 = vrot.slane %v5349, 4
      %v5351 = vrot.slane %v5230, 5
      %v5352 = vsel %vm1748, %v5350, %v5351
      %v5353 = vrot.slane %v5351, 4
      %v5354 = vrot.slane %v5231, 5
      %v5355 = vsel %vm1748, %v5353, %v5354
      %v5356 = vrot.slane %v5232, 5
      %v5357 = vrot.slane %v5356, 4
      %v5358 = vrot.slane %v5233, 5
      %v5359 = vsel %vm1748, %v5357, %v5358
      %v5360 = vrot.slane %v5358, 4
      %v5361 = vrot.slane %v5234, 5
      %v5362 = vsel %vm1748, %v5360, %v5361
      %v5363 = vrot.slane %v5235, 5
      %v5364 = vrot.slane %v5363, 4
      %v5365 = vrot.slane %v5236, 5
      %v5366 = vsel %vm1748, %v5364, %v5365
      %v5367 = vrot.slane %v5365, 4
      %v5368 = vrot.slane %v5237, 5
      %v5369 = vsel %vm1748, %v5367, %v5368
      %v5370 = vrot.slane %v5238, 5
      %v5371 = vrot.slane %v5370, 4
      %v5372 = vrot.slane %v5239, 5
      %v5373 = vsel %vm1748, %v5371, %v5372
      %v5374 = vrot.slane %v5372, 4
      %v5375 = vrot.slane %v5240, 5
      %v5376 = vsel %vm1748, %v5374, %v5375
      %v5377 = vrot.slane %v5241, 5
      %v5378 = vrot.slane %v5377, 4
      %v5379 = vrot.slane %v5242, 5
      %v5380 = vsel %vm1748, %v5378, %v5379
      %v5381 = vrot.slane %v5379, 4
      %v5382 = vrot.slane %v5243, 5
      %v5383 = vsel %vm1748, %v5381, %v5382
      %v5384 = vrot.slane %v5244, 5
      %v5385 = vrot.slane %v5384, 4
      %v5386 = vrot.slane %v5245, 5
      %v5387 = vsel %vm1748, %v5385, %v5386
      %v5388 = vrot.slane %v5386, 4
      %v5389 = vrot.slane %v5246, 5
      %v5390 = vsel %vm1748, %v5388, %v5389
      %v5391 = vrot.slane %v5247, 5
      %v5392 = vrot.slane %v5391, 4
      %v5393 = vrot.slane %v5248, 5
      %v5394 = vsel %vm1748, %v5392, %v5393
      %v5395 = vrot.slane %v5393, 4
      %v5396 = vrot.slane %v5249, 5
      %v5397 = vsel %vm1748, %v5395, %v5396
      %v5398 = vrot.slane %v5250, 5
      %v5399 = vrot.slane %v5398, 4
      %v5400 = vrot.slane %v5251, 5
      %v5401 = vsel %vm1748, %v5399, %v5400
      %v5402 = vrot.slane %v5400, 4
      %v5403 = vrot.slane %v5252, 5
      %v5404 = vsel %vm1748, %v5402, %v5403
      %v5405 = vrot.slane %v5253, 5
      %v5406 = vrot.slane %v5405, 4
      %v5407 = vrot.slane %v5254, 5
      %v5408 = vsel %vm1748, %v5406, %v5407
      %v5409 = vrot.slane %v5407, 4
      %v5410 = vrot.slane %v5255, 5
      %v5411 = vsel %vm1748, %v5409, %v5410
      %v5412 = vrot.slane %v5256, 5
      %v5413 = vrot.slane %v5412, 4
      %v5414 = vrot.slane %v5257, 5
      %v5415 = vsel %vm1748, %v5413, %v5414
      %v5416 = vrot.slane %v5414, 4
      %v5417 = vrot.slane %v5258, 5
      %v5418 = vsel %vm1748, %v5416, %v5417
      %v5419 = vld [vmem:[#allocation2] sm:$0xff]
      %v5420 = vld [vmem:[#allocation2 + $0x8] sm:$0xff]
      %v5421 = vld [vmem:[#allocation2 + $0x10] sm:$0xff]
      %v5422 = vld [vmem:[#allocation2 + $0x18] sm:$0xff]
      %v5423 = vld [vmem:[#allocation2 + $0x20] sm:$0xff]
      %v5424 = vld [vmem:[#allocation2 + $0x28] sm:$0xff]
      %v5425 = vld [vmem:[#allocation2 + $0x30] sm:$0xff]
      %v5426 = vld [vmem:[#allocation2 + $0x38] sm:$0xff]
      %v5427 = vld [vmem:[#allocation2 + $0x40] sm:$0xff]
      %v5428 = vld [vmem:[#allocation2 + $0x48] sm:$0xff]
      %v5429 = vld [vmem:[#allocation2 + $0x50] sm:$0xff]
      %v5430 = vld [vmem:[#allocation2 + $0x58] sm:$0xff]
      %v5431 = vld [vmem:[#allocation2 + $0x60] sm:$0xff]
      %v5432 = vld [vmem:[#allocation2 + $0x68] sm:$0xff]
      %v5433 = vld [vmem:[#allocation2 + $0x70] sm:$0xff]
      %v5434 = vld [vmem:[#allocation2 + $0x78] sm:$0xff]
      %v5435 = vld [vmem:[#allocation2 + $0x80] sm:$0xff]
      %v5436 = vld [vmem:[#allocation2 + $0x88] sm:$0xff]
      %v5437 = vld [vmem:[#allocation2 + $0x90] sm:$0xff]
      %v5438 = vld [vmem:[#allocation2 + $0x98] sm:$0xff]
      %v5439 = vld [vmem:[#allocation2 + $0xa0] sm:$0xff]
      %v5440 = vld [vmem:[#allocation2 + $0xa8] sm:$0xff]
      %v5441 = vld [vmem:[#allocation2 + $0xb0] sm:$0xff]
      %v5442 = vld [vmem:[#allocation2 + $0xb8] sm:$0xff]
      %v5443 = vld [vmem:[#allocation2 + $0xc0] sm:$0xff]
      %v5444 = vld [vmem:[#allocation2 + $0xc8] sm:$0xff]
      %v5445 = vld [vmem:[#allocation2 + $0xd0] sm:$0xff]
      %v5446 = vld [vmem:[#allocation2 + $0xd8] sm:$0xff]
      %v5447 = vld [vmem:[#allocation2 + $0xe0] sm:$0xff]
      %v5448 = vld [vmem:[#allocation2 + $0xe8] sm:$0xff]
      %v5449 = vld [vmem:[#allocation2 + $0xf0] sm:$0xff]
      %v5450 = vld [vmem:[#allocation2 + $0xf8] sm:$0xff]
      %s5451 = scalar_lea.vmem %s1, 32
      %v5452 = vld [vmem:[%s5451] sm:$0xf]
      %v5453 = vunpack.c.l.b16 %v5310
      %v5454 = vunpack.c.l.b16 %v5313
      %v5455 = vunpack.c.l.b16 %v5317
      %v5456 = vunpack.c.l.b16 %v5320
      %v5457 = vunpack.c.l.b16 %v5324
      %v5458 = vunpack.c.l.b16 %v5327
      %v5459 = vunpack.c.l.b16 %v5331
      %v5460 = vunpack.c.l.b16 %v5334
      %v5461 = vunpack.c.l.b16 %v5338
      %v5462 = vunpack.c.l.b16 %v5341
      %v5463 = vunpack.c.l.b16 %v5345
      %v5464 = vunpack.c.l.b16 %v5348
      %v5465 = vunpack.c.l.b16 %v5352
      %v5466 = vunpack.c.l.b16 %v5355
      %v5467 = vunpack.c.l.b16 %v5359
      %v5468 = vunpack.c.l.b16 %v5362
      %v5469 = vunpack.c.l.b16 %v5366
      %v5470 = vunpack.c.l.b16 %v5369
      %v5471 = vunpack.c.l.b16 %v5373
      %v5472 = vunpack.c.l.b16 %v5376
      %v5473 = vunpack.c.l.b16 %v5380
      %v5474 = vunpack.c.l.b16 %v5383
      %v5475 = vunpack.c.l.b16 %v5387
      %v5476 = vunpack.c.l.b16 %v5390
      %v5477 = vunpack.c.l.b16 %v5394
      %v5478 = vunpack.c.l.b16 %v5397
      %v5479 = vunpack.c.l.b16 %v5401
      %v5480 = vunpack.c.l.b16 %v5404
      %v5481 = vunpack.c.l.b16 %v5408
      %v5482 = vunpack.c.l.b16 %v5411
      %v5483 = vunpack.c.l.b16 %v5415
      %v5484 = vunpack.c.l.b16 %v5418
      %v5485 = vpack.c.b16 %v5454, %v5453
      %v5486 = vpack.c.b16 %v5456, %v5455
      %v5487 = vpack.c.b16 %v5458, %v5457
      %v5488 = vpack.c.b16 %v5460, %v5459
      %v5489 = vpack.c.b16 %v5462, %v5461
      %v5490 = vpack.c.b16 %v5464, %v5463
      %v5491 = vpack.c.b16 %v5466, %v5465
      %v5492 = vpack.c.b16 %v5468, %v5467
      %v5493 = vpack.c.b16 %v5470, %v5469
      %v5494 = vpack.c.b16 %v5472, %v5471
      %v5495 = vpack.c.b16 %v5474, %v5473
      %v5496 = vpack.c.b16 %v5476, %v5475
      %v5497 = vpack.c.b16 %v5478, %v5477
      %v5498 = vpack.c.b16 %v5480, %v5479
      %v5499 = vpack.c.b16 %v5482, %v5481
      %v5500 = vpack.c.b16 %v5484, %v5483
      %v5502 = vsel %vm579, %v5485, 0
      %v5505 = vsel %vm579, %v5486, 0
      %v5508 = vsel %vm579, %v5487, 0
      %v5511 = vsel %vm579, %v5488, 0
      %v5514 = vsel %vm579, %v5489, 0
      %v5517 = vsel %vm579, %v5490, 0
      %v5520 = vsel %vm579, %v5491, 0
      %v5523 = vsel %vm579, %v5492, 0
      %v5526 = vsel %vm579, %v5493, 0
      %v5529 = vsel %vm579, %v5494, 0
      %v5532 = vsel %vm579, %v5495, 0
      %v5535 = vsel %vm579, %v5496, 0
      %v5538 = vsel %vm579, %v5497, 0
      %v5541 = vsel %vm579, %v5498, 0
      %v5544 = vsel %vm579, %v5499, 0
      %v5547 = vsel %vm579, %v5500, 0
      %v5550 = vsel %vm628, %v5452, 0
      %5552 = vmatprep.subr.bf16.mxu0 0
      %5553 = vmatpush1.bf16.msra.mxu0 %v5550
      %5554 = vmatprep.subr.bf16.mxu0 0
      %5555 = vmatpush1.bf16.msra.mxu0 0
      %5556 = vmatprep.subr.bf16.mxu0 0
      %5557 = vmatpush1.bf16.msra.mxu0 0
      %5558 = vmatprep.subr.bf16.mxu0 0
      %5559 = vmatpush1.bf16.msra.mxu0 0
      %5560 = vmatprep.subr.bf16.mxu0 0
      %5561 = vmatpush1.bf16.msra.mxu0 0
      %5562 = vmatprep.subr.bf16.mxu0 0
      %5563 = vmatpush1.bf16.msra.mxu0 0
      %5564 = vmatprep.subr.bf16.mxu0 0
      %5565 = vmatpush1.bf16.msra.mxu0 0
      %5566 = vmatprep.subr.bf16.mxu0 0
      %5567 = vmatpush1.bf16.msra.mxu0 0
      %5568 = vmatprep.subr.bf16.mxu0 0
      %5569 = vmatpush1.bf16.msra.mxu0 0
      %5570 = vmatprep.subr.bf16.mxu0 0
      %5571 = vmatpush1.bf16.msra.mxu0 0
      %5572 = vmatprep.subr.bf16.mxu0 0
      %5573 = vmatpush1.bf16.msra.mxu0 0
      %5574 = vmatprep.subr.bf16.mxu0 0
      %5575 = vmatpush1.bf16.msra.mxu0 0
      %5576 = vmatprep.subr.bf16.mxu0 0
      %5577 = vmatpush1.bf16.msra.mxu0 0
      %5578 = vmatprep.subr.bf16.mxu0 0
      %5579 = vmatpush1.bf16.msra.mxu0 0
      %5580 = vmatprep.subr.bf16.mxu0 0
      %5581 = vmatpush1.bf16.msra.mxu0 0
      %5582 = vmatprep.subr.bf16.mxu0 0
      %5583 = vmatpush1.bf16.msra.mxu0 0
      %5584 = vmatprep.mubr.bf16.mxu0 0
      %5585 = vmatmul.mubr.bf16.gmra.mrb[0].mxu0 %v5502
      %v5586 = vpop.f32.mrb[0].mxu0
      %v5587 = vadd.f32 0.0, %v5586
      %v5588 = vpop.f32.mrb[0].mxu0
      %v5589 = vpop.f32.mrb[0].mxu0
      %v5590 = vadd.f32 0.0, %v5589
      %v5591 = vpop.f32.mrb[0].mxu0
      %5592 = vmatprep.mubr.bf16.mxu0 0
      %5593 = vmatmul.mubr.bf16.gmra.mrb[0].mxu0 %v5505
      %v5594 = vpop.f32.mrb[0].mxu0
      %v5595 = vadd.f32 0.0, %v5594
      %v5596 = vpop.f32.mrb[0].mxu0
      %v5597 = vpop.f32.mrb[0].mxu0
      %v5598 = vadd.f32 0.0, %v5597
      %v5599 = vpop.f32.mrb[0].mxu0
      %5600 = vmatprep.mubr.bf16.mxu0 0
      %5601 = vmatmul.mubr.bf16.gmra.mrb[0].mxu0 %v5508
      %v5602 = vpop.f32.mrb[0].mxu0
      %v5603 = vadd.f32 0.0, %v5602
      %v5604 = vpop.f32.mrb[0].mxu0
      %v5605 = vpop.f32.mrb[0].mxu0
      %v5606 = vadd.f32 0.0, %v5605
      %v5607 = vpop.f32.mrb[0].mxu0
      %5608 = vmatprep.mubr.bf16.mxu0 0
      %5609 = vmatmul.mubr.bf16.gmra.mrb[0].mxu0 %v5511
      %v5610 = vpop.f32.mrb[0].mxu0
      %v5611 = vadd.f32 0.0, %v5610
      %v5612 = vpop.f32.mrb[0].mxu0
      %v5613 = vpop.f32.mrb[0].mxu0
      %v5614 = vadd.f32 0.0, %v5613
      %v5615 = vpop.f32.mrb[0].mxu0
      %5616 = vmatprep.mubr.bf16.mxu0 0
      %5617 = vmatmul.mubr.bf16.gmra.mrb[0].mxu0 %v5514
      %v5618 = vpop.f32.mrb[0].mxu0
      %v5619 = vadd.f32 0.0, %v5618
      %v5620 = vpop.f32.mrb[0].mxu0
      %v5621 = vpop.f32.mrb[0].mxu0
      %v5622 = vadd.f32 0.0, %v5621
      %v5623 = vpop.f32.mrb[0].mxu0
      %5624 = vmatprep.mubr.bf16.mxu0 0
      %5625 = vmatmul.mubr.bf16.gmra.mrb[0].mxu0 %v5517
      %v5626 = vpop.f32.mrb[0].mxu0
      %v5627 = vadd.f32 0.0, %v5626
      %v5628 = vpop.f32.mrb[0].mxu0
      %v5629 = vpop.f32.mrb[0].mxu0
      %v5630 = vadd.f32 0.0, %v5629
      %v5631 = vpop.f32.mrb[0].mxu0
      %5632 = vmatprep.mubr.bf16.mxu0 0
      %5633 = vmatmul.mubr.bf16.gmra.mrb[0].mxu0 %v5520
      %v5634 = vpop.f32.mrb[0].mxu0
      %v5635 = vadd.f32 0.0, %v5634
      %v5636 = vpop.f32.mrb[0].mxu0
      %v5637 = vpop.f32.mrb[0].mxu0
      %v5638 = vadd.f32 0.0, %v5637
      %v5639 = vpop.f32.mrb[0].mxu0
      %5640 = vmatprep.mubr.bf16.mxu0 0
      %5641 = vmatmul.mubr.bf16.gmra.mrb[0].mxu0 %v5523
      %v5642 = vpop.f32.mrb[0].mxu0
      %v5643 = vadd.f32 0.0, %v5642
      %v5644 = vpop.f32.mrb[0].mxu0
      %v5645 = vpop.f32.mrb[0].mxu0
      %v5646 = vadd.f32 0.0, %v5645
      %v5647 = vpop.f32.mrb[0].mxu0
      %5648 = vmatprep.mubr.bf16.mxu0 0
      %5649 = vmatmul.mubr.bf16.gmra.mrb[0].mxu0 %v5526
      %v5650 = vpop.f32.mrb[0].mxu0
      %v5651 = vadd.f32 0.0, %v5650
      %v5652 = vpop.f32.mrb[0].mxu0
      %v5653 = vpop.f32.mrb[0].mxu0
      %v5654 = vadd.f32 0.0, %v5653
      %v5655 = vpop.f32.mrb[0].mxu0
      %5656 = vmatprep.mubr.bf16.mxu0 0
      %5657 = vmatmul.mubr.bf16.gmra.mrb[0].mxu0 %v5529
      %v5658 = vpop.f32.mrb[0].mxu0
      %v5659 = vadd.f32 0.0, %v5658
      %v5660 = vpop.f32.mrb[0].mxu0
      %v5661 = vpop.f32.mrb[0].mxu0
      %v5662 = vadd.f32 0.0, %v5661
      %v5663 = vpop.f32.mrb[0].mxu0
      %5664 = vmatprep.mubr.bf16.mxu0 0
      %5665 = vmatmul.mubr.bf16.gmra.mrb[0].mxu0 %v5532
      %v5666 = vpop.f32.mrb[0].mxu0
      %v5667 = vadd.f32 0.0, %v5666
      %v5668 = vpop.f32.mrb[0].mxu0
      %v5669 = vpop.f32.mrb[0].mxu0
      %v5670 = vadd.f32 0.0, %v5669
      %v5671 = vpop.f32.mrb[0].mxu0
      %5672 = vmatprep.mubr.bf16.mxu0 0
      %5673 = vmatmul.mubr.bf16.gmra.mrb[0].mxu0 %v5535
      %v5674 = vpop.f32.mrb[0].mxu0
      %v5675 = vadd.f32 0.0, %v5674
      %v5676 = vpop.f32.mrb[0].mxu0
      %v5677 = vpop.f32.mrb[0].mxu0
      %v5678 = vadd.f32 0.0, %v5677
      %v5679 = vpop.f32.mrb[0].mxu0
      %5680 = vmatprep.mubr.bf16.mxu0 0
      %5681 = vmatmul.mubr.bf16.gmra.mrb[0].mxu0 %v5538
      %v5682 = vpop.f32.mrb[0].mxu0
      %v5683 = vadd.f32 0.0, %v5682
      %v5684 = vpop.f32.mrb[0].mxu0
      %v5685 = vpop.f32.mrb[0].mxu0
      %v5686 = vadd.f32 0.0, %v5685
      %v5687 = vpop.f32.mrb[0].mxu0
      %5688 = vmatprep.mubr.bf16.mxu0 0
      %5689 = vmatmul.mubr.bf16.gmra.mrb[0].mxu0 %v5541
      %v5690 = vpop.f32.mrb[0].mxu0
      %v5691 = vadd.f32 0.0, %v5690
      %v5692 = vpop.f32.mrb[0].mxu0
      %v5693 = vpop.f32.mrb[0].mxu0
      %v5694 = vadd.f32 0.0, %v5693
      %v5695 = vpop.f32.mrb[0].mxu0
      %5696 = vmatprep.mubr.bf16.mxu0 0
      %5697 = vmatmul.mubr.bf16.gmra.mrb[0].mxu0 %v5544
      %v5698 = vpop.f32.mrb[0].mxu0
      %v5699 = vadd.f32 0.0, %v5698
      %v5700 = vpop.f32.mrb[0].mxu0
      %v5701 = vpop.f32.mrb[0].mxu0
      %v5702 = vadd.f32 0.0, %v5701
      %v5703 = vpop.f32.mrb[0].mxu0
      %5704 = vmatprep.mubr.bf16.mxu0 0
      %5705 = vmatmul.mubr.bf16.gmra.mrb[0].mxu0 %v5547
      %v5706 = vpop.f32.mrb[0].mxu0
      %v5707 = vadd.f32 0.0, %v5706
      %v5708 = vpop.f32.mrb[0].mxu0
      %v5709 = vpop.f32.mrb[0].mxu0
      %v5710 = vadd.f32 0.0, %v5709
      %v5711 = vpop.f32.mrb[0].mxu0
      %5712 = vdwg.mxu0
      %v5713 = vadd.f32 %v5419, %v5587
      %v5714 = vadd.f32 %v5420, %v5590
      %v5715 = vadd.f32 %v5421, %v5595
      %v5716 = vadd.f32 %v5422, %v5598
      %v5717 = vadd.f32 %v5423, %v5603
      %v5718 = vadd.f32 %v5424, %v5606
      %v5719 = vadd.f32 %v5425, %v5611
      %v5720 = vadd.f32 %v5426, %v5614
      %v5721 = vadd.f32 %v5427, %v5619
      %v5722 = vadd.f32 %v5428, %v5622
      %v5723 = vadd.f32 %v5429, %v5627
      %v5724 = vadd.f32 %v5430, %v5630
      %v5725 = vadd.f32 %v5431, %v5635
      %v5726 = vadd.f32 %v5432, %v5638
      %v5727 = vadd.f32 %v5433, %v5643
      %v5728 = vadd.f32 %v5434, %v5646
      %v5729 = vadd.f32 %v5435, %v5651
      %v5730 = vadd.f32 %v5436, %v5654
      %v5731 = vadd.f32 %v5437, %v5659
      %v5732 = vadd.f32 %v5438, %v5662
      %v5733 = vadd.f32 %v5439, %v5667
      %v5734 = vadd.f32 %v5440, %v5670
      %v5735 = vadd.f32 %v5441, %v5675
      %v5736 = vadd.f32 %v5442, %v5678
      %v5737 = vadd.f32 %v5443, %v5683
      %v5738 = vadd.f32 %v5444, %v5686
      %v5739 = vadd.f32 %v5445, %v5691
      %v5740 = vadd.f32 %v5446, %v5694
      %v5741 = vadd.f32 %v5447, %v5699
      %v5742 = vadd.f32 %v5448, %v5702
      %v5743 = vadd.f32 %v5449, %v5707
      %v5744 = vadd.f32 %v5450, %v5710
      %5745 = vst.msk [vmem:[#allocation2] sm:$0xff] %vm401, %v5713
      %5746 = vst.msk [vmem:[#allocation2 + $0x8] sm:$0xff] %vm401, %v5714
      %5747 = vst.msk [vmem:[#allocation2 + $0x10] sm:$0xff] %vm401, %v5715
      %5748 = vst.msk [vmem:[#allocation2 + $0x18] sm:$0xff] %vm401, %v5716
      %5749 = vst.msk [vmem:[#allocation2 + $0x20] sm:$0xff] %vm401, %v5717
      %5750 = vst.msk [vmem:[#allocation2 + $0x28] sm:$0xff] %vm401, %v5718
      %5751 = vst.msk [vmem:[#allocation2 + $0x30] sm:$0xff] %vm401, %v5719
      %5752 = vst.msk [vmem:[#allocation2 + $0x38] sm:$0xff] %vm401, %v5720
      %5753 = vst.msk [vmem:[#allocation2 + $0x40] sm:$0xff] %vm401, %v5721
      %5754 = vst.msk [vmem:[#allocation2 + $0x48] sm:$0xff] %vm401, %v5722
      %5755 = vst.msk [vmem:[#allocation2 + $0x50] sm:$0xff] %vm401, %v5723
      %5756 = vst.msk [vmem:[#allocation2 + $0x58] sm:$0xff] %vm401, %v5724
      %5757 = vst.msk [vmem:[#allocation2 + $0x60] sm:$0xff] %vm401, %v5725
      %5758 = vst.msk [vmem:[#allocation2 + $0x68] sm:$0xff] %vm401, %v5726
      %5759 = vst.msk [vmem:[#allocation2 + $0x70] sm:$0xff] %vm401, %v5727
      %5760 = vst.msk [vmem:[#allocation2 + $0x78] sm:$0xff] %vm401, %v5728
      %5761 = vst.msk [vmem:[#allocation2 + $0x80] sm:$0xff] %vm401, %v5729
      %5762 = vst.msk [vmem:[#allocation2 + $0x88] sm:$0xff] %vm401, %v5730
      %5763 = vst.msk [vmem:[#allocation2 + $0x90] sm:$0xff] %vm401, %v5731
      %5764 = vst.msk [vmem:[#allocation2 + $0x98] sm:$0xff] %vm401, %v5732
      %5765 = vst.msk [vmem:[#allocation2 + $0xa0] sm:$0xff] %vm401, %v5733
      %5766 = vst.msk [vmem:[#allocation2 + $0xa8] sm:$0xff] %vm401, %v5734
      %5767 = vst.msk [vmem:[#allocation2 + $0xb0] sm:$0xff] %vm401, %v5735
      %5768 = vst.msk [vmem:[#allocation2 + $0xb8] sm:$0xff] %vm401, %v5736
      %5769 = vst.msk [vmem:[#allocation2 + $0xc0] sm:$0xff] %vm401, %v5737
      %5770 = vst.msk [vmem:[#allocation2 + $0xc8] sm:$0xff] %vm401, %v5738
      %5771 = vst.msk [vmem:[#allocation2 + $0xd0] sm:$0xff] %vm401, %v5739
      %5772 = vst.msk [vmem:[#allocation2 + $0xd8] sm:$0xff] %vm401, %v5740
      %5773 = vst.msk [vmem:[#allocation2 + $0xe0] sm:$0xff] %vm401, %v5741
      %5774 = vst.msk [vmem:[#allocation2 + $0xe8] sm:$0xff] %vm401, %v5742
      %5775 = vst.msk [vmem:[#allocation2 + $0xf0] sm:$0xff] %vm401, %v5743
      %5776 = vst.msk [vmem:[#allocation2 + $0xf8] sm:$0xff] %vm401, %v5744
      %v5777 = vld [vmem:[#allocation2] sm:$0xff]
      %v5778 = vld [vmem:[#allocation2 + $0x8] sm:$0xff]
      %v5779 = vld [vmem:[#allocation2 + $0x10] sm:$0xff]
      %v5780 = vld [vmem:[#allocation2 + $0x18] sm:$0xff]
      %v5781 = vld [vmem:[#allocation2 + $0x20] sm:$0xff]
      %v5782 = vld [vmem:[#allocation2 + $0x28] sm:$0xff]
      %v5783 = vld [vmem:[#allocation2 + $0x30] sm:$0xff]
      %v5784 = vld [vmem:[#allocation2 + $0x38] sm:$0xff]
      %v5785 = vld [vmem:[#allocation2 + $0x40] sm:$0xff]
      %v5786 = vld [vmem:[#allocation2 + $0x48] sm:$0xff]
      %v5787 = vld [vmem:[#allocation2 + $0x50] sm:$0xff]
      %v5788 = vld [vmem:[#allocation2 + $0x58] sm:$0xff]
      %v5789 = vld [vmem:[#allocation2 + $0x60] sm:$0xff]
      %v5790 = vld [vmem:[#allocation2 + $0x68] sm:$0xff]
      %v5791 = vld [vmem:[#allocation2 + $0x70] sm:$0xff]
      %v5792 = vld [vmem:[#allocation2 + $0x78] sm:$0xff]
      %v5793 = vld [vmem:[#allocation2 + $0x80] sm:$0xff]
      %v5794 = vld [vmem:[#allocation2 + $0x88] sm:$0xff]
      %v5795 = vld [vmem:[#allocation2 + $0x90] sm:$0xff]
      %v5796 = vld [vmem:[#allocation2 + $0x98] sm:$0xff]
      %v5797 = vld [vmem:[#allocation2 + $0xa0] sm:$0xff]
      %v5798 = vld [vmem:[#allocation2 + $0xa8] sm:$0xff]
      %v5799 = vld [vmem:[#allocation2 + $0xb0] sm:$0xff]
      %v5800 = vld [vmem:[#allocation2 + $0xb8] sm:$0xff]
      %v5801 = vld [vmem:[#allocation2 + $0xc0] sm:$0xff]
      %v5802 = vld [vmem:[#allocation2 + $0xc8] sm:$0xff]
      %v5803 = vld [vmem:[#allocation2 + $0xd0] sm:$0xff]
      %v5804 = vld [vmem:[#allocation2 + $0xd8] sm:$0xff]
      %v5805 = vld [vmem:[#allocation2 + $0xe0] sm:$0xff]
      %v5806 = vld [vmem:[#allocation2 + $0xe8] sm:$0xff]
      %v5807 = vld [vmem:[#allocation2 + $0xf0] sm:$0xff]
      %v5808 = vld [vmem:[#allocation2 + $0xf8] sm:$0xff]
      %v5809 = vmax.f32 %v5777, 0.0
      %v5810 = vmax.f32 %v5778, 0.0
      %v5811 = vmax.f32 %v5779, 0.0
      %v5812 = vmax.f32 %v5780, 0.0
      %v5813 = vmax.f32 %v5781, 0.0
      %v5814 = vmax.f32 %v5782, 0.0
      %v5815 = vmax.f32 %v5783, 0.0
      %v5816 = vmax.f32 %v5784, 0.0
      %v5817 = vmax.f32 %v5785, 0.0
      %v5818 = vmax.f32 %v5786, 0.0
      %v5819 = vmax.f32 %v5787, 0.0
      %v5820 = vmax.f32 %v5788, 0.0
      %v5821 = vmax.f32 %v5789, 0.0
      %v5822 = vmax.f32 %v5790, 0.0
      %v5823 = vmax.f32 %v5791, 0.0
      %v5824 = vmax.f32 %v5792, 0.0
      %v5825 = vmax.f32 %v5793, 0.0
      %v5826 = vmax.f32 %v5794, 0.0
      %v5827 = vmax.f32 %v5795, 0.0
      %v5828 = vmax.f32 %v5796, 0.0
      %v5829 = vmax.f32 %v5797, 0.0
      %v5830 = vmax.f32 %v5798, 0.0
      %v5831 = vmax.f32 %v5799, 0.0
      %v5832 = vmax.f32 %v5800, 0.0
      %v5833 = vmax.f32 %v5801, 0.0
      %v5834 = vmax.f32 %v5802, 0.0
      %v5835 = vmax.f32 %v5803, 0.0
      %v5836 = vmax.f32 %v5804, 0.0
      %v5837 = vmax.f32 %v5805, 0.0
      %v5838 = vmax.f32 %v5806, 0.0
      %v5839 = vmax.f32 %v5807, 0.0
      %v5840 = vmax.f32 %v5808, 0.0
      %v5841 = vpack.c.bf16 %v5810, %v5809
      %v5842 = vpack.c.bf16 %v5812, %v5811
      %v5843 = vpack.c.bf16 %v5814, %v5813
      %v5844 = vpack.c.bf16 %v5816, %v5815
      %v5845 = vpack.c.bf16 %v5818, %v5817
      %v5846 = vpack.c.bf16 %v5820, %v5819
      %v5847 = vpack.c.bf16 %v5822, %v5821
      %v5848 = vpack.c.bf16 %v5824, %v5823
      %v5849 = vpack.c.bf16 %v5826, %v5825
      %v5850 = vpack.c.bf16 %v5828, %v5827
      %v5851 = vpack.c.bf16 %v5830, %v5829
      %v5852 = vpack.c.bf16 %v5832, %v5831
      %v5853 = vpack.c.bf16 %v5834, %v5833
      %v5854 = vpack.c.bf16 %v5836, %v5835
      %v5855 = vpack.c.bf16 %v5838, %v5837
      %v5856 = vpack.c.bf16 %v5840, %v5839
      %v5873 = vunpack.c.l.b16 %v5841
      %v5874 = vunpack.c.h.b16 %v5841
      %v5875 = vunpack.c.l.b16 %v5842
      %v5876 = vunpack.c.h.b16 %v5842
      %v5877 = vunpack.c.l.b16 %v5843
      %v5878 = vunpack.c.h.b16 %v5843
      %v5879 = vunpack.c.l.b16 %v5844
      %v5880 = vunpack.c.h.b16 %v5844
      %v5881 = vunpack.c.l.b16 %v5845
      %v5882 = vunpack.c.h.b16 %v5845
      %v5883 = vunpack.c.l.b16 %v5846
      %v5884 = vunpack.c.h.b16 %v5846
      %v5885 = vunpack.c.l.b16 %v5847
      %v5886 = vunpack.c.h.b16 %v5847
      %v5887 = vunpack.c.l.b16 %v5848
      %v5888 = vunpack.c.h.b16 %v5848
      %v5889 = vunpack.c.l.b16 %v5849
      %v5890 = vunpack.c.h.b16 %v5849
      %v5891 = vunpack.c.l.b16 %v5850
      %v5892 = vunpack.c.h.b16 %v5850
      %v5893 = vunpack.c.l.b16 %v5851
      %v5894 = vunpack.c.h.b16 %v5851
      %v5895 = vunpack.c.l.b16 %v5852
      %v5896 = vunpack.c.h.b16 %v5852
      %v5897 = vunpack.c.l.b16 %v5853
      %v5898 = vunpack.c.h.b16 %v5853
      %v5899 = vunpack.c.l.b16 %v5854
      %v5900 = vunpack.c.h.b16 %v5854
      %v5901 = vunpack.c.l.b16 %v5855
      %v5902 = vunpack.c.h.b16 %v5855
      %v5903 = vunpack.c.l.b16 %v5856
      %v5904 = vunpack.c.h.b16 %v5856
      %v5905 = vpack.c.b16 %v5873, %v5873
      %v5906 = vpack.c.b16 %v5874, %v5874
      %v5907 = vpack.c.b16 %v5875, %v5875
      %v5908 = vpack.c.b16 %v5876, %v5876
      %v5909 = vpack.c.b16 %v5877, %v5877
      %v5910 = vpack.c.b16 %v5878, %v5878
      %v5911 = vpack.c.b16 %v5879, %v5879
      %v5912 = vpack.c.b16 %v5880, %v5880
      %v5913 = vpack.c.b16 %v5881, %v5881
      %v5914 = vpack.c.b16 %v5882, %v5882
      %v5915 = vpack.c.b16 %v5883, %v5883
      %v5916 = vpack.c.b16 %v5884, %v5884
      %v5917 = vpack.c.b16 %v5885, %v5885
      %v5918 = vpack.c.b16 %v5886, %v5886
      %v5919 = vpack.c.b16 %v5887, %v5887
      %v5920 = vpack.c.b16 %v5888, %v5888
      %v5921 = vpack.c.b16 %v5889, %v5889
      %v5922 = vpack.c.b16 %v5890, %v5890
      %v5923 = vpack.c.b16 %v5891, %v5891
      %v5924 = vpack.c.b16 %v5892, %v5892
      %v5925 = vpack.c.b16 %v5893, %v5893
      %v5926 = vpack.c.b16 %v5894, %v5894
      %v5927 = vpack.c.b16 %v5895, %v5895
      %v5928 = vpack.c.b16 %v5896, %v5896
      %v5929 = vpack.c.b16 %v5897, %v5897
      %v5930 = vpack.c.b16 %v5898, %v5898
      %v5931 = vpack.c.b16 %v5899, %v5899
      %v5932 = vpack.c.b16 %v5900, %v5900
      %v5933 = vpack.c.b16 %v5901, %v5901
      %v5934 = vpack.c.b16 %v5902, %v5902
      %v5935 = vpack.c.b16 %v5903, %v5903
      %v5936 = vpack.c.b16 %v5904, %v5904
      %vm5937 = vsmask.f32 256
      %vm5938 = vsmask.f32 4368
      %vm5939 = vmor %vm5937, %vm5938
      %v5941 = vshrl.u32 %v5905, 16
      %v5943 = vrot.slane %v5941, 7
      %v5944 = vshll.u32 %v5905, 16
      %v5946 = vor.u32 %v5943, %v5944
      %v5947 = vrot.slane %v5943, 4
      %v5949 = vshrl.u32 %v5906, 16
      %v5951 = vrot.slane %v5949, 7
      %v5952 = vshll.u32 %v5906, 16
      %v5954 = vor.u32 %v5951, %v5952
      %v5955 = vsel %vm5939, %v5947, %v5954
      %v5956 = vrot.slane %v5951, 4
      %v5958 = vshrl.u32 %v5907, 16
      %v5960 = vrot.slane %v5958, 7
      %v5961 = vshll.u32 %v5907, 16
      %v5963 = vor.u32 %v5960, %v5961
      %v5964 = vrot.slane %v5960, 4
      %v5966 = vshrl.u32 %v5908, 16
      %v5968 = vrot.slane %v5966, 7
      %v5969 = vshll.u32 %v5908, 16
      %v5971 = vor.u32 %v5968, %v5969
      %v5972 = vsel %vm5939, %v5964, %v5971
      %v5973 = vrot.slane %v5968, 4
      %v5975 = vshrl.u32 %v5909, 16
      %v5977 = vrot.slane %v5975, 7
      %v5978 = vshll.u32 %v5909, 16
      %v5980 = vor.u32 %v5977, %v5978
      %v5981 = vrot.slane %v5977, 4
      %v5983 = vshrl.u32 %v5910, 16
      %v5985 = vrot.slane %v5983, 7
      %v5986 = vshll.u32 %v5910, 16
      %v5988 = vor.u32 %v5985, %v5986
      %v5989 = vsel %vm5939, %v5981, %v5988
      %v5990 = vrot.slane %v5985, 4
      %v5992 = vshrl.u32 %v5911, 16
      %v5994 = vrot.slane %v5992, 7
      %v5995 = vshll.u32 %v5911, 16
      %v5997 = vor.u32 %v5994, %v5995
      %v5998 = vrot.slane %v5994, 4
      %v6000 = vshrl.u32 %v5912, 16
      %v6002 = vrot.slane %v6000, 7
      %v6003 = vshll.u32 %v5912, 16
      %v6005 = vor.u32 %v6002, %v6003
      %v6006 = vsel %vm5939, %v5998, %v6005
      %v6007 = vrot.slane %v6002, 4
      %v6009 = vshrl.u32 %v5913, 16
      %v6011 = vrot.slane %v6009, 7
      %v6012 = vshll.u32 %v5913, 16
      %v6014 = vor.u32 %v6011, %v6012
      %v6015 = vrot.slane %v6011, 4
      %v6017 = vshrl.u32 %v5914, 16
      %v6019 = vrot.slane %v6017, 7
      %v6020 = vshll.u32 %v5914, 16
      %v6022 = vor.u32 %v6019, %v6020
      %v6023 = vsel %vm5939, %v6015, %v6022
      %v6024 = vrot.slane %v6019, 4
      %v6026 = vshrl.u32 %v5915, 16
      %v6028 = vrot.slane %v6026, 7
      %v6029 = vshll.u32 %v5915, 16
      %v6031 = vor.u32 %v6028, %v6029
      %v6032 = vrot.slane %v6028, 4
      %v6034 = vshrl.u32 %v5916, 16
      %v6036 = vrot.slane %v6034, 7
      %v6037 = vshll.u32 %v5916, 16
      %v6039 = vor.u32 %v6036, %v6037
      %v6040 = vsel %vm5939, %v6032, %v6039
      %v6041 = vrot.slane %v6036, 4
      %v6043 = vshrl.u32 %v5917, 16
      %v6045 = vrot.slane %v6043, 7
      %v6046 = vshll.u32 %v5917, 16
      %v6048 = vor.u32 %v6045, %v6046
      %v6049 = vrot.slane %v6045, 4
      %v6051 = vshrl.u32 %v5918, 16
      %v6053 = vrot.slane %v6051, 7
      %v6054 = vshll.u32 %v5918, 16
      %v6056 = vor.u32 %v6053, %v6054
      %v6057 = vsel %vm5939, %v6049, %v6056
      %v6058 = vrot.slane %v6053, 4
      %v6060 = vshrl.u32 %v5919, 16
      %v6062 = vrot.slane %v6060, 7
      %v6063 = vshll.u32 %v5919, 16
      %v6065 = vor.u32 %v6062, %v6063
      %v6066 = vrot.slane %v6062, 4
      %v6068 = vshrl.u32 %v5920, 16
      %v6070 = vrot.slane %v6068, 7
      %v6071 = vshll.u32 %v5920, 16
      %v6073 = vor.u32 %v6070, %v6071
      %v6074 = vsel %vm5939, %v6066, %v6073
      %v6075 = vrot.slane %v6070, 4
      %v6077 = vshrl.u32 %v5921, 16
      %v6079 = vrot.slane %v6077, 7
      %v6080 = vshll.u32 %v5921, 16
      %v6082 = vor.u32 %v6079, %v6080
      %v6083 = vrot.slane %v6079, 4
      %v6085 = vshrl.u32 %v5922, 16
      %v6087 = vrot.slane %v6085, 7
      %v6088 = vshll.u32 %v5922, 16
      %v6090 = vor.u32 %v6087, %v6088
      %v6091 = vsel %vm5939, %v6083, %v6090
      %v6092 = vrot.slane %v6087, 4
      %v6094 = vshrl.u32 %v5923, 16
      %v6096 = vrot.slane %v6094, 7
      %v6097 = vshll.u32 %v5923, 16
      %v6099 = vor.u32 %v6096, %v6097
      %v6100 = vrot.slane %v6096, 4
      %v6102 = vshrl.u32 %v5924, 16
      %v6104 = vrot.slane %v6102, 7
      %v6105 = vshll.u32 %v5924, 16
      %v6107 = vor.u32 %v6104, %v6105
      %v6108 = vsel %vm5939, %v6100, %v6107
      %v6109 = vrot.slane %v6104, 4
      %v6111 = vshrl.u32 %v5925, 16
      %v6113 = vrot.slane %v6111, 7
      %v6114 = vshll.u32 %v5925, 16
      %v6116 = vor.u32 %v6113, %v6114
      %v6117 = vrot.slane %v6113, 4
      %v6119 = vshrl.u32 %v5926, 16
      %v6121 = vrot.slane %v6119, 7
      %v6122 = vshll.u32 %v5926, 16
      %v6124 = vor.u32 %v6121, %v6122
      %v6125 = vsel %vm5939, %v6117, %v6124
      %v6126 = vrot.slane %v6121, 4
      %v6128 = vshrl.u32 %v5927, 16
      %v6130 = vrot.slane %v6128, 7
      %v6131 = vshll.u32 %v5927, 16
      %v6133 = vor.u32 %v6130, %v6131
      %v6134 = vrot.slane %v6130, 4
      %v6136 = vshrl.u32 %v5928, 16
      %v6138 = vrot.slane %v6136, 7
      %v6139 = vshll.u32 %v5928, 16
      %v6141 = vor.u32 %v6138, %v6139
      %v6142 = vsel %vm5939, %v6134, %v6141
      %v6143 = vrot.slane %v6138, 4
      %v6145 = vshrl.u32 %v5929, 16
      %v6147 = vrot.slane %v6145, 7
      %v6148 = vshll.u32 %v5929, 16
      %v6150 = vor.u32 %v6147, %v6148
      %v6151 = vrot.slane %v6147, 4
      %v6153 = vshrl.u32 %v5930, 16
      %v6155 = vrot.slane %v6153, 7
      %v6156 = vshll.u32 %v5930, 16
      %v6158 = vor.u32 %v6155, %v6156
      %v6159 = vsel %vm5939, %v6151, %v6158
      %v6160 = vrot.slane %v6155, 4
      %v6162 = vshrl.u32 %v5931, 16
      %v6164 = vrot.slane %v6162, 7
      %v6165 = vshll.u32 %v5931, 16
      %v6167 = vor.u32 %v6164, %v6165
      %v6168 = vrot.slane %v6164, 4
      %v6170 = vshrl.u32 %v5932, 16
      %v6172 = vrot.slane %v6170, 7
      %v6173 = vshll.u32 %v5932, 16
      %v6175 = vor.u32 %v6172, %v6173
      %v6176 = vsel %vm5939, %v6168, %v6175
      %v6177 = vrot.slane %v6172, 4
      %v6179 = vshrl.u32 %v5933, 16
      %v6181 = vrot.slane %v6179, 7
      %v6182 = vshll.u32 %v5933, 16
      %v6184 = vor.u32 %v6181, %v6182
      %v6185 = vrot.slane %v6181, 4
      %v6187 = vshrl.u32 %v5934, 16
      %v6189 = vrot.slane %v6187, 7
      %v6190 = vshll.u32 %v5934, 16
      %v6192 = vor.u32 %v6189, %v6190
      %v6193 = vsel %vm5939, %v6185, %v6192
      %v6194 = vrot.slane %v6189, 4
      %v6196 = vshrl.u32 %v5935, 16
      %v6198 = vrot.slane %v6196, 7
      %v6199 = vshll.u32 %v5935, 16
      %v6201 = vor.u32 %v6198, %v6199
      %v6202 = vrot.slane %v6198, 4
      %v6204 = vshrl.u32 %v5936, 16
      %v6206 = vrot.slane %v6204, 7
      %v6207 = vshll.u32 %v5936, 16
      %v6209 = vor.u32 %v6206, %v6207
      %v6210 = vsel %vm5939, %v6202, %v6209
      %v6211 = vrot.slane %v6206, 4
      %s6260 = scalar_lea.vmem [#allocation4], 12
      %vm6261 = vcmask 519168
      %vm6262 = vsmask.f32 7938
      %vm6263 = vmand %vm6261, %vm6262
      %v6264 = vld [vmem:[%s6260] sm:$0xf]
      %v6265 = vsel %vm6263, %v5946, %v6264
      %6266 = vst [vmem:[%s6260] sm:$0xf] %v6265
      %vm6267 = vcmask 519168
      %6268 = vst.msk [vmem:[%s6260 + $0x4] sm:$0xf] %vm6267, %v5955
      %vm6269 = vcmask 516096
      %vm6270 = vmand %vm6269, %vm5937
      %v6271 = vld [vmem:[%s6260 + $0x8] sm:$0x1]
      %v6272 = vsel %vm6270, %v5956, %v6271
      %6273 = vst [vmem:[%s6260 + $0x8] sm:$0x1] %v6272
      %v6274 = vld [vmem:[%s6260 + $0xc] sm:$0xf]
      %v6275 = vsel %vm6263, %v5963, %v6274
      %6276 = vst [vmem:[%s6260 + $0xc] sm:$0xf] %v6275
      %6277 = vst.msk [vmem:[%s6260 + $0x10] sm:$0xf] %vm6267, %v5972
      %v6278 = vld [vmem:[%s6260 + $0x14] sm:$0x1]
      %v6279 = vsel %vm6270, %v5973, %v6278
      %6280 = vst [vmem:[%s6260 + $0x14] sm:$0x1] %v6279
      %v6281 = vld [vmem:[%s6260 + $0x18] sm:$0xf]
      %v6282 = vsel %vm6263, %v5980, %v6281
      %6283 = vst [vmem:[%s6260 + $0x18] sm:$0xf] %v6282
      %6284 = vst.msk [vmem:[%s6260 + $0x1c] sm:$0xf] %vm6267, %v5989
      %v6285 = vld [vmem:[%s6260 + $0x20] sm:$0x1]
      %v6286 = vsel %vm6270, %v5990, %v6285
      %6287 = vst [vmem:[%s6260 + $0x20] sm:$0x1] %v6286
      %v6288 = vld [vmem:[%s6260 + $0x24] sm:$0xf]
      %v6289 = vsel %vm6263, %v5997, %v6288
      %6290 = vst [vmem:[%s6260 + $0x24] sm:$0xf] %v6289
      %6291 = vst.msk [vmem:[%s6260 + $0x28] sm:$0xf] %vm6267, %v6006
      %v6292 = vld [vmem:[%s6260 + $0x2c] sm:$0x1]
      %v6293 = vsel %vm6270, %v6007, %v6292
      %6294 = vst [vmem:[%s6260 + $0x2c] sm:$0x1] %v6293
      %v6295 = vld [vmem:[%s6260 + $0x30] sm:$0xf]
      %v6296 = vsel %vm6263, %v6014, %v6295
      %6297 = vst [vmem:[%s6260 + $0x30] sm:$0xf] %v6296
      %6298 = vst.msk [vmem:[%s6260 + $0x34] sm:$0xf] %vm6267, %v6023
      %v6299 = vld [vmem:[%s6260 + $0x38] sm:$0x1]
      %v6300 = vsel %vm6270, %v6024, %v6299
      %6301 = vst [vmem:[%s6260 + $0x38] sm:$0x1] %v6300
      %v6302 = vld [vmem:[%s6260 + $0x3c] sm:$0xf]
      %v6303 = vsel %vm6263, %v6031, %v6302
      %6304 = vst [vmem:[%s6260 + $0x3c] sm:$0xf] %v6303
      %6305 = vst.msk [vmem:[%s6260 + $0x40] sm:$0xf] %vm6267, %v6040
      %v6306 = vld [vmem:[%s6260 + $0x44] sm:$0x1]
      %v6307 = vsel %vm6270, %v6041, %v6306
      %6308 = vst [vmem:[%s6260 + $0x44] sm:$0x1] %v6307
      %v6309 = vld [vmem:[%s6260 + $0x48] sm:$0xf]
      %v6310 = vsel %vm6263, %v6048, %v6309
      %6311 = vst [vmem:[%s6260 + $0x48] sm:$0xf] %v6310
      %6312 = vst.msk [vmem:[%s6260 + $0x4c] sm:$0xf] %vm6267, %v6057
      %v6313 = vld [vmem:[%s6260 + $0x50] sm:$0x1]
      %v6314 = vsel %vm6270, %v6058, %v6313
      %6315 = vst [vmem:[%s6260 + $0x50] sm:$0x1] %v6314
      %v6316 = vld [vmem:[%s6260 + $0x54] sm:$0xf]
      %v6317 = vsel %vm6263, %v6065, %v6316
      %6318 = vst [vmem:[%s6260 + $0x54] sm:$0xf] %v6317
      %6319 = vst.msk [vmem:[%s6260 + $0x58] sm:$0xf] %vm6267, %v6074
      %v6320 = vld [vmem:[%s6260 + $0x5c] sm:$0x1]
      %v6321 = vsel %vm6270, %v6075, %v6320
      %6322 = vst [vmem:[%s6260 + $0x5c] sm:$0x1] %v6321
      %v6323 = vld [vmem:[%s6260 + $0x60] sm:$0xf]
      %v6324 = vsel %vm6263, %v6082, %v6323
      %6325 = vst [vmem:[%s6260 + $0x60] sm:$0xf] %v6324
      %6326 = vst.msk [vmem:[%s6260 + $0x64] sm:$0xf] %vm6267, %v6091
      %v6327 = vld [vmem:[%s6260 + $0x68] sm:$0x1]
      %v6328 = vsel %vm6270, %v6092, %v6327
      %6329 = vst [vmem:[%s6260 + $0x68] sm:$0x1] %v6328
      %v6330 = vld [vmem:[%s6260 + $0x6c] sm:$0xf]
      %v6331 = vsel %vm6263, %v6099, %v6330
      %6332 = vst [vmem:[%s6260 + $0x6c] sm:$0xf] %v6331
      %6333 = vst.msk [vmem:[%s6260 + $0x70] sm:$0xf] %vm6267, %v6108
      %v6334 = vld [vmem:[%s6260 + $0x74] sm:$0x1]
      %v6335 = vsel %vm6270, %v6109, %v6334
      %6336 = vst [vmem:[%s6260 + $0x74] sm:$0x1] %v6335
      %v6337 = vld [vmem:[%s6260 + $0x78] sm:$0xf]
      %v6338 = vsel %vm6263, %v6116, %v6337
      %6339 = vst [vmem:[%s6260 + $0x78] sm:$0xf] %v6338
      %6340 = vst.msk [vmem:[%s6260 + $0x7c] sm:$0xf] %vm6267, %v6125
      %v6341 = vld [vmem:[%s6260 + $0x80] sm:$0x1]
      %v6342 = vsel %vm6270, %v6126, %v6341
      %6343 = vst [vmem:[%s6260 + $0x80] sm:$0x1] %v6342
      %v6344 = vld [vmem:[%s6260 + $0x84] sm:$0xf]
      %v6345 = vsel %vm6263, %v6133, %v6344
      %6346 = vst [vmem:[%s6260 + $0x84] sm:$0xf] %v6345
      %6347 = vst.msk [vmem:[%s6260 + $0x88] sm:$0xf] %vm6267, %v6142
      %v6348 = vld [vmem:[%s6260 + $0x8c] sm:$0x1]
      %v6349 = vsel %vm6270, %v6143, %v6348
      %6350 = vst [vmem:[%s6260 + $0x8c] sm:$0x1] %v6349
      %v6351 = vld [vmem:[%s6260 + $0x90] sm:$0xf]
      %v6352 = vsel %vm6263, %v6150, %v6351
      %6353 = vst [vmem:[%s6260 + $0x90] sm:$0xf] %v6352
      %6354 = vst.msk [vmem:[%s6260 + $0x94] sm:$0xf] %vm6267, %v6159
      %v6355 = vld [vmem:[%s6260 + $0x98] sm:$0x1]
      %v6356 = vsel %vm6270, %v6160, %v6355
      %6357 = vst [vmem:[%s6260 + $0x98] sm:$0x1] %v6356
      %v6358 = vld [vmem:[%s6260 + $0x9c] sm:$0xf]
      %v6359 = vsel %vm6263, %v6167, %v6358
      %6360 = vst [vmem:[%s6260 + $0x9c] sm:$0xf] %v6359
      %6361 = vst.msk [vmem:[%s6260 + $0xa0] sm:$0xf] %vm6267, %v6176
      %v6362 = vld [vmem:[%s6260 + $0xa4] sm:$0x1]
      %v6363 = vsel %vm6270, %v6177, %v6362
      %6364 = vst [vmem:[%s6260 + $0xa4] sm:$0x1] %v6363
      %v6365 = vld [vmem:[%s6260 + $0xa8] sm:$0xf]
      %v6366 = vsel %vm6263, %v6184, %v6365
      %6367 = vst [vmem:[%s6260 + $0xa8] sm:$0xf] %v6366
      %6368 = vst.msk [vmem:[%s6260 + $0xac] sm:$0xf] %vm6267, %v6193
      %v6369 = vld [vmem:[%s6260 + $0xb0] sm:$0x1]
      %v6370 = vsel %vm6270, %v6194, %v6369
      %6371 = vst [vmem:[%s6260 + $0xb0] sm:$0x1] %v6370
      %v6372 = vld [vmem:[%s6260 + $0xb4] sm:$0xf]
      %v6373 = vsel %vm6263, %v6201, %v6372
      %6374 = vst [vmem:[%s6260 + $0xb4] sm:$0xf] %v6373
      %6375 = vst.msk [vmem:[%s6260 + $0xb8] sm:$0xf] %vm6267, %v6210
      %v6376 = vld [vmem:[%s6260 + $0xbc] sm:$0x1]
      %v6377 = vsel %vm6270, %v6211, %v6376
      %6378 = vst [vmem:[%s6260 + $0xbc] sm:$0x1] %v6377
      %v6379 = vld [vmem:[%s4] sm:$0x1]
      %v6381 = vlaneseq
      %v6382 = vshrl.u32 %v6381, 7
      %v6383 = vsub.s32 0, %v6382
      %v6384 = vrot.slane %v6379, %v6383
      %6386 = vst.msk [vmem:[#allocation2] sm:$0xff] %vm401, %v6384
      %6387 = vst.msk [vmem:[#allocation2 + $0x8] sm:$0xff] %vm401, %v6384
      %6388 = vst.msk [vmem:[#allocation2 + $0x10] sm:$0xff] %vm401, %v6384
      %6389 = vst.msk [vmem:[#allocation2 + $0x18] sm:$0xff] %vm401, %v6384
      %6390 = vst.msk [vmem:[#allocation2 + $0x20] sm:$0xff] %vm401, %v6384
      %6391 = vst.msk [vmem:[#allocation2 + $0x28] sm:$0xff] %vm401, %v6384
      %6392 = vst.msk [vmem:[#allocation2 + $0x30] sm:$0xff] %vm401, %v6384
      %6393 = vst.msk [vmem:[#allocation2 + $0x38] sm:$0xff] %vm401, %v6384
      %6394 = vst.msk [vmem:[#allocation2 + $0x40] sm:$0xff] %vm401, %v6384
      %6395 = vst.msk [vmem:[#allocation2 + $0x48] sm:$0xff] %vm401, %v6384
      %6396 = vst.msk [vmem:[#allocation2 + $0x50] sm:$0xff] %vm401, %v6384
      %6397 = vst.msk [vmem:[#allocation2 + $0x58] sm:$0xff] %vm401, %v6384
      %6398 = vst.msk [vmem:[#allocation2 + $0x60] sm:$0xff] %vm401, %v6384
      %6399 = vst.msk [vmem:[#allocation2 + $0x68] sm:$0xff] %vm401, %v6384
      %6400 = vst.msk [vmem:[#allocation2 + $0x70] sm:$0xff] %vm401, %v6384
      %6401 = vst.msk [vmem:[#allocation2 + $0x78] sm:$0xff] %vm401, %v6384
      %6402 = vst.msk [vmem:[#allocation2 + $0x80] sm:$0xff] %vm401, %v6384
      %6403 = vst.msk [vmem:[#allocation2 + $0x88] sm:$0xff] %vm401, %v6384
      %6404 = vst.msk [vmem:[#allocation2 + $0x90] sm:$0xff] %vm401, %v6384
      %6405 = vst.msk [vmem:[#allocation2 + $0x98] sm:$0xff] %vm401, %v6384
      %6406 = vst.msk [vmem:[#allocation2 + $0xa0] sm:$0xff] %vm401, %v6384
      %6407 = vst.msk [vmem:[#allocation2 + $0xa8] sm:$0xff] %vm401, %v6384
      %6408 = vst.msk [vmem:[#allocation2 + $0xb0] sm:$0xff] %vm401, %v6384
      %6409 = vst.msk [vmem:[#allocation2 + $0xb8] sm:$0xff] %vm401, %v6384
      %6410 = vst.msk [vmem:[#allocation2 + $0xc0] sm:$0xff] %vm401, %v6384
      %6411 = vst.msk [vmem:[#allocation2 + $0xc8] sm:$0xff] %vm401, %v6384
      %6412 = vst.msk [vmem:[#allocation2 + $0xd0] sm:$0xff] %vm401, %v6384
      %6413 = vst.msk [vmem:[#allocation2 + $0xd8] sm:$0xff] %vm401, %v6384
      %6414 = vst.msk [vmem:[#allocation2 + $0xe0] sm:$0xff] %vm401, %v6384
      %6415 = vst.msk [vmem:[#allocation2 + $0xe8] sm:$0xff] %vm401, %v6384
      %6416 = vst.msk [vmem:[#allocation2 + $0xf0] sm:$0xff] %vm401, %v6384
      %6417 = vst.msk [vmem:[#allocation2 + $0xf8] sm:$0xff] %vm401, %v6384
      %v6418 = vld [vmem:[#allocation4] sm:$0xf]
      %v6419 = vld [vmem:[#allocation4 + $0x4] sm:$0xf]
      %v6420 = vld [vmem:[#allocation4 + $0x8] sm:$0x1]
      %v6421 = vld [vmem:[#allocation4 + $0xc] sm:$0xf]
      %v6422 = vld [vmem:[#allocation4 + $0x10] sm:$0xf]
      %v6423 = vld [vmem:[#allocation4 + $0x14] sm:$0x1]
      %v6424 = vld [vmem:[#allocation4 + $0x18] sm:$0xf]
      %v6425 = vld [vmem:[#allocation4 + $0x1c] sm:$0xf]
      %v6426 = vld [vmem:[#allocation4 + $0x20] sm:$0x1]
      %v6427 = vld [vmem:[#allocation4 + $0x24] sm:$0xf]
      %v6428 = vld [vmem:[#allocation4 + $0x28] sm:$0xf]
      %v6429 = vld [vmem:[#allocation4 + $0x2c] sm:$0x1]
      %v6430 = vld [vmem:[#allocation4 + $0x30] sm:$0xf]
      %v6431 = vld [vmem:[#allocation4 + $0x34] sm:$0xf]
      %v6432 = vld [vmem:[#allocation4 + $0x38] sm:$0x1]
      %v6433 = vld [vmem:[#allocation4 + $0x3c] sm:$0xf]
      %v6434 = vld [vmem:[#allocation4 + $0x40] sm:$0xf]
      %v6435 = vld [vmem:[#allocation4 + $0x44] sm:$0x1]
      %v6436 = vld [vmem:[#allocation4 + $0x48] sm:$0xf]
      %v6437 = vld [vmem:[#allocation4 + $0x4c] sm:$0xf]
      %v6438 = vld [vmem:[#allocation4 + $0x50] sm:$0x1]
      %v6439 = vld [vmem:[#allocation4 + $0x54] sm:$0xf]
      %v6440 = vld [vmem:[#allocation4 + $0x58] sm:$0xf]
      %v6441 = vld [vmem:[#allocation4 + $0x5c] sm:$0x1]
      %v6442 = vld [vmem:[#allocation4 + $0x60] sm:$0xf]
      %v6443 = vld [vmem:[#allocation4 + $0x64] sm:$0xf]
      %v6444 = vld [vmem:[#allocation4 + $0x68] sm:$0x1]
      %v6445 = vld [vmem:[#allocation4 + $0x6c] sm:$0xf]
      %v6446 = vld [vmem:[#allocation4 + $0x70] sm:$0xf]
      %v6447 = vld [vmem:[#allocation4 + $0x74] sm:$0x1]
      %v6448 = vld [vmem:[#allocation4 + $0x78] sm:$0xf]
      %v6449 = vld [vmem:[#allocation4 + $0x7c] sm:$0xf]
      %v6450 = vld [vmem:[#allocation4 + $0x80] sm:$0x1]
      %v6451 = vld [vmem:[#allocation4 + $0x84] sm:$0xf]
      %v6452 = vld [vmem:[#allocation4 + $0x88] sm:$0xf]
      %v6453 = vld [vmem:[#allocation4 + $0x8c] sm:$0x1]
      %v6454 = vld [vmem:[#allocation4 + $0x90] sm:$0xf]
      %v6455 = vld [vmem:[#allocation4 + $0x94] sm:$0xf]
      %v6456 = vld [vmem:[#allocation4 + $0x98] sm:$0x1]
      %v6457 = vld [vmem:[#allocation4 + $0x9c] sm:$0xf]
      %v6458 = vld [vmem:[#allocation4 + $0xa0] sm:$0xf]
      %v6459 = vld [vmem:[#allocation4 + $0xa4] sm:$0x1]
      %v6460 = vld [vmem:[#allocation4 + $0xa8] sm:$0xf]
      %v6461 = vld [vmem:[#allocation4 + $0xac] sm:$0xf]
      %v6462 = vld [vmem:[#allocation4 + $0xb0] sm:$0x1]
      %v6463 = vld [vmem:[#allocation4 + $0xb4] sm:$0xf]
      %v6464 = vld [vmem:[#allocation4 + $0xb8] sm:$0xf]
      %v6465 = vld [vmem:[#allocation4 + $0xbc] sm:$0x1]
      %v6498 = vunpack.c.l.b16 %v6418
      %v6499 = vunpack.c.l.b16 %v6419
      %v6500 = vunpack.c.l.b16 %v6421
      %v6501 = vunpack.c.l.b16 %v6422
      %v6502 = vunpack.c.l.b16 %v6424
      %v6503 = vunpack.c.l.b16 %v6425
      %v6504 = vunpack.c.l.b16 %v6427
      %v6505 = vunpack.c.l.b16 %v6428
      %v6506 = vunpack.c.l.b16 %v6430
      %v6507 = vunpack.c.l.b16 %v6431
      %v6508 = vunpack.c.l.b16 %v6433
      %v6509 = vunpack.c.l.b16 %v6434
      %v6510 = vunpack.c.l.b16 %v6436
      %v6511 = vunpack.c.l.b16 %v6437
      %v6512 = vunpack.c.l.b16 %v6439
      %v6513 = vunpack.c.l.b16 %v6440
      %v6514 = vunpack.c.l.b16 %v6442
      %v6515 = vunpack.c.l.b16 %v6443
      %v6516 = vunpack.c.l.b16 %v6445
      %v6517 = vunpack.c.l.b16 %v6446
      %v6518 = vunpack.c.l.b16 %v6448
      %v6519 = vunpack.c.l.b16 %v6449
      %v6520 = vunpack.c.l.b16 %v6451
      %v6521 = vunpack.c.l.b16 %v6452
      %v6522 = vunpack.c.l.b16 %v6454
      %v6523 = vunpack.c.l.b16 %v6455
      %v6524 = vunpack.c.l.b16 %v6457
      %v6525 = vunpack.c.l.b16 %v6458
      %v6526 = vunpack.c.l.b16 %v6460
      %v6527 = vunpack.c.l.b16 %v6461
      %v6528 = vunpack.c.l.b16 %v6463
      %v6529 = vunpack.c.l.b16 %v6464
      %v6530 = vpack.c.b16 %v6499, %v6498
      %v6531 = vpack.c.b16 %v6501, %v6500
      %v6532 = vpack.c.b16 %v6503, %v6502
      %v6533 = vpack.c.b16 %v6505, %v6504
      %v6534 = vpack.c.b16 %v6507, %v6506
      %v6535 = vpack.c.b16 %v6509, %v6508
      %v6536 = vpack.c.b16 %v6511, %v6510
      %v6537 = vpack.c.b16 %v6513, %v6512
      %v6538 = vpack.c.b16 %v6515, %v6514
      %v6539 = vpack.c.b16 %v6517, %v6516
      %v6540 = vpack.c.b16 %v6519, %v6518
      %v6541 = vpack.c.b16 %v6521, %v6520
      %v6542 = vpack.c.b16 %v6523, %v6522
      %v6543 = vpack.c.b16 %v6525, %v6524
      %v6544 = vpack.c.b16 %v6527, %v6526
      %v6545 = vpack.c.b16 %v6529, %v6528
      %v6562 = vunpack.c.l.b16 %v6420
      %v6563 = vunpack.c.l.b16 %v6423
      %v6564 = vunpack.c.l.b16 %v6426
      %v6565 = vunpack.c.l.b16 %v6429
      %v6566 = vunpack.c.l.b16 %v6432
      %v6567 = vunpack.c.l.b16 %v6435
      %v6568 = vunpack.c.l.b16 %v6438
      %v6569 = vunpack.c.l.b16 %v6441
      %v6570 = vunpack.c.l.b16 %v6444
      %v6571 = vunpack.c.l.b16 %v6447
      %v6572 = vunpack.c.l.b16 %v6450
      %v6573 = vunpack.c.l.b16 %v6453
      %v6574 = vunpack.c.l.b16 %v6456
      %v6575 = vunpack.c.l.b16 %v6459
      %v6576 = vunpack.c.l.b16 %v6462
      %v6577 = vunpack.c.l.b16 %v6465
      %v6578 = vpack.c.b16 %v6562, %v6562
      %v6579 = vpack.c.b16 %v6563, %v6563
      %v6580 = vpack.c.b16 %v6564, %v6564
      %v6581 = vpack.c.b16 %v6565, %v6565
      %v6582 = vpack.c.b16 %v6566, %v6566
      %v6583 = vpack.c.b16 %v6567, %v6567
      %v6584 = vpack.c.b16 %v6568, %v6568
      %v6585 = vpack.c.b16 %v6569, %v6569
      %v6586 = vpack.c.b16 %v6570, %v6570
      %v6587 = vpack.c.b16 %v6571, %v6571
      %v6588 = vpack.c.b16 %v6572, %v6572
      %v6589 = vpack.c.b16 %v6573, %v6573
      %v6590 = vpack.c.b16 %v6574, %v6574
      %v6591 = vpack.c.b16 %v6575, %v6575
      %v6592 = vpack.c.b16 %v6576, %v6576
      %v6593 = vpack.c.b16 %v6577, %v6577
      %vm6594 = vsmask.f32 7424
      %v6596 = vshrl.u32 %v6530, 16
      %v6598 = vshll.u32 %v6530, 16
      %v6600 = vrot.slane %v6598, 1
      %v6601 = vor.u32 %v6596, %v6600
      %v6603 = vshll.u32 %v6578, 16
      %v6605 = vrot.slane %v6603, 1
      %v6606 = vsel %vm6594, %v6601, %v6605
      %v6608 = vshrl.u32 %v6531, 16
      %v6610 = vshll.u32 %v6531, 16
      %v6612 = vrot.slane %v6610, 1
      %v6613 = vor.u32 %v6608, %v6612
      %v6615 = vshll.u32 %v6579, 16
      %v6617 = vrot.slane %v6615, 1
      %v6618 = vsel %vm6594, %v6613, %v6617
      %v6620 = vshrl.u32 %v6532, 16
      %v6622 = vshll.u32 %v6532, 16
      %v6624 = vrot.slane %v6622, 1
      %v6625 = vor.u32 %v6620, %v6624
      %v6627 = vshll.u32 %v6580, 16
      %v6629 = vrot.slane %v6627, 1
      %v6630 = vsel %vm6594, %v6625, %v6629
      %v6632 = vshrl.u32 %v6533, 16
      %v6634 = vshll.u32 %v6533, 16
      %v6636 = vrot.slane %v6634, 1
      %v6637 = vor.u32 %v6632, %v6636
      %v6639 = vshll.u32 %v6581, 16
      %v6641 = vrot.slane %v6639, 1
      %v6642 = vsel %vm6594, %v6637, %v6641
      %v6644 = vshrl.u32 %v6534, 16
      %v6646 = vshll.u32 %v6534, 16
      %v6648 = vrot.slane %v6646, 1
      %v6649 = vor.u32 %v6644, %v6648
      %v6651 = vshll.u32 %v6582, 16
      %v6653 = vrot.slane %v6651, 1
      %v6654 = vsel %vm6594, %v6649, %v6653
      %v6656 = vshrl.u32 %v6535, 16
      %v6658 = vshll.u32 %v6535, 16
      %v6660 = vrot.slane %v6658, 1
      %v6661 = vor.u32 %v6656, %v6660
      %v6663 = vshll.u32 %v6583, 16
      %v6665 = vrot.slane %v6663, 1
      %v6666 = vsel %vm6594, %v6661, %v6665
      %v6668 = vshrl.u32 %v6536, 16
      %v6670 = vshll.u32 %v6536, 16
      %v6672 = vrot.slane %v6670, 1
      %v6673 = vor.u32 %v6668, %v6672
      %v6675 = vshll.u32 %v6584, 16
      %v6677 = vrot.slane %v6675, 1
      %v6678 = vsel %vm6594, %v6673, %v6677
      %v6680 = vshrl.u32 %v6537, 16
      %v6682 = vshll.u32 %v6537, 16
      %v6684 = vrot.slane %v6682, 1
      %v6685 = vor.u32 %v6680, %v6684
      %v6687 = vshll.u32 %v6585, 16
      %v6689 = vrot.slane %v6687, 1
      %v6690 = vsel %vm6594, %v6685, %v6689
      %v6692 = vshrl.u32 %v6538, 16
      %v6694 = vshll.u32 %v6538, 16
      %v6696 = vrot.slane %v6694, 1
      %v6697 = vor.u32 %v6692, %v6696
      %v6699 = vshll.u32 %v6586, 16
      %v6701 = vrot.slane %v6699, 1
      %v6702 = vsel %vm6594, %v6697, %v6701
      %v6704 = vshrl.u32 %v6539, 16
      %v6706 = vshll.u32 %v6539, 16
      %v6708 = vrot.slane %v6706, 1
      %v6709 = vor.u32 %v6704, %v6708
      %v6711 = vshll.u32 %v6587, 16
      %v6713 = vrot.slane %v6711, 1
      %v6714 = vsel %vm6594, %v6709, %v6713
      %v6716 = vshrl.u32 %v6540, 16
      %v6718 = vshll.u32 %v6540, 16
      %v6720 = vrot.slane %v6718, 1
      %v6721 = vor.u32 %v6716, %v6720
      %v6723 = vshll.u32 %v6588, 16
      %v6725 = vrot.slane %v6723, 1
      %v6726 = vsel %vm6594, %v6721, %v6725
      %v6728 = vshrl.u32 %v6541, 16
      %v6730 = vshll.u32 %v6541, 16
      %v6732 = vrot.slane %v6730, 1
      %v6733 = vor.u32 %v6728, %v6732
      %v6735 = vshll.u32 %v6589, 16
      %v6737 = vrot.slane %v6735, 1
      %v6738 = vsel %vm6594, %v6733, %v6737
      %v6740 = vshrl.u32 %v6542, 16
      %v6742 = vshll.u32 %v6542, 16
      %v6744 = vrot.slane %v6742, 1
      %v6745 = vor.u32 %v6740, %v6744
      %v6747 = vshll.u32 %v6590, 16
      %v6749 = vrot.slane %v6747, 1
      %v6750 = vsel %vm6594, %v6745, %v6749
      %v6752 = vshrl.u32 %v6543, 16
      %v6754 = vshll.u32 %v6543, 16
      %v6756 = vrot.slane %v6754, 1
      %v6757 = vor.u32 %v6752, %v6756
      %v6759 = vshll.u32 %v6591, 16
      %v6761 = vrot.slane %v6759, 1
      %v6762 = vsel %vm6594, %v6757, %v6761
      %v6764 = vshrl.u32 %v6544, 16
      %v6766 = vshll.u32 %v6544, 16
      %v6768 = vrot.slane %v6766, 1
      %v6769 = vor.u32 %v6764, %v6768
      %v6771 = vshll.u32 %v6592, 16
      %v6773 = vrot.slane %v6771, 1
      %v6774 = vsel %vm6594, %v6769, %v6773
      %v6776 = vshrl.u32 %v6545, 16
      %v6778 = vshll.u32 %v6545, 16
      %v6780 = vrot.slane %v6778, 1
      %v6781 = vor.u32 %v6776, %v6780
      %v6783 = vshll.u32 %v6593, 16
      %v6785 = vrot.slane %v6783, 1
      %v6786 = vsel %vm6594, %v6781, %v6785
      %6787 = vrot.lane.b32.xlu0 %v6606, 64
      %v6788 = vpop.permute.xlu0 %6787
      %6789 = vrot.lane.b32.xlu0 %v6618, 64
      %v6790 = vpop.permute.xlu0 %6789
      %6791 = vrot.lane.b32.xlu0 %v6630, 64
      %v6792 = vpop.permute.xlu0 %6791
      %6793 = vrot.lane.b32.xlu0 %v6642, 64
      %v6794 = vpop.permute.xlu0 %6793
      %6795 = vrot.lane.b32.xlu0 %v6654, 64
      %v6796 = vpop.permute.xlu0 %6795
      %6797 = vrot.lane.b32.xlu0 %v6666, 64
      %v6798 = vpop.permute.xlu0 %6797
      %6799 = vrot.lane.b32.xlu0 %v6678, 64
      %v6800 = vpop.permute.xlu0 %6799
      %6801 = vrot.lane.b32.xlu0 %v6690, 64
      %v6802 = vpop.permute.xlu0 %6801
      %6803 = vrot.lane.b32.xlu0 %v6702, 64
      %v6804 = vpop.permute.xlu0 %6803
      %6805 = vrot.lane.b32.xlu0 %v6714, 64
      %v6806 = vpop.permute.xlu0 %6805
      %6807 = vrot.lane.b32.xlu0 %v6726, 64
      %v6808 = vpop.permute.xlu0 %6807
      %6809 = vrot.lane.b32.xlu0 %v6738, 64
      %v6810 = vpop.permute.xlu0 %6809
      %6811 = vrot.lane.b32.xlu0 %v6750, 64
      %v6812 = vpop.permute.xlu0 %6811
      %6813 = vrot.lane.b32.xlu0 %v6762, 64
      %v6814 = vpop.permute.xlu0 %6813
      %6815 = vrot.lane.b32.xlu0 %v6774, 64
      %v6816 = vpop.permute.xlu0 %6815
      %6817 = vrot.lane.b32.xlu0 %v6786, 64
      %v6818 = vpop.permute.xlu0 %6817
      %vm6819 = vcmask 1046528
      %v6820 = vrot.slane %v6530, 1
      %v6821 = vrot.slane %v6578, 1
      %v6822 = vsel %vm6819, %v6820, %v6821
      %v6823 = vrot.slane %v6531, 1
      %v6824 = vrot.slane %v6579, 1
      %v6825 = vsel %vm6819, %v6823, %v6824
      %v6826 = vrot.slane %v6532, 1
      %v6827 = vrot.slane %v6580, 1
      %v6828 = vsel %vm6819, %v6826, %v6827
      %v6829 = vrot.slane %v6533, 1
      %v6830 = vrot.slane %v6581, 1
      %v6831 = vsel %vm6819, %v6829, %v6830
      %v6832 = vrot.slane %v6534, 1
      %v6833 = vrot.slane %v6582, 1
      %v6834 = vsel %vm6819, %v6832, %v6833
      %v6835 = vrot.slane %v6535, 1
      %v6836 = vrot.slane %v6583, 1
      %v6837 = vsel %vm6819, %v6835, %v6836
      %v6838 = vrot.slane %v6536, 1
      %v6839 = vrot.slane %v6584, 1
      %v6840 = vsel %vm6819, %v6838, %v6839
      %v6841 = vrot.slane %v6537, 1
      %v6842 = vrot.slane %v6585, 1
      %v6843 = vsel %vm6819, %v6841, %v6842
      %v6844 = vrot.slane %v6538, 1
      %v6845 = vrot.slane %v6586, 1
      %v6846 = vsel %vm6819, %v6844, %v6845
      %v6847 = vrot.slane %v6539, 1
      %v6848 = vrot.slane %v6587, 1
      %v6849 = vsel %vm6819, %v6847, %v6848
      %v6850 = vrot.slane %v6540, 1
      %v6851 = vrot.slane %v6588, 1
      %v6852 = vsel %vm6819, %v6850, %v6851
      %v6853 = vrot.slane %v6541, 1
      %v6854 = vrot.slane %v6589, 1
      %v6855 = vsel %vm6819, %v6853, %v6854
      %v6856 = vrot.slane %v6542, 1
      %v6857 = vrot.slane %v6590, 1
      %v6858 = vsel %vm6819, %v6856, %v6857
      %v6859 = vrot.slane %v6543, 1
      %v6860 = vrot.slane %v6591, 1
      %v6861 = vsel %vm6819, %v6859, %v6860
      %v6862 = vrot.slane %v6544, 1
      %v6863 = vrot.slane %v6592, 1
      %v6864 = vsel %vm6819, %v6862, %v6863
      %v6865 = vrot.slane %v6545, 1
      %v6866 = vrot.slane %v6593, 1
      %v6867 = vsel %vm6819, %v6865, %v6866
      %v6869 = vsel %vm401, %v6530, %v6788
      %v6872 = vsel %vm401, %v6531, %v6790
      %v6875 = vsel %vm401, %v6532, %v6792
      %v6878 = vsel %vm401, %v6533, %v6794
      %v6881 = vsel %vm401, %v6534, %v6796
      %v6884 = vsel %vm401, %v6535, %v6798
      %v6887 = vsel %vm401, %v6536, %v6800
      %v6890 = vsel %vm401, %v6537, %v6802
      %v6893 = vsel %vm401, %v6538, %v6804
      %v6896 = vsel %vm401, %v6539, %v6806
      %v6899 = vsel %vm401, %v6540, %v6808
      %v6902 = vsel %vm401, %v6541, %v6810
      %v6905 = vsel %vm401, %v6542, %v6812
      %v6908 = vsel %vm401, %v6543, %v6814
      %v6911 = vsel %vm401, %v6544, %v6816
      %v6914 = vsel %vm401, %v6545, %v6818
      %v6916 = vld [vmem:[#allocation2] sm:$0xff]
      %v6917 = vld [vmem:[#allocation2 + $0x8] sm:$0xff]
      %v6918 = vld [vmem:[#allocation2 + $0x10] sm:$0xff]
      %v6919 = vld [vmem:[#allocation2 + $0x18] sm:$0xff]
      %v6920 = vld [vmem:[#allocation2 + $0x20] sm:$0xff]
      %v6921 = vld [vmem:[#allocation2 + $0x28] sm:$0xff]
      %v6922 = vld [vmem:[#allocation2 + $0x30] sm:$0xff]
      %v6923 = vld [vmem:[#allocation2 + $0x38] sm:$0xff]
      %v6924 = vld [vmem:[#allocation2 + $0x40] sm:$0xff]
      %v6925 = vld [vmem:[#allocation2 + $0x48] sm:$0xff]
      %v6926 = vld [vmem:[#allocation2 + $0x50] sm:$0xff]
      %v6927 = vld [vmem:[#allocation2 + $0x58] sm:$0xff]
      %v6928 = vld [vmem:[#allocation2 + $0x60] sm:$0xff]
      %v6929 = vld [vmem:[#allocation2 + $0x68] sm:$0xff]
      %v6930 = vld [vmem:[#allocation2 + $0x70] sm:$0xff]
      %v6931 = vld [vmem:[#allocation2 + $0x78] sm:$0xff]
      %v6932 = vld [vmem:[#allocation2 + $0x80] sm:$0xff]
      %v6933 = vld [vmem:[#allocation2 + $0x88] sm:$0xff]
      %v6934 = vld [vmem:[#allocation2 + $0x90] sm:$0xff]
      %v6935 = vld [vmem:[#allocation2 + $0x98] sm:$0xff]
      %v6936 = vld [vmem:[#allocation2 + $0xa0] sm:$0xff]
      %v6937 = vld [vmem:[#allocation2 + $0xa8] sm:$0xff]
      %v6938 = vld [vmem:[#allocation2 + $0xb0] sm:$0xff]
      %v6939 = vld [vmem:[#allocation2 + $0xb8] sm:$0xff]
      %v6940 = vld [vmem:[#allocation2 + $0xc0] sm:$0xff]
      %v6941 = vld [vmem:[#allocation2 + $0xc8] sm:$0xff]
      %v6942 = vld [vmem:[#allocation2 + $0xd0] sm:$0xff]
      %v6943 = vld [vmem:[#allocation2 + $0xd8] sm:$0xff]
      %v6944 = vld [vmem:[#allocation2 + $0xe0] sm:$0xff]
      %v6945 = vld [vmem:[#allocation2 + $0xe8] sm:$0xff]
      %v6946 = vld [vmem:[#allocation2 + $0xf0] sm:$0xff]
      %v6947 = vld [vmem:[#allocation2 + $0xf8] sm:$0xff]
      %v6948 = vld [vmem:[%s3] sm:$0xf]
      %v6949 = vld [vmem:[%s3 + $0x4] sm:$0xf]
      %v6950 = vld [vmem:[%s3 + $0x8] sm:$0xf]
      %v6951 = vld [vmem:[%s3 + $0xc] sm:$0xf]
      %v6952 = vld [vmem:[%s3 + $0x10] sm:$0xf]
      %v6953 = vld [vmem:[%s3 + $0x14] sm:$0xf]
      %v6954 = vld [vmem:[%s3 + $0x18] sm:$0xf]
      %v6955 = vld [vmem:[%s3 + $0x1c] sm:$0xf]
      %v6956 = vld [vmem:[%s3 + $0x20] sm:$0xf]
      %v6957 = vld [vmem:[%s3 + $0x24] sm:$0xf]
      %v6958 = vld [vmem:[%s3 + $0x28] sm:$0xf]
      %v6959 = vld [vmem:[%s3 + $0x2c] sm:$0xf]
      %v6960 = vld [vmem:[%s3 + $0x30] sm:$0xf]
      %v6961 = vld [vmem:[%s3 + $0x34] sm:$0xf]
      %v6962 = vld [vmem:[%s3 + $0x38] sm:$0xf]
      %v6963 = vld [vmem:[%s3 + $0x3c] sm:$0xf]
      %v6964 = vld [vmem:[%s3 + $0x40] sm:$0xf]
      %v6965 = vld [vmem:[%s3 + $0x44] sm:$0xf]
      %v6966 = vld [vmem:[%s3 + $0x48] sm:$0xf]
      %v6967 = vld [vmem:[%s3 + $0x4c] sm:$0xf]
      %v6968 = vld [vmem:[%s3 + $0x50] sm:$0xf]
      %v6969 = vld [vmem:[%s3 + $0x54] sm:$0xf]
      %v6970 = vld [vmem:[%s3 + $0x58] sm:$0xf]
      %v6971 = vld [vmem:[%s3 + $0x5c] sm:$0xf]
      %v6996 = vunpack.c.l.b16 %v6948
      %v6997 = vunpack.c.l.b16 %v6949
      %v6998 = vunpack.c.l.b16 %v6950
      %v6999 = vunpack.c.l.b16 %v6951
      %v7000 = vunpack.c.l.b16 %v6952
      %v7001 = vunpack.c.l.b16 %v6953
      %v7002 = vunpack.c.l.b16 %v6954
      %v7003 = vunpack.c.l.b16 %v6955
      %v7004 = vunpack.c.l.b16 %v6956
      %v7005 = vunpack.c.l.b16 %v6957
      %v7006 = vunpack.c.l.b16 %v6958
      %v7007 = vunpack.c.l.b16 %v6959
      %v7008 = vunpack.c.l.b16 %v6960
      %v7009 = vunpack.c.l.b16 %v6961
      %v7010 = vunpack.c.l.b16 %v6962
      %v7011 = vunpack.c.l.b16 %v6963
      %v7012 = vunpack.c.l.b16 %v6964
      %v7013 = vunpack.c.l.b16 %v6965
      %v7014 = vunpack.c.l.b16 %v6966
      %v7015 = vunpack.c.l.b16 %v6967
      %v7016 = vunpack.c.l.b16 %v6968
      %v7017 = vunpack.c.l.b16 %v6969
      %v7018 = vunpack.c.l.b16 %v6970
      %v7019 = vunpack.c.l.b16 %v6971
      %v7020 = vpack.c.b16 %v6997, %v6996
      %v7021 = vpack.c.b16 %v6999, %v6998
      %v7022 = vpack.c.b16 %v7001, %v7000
      %v7023 = vpack.c.b16 %v7003, %v7002
      %v7024 = vpack.c.b16 %v7005, %v7004
      %v7025 = vpack.c.b16 %v7007, %v7006
      %v7026 = vpack.c.b16 %v7009, %v7008
      %v7027 = vpack.c.b16 %v7011, %v7010
      %v7028 = vpack.c.b16 %v7013, %v7012
      %v7029 = vpack.c.b16 %v7015, %v7014
      %v7030 = vpack.c.b16 %v7017, %v7016
      %v7031 = vpack.c.b16 %v7019, %v7018
      %v7045 = vsel %vm401, %v6822, 0
      %v7048 = vsel %vm401, %v6825, 0
      %v7051 = vsel %vm401, %v6828, 0
      %v7054 = vsel %vm401, %v6831, 0
      %v7057 = vsel %vm401, %v6834, 0
      %v7060 = vsel %vm401, %v6837, 0
      %v7063 = vsel %vm401, %v6840, 0
      %v7066 = vsel %vm401, %v6843, 0
      %v7069 = vsel %vm401, %v6846, 0
      %v7072 = vsel %vm401, %v6849, 0
      %v7075 = vsel %vm401, %v6852, 0
      %v7078 = vsel %vm401, %v6855, 0
      %v7081 = vsel %vm401, %v6858, 0
      %v7084 = vsel %vm401, %v6861, 0
      %v7087 = vsel %vm401, %v6864, 0
      %v7090 = vsel %vm401, %v6867, 0
      %7092 = vmatprep.subr.bf16.mxu0 0
      %7093 = vmatpush1.bf16.msra.mxu0 %v7020
      %7094 = vmatprep.subr.bf16.mxu0 0
      %7095 = vmatpush1.bf16.msra.mxu0 %v7021
      %7096 = vmatprep.subr.bf16.mxu0 0
      %7097 = vmatpush1.bf16.msra.mxu0 %v7022
      %7098 = vmatprep.subr.bf16.mxu0 0
      %7099 = vmatpush1.bf16.msra.mxu0 %v7023
      %7100 = vmatprep.subr.bf16.mxu0 0
      %7101 = vmatpush1.bf16.msra.mxu0 %v7024
      %7102 = vmatprep.subr.bf16.mxu0 0
      %7103 = vmatpush1.bf16.msra.mxu0 %v7025
      %7104 = vmatprep.subr.bf16.mxu0 0
      %7105 = vmatpush1.bf16.msra.mxu0 %v7026
      %7106 = vmatprep.subr.bf16.mxu0 0
      %7107 = vmatpush1.bf16.msra.mxu0 %v7027
      %7108 = vmatprep.subr.bf16.mxu0 0
      %7109 = vmatpush1.bf16.msra.mxu0 %v7028
      %7110 = vmatprep.subr.bf16.mxu0 0
      %7111 = vmatpush1.bf16.msra.mxu0 %v7029
      %7112 = vmatprep.subr.bf16.mxu0 0
      %7113 = vmatpush1.bf16.msra.mxu0 %v7030
      %7114 = vmatprep.subr.bf16.mxu0 0
      %7115 = vmatpush1.bf16.msra.mxu0 %v7031
      %7116 = vmatprep.subr.bf16.mxu0 0
      %7117 = vmatpush1.bf16.msra.mxu0 0
      %7118 = vmatprep.subr.bf16.mxu0 0
      %7119 = vmatpush1.bf16.msra.mxu0 0
      %7120 = vmatprep.subr.bf16.mxu0 0
      %7121 = vmatpush1.bf16.msra.mxu0 0
      %7122 = vmatprep.subr.bf16.mxu0 0
      %7123 = vmatpush1.bf16.msra.mxu0 0
      %7124 = vmatprep.mubr.bf16.mxu0 %v7045
      %7125 = vmatmul.mubr.bf16.gmra.mrb[0].mxu0 %v6869
      %v7126 = vpop.f32.mrb[0].mxu0
      %v7127 = vadd.f32 0.0, %v7126
      %v7128 = vpop.f32.mrb[0].mxu0
      %v7129 = vpop.f32.mrb[0].mxu0
      %v7130 = vadd.f32 0.0, %v7129
      %v7131 = vpop.f32.mrb[0].mxu0
      %7132 = vmatprep.mubr.bf16.mxu0 %v7048
      %7133 = vmatmul.mubr.bf16.gmra.mrb[0].mxu0 %v6872
      %v7134 = vpop.f32.mrb[0].mxu0
      %v7135 = vadd.f32 0.0, %v7134
      %v7136 = vpop.f32.mrb[0].mxu0
      %v7137 = vpop.f32.mrb[0].mxu0
      %v7138 = vadd.f32 0.0, %v7137
      %v7139 = vpop.f32.mrb[0].mxu0
      %7140 = vmatprep.mubr.bf16.mxu0 %v7051
      %7141 = vmatmul.mubr.bf16.gmra.mrb[0].mxu0 %v6875
      %v7142 = vpop.f32.mrb[0].mxu0
      %v7143 = vadd.f32 0.0, %v7142
      %v7144 = vpop.f32.mrb[0].mxu0
      %v7145 = vpop.f32.mrb[0].mxu0
      %v7146 = vadd.f32 0.0, %v7145
      %v7147 = vpop.f32.mrb[0].mxu0
      %7148 = vmatprep.mubr.bf16.mxu0 %v7054
      %7149 = vmatmul.mubr.bf16.gmra.mrb[0].mxu0 %v6878
      %v7150 = vpop.f32.mrb[0].mxu0
      %v7151 = vadd.f32 0.0, %v7150
      %v7152 = vpop.f32.mrb[0].mxu0
      %v7153 = vpop.f32.mrb[0].mxu0
      %v7154 = vadd.f32 0.0, %v7153
      %v7155 = vpop.f32.mrb[0].mxu0
      %7156 = vmatprep.mubr.bf16.mxu0 %v7057
      %7157 = vmatmul.mubr.bf16.gmra.mrb[0].mxu0 %v6881
      %v7158 = vpop.f32.mrb[0].mxu0
      %v7159 = vadd.f32 0.0, %v7158
      %v7160 = vpop.f32.mrb[0].mxu0
      %v7161 = vpop.f32.mrb[0].mxu0
      %v7162 = vadd.f32 0.0, %v7161
      %v7163 = vpop.f32.mrb[0].mxu0
      %7164 = vmatprep.mubr.bf16.mxu0 %v7060
      %7165 = vmatmul.mubr.bf16.gmra.mrb[0].mxu0 %v6884
      %v7166 = vpop.f32.mrb[0].mxu0
      %v7167 = vadd.f32 0.0, %v7166
      %v7168 = vpop.f32.mrb[0].mxu0
      %v7169 = vpop.f32.mrb[0].mxu0
      %v7170 = vadd.f32 0.0, %v7169
      %v7171 = vpop.f32.mrb[0].mxu0
      %7172 = vmatprep.mubr.bf16.mxu0 %v7063
      %7173 = vmatmul.mubr.bf16.gmra.mrb[0].mxu0 %v6887
      %v7174 = vpop.f32.mrb[0].mxu0
      %v7175 = vadd.f32 0.0, %v7174
      %v7176 = vpop.f32.mrb[0].mxu0
      %v7177 = vpop.f32.mrb[0].mxu0
      %v7178 = vadd.f32 0.0, %v7177
      %v7179 = vpop.f32.mrb[0].mxu0
      %7180 = vmatprep.mubr.bf16.mxu0 %v7066
      %7181 = vmatmul.mubr.bf16.gmra.mrb[0].mxu0 %v6890
      %v7182 = vpop.f32.mrb[0].mxu0
      %v7183 = vadd.f32 0.0, %v7182
      %v7184 = vpop.f32.mrb[0].mxu0
      %v7185 = vpop.f32.mrb[0].mxu0
      %v7186 = vadd.f32 0.0, %v7185
      %v7187 = vpop.f32.mrb[0].mxu0
      %7188 = vmatprep.mubr.bf16.mxu0 %v7069
      %7189 = vmatmul.mubr.bf16.gmra.mrb[0].mxu0 %v6893
      %v7190 = vpop.f32.mrb[0].mxu0
      %v7191 = vadd.f32 0.0, %v7190
      %v7192 = vpop.f32.mrb[0].mxu0
      %v7193 = vpop.f32.mrb[0].mxu0
      %v7194 = vadd.f32 0.0, %v7193
      %v7195 = vpop.f32.mrb[0].mxu0
      %7196 = vmatprep.mubr.bf16.mxu0 %v7072
      %7197 = vmatmul.mubr.bf16.gmra.mrb[0].mxu0 %v6896
      %v7198 = vpop.f32.mrb[0].mxu0
      %v7199 = vadd.f32 0.0, %v7198
      %v7200 = vpop.f32.mrb[0].mxu0
      %v7201 = vpop.f32.mrb[0].mxu0
      %v7202 = vadd.f32 0.0, %v7201
      %v7203 = vpop.f32.mrb[0].mxu0
      %7204 = vmatprep.mubr.bf16.mxu0 %v7075
      %7205 = vmatmul.mubr.bf16.gmra.mrb[0].mxu0 %v6899
      %v7206 = vpop.f32.mrb[0].mxu0
      %v7207 = vadd.f32 0.0, %v7206
      %v7208 = vpop.f32.mrb[0].mxu0
      %v7209 = vpop.f32.mrb[0].mxu0
      %v7210 = vadd.f32 0.0, %v7209
      %v7211 = vpop.f32.mrb[0].mxu0
      %7212 = vmatprep.mubr.bf16.mxu0 %v7078
      %7213 = vmatmul.mubr.bf16.gmra.mrb[0].mxu0 %v6902
      %v7214 = vpop.f32.mrb[0].mxu0
      %v7215 = vadd.f32 0.0, %v7214
      %v7216 = vpop.f32.mrb[0].mxu0
      %v7217 = vpop.f32.mrb[0].mxu0
      %v7218 = vadd.f32 0.0, %v7217
      %v7219 = vpop.f32.mrb[0].mxu0
      %7220 = vmatprep.mubr.bf16.mxu0 %v7081
      %7221 = vmatmul.mubr.bf16.gmra.mrb[0].mxu0 %v6905
      %v7222 = vpop.f32.mrb[0].mxu0
      %v7223 = vadd.f32 0.0, %v7222
      %v7224 = vpop.f32.mrb[0].mxu0
      %v7225 = vpop.f32.mrb[0].mxu0
      %v7226 = vadd.f32 0.0, %v7225
      %v7227 = vpop.f32.mrb[0].mxu0
      %7228 = vmatprep.mubr.bf16.mxu0 %v7084
      %7229 = vmatmul.mubr.bf16.gmra.mrb[0].mxu0 %v6908
      %v7230 = vpop.f32.mrb[0].mxu0
      %v7231 = vadd.f32 0.0, %v7230
      %v7232 = vpop.f32.mrb[0].mxu0
      %v7233 = vpop.f32.mrb[0].mxu0
      %v7234 = vadd.f32 0.0, %v7233
      %v7235 = vpop.f32.mrb[0].mxu0
      %7236 = vmatprep.mubr.bf16.mxu0 %v7087
      %7237 = vmatmul.mubr.bf16.gmra.mrb[0].mxu0 %v6911
      %v7238 = vpop.f32.mrb[0].mxu0
      %v7239 = vadd.f32 0.0, %v7238
      %v7240 = vpop.f32.mrb[0].mxu0
      %v7241 = vpop.f32.mrb[0].mxu0
      %v7242 = vadd.f32 0.0, %v7241
      %v7243 = vpop.f32.mrb[0].mxu0
      %7244 = vmatprep.mubr.bf16.mxu0 %v7090
      %7245 = vmatmul.mubr.bf16.gmra.mrb[0].mxu0 %v6914
      %v7246 = vpop.f32.mrb[0].mxu0
      %v7247 = vadd.f32 0.0, %v7246
      %v7248 = vpop.f32.mrb[0].mxu0
      %v7249 = vpop.f32.mrb[0].mxu0
      %v7250 = vadd.f32 0.0, %v7249
      %v7251 = vpop.f32.mrb[0].mxu0
      %7252 = vdwg.mxu0
      %v7253 = vadd.f32 %v6916, %v7127
      %v7254 = vadd.f32 %v6917, %v7130
      %v7255 = vadd.f32 %v6918, %v7135
      %v7256 = vadd.f32 %v6919, %v7138
      %v7257 = vadd.f32 %v6920, %v7143
      %v7258 = vadd.f32 %v6921, %v7146
      %v7259 = vadd.f32 %v6922, %v7151
      %v7260 = vadd.f32 %v6923, %v7154
      %v7261 = vadd.f32 %v6924, %v7159
      %v7262 = vadd.f32 %v6925, %v7162
      %v7263 = vadd.f32 %v6926, %v7167
      %v7264 = vadd.f32 %v6927, %v7170
      %v7265 = vadd.f32 %v6928, %v7175
      %v7266 = vadd.f32 %v6929, %v7178
      %v7267 = vadd.f32 %v6930, %v7183
      %v7268 = vadd.f32 %v6931, %v7186
      %v7269 = vadd.f32 %v6932, %v7191
      %v7270 = vadd.f32 %v6933, %v7194
      %v7271 = vadd.f32 %v6934, %v7199
      %v7272 = vadd.f32 %v6935, %v7202
      %v7273 = vadd.f32 %v6936, %v7207
      %v7274 = vadd.f32 %v6937, %v7210
      %v7275 = vadd.f32 %v6938, %v7215
      %v7276 = vadd.f32 %v6939, %v7218
      %v7277 = vadd.f32 %v6940, %v7223
      %v7278 = vadd.f32 %v6941, %v7226
      %v7279 = vadd.f32 %v6942, %v7231
      %v7280 = vadd.f32 %v6943, %v7234
      %v7281 = vadd.f32 %v6944, %v7239
      %v7282 = vadd.f32 %v6945, %v7242
      %v7283 = vadd.f32 %v6946, %v7247
      %v7284 = vadd.f32 %v6947, %v7250
      %7285 = vst.msk [vmem:[#allocation2] sm:$0xff] %vm401, %v7253
      %7286 = vst.msk [vmem:[#allocation2 + $0x8] sm:$0xff] %vm401, %v7254
      %7287 = vst.msk [vmem:[#allocation2 + $0x10] sm:$0xff] %vm401, %v7255
      %7288 = vst.msk [vmem:[#allocation2 + $0x18] sm:$0xff] %vm401, %v7256
      %7289 = vst.msk [vmem:[#allocation2 + $0x20] sm:$0xff] %vm401, %v7257
      %7290 = vst.msk [vmem:[#allocation2 + $0x28] sm:$0xff] %vm401, %v7258
      %7291 = vst.msk [vmem:[#allocation2 + $0x30] sm:$0xff] %vm401, %v7259
      %7292 = vst.msk [vmem:[#allocation2 + $0x38] sm:$0xff] %vm401, %v7260
      %7293 = vst.msk [vmem:[#allocation2 + $0x40] sm:$0xff] %vm401, %v7261
      %7294 = vst.msk [vmem:[#allocation2 + $0x48] sm:$0xff] %vm401, %v7262
      %7295 = vst.msk [vmem:[#allocation2 + $0x50] sm:$0xff] %vm401, %v7263
      %7296 = vst.msk [vmem:[#allocation2 + $0x58] sm:$0xff] %vm401, %v7264
      %7297 = vst.msk [vmem:[#allocation2 + $0x60] sm:$0xff] %vm401, %v7265
      %7298 = vst.msk [vmem:[#allocation2 + $0x68] sm:$0xff] %vm401, %v7266
      %7299 = vst.msk [vmem:[#allocation2 + $0x70] sm:$0xff] %vm401, %v7267
      %7300 = vst.msk [vmem:[#allocation2 + $0x78] sm:$0xff] %vm401, %v7268
      %7301 = vst.msk [vmem:[#allocation2 + $0x80] sm:$0xff] %vm401, %v7269
      %7302 = vst.msk [vmem:[#allocation2 + $0x88] sm:$0xff] %vm401, %v7270
      %7303 = vst.msk [vmem:[#allocation2 + $0x90] sm:$0xff] %vm401, %v7271
      %7304 = vst.msk [vmem:[#allocation2 + $0x98] sm:$0xff] %vm401, %v7272
      %7305 = vst.msk [vmem:[#allocation2 + $0xa0] sm:$0xff] %vm401, %v7273
      %7306 = vst.msk [vmem:[#allocation2 + $0xa8] sm:$0xff] %vm401, %v7274
      %7307 = vst.msk [vmem:[#allocation2 + $0xb0] sm:$0xff] %vm401, %v7275
      %7308 = vst.msk [vmem:[#allocation2 + $0xb8] sm:$0xff] %vm401, %v7276
      %7309 = vst.msk [vmem:[#allocation2 + $0xc0] sm:$0xff] %vm401, %v7277
      %7310 = vst.msk [vmem:[#allocation2 + $0xc8] sm:$0xff] %vm401, %v7278
      %7311 = vst.msk [vmem:[#allocation2 + $0xd0] sm:$0xff] %vm401, %v7279
      %7312 = vst.msk [vmem:[#allocation2 + $0xd8] sm:$0xff] %vm401, %v7280
      %7313 = vst.msk [vmem:[#allocation2 + $0xe0] sm:$0xff] %vm401, %v7281
      %7314 = vst.msk [vmem:[#allocation2 + $0xe8] sm:$0xff] %vm401, %v7282
      %7315 = vst.msk [vmem:[#allocation2 + $0xf0] sm:$0xff] %vm401, %v7283
      %7316 = vst.msk [vmem:[#allocation2 + $0xf8] sm:$0xff] %vm401, %v7284
      %v7317 = vld [vmem:[%s6260] sm:$0xf]
      %v7318 = vld [vmem:[%s6260 + $0x4] sm:$0xf]
      %v7319 = vld [vmem:[%s6260 + $0x8] sm:$0x1]
      %v7320 = vld [vmem:[%s6260 + $0xc] sm:$0xf]
      %v7321 = vld [vmem:[%s6260 + $0x10] sm:$0xf]
      %v7322 = vld [vmem:[%s6260 + $0x14] sm:$0x1]
      %v7323 = vld [vmem:[%s6260 + $0x18] sm:$0xf]
      %v7324 = vld [vmem:[%s6260 + $0x1c] sm:$0xf]
      %v7325 = vld [vmem:[%s6260 + $0x20] sm:$0x1]
      %v7326 = vld [vmem:[%s6260 + $0x24] sm:$0xf]
      %v7327 = vld [vmem:[%s6260 + $0x28] sm:$0xf]
      %v7328 = vld [vmem:[%s6260 + $0x2c] sm:$0x1]
      %v7329 = vld [vmem:[%s6260 + $0x30] sm:$0xf]
      %v7330 = vld [vmem:[%s6260 + $0x34] sm:$0xf]
      %v7331 = vld [vmem:[%s6260 + $0x38] sm:$0x1]
      %v7332 = vld [vmem:[%s6260 + $0x3c] sm:$0xf]
      %v7333 = vld [vmem:[%s6260 + $0x40] sm:$0xf]
      %v7334 = vld [vmem:[%s6260 + $0x44] sm:$0x1]
      %v7335 = vld [vmem:[%s6260 + $0x48] sm:$0xf]
      %v7336 = vld [vmem:[%s6260 + $0x4c] sm:$0xf]
      %v7337 = vld [vmem:[%s6260 + $0x50] sm:$0x1]
      %v7338 = vld [vmem:[%s6260 + $0x54] sm:$0xf]
      %v7339 = vld [vmem:[%s6260 + $0x58] sm:$0xf]
      %v7340 = vld [vmem:[%s6260 + $0x5c] sm:$0x1]
      %v7341 = vld [vmem:[%s6260 + $0x60] sm:$0xf]
      %v7342 = vld [vmem:[%s6260 + $0x64] sm:$0xf]
      %v7343 = vld [vmem:[%s6260 + $0x68] sm:$0x1]
      %v7344 = vld [vmem:[%s6260 + $0x6c] sm:$0xf]
      %v7345 = vld [vmem:[%s6260 + $0x70] sm:$0xf]
      %v7346 = vld [vmem:[%s6260 + $0x74] sm:$0x1]
      %v7347 = vld [vmem:[%s6260 + $0x78] sm:$0xf]
      %v7348 = vld [vmem:[%s6260 + $0x7c] sm:$0xf]
      %v7349 = vld [vmem:[%s6260 + $0x80] sm:$0x1]
      %v7350 = vld [vmem:[%s6260 + $0x84] sm:$0xf]
      %v7351 = vld [vmem:[%s6260 + $0x88] sm:$0xf]
      %v7352 = vld [vmem:[%s6260 + $0x8c] sm:$0x1]
      %v7353 = vld [vmem:[%s6260 + $0x90] sm:$0xf]
      %v7354 = vld [vmem:[%s6260 + $0x94] sm:$0xf]
      %v7355 = vld [vmem:[%s6260 + $0x98] sm:$0x1]
      %v7356 = vld [vmem:[%s6260 + $0x9c] sm:$0xf]
      %v7357 = vld [vmem:[%s6260 + $0xa0] sm:$0xf]
      %v7358 = vld [vmem:[%s6260 + $0xa4] sm:$0x1]
      %v7359 = vld [vmem:[%s6260 + $0xa8] sm:$0xf]
      %v7360 = vld [vmem:[%s6260 + $0xac] sm:$0xf]
      %v7361 = vld [vmem:[%s6260 + $0xb0] sm:$0x1]
      %v7362 = vld [vmem:[%s6260 + $0xb4] sm:$0xf]
      %v7363 = vld [vmem:[%s6260 + $0xb8] sm:$0xf]
      %v7364 = vld [vmem:[%s6260 + $0xbc] sm:$0x1]
      %v7397 = vunpack.c.l.b16 %v7317
      %v7398 = vunpack.c.l.b16 %v7318
      %v7399 = vunpack.c.l.b16 %v7320
      %v7400 = vunpack.c.l.b16 %v7321
      %v7401 = vunpack.c.l.b16 %v7323
      %v7402 = vunpack.c.l.b16 %v7324
      %v7403 = vunpack.c.l.b16 %v7326
      %v7404 = vunpack.c.l.b16 %v7327
      %v7405 = vunpack.c.l.b16 %v7329
      %v7406 = vunpack.c.l.b16 %v7330
      %v7407 = vunpack.c.l.b16 %v7332
      %v7408 = vunpack.c.l.b16 %v7333
      %v7409 = vunpack.c.l.b16 %v7335
      %v7410 = vunpack.c.l.b16 %v7336
      %v7411 = vunpack.c.l.b16 %v7338
      %v7412 = vunpack.c.l.b16 %v7339
      %v7413 = vunpack.c.l.b16 %v7341
      %v7414 = vunpack.c.l.b16 %v7342
      %v7415 = vunpack.c.l.b16 %v7344
      %v7416 = vunpack.c.l.b16 %v7345
      %v7417 = vunpack.c.l.b16 %v7347
      %v7418 = vunpack.c.l.b16 %v7348
      %v7419 = vunpack.c.l.b16 %v7350
      %v7420 = vunpack.c.l.b16 %v7351
      %v7421 = vunpack.c.l.b16 %v7353
      %v7422 = vunpack.c.l.b16 %v7354
      %v7423 = vunpack.c.l.b16 %v7356
      %v7424 = vunpack.c.l.b16 %v7357
      %v7425 = vunpack.c.l.b16 %v7359
      %v7426 = vunpack.c.l.b16 %v7360
      %v7427 = vunpack.c.l.b16 %v7362
      %v7428 = vunpack.c.l.b16 %v7363
      %v7429 = vpack.c.b16 %v7398, %v7397
      %v7430 = vpack.c.b16 %v7400, %v7399
      %v7431 = vpack.c.b16 %v7402, %v7401
      %v7432 = vpack.c.b16 %v7404, %v7403
      %v7433 = vpack.c.b16 %v7406, %v7405
      %v7434 = vpack.c.b16 %v7408, %v7407
      %v7435 = vpack.c.b16 %v7410, %v7409
      %v7436 = vpack.c.b16 %v7412, %v7411
      %v7437 = vpack.c.b16 %v7414, %v7413
      %v7438 = vpack.c.b16 %v7416, %v7415
      %v7439 = vpack.c.b16 %v7418, %v7417
      %v7440 = vpack.c.b16 %v7420, %v7419
      %v7441 = vpack.c.b16 %v7422, %v7421
      %v7442 = vpack.c.b16 %v7424, %v7423
      %v7443 = vpack.c.b16 %v7426, %v7425
      %v7444 = vpack.c.b16 %v7428, %v7427
      %v7461 = vunpack.c.l.b16 %v7319
      %v7462 = vunpack.c.l.b16 %v7322
      %v7463 = vunpack.c.l.b16 %v7325
      %v7464 = vunpack.c.l.b16 %v7328
      %v7465 = vunpack.c.l.b16 %v7331
      %v7466 = vunpack.c.l.b16 %v7334
      %v7467 = vunpack.c.l.b16 %v7337
      %v7468 = vunpack.c.l.b16 %v7340
      %v7469 = vunpack.c.l.b16 %v7343
      %v7470 = vunpack.c.l.b16 %v7346
      %v7471 = vunpack.c.l.b16 %v7349
      %v7472 = vunpack.c.l.b16 %v7352
      %v7473 = vunpack.c.l.b16 %v7355
      %v7474 = vunpack.c.l.b16 %v7358
      %v7475 = vunpack.c.l.b16 %v7361
      %v7476 = vunpack.c.l.b16 %v7364
      %v7477 = vpack.c.b16 %v7461, %v7461
      %v7478 = vpack.c.b16 %v7462, %v7462
      %v7479 = vpack.c.b16 %v7463, %v7463
      %v7480 = vpack.c.b16 %v7464, %v7464
      %v7481 = vpack.c.b16 %v7465, %v7465
      %v7482 = vpack.c.b16 %v7466, %v7466
      %v7483 = vpack.c.b16 %v7467, %v7467
      %v7484 = vpack.c.b16 %v7468, %v7468
      %v7485 = vpack.c.b16 %v7469, %v7469
      %v7486 = vpack.c.b16 %v7470, %v7470
      %v7487 = vpack.c.b16 %v7471, %v7471
      %v7488 = vpack.c.b16 %v7472, %v7472
      %v7489 = vpack.c.b16 %v7473, %v7473
      %v7490 = vpack.c.b16 %v7474, %v7474
      %v7491 = vpack.c.b16 %v7475, %v7475
      %v7492 = vpack.c.b16 %v7476, %v7476
      %v7494 = vshrl.u32 %v7429, 16
      %v7496 = vshll.u32 %v7429, 16
      %v7498 = vrot.slane %v7496, 1
      %v7499 = vor.u32 %v7494, %v7498
      %v7501 = vshll.u32 %v7477, 16
      %v7503 = vrot.slane %v7501, 1
      %v7504 = vsel %vm6594, %v7499, %v7503
      %v7506 = vshrl.u32 %v7430, 16
      %v7508 = vshll.u32 %v7430, 16
      %v7510 = vrot.slane %v7508, 1
      %v7511 = vor.u32 %v7506, %v7510
      %v7513 = vshll.u32 %v7478, 16
      %v7515 = vrot.slane %v7513, 1
      %v7516 = vsel %vm6594, %v7511, %v7515
      %v7518 = vshrl.u32 %v7431, 16
      %v7520 = vshll.u32 %v7431, 16
      %v7522 = vrot.slane %v7520, 1
      %v7523 = vor.u32 %v7518, %v7522
      %v7525 = vshll.u32 %v7479, 16
      %v7527 = vrot.slane %v7525, 1
      %v7528 = vsel %vm6594, %v7523, %v7527
      %v7530 = vshrl.u32 %v7432, 16
      %v7532 = vshll.u32 %v7432, 16
      %v7534 = vrot.slane %v7532, 1
      %v7535 = vor.u32 %v7530, %v7534
      %v7537 = vshll.u32 %v7480, 16
      %v7539 = vrot.slane %v7537, 1
      %v7540 = vsel %vm6594, %v7535, %v7539
      %v7542 = vshrl.u32 %v7433, 16
      %v7544 = vshll.u32 %v7433, 16
      %v7546 = vrot.slane %v7544, 1
      %v7547 = vor.u32 %v7542, %v7546
      %v7549 = vshll.u32 %v7481, 16
      %v7551 = vrot.slane %v7549, 1
      %v7552 = vsel %vm6594, %v7547, %v7551
      %v7554 = vshrl.u32 %v7434, 16
      %v7556 = vshll.u32 %v7434, 16
      %v7558 = vrot.slane %v7556, 1
      %v7559 = vor.u32 %v7554, %v7558
      %v7561 = vshll.u32 %v7482, 16
      %v7563 = vrot.slane %v7561, 1
      %v7564 = vsel %vm6594, %v7559, %v7563
      %v7566 = vshrl.u32 %v7435, 16
      %v7568 = vshll.u32 %v7435, 16
      %v7570 = vrot.slane %v7568, 1
      %v7571 = vor.u32 %v7566, %v7570
      %v7573 = vshll.u32 %v7483, 16
      %v7575 = vrot.slane %v7573, 1
      %v7576 = vsel %vm6594, %v7571, %v7575
      %v7578 = vshrl.u32 %v7436, 16
      %v7580 = vshll.u32 %v7436, 16
      %v7582 = vrot.slane %v7580, 1
      %v7583 = vor.u32 %v7578, %v7582
      %v7585 = vshll.u32 %v7484, 16
      %v7587 = vrot.slane %v7585, 1
      %v7588 = vsel %vm6594, %v7583, %v7587
      %v7590 = vshrl.u32 %v7437, 16
      %v7592 = vshll.u32 %v7437, 16
      %v7594 = vrot.slane %v7592, 1
      %v7595 = vor.u32 %v7590, %v7594
      %v7597 = vshll.u32 %v7485, 16
      %v7599 = vrot.slane %v7597, 1
      %v7600 = vsel %vm6594, %v7595, %v7599
      %v7602 = vshrl.u32 %v7438, 16
      %v7604 = vshll.u32 %v7438, 16
      %v7606 = vrot.slane %v7604, 1
      %v7607 = vor.u32 %v7602, %v7606
      %v7609 = vshll.u32 %v7486, 16
      %v7611 = vrot.slane %v7609, 1
      %v7612 = vsel %vm6594, %v7607, %v7611
      %v7614 = vshrl.u32 %v7439, 16
      %v7616 = vshll.u32 %v7439, 16
      %v7618 = vrot.slane %v7616, 1
      %v7619 = vor.u32 %v7614, %v7618
      %v7621 = vshll.u32 %v7487, 16
      %v7623 = vrot.slane %v7621, 1
      %v7624 = vsel %vm6594, %v7619, %v7623
      %v7626 = vshrl.u32 %v7440, 16
      %v7628 = vshll.u32 %v7440, 16
      %v7630 = vrot.slane %v7628, 1
      %v7631 = vor.u32 %v7626, %v7630
      %v7633 = vshll.u32 %v7488, 16
      %v7635 = vrot.slane %v7633, 1
      %v7636 = vsel %vm6594, %v7631, %v7635
      %v7638 = vshrl.u32 %v7441, 16
      %v7640 = vshll.u32 %v7441, 16
      %v7642 = vrot.slane %v7640, 1
      %v7643 = vor.u32 %v7638, %v7642
      %v7645 = vshll.u32 %v7489, 16
      %v7647 = vrot.slane %v7645, 1
      %v7648 = vsel %vm6594, %v7643, %v7647
      %v7650 = vshrl.u32 %v7442, 16
      %v7652 = vshll.u32 %v7442, 16
      %v7654 = vrot.slane %v7652, 1
      %v7655 = vor.u32 %v7650, %v7654
      %v7657 = vshll.u32 %v7490, 16
      %v7659 = vrot.slane %v7657, 1
      %v7660 = vsel %vm6594, %v7655, %v7659
      %v7662 = vshrl.u32 %v7443, 16
      %v7664 = vshll.u32 %v7443, 16
      %v7666 = vrot.slane %v7664, 1
      %v7667 = vor.u32 %v7662, %v7666
      %v7669 = vshll.u32 %v7491, 16
      %v7671 = vrot.slane %v7669, 1
      %v7672 = vsel %vm6594, %v7667, %v7671
      %v7674 = vshrl.u32 %v7444, 16
      %v7676 = vshll.u32 %v7444, 16
      %v7678 = vrot.slane %v7676, 1
      %v7679 = vor.u32 %v7674, %v7678
      %v7681 = vshll.u32 %v7492, 16
      %v7683 = vrot.slane %v7681, 1
      %v7684 = vsel %vm6594, %v7679, %v7683
      %7685 = vrot.lane.b32.xlu0 %v7504, 64
      %v7686 = vpop.permute.xlu0 %7685
      %7687 = vrot.lane.b32.xlu0 %v7516, 64
      %v7688 = vpop.permute.xlu0 %7687
      %7689 = vrot.lane.b32.xlu0 %v7528, 64
      %v7690 = vpop.permute.xlu0 %7689
      %7691 = vrot.lane.b32.xlu0 %v7540, 64
      %v7692 = vpop.permute.xlu0 %7691
      %7693 = vrot.lane.b32.xlu0 %v7552, 64
      %v7694 = vpop.permute.xlu0 %7693
      %7695 = vrot.lane.b32.xlu0 %v7564, 64
      %v7696 = vpop.permute.xlu0 %7695
      %7697 = vrot.lane.b32.xlu0 %v7576, 64
      %v7698 = vpop.permute.xlu0 %7697
      %7699 = vrot.lane.b32.xlu0 %v7588, 64
      %v7700 = vpop.permute.xlu0 %7699
      %7701 = vrot.lane.b32.xlu0 %v7600, 64
      %v7702 = vpop.permute.xlu0 %7701
      %7703 = vrot.lane.b32.xlu0 %v7612, 64
      %v7704 = vpop.permute.xlu0 %7703
      %7705 = vrot.lane.b32.xlu0 %v7624, 64
      %v7706 = vpop.permute.xlu0 %7705
      %7707 = vrot.lane.b32.xlu0 %v7636, 64
      %v7708 = vpop.permute.xlu0 %7707
      %7709 = vrot.lane.b32.xlu0 %v7648, 64
      %v7710 = vpop.permute.xlu0 %7709
      %7711 = vrot.lane.b32.xlu0 %v7660, 64
      %v7712 = vpop.permute.xlu0 %7711
      %7713 = vrot.lane.b32.xlu0 %v7672, 64
      %v7714 = vpop.permute.xlu0 %7713
      %7715 = vrot.lane.b32.xlu0 %v7684, 64
      %v7716 = vpop.permute.xlu0 %7715
      %v7717 = vrot.slane %v7429, 1
      %v7718 = vrot.slane %v7477, 1
      %v7719 = vsel %vm6819, %v7717, %v7718
      %v7720 = vrot.slane %v7430, 1
      %v7721 = vrot.slane %v7478, 1
      %v7722 = vsel %vm6819, %v7720, %v7721
      %v7723 = vrot.slane %v7431, 1
      %v7724 = vrot.slane %v7479, 1
      %v7725 = vsel %vm6819, %v7723, %v7724
      %v7726 = vrot.slane %v7432, 1
      %v7727 = vrot.slane %v7480, 1
      %v7728 = vsel %vm6819, %v7726, %v7727
      %v7729 = vrot.slane %v7433, 1
      %v7730 = vrot.slane %v7481, 1
      %v7731 = vsel %vm6819, %v7729, %v7730
      %v7732 = vrot.slane %v7434, 1
      %v7733 = vrot.slane %v7482, 1
      %v7734 = vsel %vm6819, %v7732, %v7733
      %v7735 = vrot.slane %v7435, 1
      %v7736 = vrot.slane %v7483, 1
      %v7737 = vsel %vm6819, %v7735, %v7736
      %v7738 = vrot.slane %v7436, 1
      %v7739 = vrot.slane %v7484, 1
      %v7740 = vsel %vm6819, %v7738, %v7739
      %v7741 = vrot.slane %v7437, 1
      %v7742 = vrot.slane %v7485, 1
      %v7743 = vsel %vm6819, %v7741, %v7742
      %v7744 = vrot.slane %v7438, 1
      %v7745 = vrot.slane %v7486, 1
      %v7746 = vsel %vm6819, %v7744, %v7745
      %v7747 = vrot.slane %v7439, 1
      %v7748 = vrot.slane %v7487, 1
      %v7749 = vsel %vm6819, %v7747, %v7748
      %v7750 = vrot.slane %v7440, 1
      %v7751 = vrot.slane %v7488, 1
      %v7752 = vsel %vm6819, %v7750, %v7751
      %v7753 = vrot.slane %v7441, 1
      %v7754 = vrot.slane %v7489, 1
      %v7755 = vsel %vm6819, %v7753, %v7754
      %v7756 = vrot.slane %v7442, 1
      %v7757 = vrot.slane %v7490, 1
      %v7758 = vsel %vm6819, %v7756, %v7757
      %v7759 = vrot.slane %v7443, 1
      %v7760 = vrot.slane %v7491, 1
      %v7761 = vsel %vm6819, %v7759, %v7760
      %v7762 = vrot.slane %v7444, 1
      %v7763 = vrot.slane %v7492, 1
      %v7764 = vsel %vm6819, %v7762, %v7763
      %v7766 = vsel %vm401, %v7429, %v7686
      %v7769 = vsel %vm401, %v7430, %v7688
      %v7772 = vsel %vm401, %v7431, %v7690
      %v7775 = vsel %vm401, %v7432, %v7692
      %v7778 = vsel %vm401, %v7433, %v7694
      %v7781 = vsel %vm401, %v7434, %v7696
      %v7784 = vsel %vm401, %v7435, %v7698
      %v7787 = vsel %vm401, %v7436, %v7700
      %v7790 = vsel %vm401, %v7437, %v7702
      %v7793 = vsel %vm401, %v7438, %v7704
      %v7796 = vsel %vm401, %v7439, %v7706
      %v7799 = vsel %vm401, %v7440, %v7708
      %v7802 = vsel %vm401, %v7441, %v7710
      %v7805 = vsel %vm401, %v7442, %v7712
      %v7808 = vsel %vm401, %v7443, %v7714
      %v7811 = vsel %vm401, %v7444, %v7716
      %v7813 = vld [vmem:[#allocation2] sm:$0xff]
      %v7814 = vld [vmem:[#allocation2 + $0x8] sm:$0xff]
      %v7815 = vld [vmem:[#allocation2 + $0x10] sm:$0xff]
      %v7816 = vld [vmem:[#allocation2 + $0x18] sm:$0xff]
      %v7817 = vld [vmem:[#allocation2 + $0x20] sm:$0xff]
      %v7818 = vld [vmem:[#allocation2 + $0x28] sm:$0xff]
      %v7819 = vld [vmem:[#allocation2 + $0x30] sm:$0xff]
      %v7820 = vld [vmem:[#allocation2 + $0x38] sm:$0xff]
      %v7821 = vld [vmem:[#allocation2 + $0x40] sm:$0xff]
      %v7822 = vld [vmem:[#allocation2 + $0x48] sm:$0xff]
      %v7823 = vld [vmem:[#allocation2 + $0x50] sm:$0xff]
      %v7824 = vld [vmem:[#allocation2 + $0x58] sm:$0xff]
      %v7825 = vld [vmem:[#allocation2 + $0x60] sm:$0xff]
      %v7826 = vld [vmem:[#allocation2 + $0x68] sm:$0xff]
      %v7827 = vld [vmem:[#allocation2 + $0x70] sm:$0xff]
      %v7828 = vld [vmem:[#allocation2 + $0x78] sm:$0xff]
      %v7829 = vld [vmem:[#allocation2 + $0x80] sm:$0xff]
      %v7830 = vld [vmem:[#allocation2 + $0x88] sm:$0xff]
      %v7831 = vld [vmem:[#allocation2 + $0x90] sm:$0xff]
      %v7832 = vld [vmem:[#allocation2 + $0x98] sm:$0xff]
      %v7833 = vld [vmem:[#allocation2 + $0xa0] sm:$0xff]
      %v7834 = vld [vmem:[#allocation2 + $0xa8] sm:$0xff]
      %v7835 = vld [vmem:[#allocation2 + $0xb0] sm:$0xff]
      %v7836 = vld [vmem:[#allocation2 + $0xb8] sm:$0xff]
      %v7837 = vld [vmem:[#allocation2 + $0xc0] sm:$0xff]
      %v7838 = vld [vmem:[#allocation2 + $0xc8] sm:$0xff]
      %v7839 = vld [vmem:[#allocation2 + $0xd0] sm:$0xff]
      %v7840 = vld [vmem:[#allocation2 + $0xd8] sm:$0xff]
      %v7841 = vld [vmem:[#allocation2 + $0xe0] sm:$0xff]
      %v7842 = vld [vmem:[#allocation2 + $0xe8] sm:$0xff]
      %v7843 = vld [vmem:[#allocation2 + $0xf0] sm:$0xff]
      %v7844 = vld [vmem:[#allocation2 + $0xf8] sm:$0xff]
      %s7845 = scalar_lea.vmem %s3, 96
      %v7846 = vld [vmem:[%s7845] sm:$0xf]
      %v7847 = vld [vmem:[%s7845 + $0x4] sm:$0xf]
      %v7848 = vld [vmem:[%s7845 + $0x8] sm:$0xf]
      %v7849 = vld [vmem:[%s7845 + $0xc] sm:$0xf]
      %v7850 = vld [vmem:[%s7845 + $0x10] sm:$0xf]
      %v7851 = vld [vmem:[%s7845 + $0x14] sm:$0xf]
      %v7852 = vld [vmem:[%s7845 + $0x18] sm:$0xf]
      %v7853 = vld [vmem:[%s7845 + $0x1c] sm:$0xf]
      %v7854 = vld [vmem:[%s7845 + $0x20] sm:$0xf]
      %v7855 = vld [vmem:[%s7845 + $0x24] sm:$0xf]
      %v7856 = vld [vmem:[%s7845 + $0x28] sm:$0xf]
      %v7857 = vld [vmem:[%s7845 + $0x2c] sm:$0xf]
      %v7858 = vld [vmem:[%s7845 + $0x30] sm:$0xf]
      %v7859 = vld [vmem:[%s7845 + $0x34] sm:$0xf]
      %v7860 = vld [vmem:[%s7845 + $0x38] sm:$0xf]
      %v7861 = vld [vmem:[%s7845 + $0x3c] sm:$0xf]
      %v7862 = vld [vmem:[%s7845 + $0x40] sm:$0xf]
      %v7863 = vld [vmem:[%s7845 + $0x44] sm:$0xf]
      %v7864 = vld [vmem:[%s7845 + $0x48] sm:$0xf]
      %v7865 = vld [vmem:[%s7845 + $0x4c] sm:$0xf]
      %v7866 = vld [vmem:[%s7845 + $0x50] sm:$0xf]
      %v7867 = vld [vmem:[%s7845 + $0x54] sm:$0xf]
      %v7868 = vld [vmem:[%s7845 + $0x58] sm:$0xf]
      %v7869 = vld [vmem:[%s7845 + $0x5c] sm:$0xf]
      %v7894 = vunpack.c.l.b16 %v7846
      %v7895 = vunpack.c.l.b16 %v7847
      %v7896 = vunpack.c.l.b16 %v7848
      %v7897 = vunpack.c.l.b16 %v7849
      %v7898 = vunpack.c.l.b16 %v7850
      %v7899 = vunpack.c.l.b16 %v7851
      %v7900 = vunpack.c.l.b16 %v7852
      %v7901 = vunpack.c.l.b16 %v7853
      %v7902 = vunpack.c.l.b16 %v7854
      %v7903 = vunpack.c.l.b16 %v7855
      %v7904 = vunpack.c.l.b16 %v7856
      %v7905 = vunpack.c.l.b16 %v7857
      %v7906 = vunpack.c.l.b16 %v7858
      %v7907 = vunpack.c.l.b16 %v7859
      %v7908 = vunpack.c.l.b16 %v7860
      %v7909 = vunpack.c.l.b16 %v7861
      %v7910 = vunpack.c.l.b16 %v7862
      %v7911 = vunpack.c.l.b16 %v7863
      %v7912 = vunpack.c.l.b16 %v7864
      %v7913 = vunpack.c.l.b16 %v7865
      %v7914 = vunpack.c.l.b16 %v7866
      %v7915 = vunpack.c.l.b16 %v7867
      %v7916 = vunpack.c.l.b16 %v7868
      %v7917 = vunpack.c.l.b16 %v7869
      %v7918 = vpack.c.b16 %v7895, %v7894
      %v7919 = vpack.c.b16 %v7897, %v7896
      %v7920 = vpack.c.b16 %v7899, %v7898
      %v7921 = vpack.c.b16 %v7901, %v7900
      %v7922 = vpack.c.b16 %v7903, %v7902
      %v7923 = vpack.c.b16 %v7905, %v7904
      %v7924 = vpack.c.b16 %v7907, %v7906
      %v7925 = vpack.c.b16 %v7909, %v7908
      %v7926 = vpack.c.b16 %v7911, %v7910
      %v7927 = vpack.c.b16 %v7913, %v7912
      %v7928 = vpack.c.b16 %v7915, %v7914
      %v7929 = vpack.c.b16 %v7917, %v7916
      %v7943 = vsel %vm401, %v7719, 0
      %v7946 = vsel %vm401, %v7722, 0
      %v7949 = vsel %vm401, %v7725, 0
      %v7952 = vsel %vm401, %v7728, 0
      %v7955 = vsel %vm401, %v7731, 0
      %v7958 = vsel %vm401, %v7734, 0
      %v7961 = vsel %vm401, %v7737, 0
      %v7964 = vsel %vm401, %v7740, 0
      %v7967 = vsel %vm401, %v7743, 0
      %v7970 = vsel %vm401, %v7746, 0
      %v7973 = vsel %vm401, %v7749, 0
      %v7976 = vsel %vm401, %v7752, 0
      %v7979 = vsel %vm401, %v7755, 0
      %v7982 = vsel %vm401, %v7758, 0
      %v7985 = vsel %vm401, %v7761, 0
      %v7988 = vsel %vm401, %v7764, 0
      %7990 = vmatprep.subr.bf16.mxu0 0
      %7991 = vmatpush1.bf16.msra.mxu0 %v7918
      %7992 = vmatprep.subr.bf16.mxu0 0
      %7993 = vmatpush1.bf16.msra.mxu0 %v7919
      %7994 = vmatprep.subr.bf16.mxu0 0
      %7995 = vmatpush1.bf16.msra.mxu0 %v7920
      %7996 = vmatprep.subr.bf16.mxu0 0
      %7997 = vmatpush1.bf16.msra.mxu0 %v7921
      %7998 = vmatprep.subr.bf16.mxu0 0
      %7999 = vmatpush1.bf16.msra.mxu0 %v7922
      %8000 = vmatprep.subr.bf16.mxu0 0
      %8001 = vmatpush1.bf16.msra.mxu0 %v7923
      %8002 = vmatprep.subr.bf16.mxu0 0
      %8003 = vmatpush1.bf16.msra.mxu0 %v7924
      %8004 = vmatprep.subr.bf16.mxu0 0
      %8005 = vmatpush1.bf16.msra.mxu0 %v7925
      %8006 = vmatprep.subr.bf16.mxu0 0
      %8007 = vmatpush1.bf16.msra.mxu0 %v7926
      %8008 = vmatprep.subr.bf16.mxu0 0
      %8009 = vmatpush1.bf16.msra.mxu0 %v7927
      %8010 = vmatprep.subr.bf16.mxu0 0
      %8011 = vmatpush1.bf16.msra.mxu0 %v7928
      %8012 = vmatprep.subr.bf16.mxu0 0
      %8013 = vmatpush1.bf16.msra.mxu0 %v7929
      %8014 = vmatprep.subr.bf16.mxu0 0
      %8015 = vmatpush1.bf16.msra.mxu0 0
      %8016 = vmatprep.subr.bf16.mxu0 0
      %8017 = vmatpush1.bf16.msra.mxu0 0
      %8018 = vmatprep.subr.bf16.mxu0 0
      %8019 = vmatpush1.bf16.msra.mxu0 0
      %8020 = vmatprep.subr.bf16.mxu0 0
      %8021 = vmatpush1.bf16.msra.mxu0 0
      %8022 = vmatprep.mubr.bf16.mxu0 %v7943
      %8023 = vmatmul.mubr.bf16.gmra.mrb[0].mxu0 %v7766
      %v8024 = vpop.f32.mrb[0].mxu0
      %v8025 = vadd.f32 0.0, %v8024
      %v8026 = vpop.f32.mrb[0].mxu0
      %v8027 = vpop.f32.mrb[0].mxu0
      %v8028 = vadd.f32 0.0, %v8027
      %v8029 = vpop.f32.mrb[0].mxu0
      %8030 = vmatprep.mubr.bf16.mxu0 %v7946
      %8031 = vmatmul.mubr.bf16.gmra.mrb[0].mxu0 %v7769
      %v8032 = vpop.f32.mrb[0].mxu0
      %v8033 = vadd.f32 0.0, %v8032
      %v8034 = vpop.f32.mrb[0].mxu0
      %v8035 = vpop.f32.mrb[0].mxu0
      %v8036 = vadd.f32 0.0, %v8035
      %v8037 = vpop.f32.mrb[0].mxu0
      %8038 = vmatprep.mubr.bf16.mxu0 %v7949
      %8039 = vmatmul.mubr.bf16.gmra.mrb[0].mxu0 %v7772
      %v8040 = vpop.f32.mrb[0].mxu0
      %v8041 = vadd.f32 0.0, %v8040
      %v8042 = vpop.f32.mrb[0].mxu0
      %v8043 = vpop.f32.mrb[0].mxu0
      %v8044 = vadd.f32 0.0, %v8043
      %v8045 = vpop.f32.mrb[0].mxu0
      %8046 = vmatprep.mubr.bf16.mxu0 %v7952
      %8047 = vmatmul.mubr.bf16.gmra.mrb[0].mxu0 %v7775
      %v8048 = vpop.f32.mrb[0].mxu0
      %v8049 = vadd.f32 0.0, %v8048
      %v8050 = vpop.f32.mrb[0].mxu0
      %v8051 = vpop.f32.mrb[0].mxu0
      %v8052 = vadd.f32 0.0, %v8051
      %v8053 = vpop.f32.mrb[0].mxu0
      %8054 = vmatprep.mubr.bf16.mxu0 %v7955
      %8055 = vmatmul.mubr.bf16.gmra.mrb[0].mxu0 %v7778
      %v8056 = vpop.f32.mrb[0].mxu0
      %v8057 = vadd.f32 0.0, %v8056
      %v8058 = vpop.f32.mrb[0].mxu0
      %v8059 = vpop.f32.mrb[0].mxu0
      %v8060 = vadd.f32 0.0, %v8059
      %v8061 = vpop.f32.mrb[0].mxu0
      %8062 = vmatprep.mubr.bf16.mxu0 %v7958
      %8063 = vmatmul.mubr.bf16.gmra.mrb[0].mxu0 %v7781
      %v8064 = vpop.f32.mrb[0].mxu0
      %v8065 = vadd.f32 0.0, %v8064
      %v8066 = vpop.f32.mrb[0].mxu0
      %v8067 = vpop.f32.mrb[0].mxu0
      %v8068 = vadd.f32 0.0, %v8067
      %v8069 = vpop.f32.mrb[0].mxu0
      %8070 = vmatprep.mubr.bf16.mxu0 %v7961
      %8071 = vmatmul.mubr.bf16.gmra.mrb[0].mxu0 %v7784
      %v8072 = vpop.f32.mrb[0].mxu0
      %v8073 = vadd.f32 0.0, %v8072
      %v8074 = vpop.f32.mrb[0].mxu0
      %v8075 = vpop.f32.mrb[0].mxu0
      %v8076 = vadd.f32 0.0, %v8075
      %v8077 = vpop.f32.mrb[0].mxu0
      %8078 = vmatprep.mubr.bf16.mxu0 %v7964
      %8079 = vmatmul.mubr.bf16.gmra.mrb[0].mxu0 %v7787
      %v8080 = vpop.f32.mrb[0].mxu0
      %v8081 = vadd.f32 0.0, %v8080
      %v8082 = vpop.f32.mrb[0].mxu0
      %v8083 = vpop.f32.mrb[0].mxu0
      %v8084 = vadd.f32 0.0, %v8083
      %v8085 = vpop.f32.mrb[0].mxu0
      %8086 = vmatprep.mubr.bf16.mxu0 %v7967
      %8087 = vmatmul.mubr.bf16.gmra.mrb[0].mxu0 %v7790
      %v8088 = vpop.f32.mrb[0].mxu0
      %v8089 = vadd.f32 0.0, %v8088
      %v8090 = vpop.f32.mrb[0].mxu0
      %v8091 = vpop.f32.mrb[0].mxu0
      %v8092 = vadd.f32 0.0, %v8091
      %v8093 = vpop.f32.mrb[0].mxu0
      %8094 = vmatprep.mubr.bf16.mxu0 %v7970
      %8095 = vmatmul.mubr.bf16.gmra.mrb[0].mxu0 %v7793
      %v8096 = vpop.f32.mrb[0].mxu0
      %v8097 = vadd.f32 0.0, %v8096
      %v8098 = vpop.f32.mrb[0].mxu0
      %v8099 = vpop.f32.mrb[0].mxu0
      %v8100 = vadd.f32 0.0, %v8099
      %v8101 = vpop.f32.mrb[0].mxu0
      %8102 = vmatprep.mubr.bf16.mxu0 %v7973
      %8103 = vmatmul.mubr.bf16.gmra.mrb[0].mxu0 %v7796
      %v8104 = vpop.f32.mrb[0].mxu0
      %v8105 = vadd.f32 0.0, %v8104
      %v8106 = vpop.f32.mrb[0].mxu0
      %v8107 = vpop.f32.mrb[0].mxu0
      %v8108 = vadd.f32 0.0, %v8107
      %v8109 = vpop.f32.mrb[0].mxu0
      %8110 = vmatprep.mubr.bf16.mxu0 %v7976
      %8111 = vmatmul.mubr.bf16.gmra.mrb[0].mxu0 %v7799
      %v8112 = vpop.f32.mrb[0].mxu0
      %v8113 = vadd.f32 0.0, %v8112
      %v8114 = vpop.f32.mrb[0].mxu0
      %v8115 = vpop.f32.mrb[0].mxu0
      %v8116 = vadd.f32 0.0, %v8115
      %v8117 = vpop.f32.mrb[0].mxu0
      %8118 = vmatprep.mubr.bf16.mxu0 %v7979
      %8119 = vmatmul.mubr.bf16.gmra.mrb[0].mxu0 %v7802
      %v8120 = vpop.f32.mrb[0].mxu0
      %v8121 = vadd.f32 0.0, %v8120
      %v8122 = vpop.f32.mrb[0].mxu0
      %v8123 = vpop.f32.mrb[0].mxu0
      %v8124 = vadd.f32 0.0, %v8123
      %v8125 = vpop.f32.mrb[0].mxu0
      %8126 = vmatprep.mubr.bf16.mxu0 %v7982
      %8127 = vmatmul.mubr.bf16.gmra.mrb[0].mxu0 %v7805
      %v8128 = vpop.f32.mrb[0].mxu0
      %v8129 = vadd.f32 0.0, %v8128
      %v8130 = vpop.f32.mrb[0].mxu0
      %v8131 = vpop.f32.mrb[0].mxu0
      %v8132 = vadd.f32 0.0, %v8131
      %v8133 = vpop.f32.mrb[0].mxu0
      %8134 = vmatprep.mubr.bf16.mxu0 %v7985
      %8135 = vmatmul.mubr.bf16.gmra.mrb[0].mxu0 %v7808
      %v8136 = vpop.f32.mrb[0].mxu0
      %v8137 = vadd.f32 0.0, %v8136
      %v8138 = vpop.f32.mrb[0].mxu0
      %v8139 = vpop.f32.mrb[0].mxu0
      %v8140 = vadd.f32 0.0, %v8139
      %v8141 = vpop.f32.mrb[0].mxu0
      %8142 = vmatprep.mubr.bf16.mxu0 %v7988
      %8143 = vmatmul.mubr.bf16.gmra.mrb[0].mxu0 %v7811
      %v8144 = vpop.f32.mrb[0].mxu0
      %v8145 = vadd.f32 0.0, %v8144
      %v8146 = vpop.f32.mrb[0].mxu0
      %v8147 = vpop.f32.mrb[0].mxu0
      %v8148 = vadd.f32 0.0, %v8147
      %v8149 = vpop.f32.mrb[0].mxu0
      %8150 = vdwg.mxu0
      %v8151 = vadd.f32 %v7813, %v8025
      %v8152 = vadd.f32 %v7814, %v8028
      %v8153 = vadd.f32 %v7815, %v8033
      %v8154 = vadd.f32 %v7816, %v8036
      %v8155 = vadd.f32 %v7817, %v8041
      %v8156 = vadd.f32 %v7818, %v8044
      %v8157 = vadd.f32 %v7819, %v8049
      %v8158 = vadd.f32 %v7820, %v8052
      %v8159 = vadd.f32 %v7821, %v8057
      %v8160 = vadd.f32 %v7822, %v8060
      %v8161 = vadd.f32 %v7823, %v8065
      %v8162 = vadd.f32 %v7824, %v8068
      %v8163 = vadd.f32 %v7825, %v8073
      %v8164 = vadd.f32 %v7826, %v8076
      %v8165 = vadd.f32 %v7827, %v8081
      %v8166 = vadd.f32 %v7828, %v8084
      %v8167 = vadd.f32 %v7829, %v8089
      %v8168 = vadd.f32 %v7830, %v8092
      %v8169 = vadd.f32 %v7831, %v8097
      %v8170 = vadd.f32 %v7832, %v8100
      %v8171 = vadd.f32 %v7833, %v8105
      %v8172 = vadd.f32 %v7834, %v8108
      %v8173 = vadd.f32 %v7835, %v8113
      %v8174 = vadd.f32 %v7836, %v8116
      %v8175 = vadd.f32 %v7837, %v8121
      %v8176 = vadd.f32 %v7838, %v8124
      %v8177 = vadd.f32 %v7839, %v8129
      %v8178 = vadd.f32 %v7840, %v8132
      %v8179 = vadd.f32 %v7841, %v8137
      %v8180 = vadd.f32 %v7842, %v8140
      %v8181 = vadd.f32 %v7843, %v8145
      %v8182 = vadd.f32 %v7844, %v8148
      %8183 = vst.msk [vmem:[#allocation2] sm:$0xff] %vm401, %v8151
      %8184 = vst.msk [vmem:[#allocation2 + $0x8] sm:$0xff] %vm401, %v8152
      %8185 = vst.msk [vmem:[#allocation2 + $0x10] sm:$0xff] %vm401, %v8153
      %8186 = vst.msk [vmem:[#allocation2 + $0x18] sm:$0xff] %vm401, %v8154
      %8187 = vst.msk [vmem:[#allocation2 + $0x20] sm:$0xff] %vm401, %v8155
      %8188 = vst.msk [vmem:[#allocation2 + $0x28] sm:$0xff] %vm401, %v8156
      %8189 = vst.msk [vmem:[#allocation2 + $0x30] sm:$0xff] %vm401, %v8157
      %8190 = vst.msk [vmem:[#allocation2 + $0x38] sm:$0xff] %vm401, %v8158
      %8191 = vst.msk [vmem:[#allocation2 + $0x40] sm:$0xff] %vm401, %v8159
      %8192 = vst.msk [vmem:[#allocation2 + $0x48] sm:$0xff] %vm401, %v8160
      %8193 = vst.msk [vmem:[#allocation2 + $0x50] sm:$0xff] %vm401, %v8161
      %8194 = vst.msk [vmem:[#allocation2 + $0x58] sm:$0xff] %vm401, %v8162
      %8195 = vst.msk [vmem:[#allocation2 + $0x60] sm:$0xff] %vm401, %v8163
      %8196 = vst.msk [vmem:[#allocation2 + $0x68] sm:$0xff] %vm401, %v8164
      %8197 = vst.msk [vmem:[#allocation2 + $0x70] sm:$0xff] %vm401, %v8165
      %8198 = vst.msk [vmem:[#allocation2 + $0x78] sm:$0xff] %vm401, %v8166
      %8199 = vst.msk [vmem:[#allocation2 + $0x80] sm:$0xff] %vm401, %v8167
      %8200 = vst.msk [vmem:[#allocation2 + $0x88] sm:$0xff] %vm401, %v8168
      %8201 = vst.msk [vmem:[#allocation2 + $0x90] sm:$0xff] %vm401, %v8169
      %8202 = vst.msk [vmem:[#allocation2 + $0x98] sm:$0xff] %vm401, %v8170
      %8203 = vst.msk [vmem:[#allocation2 + $0xa0] sm:$0xff] %vm401, %v8171
      %8204 = vst.msk [vmem:[#allocation2 + $0xa8] sm:$0xff] %vm401, %v8172
      %8205 = vst.msk [vmem:[#allocation2 + $0xb0] sm:$0xff] %vm401, %v8173
      %8206 = vst.msk [vmem:[#allocation2 + $0xb8] sm:$0xff] %vm401, %v8174
      %8207 = vst.msk [vmem:[#allocation2 + $0xc0] sm:$0xff] %vm401, %v8175
      %8208 = vst.msk [vmem:[#allocation2 + $0xc8] sm:$0xff] %vm401, %v8176
      %8209 = vst.msk [vmem:[#allocation2 + $0xd0] sm:$0xff] %vm401, %v8177
      %8210 = vst.msk [vmem:[#allocation2 + $0xd8] sm:$0xff] %vm401, %v8178
      %8211 = vst.msk [vmem:[#allocation2 + $0xe0] sm:$0xff] %vm401, %v8179
      %8212 = vst.msk [vmem:[#allocation2 + $0xe8] sm:$0xff] %vm401, %v8180
      %8213 = vst.msk [vmem:[#allocation2 + $0xf0] sm:$0xff] %vm401, %v8181
      %8214 = vst.msk [vmem:[#allocation2 + $0xf8] sm:$0xff] %vm401, %v8182
      %s8215 = scalar_lea.vmem [#allocation4], 24
      %v8216 = vld [vmem:[%s8215] sm:$0xf]
      %v8217 = vld [vmem:[%s8215 + $0x4] sm:$0xf]
      %v8218 = vld [vmem:[%s8215 + $0x8] sm:$0x1]
      %v8219 = vld [vmem:[%s8215 + $0xc] sm:$0xf]
      %v8220 = vld [vmem:[%s8215 + $0x10] sm:$0xf]
      %v8221 = vld [vmem:[%s8215 + $0x14] sm:$0x1]
      %v8222 = vld [vmem:[%s8215 + $0x18] sm:$0xf]
      %v8223 = vld [vmem:[%s8215 + $0x1c] sm:$0xf]
      %v8224 = vld [vmem:[%s8215 + $0x20] sm:$0x1]
      %v8225 = vld [vmem:[%s8215 + $0x24] sm:$0xf]
      %v8226 = vld [vmem:[%s8215 + $0x28] sm:$0xf]
      %v8227 = vld [vmem:[%s8215 + $0x2c] sm:$0x1]
      %v8228 = vld [vmem:[%s8215 + $0x30] sm:$0xf]
      %v8229 = vld [vmem:[%s8215 + $0x34] sm:$0xf]
      %v8230 = vld [vmem:[%s8215 + $0x38] sm:$0x1]
      %v8231 = vld [vmem:[%s8215 + $0x3c] sm:$0xf]
      %v8232 = vld [vmem:[%s8215 + $0x40] sm:$0xf]
      %v8233 = vld [vmem:[%s8215 + $0x44] sm:$0x1]
      %v8234 = vld [vmem:[%s8215 + $0x48] sm:$0xf]
      %v8235 = vld [vmem:[%s8215 + $0x4c] sm:$0xf]
      %v8236 = vld [vmem:[%s8215 + $0x50] sm:$0x1]
      %v8237 = vld [vmem:[%s8215 + $0x54] sm:$0xf]
      %v8238 = vld [vmem:[%s8215 + $0x58] sm:$0xf]
      %v8239 = vld [vmem:[%s8215 + $0x5c] sm:$0x1]
      %v8240 = vld [vmem:[%s8215 + $0x60] sm:$0xf]
      %v8241 = vld [vmem:[%s8215 + $0x64] sm:$0xf]
      %v8242 = vld [vmem:[%s8215 + $0x68] sm:$0x1]
      %v8243 = vld [vmem:[%s8215 + $0x6c] sm:$0xf]
      %v8244 = vld [vmem:[%s8215 + $0x70] sm:$0xf]
      %v8245 = vld [vmem:[%s8215 + $0x74] sm:$0x1]
      %v8246 = vld [vmem:[%s8215 + $0x78] sm:$0xf]
      %v8247 = vld [vmem:[%s8215 + $0x7c] sm:$0xf]
      %v8248 = vld [vmem:[%s8215 + $0x80] sm:$0x1]
      %v8249 = vld [vmem:[%s8215 + $0x84] sm:$0xf]
      %v8250 = vld [vmem:[%s8215 + $0x88] sm:$0xf]
      %v8251 = vld [vmem:[%s8215 + $0x8c] sm:$0x1]
      %v8252 = vld [vmem:[%s8215 + $0x90] sm:$0xf]
      %v8253 = vld [vmem:[%s8215 + $0x94] sm:$0xf]
      %v8254 = vld [vmem:[%s8215 + $0x98] sm:$0x1]
      %v8255 = vld [vmem:[%s8215 + $0x9c] sm:$0xf]
      %v8256 = vld [vmem:[%s8215 + $0xa0] sm:$0xf]
      %v8257 = vld [vmem:[%s8215 + $0xa4] sm:$0x1]
      %v8258 = vld [vmem:[%s8215 + $0xa8] sm:$0xf]
      %v8259 = vld [vmem:[%s8215 + $0xac] sm:$0xf]
      %v8260 = vld [vmem:[%s8215 + $0xb0] sm:$0x1]
      %v8261 = vld [vmem:[%s8215 + $0xb4] sm:$0xf]
      %v8262 = vld [vmem:[%s8215 + $0xb8] sm:$0xf]
      %v8263 = vld [vmem:[%s8215 + $0xbc] sm:$0x1]
      %v8296 = vunpack.c.l.b16 %v8216
      %v8297 = vunpack.c.l.b16 %v8217
      %v8298 = vunpack.c.l.b16 %v8219
      %v8299 = vunpack.c.l.b16 %v8220
      %v8300 = vunpack.c.l.b16 %v8222
      %v8301 = vunpack.c.l.b16 %v8223
      %v8302 = vunpack.c.l.b16 %v8225
      %v8303 = vunpack.c.l.b16 %v8226
      %v8304 = vunpack.c.l.b16 %v8228
      %v8305 = vunpack.c.l.b16 %v8229
      %v8306 = vunpack.c.l.b16 %v8231
      %v8307 = vunpack.c.l.b16 %v8232
      %v8308 = vunpack.c.l.b16 %v8234
      %v8309 = vunpack.c.l.b16 %v8235
      %v8310 = vunpack.c.l.b16 %v8237
      %v8311 = vunpack.c.l.b16 %v8238
      %v8312 = vunpack.c.l.b16 %v8240
      %v8313 = vunpack.c.l.b16 %v8241
      %v8314 = vunpack.c.l.b16 %v8243
      %v8315 = vunpack.c.l.b16 %v8244
      %v8316 = vunpack.c.l.b16 %v8246
      %v8317 = vunpack.c.l.b16 %v8247
      %v8318 = vunpack.c.l.b16 %v8249
      %v8319 = vunpack.c.l.b16 %v8250
      %v8320 = vunpack.c.l.b16 %v8252
      %v8321 = vunpack.c.l.b16 %v8253
      %v8322 = vunpack.c.l.b16 %v8255
      %v8323 = vunpack.c.l.b16 %v8256
      %v8324 = vunpack.c.l.b16 %v8258
      %v8325 = vunpack.c.l.b16 %v8259
      %v8326 = vunpack.c.l.b16 %v8261
      %v8327 = vunpack.c.l.b16 %v8262
      %v8328 = vpack.c.b16 %v8297, %v8296
      %v8329 = vpack.c.b16 %v8299, %v8298
      %v8330 = vpack.c.b16 %v8301, %v8300
      %v8331 = vpack.c.b16 %v8303, %v8302
      %v8332 = vpack.c.b16 %v8305, %v8304
      %v8333 = vpack.c.b16 %v8307, %v8306
      %v8334 = vpack.c.b16 %v8309, %v8308
      %v8335 = vpack.c.b16 %v8311, %v8310
      %v8336 = vpack.c.b16 %v8313, %v8312
      %v8337 = vpack.c.b16 %v8315, %v8314
      %v8338 = vpack.c.b16 %v8317, %v8316
      %v8339 = vpack.c.b16 %v8319, %v8318
      %v8340 = vpack.c.b16 %v8321, %v8320
      %v8341 = vpack.c.b16 %v8323, %v8322
      %v8342 = vpack.c.b16 %v8325, %v8324
      %v8343 = vpack.c.b16 %v8327, %v8326
      %v8360 = vunpack.c.l.b16 %v8218
      %v8361 = vunpack.c.l.b16 %v8221
      %v8362 = vunpack.c.l.b16 %v8224
      %v8363 = vunpack.c.l.b16 %v8227
      %v8364 = vunpack.c.l.b16 %v8230
      %v8365 = vunpack.c.l.b16 %v8233
      %v8366 = vunpack.c.l.b16 %v8236
      %v8367 = vunpack.c.l.b16 %v8239
      %v8368 = vunpack.c.l.b16 %v8242
      %v8369 = vunpack.c.l.b16 %v8245
      %v8370 = vunpack.c.l.b16 %v8248
      %v8371 = vunpack.c.l.b16 %v8251
      %v8372 = vunpack.c.l.b16 %v8254
      %v8373 = vunpack.c.l.b16 %v8257
      %v8374 = vunpack.c.l.b16 %v8260
      %v8375 = vunpack.c.l.b16 %v8263
      %v8376 = vpack.c.b16 %v8360, %v8360
      %v8377 = vpack.c.b16 %v8361, %v8361
      %v8378 = vpack.c.b16 %v8362, %v8362
      %v8379 = vpack.c.b16 %v8363, %v8363
      %v8380 = vpack.c.b16 %v8364, %v8364
      %v8381 = vpack.c.b16 %v8365, %v8365
      %v8382 = vpack.c.b16 %v8366, %v8366
      %v8383 = vpack.c.b16 %v8367, %v8367
      %v8384 = vpack.c.b16 %v8368, %v8368
      %v8385 = vpack.c.b16 %v8369, %v8369
      %v8386 = vpack.c.b16 %v8370, %v8370
      %v8387 = vpack.c.b16 %v8371, %v8371
      %v8388 = vpack.c.b16 %v8372, %v8372
      %v8389 = vpack.c.b16 %v8373, %v8373
      %v8390 = vpack.c.b16 %v8374, %v8374
      %v8391 = vpack.c.b16 %v8375, %v8375
      %v8393 = vshrl.u32 %v8328, 16
      %v8395 = vshll.u32 %v8328, 16
      %v8397 = vrot.slane %v8395, 1
      %v8398 = vor.u32 %v8393, %v8397
      %v8400 = vshll.u32 %v8376, 16
      %v8402 = vrot.slane %v8400, 1
      %v8403 = vsel %vm6594, %v8398, %v8402
      %v8405 = vshrl.u32 %v8329, 16
      %v8407 = vshll.u32 %v8329, 16
      %v8409 = vrot.slane %v8407, 1
      %v8410 = vor.u32 %v8405, %v8409
      %v8412 = vshll.u32 %v8377, 16
      %v8414 = vrot.slane %v8412, 1
      %v8415 = vsel %vm6594, %v8410, %v8414
      %v8417 = vshrl.u32 %v8330, 16
      %v8419 = vshll.u32 %v8330, 16
      %v8421 = vrot.slane %v8419, 1
      %v8422 = vor.u32 %v8417, %v8421
      %v8424 = vshll.u32 %v8378, 16
      %v8426 = vrot.slane %v8424, 1
      %v8427 = vsel %vm6594, %v8422, %v8426
      %v8429 = vshrl.u32 %v8331, 16
      %v8431 = vshll.u32 %v8331, 16
      %v8433 = vrot.slane %v8431, 1
      %v8434 = vor.u32 %v8429, %v8433
      %v8436 = vshll.u32 %v8379, 16
      %v8438 = vrot.slane %v8436, 1
      %v8439 = vsel %vm6594, %v8434, %v8438
      %v8441 = vshrl.u32 %v8332, 16
      %v8443 = vshll.u32 %v8332, 16
      %v8445 = vrot.slane %v8443, 1
      %v8446 = vor.u32 %v8441, %v8445
      %v8448 = vshll.u32 %v8380, 16
      %v8450 = vrot.slane %v8448, 1
      %v8451 = vsel %vm6594, %v8446, %v8450
      %v8453 = vshrl.u32 %v8333, 16
      %v8455 = vshll.u32 %v8333, 16
      %v8457 = vrot.slane %v8455, 1
      %v8458 = vor.u32 %v8453, %v8457
      %v8460 = vshll.u32 %v8381, 16
      %v8462 = vrot.slane %v8460, 1
      %v8463 = vsel %vm6594, %v8458, %v8462
      %v8465 = vshrl.u32 %v8334, 16
      %v8467 = vshll.u32 %v8334, 16
      %v8469 = vrot.slane %v8467, 1
      %v8470 = vor.u32 %v8465, %v8469
      %v8472 = vshll.u32 %v8382, 16
      %v8474 = vrot.slane %v8472, 1
      %v8475 = vsel %vm6594, %v8470, %v8474
      %v8477 = vshrl.u32 %v8335, 16
      %v8479 = vshll.u32 %v8335, 16
      %v8481 = vrot.slane %v8479, 1
      %v8482 = vor.u32 %v8477, %v8481
      %v8484 = vshll.u32 %v8383, 16
      %v8486 = vrot.slane %v8484, 1
      %v8487 = vsel %vm6594, %v8482, %v8486
      %v8489 = vshrl.u32 %v8336, 16
      %v8491 = vshll.u32 %v8336, 16
      %v8493 = vrot.slane %v8491, 1
      %v8494 = vor.u32 %v8489, %v8493
      %v8496 = vshll.u32 %v8384, 16
      %v8498 = vrot.slane %v8496, 1
      %v8499 = vsel %vm6594, %v8494, %v8498
      %v8501 = vshrl.u32 %v8337, 16
      %v8503 = vshll.u32 %v8337, 16
      %v8505 = vrot.slane %v8503, 1
      %v8506 = vor.u32 %v8501, %v8505
      %v8508 = vshll.u32 %v8385, 16
      %v8510 = vrot.slane %v8508, 1
      %v8511 = vsel %vm6594, %v8506, %v8510
      %v8513 = vshrl.u32 %v8338, 16
      %v8515 = vshll.u32 %v8338, 16
      %v8517 = vrot.slane %v8515, 1
      %v8518 = vor.u32 %v8513, %v8517
      %v8520 = vshll.u32 %v8386, 16
      %v8522 = vrot.slane %v8520, 1
      %v8523 = vsel %vm6594, %v8518, %v8522
      %v8525 = vshrl.u32 %v8339, 16
      %v8527 = vshll.u32 %v8339, 16
      %v8529 = vrot.slane %v8527, 1
      %v8530 = vor.u32 %v8525, %v8529
      %v8532 = vshll.u32 %v8387, 16
      %v8534 = vrot.slane %v8532, 1
      %v8535 = vsel %vm6594, %v8530, %v8534
      %v8537 = vshrl.u32 %v8340, 16
      %v8539 = vshll.u32 %v8340, 16
      %v8541 = vrot.slane %v8539, 1
      %v8542 = vor.u32 %v8537, %v8541
      %v8544 = vshll.u32 %v8388, 16
      %v8546 = vrot.slane %v8544, 1
      %v8547 = vsel %vm6594, %v8542, %v8546
      %v8549 = vshrl.u32 %v8341, 16
      %v8551 = vshll.u32 %v8341, 16
      %v8553 = vrot.slane %v8551, 1
      %v8554 = vor.u32 %v8549, %v8553
      %v8556 = vshll.u32 %v8389, 16
      %v8558 = vrot.slane %v8556, 1
      %v8559 = vsel %vm6594, %v8554, %v8558
      %v8561 = vshrl.u32 %v8342, 16
      %v8563 = vshll.u32 %v8342, 16
      %v8565 = vrot.slane %v8563, 1
      %v8566 = vor.u32 %v8561, %v8565
      %v8568 = vshll.u32 %v8390, 16
      %v8570 = vrot.slane %v8568, 1
      %v8571 = vsel %vm6594, %v8566, %v8570
      %v8573 = vshrl.u32 %v8343, 16
      %v8575 = vshll.u32 %v8343, 16
      %v8577 = vrot.slane %v8575, 1
      %v8578 = vor.u32 %v8573, %v8577
      %v8580 = vshll.u32 %v8391, 16
      %v8582 = vrot.slane %v8580, 1
      %v8583 = vsel %vm6594, %v8578, %v8582
      %8584 = vrot.lane.b32.xlu0 %v8403, 64
      %v8585 = vpop.permute.xlu0 %8584
      %8586 = vrot.lane.b32.xlu0 %v8415, 64
      %v8587 = vpop.permute.xlu0 %8586
      %8588 = vrot.lane.b32.xlu0 %v8427, 64
      %v8589 = vpop.permute.xlu0 %8588
      %8590 = vrot.lane.b32.xlu0 %v8439, 64
      %v8591 = vpop.permute.xlu0 %8590
      %8592 = vrot.lane.b32.xlu0 %v8451, 64
      %v8593 = vpop.permute.xlu0 %8592
      %8594 = vrot.lane.b32.xlu0 %v8463, 64
      %v8595 = vpop.permute.xlu0 %8594
      %8596 = vrot.lane.b32.xlu0 %v8475, 64
      %v8597 = vpop.permute.xlu0 %8596
      %8598 = vrot.lane.b32.xlu0 %v8487, 64
      %v8599 = vpop.permute.xlu0 %8598
      %8600 = vrot.lane.b32.xlu0 %v8499, 64
      %v8601 = vpop.permute.xlu0 %8600
      %8602 = vrot.lane.b32.xlu0 %v8511, 64
      %v8603 = vpop.permute.xlu0 %8602
      %8604 = vrot.lane.b32.xlu0 %v8523, 64
      %v8605 = vpop.permute.xlu0 %8604
      %8606 = vrot.lane.b32.xlu0 %v8535, 64
      %v8607 = vpop.permute.xlu0 %8606
      %8608 = vrot.lane.b32.xlu0 %v8547, 64
      %v8609 = vpop.permute.xlu0 %8608
      %8610 = vrot.lane.b32.xlu0 %v8559, 64
      %v8611 = vpop.permute.xlu0 %8610
      %8612 = vrot.lane.b32.xlu0 %v8571, 64
      %v8613 = vpop.permute.xlu0 %8612
      %8614 = vrot.lane.b32.xlu0 %v8583, 64
      %v8615 = vpop.permute.xlu0 %8614
      %v8616 = vrot.slane %v8328, 1
      %v8617 = vrot.slane %v8376, 1
      %v8618 = vsel %vm6819, %v8616, %v8617
      %v8619 = vrot.slane %v8329, 1
      %v8620 = vrot.slane %v8377, 1
      %v8621 = vsel %vm6819, %v8619, %v8620
      %v8622 = vrot.slane %v8330, 1
      %v8623 = vrot.slane %v8378, 1
      %v8624 = vsel %vm6819, %v8622, %v8623
      %v8625 = vrot.slane %v8331, 1
      %v8626 = vrot.slane %v8379, 1
      %v8627 = vsel %vm6819, %v8625, %v8626
      %v8628 = vrot.slane %v8332, 1
      %v8629 = vrot.slane %v8380, 1
      %v8630 = vsel %vm6819, %v8628, %v8629
      %v8631 = vrot.slane %v8333, 1
      %v8632 = vrot.slane %v8381, 1
      %v8633 = vsel %vm6819, %v8631, %v8632
      %v8634 = vrot.slane %v8334, 1
      %v8635 = vrot.slane %v8382, 1
      %v8636 = vsel %vm6819, %v8634, %v8635
      %v8637 = vrot.slane %v8335, 1
      %v8638 = vrot.slane %v8383, 1
      %v8639 = vsel %vm6819, %v8637, %v8638
      %v8640 = vrot.slane %v8336, 1
      %v8641 = vrot.slane %v8384, 1
      %v8642 = vsel %vm6819, %v8640, %v8641
      %v8643 = vrot.slane %v8337, 1
      %v8644 = vrot.slane %v8385, 1
      %v8645 = vsel %vm6819, %v8643, %v8644
      %v8646 = vrot.slane %v8338, 1
      %v8647 = vrot.slane %v8386, 1
      %v8648 = vsel %vm6819, %v8646, %v8647
      %v8649 = vrot.slane %v8339, 1
      %v8650 = vrot.slane %v8387, 1
      %v8651 = vsel %vm6819, %v8649, %v8650
      %v8652 = vrot.slane %v8340, 1
      %v8653 = vrot.slane %v8388, 1
      %v8654 = vsel %vm6819, %v8652, %v8653
      %v8655 = vrot.slane %v8341, 1
      %v8656 = vrot.slane %v8389, 1
      %v8657 = vsel %vm6819, %v8655, %v8656
      %v8658 = vrot.slane %v8342, 1
      %v8659 = vrot.slane %v8390, 1
      %v8660 = vsel %vm6819, %v8658, %v8659
      %v8661 = vrot.slane %v8343, 1
      %v8662 = vrot.slane %v8391, 1
      %v8663 = vsel %vm6819, %v8661, %v8662
      %v8665 = vsel %vm401, %v8328, %v8585
      %v8668 = vsel %vm401, %v8329, %v8587
      %v8671 = vsel %vm401, %v8330, %v8589
      %v8674 = vsel %vm401, %v8331, %v8591
      %v8677 = vsel %vm401, %v8332, %v8593
      %v8680 = vsel %vm401, %v8333, %v8595
      %v8683 = vsel %vm401, %v8334, %v8597
      %v8686 = vsel %vm401, %v8335, %v8599
      %v8689 = vsel %vm401, %v8336, %v8601
      %v8692 = vsel %vm401, %v8337, %v8603
      %v8695 = vsel %vm401, %v8338, %v8605
      %v8698 = vsel %vm401, %v8339, %v8607
      %v8701 = vsel %vm401, %v8340, %v8609
      %v8704 = vsel %vm401, %v8341, %v8611
      %v8707 = vsel %vm401, %v8342, %v8613
      %v8710 = vsel %vm401, %v8343, %v8615
      %v8712 = vld [vmem:[#allocation2] sm:$0xff]
      %v8713 = vld [vmem:[#allocation2 + $0x8] sm:$0xff]
      %v8714 = vld [vmem:[#allocation2 + $0x10] sm:$0xff]
      %v8715 = vld [vmem:[#allocation2 + $0x18] sm:$0xff]
      %v8716 = vld [vmem:[#allocation2 + $0x20] sm:$0xff]
      %v8717 = vld [vmem:[#allocation2 + $0x28] sm:$0xff]
      %v8718 = vld [vmem:[#allocation2 + $0x30] sm:$0xff]
      %v8719 = vld [vmem:[#allocation2 + $0x38] sm:$0xff]
      %v8720 = vld [vmem:[#allocation2 + $0x40] sm:$0xff]
      %v8721 = vld [vmem:[#allocation2 + $0x48] sm:$0xff]
      %v8722 = vld [vmem:[#allocation2 + $0x50] sm:$0xff]
      %v8723 = vld [vmem:[#allocation2 + $0x58] sm:$0xff]
      %v8724 = vld [vmem:[#allocation2 + $0x60] sm:$0xff]
      %v8725 = vld [vmem:[#allocation2 + $0x68] sm:$0xff]
      %v8726 = vld [vmem:[#allocation2 + $0x70] sm:$0xff]
      %v8727 = vld [vmem:[#allocation2 + $0x78] sm:$0xff]
      %v8728 = vld [vmem:[#allocation2 + $0x80] sm:$0xff]
      %v8729 = vld [vmem:[#allocation2 + $0x88] sm:$0xff]
      %v8730 = vld [vmem:[#allocation2 + $0x90] sm:$0xff]
      %v8731 = vld [vmem:[#allocation2 + $0x98] sm:$0xff]
      %v8732 = vld [vmem:[#allocation2 + $0xa0] sm:$0xff]
      %v8733 = vld [vmem:[#allocation2 + $0xa8] sm:$0xff]
      %v8734 = vld [vmem:[#allocation2 + $0xb0] sm:$0xff]
      %v8735 = vld [vmem:[#allocation2 + $0xb8] sm:$0xff]
      %v8736 = vld [vmem:[#allocation2 + $0xc0] sm:$0xff]
      %v8737 = vld [vmem:[#allocation2 + $0xc8] sm:$0xff]
      %v8738 = vld [vmem:[#allocation2 + $0xd0] sm:$0xff]
      %v8739 = vld [vmem:[#allocation2 + $0xd8] sm:$0xff]
      %v8740 = vld [vmem:[#allocation2 + $0xe0] sm:$0xff]
      %v8741 = vld [vmem:[#allocation2 + $0xe8] sm:$0xff]
      %v8742 = vld [vmem:[#allocation2 + $0xf0] sm:$0xff]
      %v8743 = vld [vmem:[#allocation2 + $0xf8] sm:$0xff]
      %s8744 = scalar_lea.vmem %s3, 192
      %v8745 = vld [vmem:[%s8744] sm:$0xf]
      %v8746 = vld [vmem:[%s8744 + $0x4] sm:$0xf]
      %v8747 = vld [vmem:[%s8744 + $0x8] sm:$0xf]
      %v8748 = vld [vmem:[%s8744 + $0xc] sm:$0xf]
      %v8749 = vld [vmem:[%s8744 + $0x10] sm:$0xf]
      %v8750 = vld [vmem:[%s8744 + $0x14] sm:$0xf]
      %v8751 = vld [vmem:[%s8744 + $0x18] sm:$0xf]
      %v8752 = vld [vmem:[%s8744 + $0x1c] sm:$0xf]
      %v8753 = vld [vmem:[%s8744 + $0x20] sm:$0xf]
      %v8754 = vld [vmem:[%s8744 + $0x24] sm:$0xf]
      %v8755 = vld [vmem:[%s8744 + $0x28] sm:$0xf]
      %v8756 = vld [vmem:[%s8744 + $0x2c] sm:$0xf]
      %v8757 = vld [vmem:[%s8744 + $0x30] sm:$0xf]
      %v8758 = vld [vmem:[%s8744 + $0x34] sm:$0xf]
      %v8759 = vld [vmem:[%s8744 + $0x38] sm:$0xf]
      %v8760 = vld [vmem:[%s8744 + $0x3c] sm:$0xf]
      %v8761 = vld [vmem:[%s8744 + $0x40] sm:$0xf]
      %v8762 = vld [vmem:[%s8744 + $0x44] sm:$0xf]
      %v8763 = vld [vmem:[%s8744 + $0x48] sm:$0xf]
      %v8764 = vld [vmem:[%s8744 + $0x4c] sm:$0xf]
      %v8765 = vld [vmem:[%s8744 + $0x50] sm:$0xf]
      %v8766 = vld [vmem:[%s8744 + $0x54] sm:$0xf]
      %v8767 = vld [vmem:[%s8744 + $0x58] sm:$0xf]
      %v8768 = vld [vmem:[%s8744 + $0x5c] sm:$0xf]
      %v8793 = vunpack.c.l.b16 %v8745
      %v8794 = vunpack.c.l.b16 %v8746
      %v8795 = vunpack.c.l.b16 %v8747
      %v8796 = vunpack.c.l.b16 %v8748
      %v8797 = vunpack.c.l.b16 %v8749
      %v8798 = vunpack.c.l.b16 %v8750
      %v8799 = vunpack.c.l.b16 %v8751
      %v8800 = vunpack.c.l.b16 %v8752
      %v8801 = vunpack.c.l.b16 %v8753
      %v8802 = vunpack.c.l.b16 %v8754
      %v8803 = vunpack.c.l.b16 %v8755
      %v8804 = vunpack.c.l.b16 %v8756
      %v8805 = vunpack.c.l.b16 %v8757
      %v8806 = vunpack.c.l.b16 %v8758
      %v8807 = vunpack.c.l.b16 %v8759
      %v8808 = vunpack.c.l.b16 %v8760
      %v8809 = vunpack.c.l.b16 %v8761
      %v8810 = vunpack.c.l.b16 %v8762
      %v8811 = vunpack.c.l.b16 %v8763
      %v8812 = vunpack.c.l.b16 %v8764
      %v8813 = vunpack.c.l.b16 %v8765
      %v8814 = vunpack.c.l.b16 %v8766
      %v8815 = vunpack.c.l.b16 %v8767
      %v8816 = vunpack.c.l.b16 %v8768
      %v8817 = vpack.c.b16 %v8794, %v8793
      %v8818 = vpack.c.b16 %v8796, %v8795
      %v8819 = vpack.c.b16 %v8798, %v8797
      %v8820 = vpack.c.b16 %v8800, %v8799
      %v8821 = vpack.c.b16 %v8802, %v8801
      %v8822 = vpack.c.b16 %v8804, %v8803
      %v8823 = vpack.c.b16 %v8806, %v8805
      %v8824 = vpack.c.b16 %v8808, %v8807
      %v8825 = vpack.c.b16 %v8810, %v8809
      %v8826 = vpack.c.b16 %v8812, %v8811
      %v8827 = vpack.c.b16 %v8814, %v8813
      %v8828 = vpack.c.b16 %v8816, %v8815
      %v8842 = vsel %vm401, %v8618, 0
      %v8845 = vsel %vm401, %v8621, 0
      %v8848 = vsel %vm401, %v8624, 0
      %v8851 = vsel %vm401, %v8627, 0
      %v8854 = vsel %vm401, %v8630, 0
      %v8857 = vsel %vm401, %v8633, 0
      %v8860 = vsel %vm401, %v8636, 0
      %v8863 = vsel %vm401, %v8639, 0
      %v8866 = vsel %vm401, %v8642, 0
      %v8869 = vsel %vm401, %v8645, 0
      %v8872 = vsel %vm401, %v8648, 0
      %v8875 = vsel %vm401, %v8651, 0
      %v8878 = vsel %vm401, %v8654, 0
      %v8881 = vsel %vm401, %v8657, 0
      %v8884 = vsel %vm401, %v8660, 0
      %v8887 = vsel %vm401, %v8663, 0
      %8889 = vmatprep.subr.bf16.mxu0 0
      %8890 = vmatpush1.bf16.msra.mxu0 %v8817
      %8891 = vmatprep.subr.bf16.mxu0 0
      %8892 = vmatpush1.bf16.msra.mxu0 %v8818
      %8893 = vmatprep.subr.bf16.mxu0 0
      %8894 = vmatpush1.bf16.msra.mxu0 %v8819
      %8895 = vmatprep.subr.bf16.mxu0 0
      %8896 = vmatpush1.bf16.msra.mxu0 %v8820
      %8897 = vmatprep.subr.bf16.mxu0 0
      %8898 = vmatpush1.bf16.msra.mxu0 %v8821
      %8899 = vmatprep.subr.bf16.mxu0 0
      %8900 = vmatpush1.bf16.msra.mxu0 %v8822
      %8901 = vmatprep.subr.bf16.mxu0 0
      %8902 = vmatpush1.bf16.msra.mxu0 %v8823
      %8903 = vmatprep.subr.bf16.mxu0 0
      %8904 = vmatpush1.bf16.msra.mxu0 %v8824
      %8905 = vmatprep.subr.bf16.mxu0 0
      %8906 = vmatpush1.bf16.msra.mxu0 %v8825
      %8907 = vmatprep.subr.bf16.mxu0 0
      %8908 = vmatpush1.bf16.msra.mxu0 %v8826
      %8909 = vmatprep.subr.bf16.mxu0 0
      %8910 = vmatpush1.bf16.msra.mxu0 %v8827
      %8911 = vmatprep.subr.bf16.mxu0 0
      %8912 = vmatpush1.bf16.msra.mxu0 %v8828
      %8913 = vmatprep.subr.bf16.mxu0 0
      %8914 = vmatpush1.bf16.msra.mxu0 0
      %8915 = vmatprep.subr.bf16.mxu0 0
      %8916 = vmatpush1.bf16.msra.mxu0 0
      %8917 = vmatprep.subr.bf16.mxu0 0
      %8918 = vmatpush1.bf16.msra.mxu0 0
      %8919 = vmatprep.subr.bf16.mxu0 0
      %8920 = vmatpush1.bf16.msra.mxu0 0
      %8921 = vmatprep.mubr.bf16.mxu0 %v8842
      %8922 = vmatmul.mubr.bf16.gmra.mrb[0].mxu0 %v8665
      %v8923 = vpop.f32.mrb[0].mxu0
      %v8924 = vadd.f32 0.0, %v8923
      %v8925 = vpop.f32.mrb[0].mxu0
      %v8926 = vpop.f32.mrb[0].mxu0
      %v8927 = vadd.f32 0.0, %v8926
      %v8928 = vpop.f32.mrb[0].mxu0
      %8929 = vmatprep.mubr.bf16.mxu0 %v8845
      %8930 = vmatmul.mubr.bf16.gmra.mrb[0].mxu0 %v8668
      %v8931 = vpop.f32.mrb[0].mxu0
      %v8932 = vadd.f32 0.0, %v8931
      %v8933 = vpop.f32.mrb[0].mxu0
      %v8934 = vpop.f32.mrb[0].mxu0
      %v8935 = vadd.f32 0.0, %v8934
      %v8936 = vpop.f32.mrb[0].mxu0
      %8937 = vmatprep.mubr.bf16.mxu0 %v8848
      %8938 = vmatmul.mubr.bf16.gmra.mrb[0].mxu0 %v8671
      %v8939 = vpop.f32.mrb[0].mxu0
      %v8940 = vadd.f32 0.0, %v8939
      %v8941 = vpop.f32.mrb[0].mxu0
      %v8942 = vpop.f32.mrb[0].mxu0
      %v8943 = vadd.f32 0.0, %v8942
      %v8944 = vpop.f32.mrb[0].mxu0
      %8945 = vmatprep.mubr.bf16.mxu0 %v8851
      %8946 = vmatmul.mubr.bf16.gmra.mrb[0].mxu0 %v8674
      %v8947 = vpop.f32.mrb[0].mxu0
      %v8948 = vadd.f32 0.0, %v8947
      %v8949 = vpop.f32.mrb[0].mxu0
      %v8950 = vpop.f32.mrb[0].mxu0
      %v8951 = vadd.f32 0.0, %v8950
      %v8952 = vpop.f32.mrb[0].mxu0
      %8953 = vmatprep.mubr.bf16.mxu0 %v8854
      %8954 = vmatmul.mubr.bf16.gmra.mrb[0].mxu0 %v8677
      %v8955 = vpop.f32.mrb[0].mxu0
      %v8956 = vadd.f32 0.0, %v8955
      %v8957 = vpop.f32.mrb[0].mxu0
      %v8958 = vpop.f32.mrb[0].mxu0
      %v8959 = vadd.f32 0.0, %v8958
      %v8960 = vpop.f32.mrb[0].mxu0
      %8961 = vmatprep.mubr.bf16.mxu0 %v8857
      %8962 = vmatmul.mubr.bf16.gmra.mrb[0].mxu0 %v8680
      %v8963 = vpop.f32.mrb[0].mxu0
      %v8964 = vadd.f32 0.0, %v8963
      %v8965 = vpop.f32.mrb[0].mxu0
      %v8966 = vpop.f32.mrb[0].mxu0
      %v8967 = vadd.f32 0.0, %v8966
      %v8968 = vpop.f32.mrb[0].mxu0
      %8969 = vmatprep.mubr.bf16.mxu0 %v8860
      %8970 = vmatmul.mubr.bf16.gmra.mrb[0].mxu0 %v8683
      %v8971 = vpop.f32.mrb[0].mxu0
      %v8972 = vadd.f32 0.0, %v8971
      %v8973 = vpop.f32.mrb[0].mxu0
      %v8974 = vpop.f32.mrb[0].mxu0
      %v8975 = vadd.f32 0.0, %v8974
      %v8976 = vpop.f32.mrb[0].mxu0
      %8977 = vmatprep.mubr.bf16.mxu0 %v8863
      %8978 = vmatmul.mubr.bf16.gmra.mrb[0].mxu0 %v8686
      %v8979 = vpop.f32.mrb[0].mxu0
      %v8980 = vadd.f32 0.0, %v8979
      %v8981 = vpop.f32.mrb[0].mxu0
      %v8982 = vpop.f32.mrb[0].mxu0
      %v8983 = vadd.f32 0.0, %v8982
      %v8984 = vpop.f32.mrb[0].mxu0
      %8985 = vmatprep.mubr.bf16.mxu0 %v8866
      %8986 = vmatmul.mubr.bf16.gmra.mrb[0].mxu0 %v8689
      %v8987 = vpop.f32.mrb[0].mxu0
      %v8988 = vadd.f32 0.0, %v8987
      %v8989 = vpop.f32.mrb[0].mxu0
      %v8990 = vpop.f32.mrb[0].mxu0
      %v8991 = vadd.f32 0.0, %v8990
      %v8992 = vpop.f32.mrb[0].mxu0
      %8993 = vmatprep.mubr.bf16.mxu0 %v8869
      %8994 = vmatmul.mubr.bf16.gmra.mrb[0].mxu0 %v8692
      %v8995 = vpop.f32.mrb[0].mxu0
      %v8996 = vadd.f32 0.0, %v8995
      %v8997 = vpop.f32.mrb[0].mxu0
      %v8998 = vpop.f32.mrb[0].mxu0
      %v8999 = vadd.f32 0.0, %v8998
      %v9000 = vpop.f32.mrb[0].mxu0
      %9001 = vmatprep.mubr.bf16.mxu0 %v8872
      %9002 = vmatmul.mubr.bf16.gmra.mrb[0].mxu0 %v8695
      %v9003 = vpop.f32.mrb[0].mxu0
      %v9004 = vadd.f32 0.0, %v9003
      %v9005 = vpop.f32.mrb[0].mxu0
      %v9006 = vpop.f32.mrb[0].mxu0
      %v9007 = vadd.f32 0.0, %v9006
      %v9008 = vpop.f32.mrb[0].mxu0
      %9009 = vmatprep.mubr.bf16.mxu0 %v8875
      %9010 = vmatmul.mubr.bf16.gmra.mrb[0].mxu0 %v8698
      %v9011 = vpop.f32.mrb[0].mxu0
      %v9012 = vadd.f32 0.0, %v9011
      %v9013 = vpop.f32.mrb[0].mxu0
      %v9014 = vpop.f32.mrb[0].mxu0
      %v9015 = vadd.f32 0.0, %v9014
      %v9016 = vpop.f32.mrb[0].mxu0
      %9017 = vmatprep.mubr.bf16.mxu0 %v8878
      %9018 = vmatmul.mubr.bf16.gmra.mrb[0].mxu0 %v8701
      %v9019 = vpop.f32.mrb[0].mxu0
      %v9020 = vadd.f32 0.0, %v9019
      %v9021 = vpop.f32.mrb[0].mxu0
      %v9022 = vpop.f32.mrb[0].mxu0
      %v9023 = vadd.f32 0.0, %v9022
      %v9024 = vpop.f32.mrb[0].mxu0
      %9025 = vmatprep.mubr.bf16.mxu0 %v8881
      %9026 = vmatmul.mubr.bf16.gmra.mrb[0].mxu0 %v8704
      %v9027 = vpop.f32.mrb[0].mxu0
      %v9028 = vadd.f32 0.0, %v9027
      %v9029 = vpop.f32.mrb[0].mxu0
      %v9030 = vpop.f32.mrb[0].mxu0
      %v9031 = vadd.f32 0.0, %v9030
      %v9032 = vpop.f32.mrb[0].mxu0
      %9033 = vmatprep.mubr.bf16.mxu0 %v8884
      %9034 = vmatmul.mubr.bf16.gmra.mrb[0].mxu0 %v8707
      %v9035 = vpop.f32.mrb[0].mxu0
      %v9036 = vadd.f32 0.0, %v9035
      %v9037 = vpop.f32.mrb[0].mxu0
      %v9038 = vpop.f32.mrb[0].mxu0
      %v9039 = vadd.f32 0.0, %v9038
      %v9040 = vpop.f32.mrb[0].mxu0
      %9041 = vmatprep.mubr.bf16.mxu0 %v8887
      %9042 = vmatmul.mubr.bf16.gmra.mrb[0].mxu0 %v8710
      %v9043 = vpop.f32.mrb[0].mxu0
      %v9044 = vadd.f32 0.0, %v9043
      %v9045 = vpop.f32.mrb[0].mxu0
      %v9046 = vpop.f32.mrb[0].mxu0
      %v9047 = vadd.f32 0.0, %v9046
      %v9048 = vpop.f32.mrb[0].mxu0
      %9049 = vdwg.mxu0
      %v9050 = vadd.f32 %v8712, %v8924
      %v9051 = vadd.f32 %v8713, %v8927
      %v9052 = vadd.f32 %v8714, %v8932
      %v9053 = vadd.f32 %v8715, %v8935
      %v9054 = vadd.f32 %v8716, %v8940
      %v9055 = vadd.f32 %v8717, %v8943
      %v9056 = vadd.f32 %v8718, %v8948
      %v9057 = vadd.f32 %v8719, %v8951
      %v9058 = vadd.f32 %v8720, %v8956
      %v9059 = vadd.f32 %v8721, %v8959
      %v9060 = vadd.f32 %v8722, %v8964
      %v9061 = vadd.f32 %v8723, %v8967
      %v9062 = vadd.f32 %v8724, %v8972
      %v9063 = vadd.f32 %v8725, %v8975
      %v9064 = vadd.f32 %v8726, %v8980
      %v9065 = vadd.f32 %v8727, %v8983
      %v9066 = vadd.f32 %v8728, %v8988
      %v9067 = vadd.f32 %v8729, %v8991
      %v9068 = vadd.f32 %v8730, %v8996
      %v9069 = vadd.f32 %v8731, %v8999
      %v9070 = vadd.f32 %v8732, %v9004
      %v9071 = vadd.f32 %v8733, %v9007
      %v9072 = vadd.f32 %v8734, %v9012
      %v9073 = vadd.f32 %v8735, %v9015
      %v9074 = vadd.f32 %v8736, %v9020
      %v9075 = vadd.f32 %v8737, %v9023
      %v9076 = vadd.f32 %v8738, %v9028
      %v9077 = vadd.f32 %v8739, %v9031
      %v9078 = vadd.f32 %v8740, %v9036
      %v9079 = vadd.f32 %v8741, %v9039
      %v9080 = vadd.f32 %v8742, %v9044
      %v9081 = vadd.f32 %v8743, %v9047
      %9082 = vst.msk [vmem:[#allocation2] sm:$0xff] %vm401, %v9050
      %9083 = vst.msk [vmem:[#allocation2 + $0x8] sm:$0xff] %vm401, %v9051
      %9084 = vst.msk [vmem:[#allocation2 + $0x10] sm:$0xff] %vm401, %v9052
      %9085 = vst.msk [vmem:[#allocation2 + $0x18] sm:$0xff] %vm401, %v9053
      %9086 = vst.msk [vmem:[#allocation2 + $0x20] sm:$0xff] %vm401, %v9054
      %9087 = vst.msk [vmem:[#allocation2 + $0x28] sm:$0xff] %vm401, %v9055
      %9088 = vst.msk [vmem:[#allocation2 + $0x30] sm:$0xff] %vm401, %v9056
      %9089 = vst.msk [vmem:[#allocation2 + $0x38] sm:$0xff] %vm401, %v9057
      %9090 = vst.msk [vmem:[#allocation2 + $0x40] sm:$0xff] %vm401, %v9058
      %9091 = vst.msk [vmem:[#allocation2 + $0x48] sm:$0xff] %vm401, %v9059
      %9092 = vst.msk [vmem:[#allocation2 + $0x50] sm:$0xff] %vm401, %v9060
      %9093 = vst.msk [vmem:[#allocation2 + $0x58] sm:$0xff] %vm401, %v9061
      %9094 = vst.msk [vmem:[#allocation2 + $0x60] sm:$0xff] %vm401, %v9062
      %9095 = vst.msk [vmem:[#allocation2 + $0x68] sm:$0xff] %vm401, %v9063
      %9096 = vst.msk [vmem:[#allocation2 + $0x70] sm:$0xff] %vm401, %v9064
      %9097 = vst.msk [vmem:[#allocation2 + $0x78] sm:$0xff] %vm401, %v9065
      %9098 = vst.msk [vmem:[#allocation2 + $0x80] sm:$0xff] %vm401, %v9066
      %9099 = vst.msk [vmem:[#allocation2 + $0x88] sm:$0xff] %vm401, %v9067
      %9100 = vst.msk [vmem:[#allocation2 + $0x90] sm:$0xff] %vm401, %v9068
      %9101 = vst.msk [vmem:[#allocation2 + $0x98] sm:$0xff] %vm401, %v9069
      %9102 = vst.msk [vmem:[#allocation2 + $0xa0] sm:$0xff] %vm401, %v9070
      %9103 = vst.msk [vmem:[#allocation2 + $0xa8] sm:$0xff] %vm401, %v9071
      %9104 = vst.msk [vmem:[#allocation2 + $0xb0] sm:$0xff] %vm401, %v9072
      %9105 = vst.msk [vmem:[#allocation2 + $0xb8] sm:$0xff] %vm401, %v9073
      %9106 = vst.msk [vmem:[#allocation2 + $0xc0] sm:$0xff] %vm401, %v9074
      %9107 = vst.msk [vmem:[#allocation2 + $0xc8] sm:$0xff] %vm401, %v9075
      %9108 = vst.msk [vmem:[#allocation2 + $0xd0] sm:$0xff] %vm401, %v9076
      %9109 = vst.msk [vmem:[#allocation2 + $0xd8] sm:$0xff] %vm401, %v9077
      %9110 = vst.msk [vmem:[#allocation2 + $0xe0] sm:$0xff] %vm401, %v9078
      %9111 = vst.msk [vmem:[#allocation2 + $0xe8] sm:$0xff] %vm401, %v9079
      %9112 = vst.msk [vmem:[#allocation2 + $0xf0] sm:$0xff] %vm401, %v9080
      %9113 = vst.msk [vmem:[#allocation2 + $0xf8] sm:$0xff] %vm401, %v9081
      %v9114 = vld [vmem:[#allocation2] sm:$0xff]
      %v9115 = vld [vmem:[#allocation2 + $0x8] sm:$0xff]
      %v9116 = vld [vmem:[#allocation2 + $0x10] sm:$0xff]
      %v9117 = vld [vmem:[#allocation2 + $0x18] sm:$0xff]
      %v9118 = vld [vmem:[#allocation2 + $0x20] sm:$0xff]
      %v9119 = vld [vmem:[#allocation2 + $0x28] sm:$0xff]
      %v9120 = vld [vmem:[#allocation2 + $0x30] sm:$0xff]
      %v9121 = vld [vmem:[#allocation2 + $0x38] sm:$0xff]
      %v9122 = vld [vmem:[#allocation2 + $0x40] sm:$0xff]
      %v9123 = vld [vmem:[#allocation2 + $0x48] sm:$0xff]
      %v9124 = vld [vmem:[#allocation2 + $0x50] sm:$0xff]
      %v9125 = vld [vmem:[#allocation2 + $0x58] sm:$0xff]
      %v9126 = vld [vmem:[#allocation2 + $0x60] sm:$0xff]
      %v9127 = vld [vmem:[#allocation2 + $0x68] sm:$0xff]
      %v9128 = vld [vmem:[#allocation2 + $0x70] sm:$0xff]
      %v9129 = vld [vmem:[#allocation2 + $0x78] sm:$0xff]
      %v9130 = vld [vmem:[#allocation2 + $0x80] sm:$0xff]
      %v9131 = vld [vmem:[#allocation2 + $0x88] sm:$0xff]
      %v9132 = vld [vmem:[#allocation2 + $0x90] sm:$0xff]
      %v9133 = vld [vmem:[#allocation2 + $0x98] sm:$0xff]
      %v9134 = vld [vmem:[#allocation2 + $0xa0] sm:$0xff]
      %v9135 = vld [vmem:[#allocation2 + $0xa8] sm:$0xff]
      %v9136 = vld [vmem:[#allocation2 + $0xb0] sm:$0xff]
      %v9137 = vld [vmem:[#allocation2 + $0xb8] sm:$0xff]
      %v9138 = vld [vmem:[#allocation2 + $0xc0] sm:$0xff]
      %v9139 = vld [vmem:[#allocation2 + $0xc8] sm:$0xff]
      %v9140 = vld [vmem:[#allocation2 + $0xd0] sm:$0xff]
      %v9141 = vld [vmem:[#allocation2 + $0xd8] sm:$0xff]
      %v9142 = vld [vmem:[#allocation2 + $0xe0] sm:$0xff]
      %v9143 = vld [vmem:[#allocation2 + $0xe8] sm:$0xff]
      %v9144 = vld [vmem:[#allocation2 + $0xf0] sm:$0xff]
      %v9145 = vld [vmem:[#allocation2 + $0xf8] sm:$0xff]
      %v9146 = vmax.f32 %v9114, 0.0
      %v9147 = vmax.f32 %v9115, 0.0
      %v9148 = vmax.f32 %v9116, 0.0
      %v9149 = vmax.f32 %v9117, 0.0
      %v9150 = vmax.f32 %v9118, 0.0
      %v9151 = vmax.f32 %v9119, 0.0
      %v9152 = vmax.f32 %v9120, 0.0
      %v9153 = vmax.f32 %v9121, 0.0
      %v9154 = vmax.f32 %v9122, 0.0
      %v9155 = vmax.f32 %v9123, 0.0
      %v9156 = vmax.f32 %v9124, 0.0
      %v9157 = vmax.f32 %v9125, 0.0
      %v9158 = vmax.f32 %v9126, 0.0
      %v9159 = vmax.f32 %v9127, 0.0
      %v9160 = vmax.f32 %v9128, 0.0
      %v9161 = vmax.f32 %v9129, 0.0
      %v9162 = vmax.f32 %v9130, 0.0
      %v9163 = vmax.f32 %v9131, 0.0
      %v9164 = vmax.f32 %v9132, 0.0
      %v9165 = vmax.f32 %v9133, 0.0
      %v9166 = vmax.f32 %v9134, 0.0
      %v9167 = vmax.f32 %v9135, 0.0
      %v9168 = vmax.f32 %v9136, 0.0
      %v9169 = vmax.f32 %v9137, 0.0
      %v9170 = vmax.f32 %v9138, 0.0
      %v9171 = vmax.f32 %v9139, 0.0
      %v9172 = vmax.f32 %v9140, 0.0
      %v9173 = vmax.f32 %v9141, 0.0
      %v9174 = vmax.f32 %v9142, 0.0
      %v9175 = vmax.f32 %v9143, 0.0
      %v9176 = vmax.f32 %v9144, 0.0
      %v9177 = vmax.f32 %v9145, 0.0
      %v9178 = vpack.c.bf16 %v9147, %v9146
      %v9179 = vpack.c.bf16 %v9149, %v9148
      %v9180 = vpack.c.bf16 %v9151, %v9150
      %v9181 = vpack.c.bf16 %v9153, %v9152
      %v9182 = vpack.c.bf16 %v9155, %v9154
      %v9183 = vpack.c.bf16 %v9157, %v9156
      %v9184 = vpack.c.bf16 %v9159, %v9158
      %v9185 = vpack.c.bf16 %v9161, %v9160
      %v9186 = vpack.c.bf16 %v9163, %v9162
      %v9187 = vpack.c.bf16 %v9165, %v9164
      %v9188 = vpack.c.bf16 %v9167, %v9166
      %v9189 = vpack.c.bf16 %v9169, %v9168
      %v9190 = vpack.c.bf16 %v9171, %v9170
      %v9191 = vpack.c.bf16 %v9173, %v9172
      %v9192 = vpack.c.bf16 %v9175, %v9174
      %v9193 = vpack.c.bf16 %v9177, %v9176
      %v9210 = vunpack.c.l.b16 %v9178
      %v9211 = vunpack.c.h.b16 %v9178
      %v9212 = vunpack.c.l.b16 %v9179
      %v9213 = vunpack.c.h.b16 %v9179
      %v9214 = vunpack.c.l.b16 %v9180
      %v9215 = vunpack.c.h.b16 %v9180
      %v9216 = vunpack.c.l.b16 %v9181
      %v9217 = vunpack.c.h.b16 %v9181
      %v9218 = vunpack.c.l.b16 %v9182
      %v9219 = vunpack.c.h.b16 %v9182
      %v9220 = vunpack.c.l.b16 %v9183
      %v9221 = vunpack.c.h.b16 %v9183
      %v9222 = vunpack.c.l.b16 %v9184
      %v9223 = vunpack.c.h.b16 %v9184
      %v9224 = vunpack.c.l.b16 %v9185
      %v9225 = vunpack.c.h.b16 %v9185
      %v9226 = vunpack.c.l.b16 %v9186
      %v9227 = vunpack.c.h.b16 %v9186
      %v9228 = vunpack.c.l.b16 %v9187
      %v9229 = vunpack.c.h.b16 %v9187
      %v9230 = vunpack.c.l.b16 %v9188
      %v9231 = vunpack.c.h.b16 %v9188
      %v9232 = vunpack.c.l.b16 %v9189
      %v9233 = vunpack.c.h.b16 %v9189
      %v9234 = vunpack.c.l.b16 %v9190
      %v9235 = vunpack.c.h.b16 %v9190
      %v9236 = vunpack.c.l.b16 %v9191
      %v9237 = vunpack.c.h.b16 %v9191
      %v9238 = vunpack.c.l.b16 %v9192
      %v9239 = vunpack.c.h.b16 %v9192
      %v9240 = vunpack.c.l.b16 %v9193
      %v9241 = vunpack.c.h.b16 %v9193
      %v9242 = vpack.c.b16 %v9210, %v9210
      %v9243 = vpack.c.b16 %v9211, %v9211
      %v9244 = vpack.c.b16 %v9212, %v9212
      %v9245 = vpack.c.b16 %v9213, %v9213
      %v9246 = vpack.c.b16 %v9214, %v9214
      %v9247 = vpack.c.b16 %v9215, %v9215
      %v9248 = vpack.c.b16 %v9216, %v9216
      %v9249 = vpack.c.b16 %v9217, %v9217
      %v9250 = vpack.c.b16 %v9218, %v9218
      %v9251 = vpack.c.b16 %v9219, %v9219
      %v9252 = vpack.c.b16 %v9220, %v9220
      %v9253 = vpack.c.b16 %v9221, %v9221
      %v9254 = vpack.c.b16 %v9222, %v9222
      %v9255 = vpack.c.b16 %v9223, %v9223
      %v9256 = vpack.c.b16 %v9224, %v9224
      %v9257 = vpack.c.b16 %v9225, %v9225
      %v9258 = vpack.c.b16 %v9226, %v9226
      %v9259 = vpack.c.b16 %v9227, %v9227
      %v9260 = vpack.c.b16 %v9228, %v9228
      %v9261 = vpack.c.b16 %v9229, %v9229
      %v9262 = vpack.c.b16 %v9230, %v9230
      %v9263 = vpack.c.b16 %v9231, %v9231
      %v9264 = vpack.c.b16 %v9232, %v9232
      %v9265 = vpack.c.b16 %v9233, %v9233
      %v9266 = vpack.c.b16 %v9234, %v9234
      %v9267 = vpack.c.b16 %v9235, %v9235
      %v9268 = vpack.c.b16 %v9236, %v9236
      %v9269 = vpack.c.b16 %v9237, %v9237
      %v9270 = vpack.c.b16 %v9238, %v9238
      %v9271 = vpack.c.b16 %v9239, %v9239
      %v9272 = vpack.c.b16 %v9240, %v9240
      %v9273 = vpack.c.b16 %v9241, %v9241
      %v9275 = vshrl.u32 %v9242, 16
      %v9277 = vrot.slane %v9275, 7
      %v9278 = vshll.u32 %v9242, 16
      %v9280 = vor.u32 %v9277, %v9278
      %v9281 = vrot.slane %v9277, 4
      %v9283 = vshrl.u32 %v9243, 16
      %v9285 = vrot.slane %v9283, 7
      %v9286 = vshll.u32 %v9243, 16
      %v9288 = vor.u32 %v9285, %v9286
      %v9289 = vsel %vm5939, %v9281, %v9288
      %v9290 = vrot.slane %v9285, 4
      %v9292 = vshrl.u32 %v9244, 16
      %v9294 = vrot.slane %v9292, 7
      %v9295 = vshll.u32 %v9244, 16
      %v9297 = vor.u32 %v9294, %v9295
      %v9298 = vrot.slane %v9294, 4
      %v9300 = vshrl.u32 %v9245, 16
      %v9302 = vrot.slane %v9300, 7
      %v9303 = vshll.u32 %v9245, 16
      %v9305 = vor.u32 %v9302, %v9303
      %v9306 = vsel %vm5939, %v9298, %v9305
      %v9307 = vrot.slane %v9302, 4
      %v9309 = vshrl.u32 %v9246, 16
      %v9311 = vrot.slane %v9309, 7
      %v9312 = vshll.u32 %v9246, 16
      %v9314 = vor.u32 %v9311, %v9312
      %v9315 = vrot.slane %v9311, 4
      %v9317 = vshrl.u32 %v9247, 16
      %v9319 = vrot.slane %v9317, 7
      %v9320 = vshll.u32 %v9247, 16
      %v9322 = vor.u32 %v9319, %v9320
      %v9323 = vsel %vm5939, %v9315, %v9322
      %v9324 = vrot.slane %v9319, 4
      %v9326 = vshrl.u32 %v9248, 16
      %v9328 = vrot.slane %v9326, 7
      %v9329 = vshll.u32 %v9248, 16
      %v9331 = vor.u32 %v9328, %v9329
      %v9332 = vrot.slane %v9328, 4
      %v9334 = vshrl.u32 %v9249, 16
      %v9336 = vrot.slane %v9334, 7
      %v9337 = vshll.u32 %v9249, 16
      %v9339 = vor.u32 %v9336, %v9337
      %v9340 = vsel %vm5939, %v9332, %v9339
      %v9341 = vrot.slane %v9336, 4
      %v9343 = vshrl.u32 %v9250, 16
      %v9345 = vrot.slane %v9343, 7
      %v9346 = vshll.u32 %v9250, 16
      %v9348 = vor.u32 %v9345, %v9346
      %v9349 = vrot.slane %v9345, 4
      %v9351 = vshrl.u32 %v9251, 16
      %v9353 = vrot.slane %v9351, 7
      %v9354 = vshll.u32 %v9251, 16
      %v9356 = vor.u32 %v9353, %v9354
      %v9357 = vsel %vm5939, %v9349, %v9356
      %v9358 = vrot.slane %v9353, 4
      %v9360 = vshrl.u32 %v9252, 16
      %v9362 = vrot.slane %v9360, 7
      %v9363 = vshll.u32 %v9252, 16
      %v9365 = vor.u32 %v9362, %v9363
      %v9366 = vrot.slane %v9362, 4
      %v9368 = vshrl.u32 %v9253, 16
      %v9370 = vrot.slane %v9368, 7
      %v9371 = vshll.u32 %v9253, 16
      %v9373 = vor.u32 %v9370, %v9371
      %v9374 = vsel %vm5939, %v9366, %v9373
      %v9375 = vrot.slane %v9370, 4
      %v9377 = vshrl.u32 %v9254, 16
      %v9379 = vrot.slane %v9377, 7
      %v9380 = vshll.u32 %v9254, 16
      %v9382 = vor.u32 %v9379, %v9380
      %v9383 = vrot.slane %v9379, 4
      %v9385 = vshrl.u32 %v9255, 16
      %v9387 = vrot.slane %v9385, 7
      %v9388 = vshll.u32 %v9255, 16
      %v9390 = vor.u32 %v9387, %v9388
      %v9391 = vsel %vm5939, %v9383, %v9390
      %v9392 = vrot.slane %v9387, 4
      %v9394 = vshrl.u32 %v9256, 16
      %v9396 = vrot.slane %v9394, 7
      %v9397 = vshll.u32 %v9256, 16
      %v9399 = vor.u32 %v9396, %v9397
      %v9400 = vrot.slane %v9396, 4
      %v9402 = vshrl.u32 %v9257, 16
      %v9404 = vrot.slane %v9402, 7
      %v9405 = vshll.u32 %v9257, 16
      %v9407 = vor.u32 %v9404, %v9405
      %v9408 = vsel %vm5939, %v9400, %v9407
      %v9409 = vrot.slane %v9404, 4
      %v9411 = vshrl.u32 %v9258, 16
      %v9413 = vrot.slane %v9411, 7
      %v9414 = vshll.u32 %v9258, 16
      %v9416 = vor.u32 %v9413, %v9414
      %v9417 = vrot.slane %v9413, 4
      %v9419 = vshrl.u32 %v9259, 16
      %v9421 = vrot.slane %v9419, 7
      %v9422 = vshll.u32 %v9259, 16
      %v9424 = vor.u32 %v9421, %v9422
      %v9425 = vsel %vm5939, %v9417, %v9424
      %v9426 = vrot.slane %v9421, 4
      %v9428 = vshrl.u32 %v9260, 16
      %v9430 = vrot.slane %v9428, 7
      %v9431 = vshll.u32 %v9260, 16
      %v9433 = vor.u32 %v9430, %v9431
      %v9434 = vrot.slane %v9430, 4
      %v9436 = vshrl.u32 %v9261, 16
      %v9438 = vrot.slane %v9436, 7
      %v9439 = vshll.u32 %v9261, 16
      %v9441 = vor.u32 %v9438, %v9439
      %v9442 = vsel %vm5939, %v9434, %v9441
      %v9443 = vrot.slane %v9438, 4
      %v9445 = vshrl.u32 %v9262, 16
      %v9447 = vrot.slane %v9445, 7
      %v9448 = vshll.u32 %v9262, 16
      %v9450 = vor.u32 %v9447, %v9448
      %v9451 = vrot.slane %v9447, 4
      %v9453 = vshrl.u32 %v9263, 16
      %v9455 = vrot.slane %v9453, 7
      %v9456 = vshll.u32 %v9263, 16
      %v9458 = vor.u32 %v9455, %v9456
      %v9459 = vsel %vm5939, %v9451, %v9458
      %v9460 = vrot.slane %v9455, 4
      %v9462 = vshrl.u32 %v9264, 16
      %v9464 = vrot.slane %v9462, 7
      %v9465 = vshll.u32 %v9264, 16
      %v9467 = vor.u32 %v9464, %v9465
      %v9468 = vrot.slane %v9464, 4
      %v9470 = vshrl.u32 %v9265, 16
      %v9472 = vrot.slane %v9470, 7
      %v9473 = vshll.u32 %v9265, 16
      %v9475 = vor.u32 %v9472, %v9473
      %v9476 = vsel %vm5939, %v9468, %v9475
      %v9477 = vrot.slane %v9472, 4
      %v9479 = vshrl.u32 %v9266, 16
      %v9481 = vrot.slane %v9479, 7
      %v9482 = vshll.u32 %v9266, 16
      %v9484 = vor.u32 %v9481, %v9482
      %v9485 = vrot.slane %v9481, 4
      %v9487 = vshrl.u32 %v9267, 16
      %v9489 = vrot.slane %v9487, 7
      %v9490 = vshll.u32 %v9267, 16
      %v9492 = vor.u32 %v9489, %v9490
      %v9493 = vsel %vm5939, %v9485, %v9492
      %v9494 = vrot.slane %v9489, 4
      %v9496 = vshrl.u32 %v9268, 16
      %v9498 = vrot.slane %v9496, 7
      %v9499 = vshll.u32 %v9268, 16
      %v9501 = vor.u32 %v9498, %v9499
      %v9502 = vrot.slane %v9498, 4
      %v9504 = vshrl.u32 %v9269, 16
      %v9506 = vrot.slane %v9504, 7
      %v9507 = vshll.u32 %v9269, 16
      %v9509 = vor.u32 %v9506, %v9507
      %v9510 = vsel %vm5939, %v9502, %v9509
      %v9511 = vrot.slane %v9506, 4
      %v9513 = vshrl.u32 %v9270, 16
      %v9515 = vrot.slane %v9513, 7
      %v9516 = vshll.u32 %v9270, 16
      %v9518 = vor.u32 %v9515, %v9516
      %v9519 = vrot.slane %v9515, 4
      %v9521 = vshrl.u32 %v9271, 16
      %v9523 = vrot.slane %v9521, 7
      %v9524 = vshll.u32 %v9271, 16
      %v9526 = vor.u32 %v9523, %v9524
      %v9527 = vsel %vm5939, %v9519, %v9526
      %v9528 = vrot.slane %v9523, 4
      %v9530 = vshrl.u32 %v9272, 16
      %v9532 = vrot.slane %v9530, 7
      %v9533 = vshll.u32 %v9272, 16
      %v9535 = vor.u32 %v9532, %v9533
      %v9536 = vrot.slane %v9532, 4
      %v9538 = vshrl.u32 %v9273, 16
      %v9540 = vrot.slane %v9538, 7
      %v9541 = vshll.u32 %v9273, 16
      %v9543 = vor.u32 %v9540, %v9541
      %v9544 = vsel %vm5939, %v9536, %v9543
      %v9545 = vrot.slane %v9540, 4
      %s9594 = scalar_lea.vmem [#allocation5], 12
      %v9595 = vld [vmem:[%s9594] sm:$0xf]
      %v9596 = vsel %vm6263, %v9280, %v9595
      %9597 = vst [vmem:[%s9594] sm:$0xf] %v9596
      %9598 = vst.msk [vmem:[%s9594 + $0x4] sm:$0xf] %vm6267, %v9289
      %v9599 = vld [vmem:[%s9594 + $0x8] sm:$0x1]
      %v9600 = vsel %vm6270, %v9290, %v9599
      %9601 = vst [vmem:[%s9594 + $0x8] sm:$0x1] %v9600
      %v9602 = vld [vmem:[%s9594 + $0xc] sm:$0xf]
      %v9603 = vsel %vm6263, %v9297, %v9602
      %9604 = vst [vmem:[%s9594 + $0xc] sm:$0xf] %v9603
      %9605 = vst.msk [vmem:[%s9594 + $0x10] sm:$0xf] %vm6267, %v9306
      %v9606 = vld [vmem:[%s9594 + $0x14] sm:$0x1]
      %v9607 = vsel %vm6270, %v9307, %v9606
      %9608 = vst [vmem:[%s9594 + $0x14] sm:$0x1] %v9607
      %v9609 = vld [vmem:[%s9594 + $0x18] sm:$0xf]
      %v9610 = vsel %vm6263, %v9314, %v9609
      %9611 = vst [vmem:[%s9594 + $0x18] sm:$0xf] %v9610
      %9612 = vst.msk [vmem:[%s9594 + $0x1c] sm:$0xf] %vm6267, %v9323
      %v9613 = vld [vmem:[%s9594 + $0x20] sm:$0x1]
      %v9614 = vsel %vm6270, %v9324, %v9613
      %9615 = vst [vmem:[%s9594 + $0x20] sm:$0x1] %v9614
      %v9616 = vld [vmem:[%s9594 + $0x24] sm:$0xf]
      %v9617 = vsel %vm6263, %v9331, %v9616
      %9618 = vst [vmem:[%s9594 + $0x24] sm:$0xf] %v9617
      %9619 = vst.msk [vmem:[%s9594 + $0x28] sm:$0xf] %vm6267, %v9340
      %v9620 = vld [vmem:[%s9594 + $0x2c] sm:$0x1]
      %v9621 = vsel %vm6270, %v9341, %v9620
      %9622 = vst [vmem:[%s9594 + $0x2c] sm:$0x1] %v9621
      %v9623 = vld [vmem:[%s9594 + $0x30] sm:$0xf]
      %v9624 = vsel %vm6263, %v9348, %v9623
      %9625 = vst [vmem:[%s9594 + $0x30] sm:$0xf] %v9624
      %9626 = vst.msk [vmem:[%s9594 + $0x34] sm:$0xf] %vm6267, %v9357
      %v9627 = vld [vmem:[%s9594 + $0x38] sm:$0x1]
      %v9628 = vsel %vm6270, %v9358, %v9627
      %9629 = vst [vmem:[%s9594 + $0x38] sm:$0x1] %v9628
      %v9630 = vld [vmem:[%s9594 + $0x3c] sm:$0xf]
      %v9631 = vsel %vm6263, %v9365, %v9630
      %9632 = vst [vmem:[%s9594 + $0x3c] sm:$0xf] %v9631
      %9633 = vst.msk [vmem:[%s9594 + $0x40] sm:$0xf] %vm6267, %v9374
      %v9634 = vld [vmem:[%s9594 + $0x44] sm:$0x1]
      %v9635 = vsel %vm6270, %v9375, %v9634
      %9636 = vst [vmem:[%s9594 + $0x44] sm:$0x1] %v9635
      %v9637 = vld [vmem:[%s9594 + $0x48] sm:$0xf]
      %v9638 = vsel %vm6263, %v9382, %v9637
      %9639 = vst [vmem:[%s9594 + $0x48] sm:$0xf] %v9638
      %9640 = vst.msk [vmem:[%s9594 + $0x4c] sm:$0xf] %vm6267, %v9391
      %v9641 = vld [vmem:[%s9594 + $0x50] sm:$0x1]
      %v9642 = vsel %vm6270, %v9392, %v9641
      %9643 = vst [vmem:[%s9594 + $0x50] sm:$0x1] %v9642
      %v9644 = vld [vmem:[%s9594 + $0x54] sm:$0xf]
      %v9645 = vsel %vm6263, %v9399, %v9644
      %9646 = vst [vmem:[%s9594 + $0x54] sm:$0xf] %v9645
      %9647 = vst.msk [vmem:[%s9594 + $0x58] sm:$0xf] %vm6267, %v9408
      %v9648 = vld [vmem:[%s9594 + $0x5c] sm:$0x1]
      %v9649 = vsel %vm6270, %v9409, %v9648
      %9650 = vst [vmem:[%s9594 + $0x5c] sm:$0x1] %v9649
      %v9651 = vld [vmem:[%s9594 + $0x60] sm:$0xf]
      %v9652 = vsel %vm6263, %v9416, %v9651
      %9653 = vst [vmem:[%s9594 + $0x60] sm:$0xf] %v9652
      %9654 = vst.msk [vmem:[%s9594 + $0x64] sm:$0xf] %vm6267, %v9425
      %v9655 = vld [vmem:[%s9594 + $0x68] sm:$0x1]
      %v9656 = vsel %vm6270, %v9426, %v9655
      %9657 = vst [vmem:[%s9594 + $0x68] sm:$0x1] %v9656
      %v9658 = vld [vmem:[%s9594 + $0x6c] sm:$0xf]
      %v9659 = vsel %vm6263, %v9433, %v9658
      %9660 = vst [vmem:[%s9594 + $0x6c] sm:$0xf] %v9659
      %9661 = vst.msk [vmem:[%s9594 + $0x70] sm:$0xf] %vm6267, %v9442
      %v9662 = vld [vmem:[%s9594 + $0x74] sm:$0x1]
      %v9663 = vsel %vm6270, %v9443, %v9662
      %9664 = vst [vmem:[%s9594 + $0x74] sm:$0x1] %v9663
      %v9665 = vld [vmem:[%s9594 + $0x78] sm:$0xf]
      %v9666 = vsel %vm6263, %v9450, %v9665
      %9667 = vst [vmem:[%s9594 + $0x78] sm:$0xf] %v9666
      %9668 = vst.msk [vmem:[%s9594 + $0x7c] sm:$0xf] %vm6267, %v9459
      %v9669 = vld [vmem:[%s9594 + $0x80] sm:$0x1]
      %v9670 = vsel %vm6270, %v9460, %v9669
      %9671 = vst [vmem:[%s9594 + $0x80] sm:$0x1] %v9670
      %v9672 = vld [vmem:[%s9594 + $0x84] sm:$0xf]
      %v9673 = vsel %vm6263, %v9467, %v9672
      %9674 = vst [vmem:[%s9594 + $0x84] sm:$0xf] %v9673
      %9675 = vst.msk [vmem:[%s9594 + $0x88] sm:$0xf] %vm6267, %v9476
      %v9676 = vld [vmem:[%s9594 + $0x8c] sm:$0x1]
      %v9677 = vsel %vm6270, %v9477, %v9676
      %9678 = vst [vmem:[%s9594 + $0x8c] sm:$0x1] %v9677
      %v9679 = vld [vmem:[%s9594 + $0x90] sm:$0xf]
      %v9680 = vsel %vm6263, %v9484, %v9679
      %9681 = vst [vmem:[%s9594 + $0x90] sm:$0xf] %v9680
      %9682 = vst.msk [vmem:[%s9594 + $0x94] sm:$0xf] %vm6267, %v9493
      %v9683 = vld [vmem:[%s9594 + $0x98] sm:$0x1]
      %v9684 = vsel %vm6270, %v9494, %v9683
      %9685 = vst [vmem:[%s9594 + $0x98] sm:$0x1] %v9684
      %v9686 = vld [vmem:[%s9594 + $0x9c] sm:$0xf]
      %v9687 = vsel %vm6263, %v9501, %v9686
      %9688 = vst [vmem:[%s9594 + $0x9c] sm:$0xf] %v9687
      %9689 = vst.msk [vmem:[%s9594 + $0xa0] sm:$0xf] %vm6267, %v9510
      %v9690 = vld [vmem:[%s9594 + $0xa4] sm:$0x1]
      %v9691 = vsel %vm6270, %v9511, %v9690
      %9692 = vst [vmem:[%s9594 + $0xa4] sm:$0x1] %v9691
      %v9693 = vld [vmem:[%s9594 + $0xa8] sm:$0xf]
      %v9694 = vsel %vm6263, %v9518, %v9693
      %9695 = vst [vmem:[%s9594 + $0xa8] sm:$0xf] %v9694
      %9696 = vst.msk [vmem:[%s9594 + $0xac] sm:$0xf] %vm6267, %v9527
      %v9697 = vld [vmem:[%s9594 + $0xb0] sm:$0x1]
      %v9698 = vsel %vm6270, %v9528, %v9697
      %9699 = vst [vmem:[%s9594 + $0xb0] sm:$0x1] %v9698
      %v9700 = vld [vmem:[%s9594 + $0xb4] sm:$0xf]
      %v9701 = vsel %vm6263, %v9535, %v9700
      %9702 = vst [vmem:[%s9594 + $0xb4] sm:$0xf] %v9701
      %9703 = vst.msk [vmem:[%s9594 + $0xb8] sm:$0xf] %vm6267, %v9544
      %v9704 = vld [vmem:[%s9594 + $0xbc] sm:$0x1]
      %v9705 = vsel %vm6270, %v9545, %v9704
      %9706 = vst [vmem:[%s9594 + $0xbc] sm:$0x1] %v9705
      %v9707 = vld [vmem:[%s6] sm:$0x1]
      %v9709 = vlaneseq
      %v9710 = vshrl.u32 %v9709, 7
      %v9711 = vsub.s32 0, %v9710
      %v9712 = vrot.slane %v9707, %v9711
      %9714 = vst.msk [vmem:[#allocation3] sm:$0xff] %vm579, %v9712
      %9715 = vst.msk [vmem:[#allocation3 + $0x8] sm:$0xff] %vm579, %v9712
      %9716 = vst.msk [vmem:[#allocation3 + $0x10] sm:$0xff] %vm579, %v9712
      %9717 = vst.msk [vmem:[#allocation3 + $0x18] sm:$0xff] %vm579, %v9712
      %9718 = vst.msk [vmem:[#allocation3 + $0x20] sm:$0xff] %vm579, %v9712
      %9719 = vst.msk [vmem:[#allocation3 + $0x28] sm:$0xff] %vm579, %v9712
      %9720 = vst.msk [vmem:[#allocation3 + $0x30] sm:$0xff] %vm579, %v9712
      %9721 = vst.msk [vmem:[#allocation3 + $0x38] sm:$0xff] %vm579, %v9712
      %9722 = vst.msk [vmem:[#allocation3 + $0x40] sm:$0xff] %vm579, %v9712
      %9723 = vst.msk [vmem:[#allocation3 + $0x48] sm:$0xff] %vm579, %v9712
      %9724 = vst.msk [vmem:[#allocation3 + $0x50] sm:$0xff] %vm579, %v9712
      %9725 = vst.msk [vmem:[#allocation3 + $0x58] sm:$0xff] %vm579, %v9712
      %9726 = vst.msk [vmem:[#allocation3 + $0x60] sm:$0xff] %vm579, %v9712
      %9727 = vst.msk [vmem:[#allocation3 + $0x68] sm:$0xff] %vm579, %v9712
      %9728 = vst.msk [vmem:[#allocation3 + $0x70] sm:$0xff] %vm579, %v9712
      %9729 = vst.msk [vmem:[#allocation3 + $0x78] sm:$0xff] %vm579, %v9712
      %9730 = vst.msk [vmem:[#allocation3 + $0x80] sm:$0xff] %vm579, %v9712
      %9731 = vst.msk [vmem:[#allocation3 + $0x88] sm:$0xff] %vm579, %v9712
      %9732 = vst.msk [vmem:[#allocation3 + $0x90] sm:$0xff] %vm579, %v9712
      %9733 = vst.msk [vmem:[#allocation3 + $0x98] sm:$0xff] %vm579, %v9712
      %9734 = vst.msk [vmem:[#allocation3 + $0xa0] sm:$0xff] %vm579, %v9712
      %9735 = vst.msk [vmem:[#allocation3 + $0xa8] sm:$0xff] %vm579, %v9712
      %9736 = vst.msk [vmem:[#allocation3 + $0xb0] sm:$0xff] %vm579, %v9712
      %9737 = vst.msk [vmem:[#allocation3 + $0xb8] sm:$0xff] %vm579, %v9712
      %9738 = vst.msk [vmem:[#allocation3 + $0xc0] sm:$0xff] %vm579, %v9712
      %9739 = vst.msk [vmem:[#allocation3 + $0xc8] sm:$0xff] %vm579, %v9712
      %9740 = vst.msk [vmem:[#allocation3 + $0xd0] sm:$0xff] %vm579, %v9712
      %9741 = vst.msk [vmem:[#allocation3 + $0xd8] sm:$0xff] %vm579, %v9712
      %9742 = vst.msk [vmem:[#allocation3 + $0xe0] sm:$0xff] %vm579, %v9712
      %9743 = vst.msk [vmem:[#allocation3 + $0xe8] sm:$0xff] %vm579, %v9712
      %9744 = vst.msk [vmem:[#allocation3 + $0xf0] sm:$0xff] %vm579, %v9712
      %9745 = vst.msk [vmem:[#allocation3 + $0xf8] sm:$0xff] %vm579, %v9712
      %v9746 = vld [vmem:[#allocation5] sm:$0xf]
      %v9747 = vld [vmem:[#allocation5 + $0x4] sm:$0xf]
      %v9748 = vld [vmem:[#allocation5 + $0x8] sm:$0x1]
      %v9749 = vld [vmem:[#allocation5 + $0xc] sm:$0xf]
      %v9750 = vld [vmem:[#allocation5 + $0x10] sm:$0xf]
      %v9751 = vld [vmem:[#allocation5 + $0x14] sm:$0x1]
      %v9752 = vld [vmem:[#allocation5 + $0x18] sm:$0xf]
      %v9753 = vld [vmem:[#allocation5 + $0x1c] sm:$0xf]
      %v9754 = vld [vmem:[#allocation5 + $0x20] sm:$0x1]
      %v9755 = vld [vmem:[#allocation5 + $0x24] sm:$0xf]
      %v9756 = vld [vmem:[#allocation5 + $0x28] sm:$0xf]
      %v9757 = vld [vmem:[#allocation5 + $0x2c] sm:$0x1]
      %v9758 = vld [vmem:[#allocation5 + $0x30] sm:$0xf]
      %v9759 = vld [vmem:[#allocation5 + $0x34] sm:$0xf]
      %v9760 = vld [vmem:[#allocation5 + $0x38] sm:$0x1]
      %v9761 = vld [vmem:[#allocation5 + $0x3c] sm:$0xf]
      %v9762 = vld [vmem:[#allocation5 + $0x40] sm:$0xf]
      %v9763 = vld [vmem:[#allocation5 + $0x44] sm:$0x1]
      %v9764 = vld [vmem:[#allocation5 + $0x48] sm:$0xf]
      %v9765 = vld [vmem:[#allocation5 + $0x4c] sm:$0xf]
      %v9766 = vld [vmem:[#allocation5 + $0x50] sm:$0x1]
      %v9767 = vld [vmem:[#allocation5 + $0x54] sm:$0xf]
      %v9768 = vld [vmem:[#allocation5 + $0x58] sm:$0xf]
      %v9769 = vld [vmem:[#allocation5 + $0x5c] sm:$0x1]
      %v9770 = vld [vmem:[#allocation5 + $0x60] sm:$0xf]
      %v9771 = vld [vmem:[#allocation5 + $0x64] sm:$0xf]
      %v9772 = vld [vmem:[#allocation5 + $0x68] sm:$0x1]
      %v9773 = vld [vmem:[#allocation5 + $0x6c] sm:$0xf]
      %v9774 = vld [vmem:[#allocation5 + $0x70] sm:$0xf]
      %v9775 = vld [vmem:[#allocation5 + $0x74] sm:$0x1]
      %v9776 = vld [vmem:[#allocation5 + $0x78] sm:$0xf]
      %v9777 = vld [vmem:[#allocation5 + $0x7c] sm:$0xf]
      %v9778 = vld [vmem:[#allocation5 + $0x80] sm:$0x1]
      %v9779 = vld [vmem:[#allocation5 + $0x84] sm:$0xf]
      %v9780 = vld [vmem:[#allocation5 + $0x88] sm:$0xf]
      %v9781 = vld [vmem:[#allocation5 + $0x8c] sm:$0x1]
      %v9782 = vld [vmem:[#allocation5 + $0x90] sm:$0xf]
      %v9783 = vld [vmem:[#allocation5 + $0x94] sm:$0xf]
      %v9784 = vld [vmem:[#allocation5 + $0x98] sm:$0x1]
      %v9785 = vld [vmem:[#allocation5 + $0x9c] sm:$0xf]
      %v9786 = vld [vmem:[#allocation5 + $0xa0] sm:$0xf]
      %v9787 = vld [vmem:[#allocation5 + $0xa4] sm:$0x1]
      %v9788 = vld [vmem:[#allocation5 + $0xa8] sm:$0xf]
      %v9789 = vld [vmem:[#allocation5 + $0xac] sm:$0xf]
      %v9790 = vld [vmem:[#allocation5 + $0xb0] sm:$0x1]
      %v9791 = vld [vmem:[#allocation5 + $0xb4] sm:$0xf]
      %v9792 = vld [vmem:[#allocation5 + $0xb8] sm:$0xf]
      %v9793 = vld [vmem:[#allocation5 + $0xbc] sm:$0x1]
      %v9826 = vunpack.c.l.b16 %v9746
      %v9827 = vunpack.c.l.b16 %v9747
      %v9828 = vunpack.c.l.b16 %v9749
      %v9829 = vunpack.c.l.b16 %v9750
      %v9830 = vunpack.c.l.b16 %v9752
      %v9831 = vunpack.c.l.b16 %v9753
      %v9832 = vunpack.c.l.b16 %v9755
      %v9833 = vunpack.c.l.b16 %v9756
      %v9834 = vunpack.c.l.b16 %v9758
      %v9835 = vunpack.c.l.b16 %v9759
      %v9836 = vunpack.c.l.b16 %v9761
      %v9837 = vunpack.c.l.b16 %v9762
      %v9838 = vunpack.c.l.b16 %v9764
      %v9839 = vunpack.c.l.b16 %v9765
      %v9840 = vunpack.c.l.b16 %v9767
      %v9841 = vunpack.c.l.b16 %v9768
      %v9842 = vunpack.c.l.b16 %v9770
      %v9843 = vunpack.c.l.b16 %v9771
      %v9844 = vunpack.c.l.b16 %v9773
      %v9845 = vunpack.c.l.b16 %v9774
      %v9846 = vunpack.c.l.b16 %v9776
      %v9847 = vunpack.c.l.b16 %v9777
      %v9848 = vunpack.c.l.b16 %v9779
      %v9849 = vunpack.c.l.b16 %v9780
      %v9850 = vunpack.c.l.b16 %v9782
      %v9851 = vunpack.c.l.b16 %v9783
      %v9852 = vunpack.c.l.b16 %v9785
      %v9853 = vunpack.c.l.b16 %v9786
      %v9854 = vunpack.c.l.b16 %v9788
      %v9855 = vunpack.c.l.b16 %v9789
      %v9856 = vunpack.c.l.b16 %v9791
      %v9857 = vunpack.c.l.b16 %v9792
      %v9858 = vpack.c.b16 %v9827, %v9826
      %v9859 = vpack.c.b16 %v9829, %v9828
      %v9860 = vpack.c.b16 %v9831, %v9830
      %v9861 = vpack.c.b16 %v9833, %v9832
      %v9862 = vpack.c.b16 %v9835, %v9834
      %v9863 = vpack.c.b16 %v9837, %v9836
      %v9864 = vpack.c.b16 %v9839, %v9838
      %v9865 = vpack.c.b16 %v9841, %v9840
      %v9866 = vpack.c.b16 %v9843, %v9842
      %v9867 = vpack.c.b16 %v9845, %v9844
      %v9868 = vpack.c.b16 %v9847, %v9846
      %v9869 = vpack.c.b16 %v9849, %v9848
      %v9870 = vpack.c.b16 %v9851, %v9850
      %v9871 = vpack.c.b16 %v9853, %v9852
      %v9872 = vpack.c.b16 %v9855, %v9854
      %v9873 = vpack.c.b16 %v9857, %v9856
      %v9890 = vunpack.c.l.b16 %v9748
      %v9891 = vunpack.c.l.b16 %v9751
      %v9892 = vunpack.c.l.b16 %v9754
      %v9893 = vunpack.c.l.b16 %v9757
      %v9894 = vunpack.c.l.b16 %v9760
      %v9895 = vunpack.c.l.b16 %v9763
      %v9896 = vunpack.c.l.b16 %v9766
      %v9897 = vunpack.c.l.b16 %v9769
      %v9898 = vunpack.c.l.b16 %v9772
      %v9899 = vunpack.c.l.b16 %v9775
      %v9900 = vunpack.c.l.b16 %v9778
      %v9901 = vunpack.c.l.b16 %v9781
      %v9902 = vunpack.c.l.b16 %v9784
      %v9903 = vunpack.c.l.b16 %v9787
      %v9904 = vunpack.c.l.b16 %v9790
      %v9905 = vunpack.c.l.b16 %v9793
      %v9906 = vpack.c.b16 %v9890, %v9890
      %v9907 = vpack.c.b16 %v9891, %v9891
      %v9908 = vpack.c.b16 %v9892, %v9892
      %v9909 = vpack.c.b16 %v9893, %v9893
      %v9910 = vpack.c.b16 %v9894, %v9894
      %v9911 = vpack.c.b16 %v9895, %v9895
      %v9912 = vpack.c.b16 %v9896, %v9896
      %v9913 = vpack.c.b16 %v9897, %v9897
      %v9914 = vpack.c.b16 %v9898, %v9898
      %v9915 = vpack.c.b16 %v9899, %v9899
      %v9916 = vpack.c.b16 %v9900, %v9900
      %v9917 = vpack.c.b16 %v9901, %v9901
      %v9918 = vpack.c.b16 %v9902, %v9902
      %v9919 = vpack.c.b16 %v9903, %v9903
      %v9920 = vpack.c.b16 %v9904, %v9904
      %v9921 = vpack.c.b16 %v9905, %v9905
      %v9923 = vshrl.u32 %v9858, 16
      %v9925 = vshll.u32 %v9858, 16
      %v9927 = vrot.slane %v9925, 1
      %v9928 = vor.u32 %v9923, %v9927
      %v9930 = vshll.u32 %v9906, 16
      %v9932 = vrot.slane %v9930, 1
      %v9933 = vsel %vm6594, %v9928, %v9932
      %v9935 = vshrl.u32 %v9859, 16
      %v9937 = vshll.u32 %v9859, 16
      %v9939 = vrot.slane %v9937, 1
      %v9940 = vor.u32 %v9935, %v9939
      %v9942 = vshll.u32 %v9907, 16
      %v9944 = vrot.slane %v9942, 1
      %v9945 = vsel %vm6594, %v9940, %v9944
      %v9947 = vshrl.u32 %v9860, 16
      %v9949 = vshll.u32 %v9860, 16
      %v9951 = vrot.slane %v9949, 1
      %v9952 = vor.u32 %v9947, %v9951
      %v9954 = vshll.u32 %v9908, 16
      %v9956 = vrot.slane %v9954, 1
      %v9957 = vsel %vm6594, %v9952, %v9956
      %v9959 = vshrl.u32 %v9861, 16
      %v9961 = vshll.u32 %v9861, 16
      %v9963 = vrot.slane %v9961, 1
      %v9964 = vor.u32 %v9959, %v9963
      %v9966 = vshll.u32 %v9909, 16
      %v9968 = vrot.slane %v9966, 1
      %v9969 = vsel %vm6594, %v9964, %v9968
      %v9971 = vshrl.u32 %v9862, 16
      %v9973 = vshll.u32 %v9862, 16
      %v9975 = vrot.slane %v9973, 1
      %v9976 = vor.u32 %v9971, %v9975
      %v9978 = vshll.u32 %v9910, 16
      %v9980 = vrot.slane %v9978, 1
      %v9981 = vsel %vm6594, %v9976, %v9980
      %v9983 = vshrl.u32 %v9863, 16
      %v9985 = vshll.u32 %v9863, 16
      %v9987 = vrot.slane %v9985, 1
      %v9988 = vor.u32 %v9983, %v9987
      %v9990 = vshll.u32 %v9911, 16
      %v9992 = vrot.slane %v9990, 1
      %v9993 = vsel %vm6594, %v9988, %v9992
      %v9995 = vshrl.u32 %v9864, 16
      %v9997 = vshll.u32 %v9864, 16
      %v9999 = vrot.slane %v9997, 1
      %v10000 = vor.u32 %v9995, %v9999
      %v10002 = vshll.u32 %v9912, 16
      %v10004 = vrot.slane %v10002, 1
      %v10005 = vsel %vm6594, %v10000, %v10004
      %v10007 = vshrl.u32 %v9865, 16
      %v10009 = vshll.u32 %v9865, 16
      %v10011 = vrot.slane %v10009, 1
      %v10012 = vor.u32 %v10007, %v10011
      %v10014 = vshll.u32 %v9913, 16
      %v10016 = vrot.slane %v10014, 1
      %v10017 = vsel %vm6594, %v10012, %v10016
      %v10019 = vshrl.u32 %v9866, 16
      %v10021 = vshll.u32 %v9866, 16
      %v10023 = vrot.slane %v10021, 1
      %v10024 = vor.u32 %v10019, %v10023
      %v10026 = vshll.u32 %v9914, 16
      %v10028 = vrot.slane %v10026, 1
      %v10029 = vsel %vm6594, %v10024, %v10028
      %v10031 = vshrl.u32 %v9867, 16
      %v10033 = vshll.u32 %v9867, 16
      %v10035 = vrot.slane %v10033, 1
      %v10036 = vor.u32 %v10031, %v10035
      %v10038 = vshll.u32 %v9915, 16
      %v10040 = vrot.slane %v10038, 1
      %v10041 = vsel %vm6594, %v10036, %v10040
      %v10043 = vshrl.u32 %v9868, 16
      %v10045 = vshll.u32 %v9868, 16
      %v10047 = vrot.slane %v10045, 1
      %v10048 = vor.u32 %v10043, %v10047
      %v10050 = vshll.u32 %v9916, 16
      %v10052 = vrot.slane %v10050, 1
      %v10053 = vsel %vm6594, %v10048, %v10052
      %v10055 = vshrl.u32 %v9869, 16
      %v10057 = vshll.u32 %v9869, 16
      %v10059 = vrot.slane %v10057, 1
      %v10060 = vor.u32 %v10055, %v10059
      %v10062 = vshll.u32 %v9917, 16
      %v10064 = vrot.slane %v10062, 1
      %v10065 = vsel %vm6594, %v10060, %v10064
      %v10067 = vshrl.u32 %v9870, 16
      %v10069 = vshll.u32 %v9870, 16
      %v10071 = vrot.slane %v10069, 1
      %v10072 = vor.u32 %v10067, %v10071
      %v10074 = vshll.u32 %v9918, 16
      %v10076 = vrot.slane %v10074, 1
      %v10077 = vsel %vm6594, %v10072, %v10076
      %v10079 = vshrl.u32 %v9871, 16
      %v10081 = vshll.u32 %v9871, 16
      %v10083 = vrot.slane %v10081, 1
      %v10084 = vor.u32 %v10079, %v10083
      %v10086 = vshll.u32 %v9919, 16
      %v10088 = vrot.slane %v10086, 1
      %v10089 = vsel %vm6594, %v10084, %v10088
      %v10091 = vshrl.u32 %v9872, 16
      %v10093 = vshll.u32 %v9872, 16
      %v10095 = vrot.slane %v10093, 1
      %v10096 = vor.u32 %v10091, %v10095
      %v10098 = vshll.u32 %v9920, 16
      %v10100 = vrot.slane %v10098, 1
      %v10101 = vsel %vm6594, %v10096, %v10100
      %v10103 = vshrl.u32 %v9873, 16
      %v10105 = vshll.u32 %v9873, 16
      %v10107 = vrot.slane %v10105, 1
      %v10108 = vor.u32 %v10103, %v10107
      %v10110 = vshll.u32 %v9921, 16
      %v10112 = vrot.slane %v10110, 1
      %v10113 = vsel %vm6594, %v10108, %v10112
      %10114 = vrot.lane.b32.xlu0 %v9933, 64
      %v10115 = vpop.permute.xlu0 %10114
      %10116 = vrot.lane.b32.xlu0 %v9945, 64
      %v10117 = vpop.permute.xlu0 %10116
      %10118 = vrot.lane.b32.xlu0 %v9957, 64
      %v10119 = vpop.permute.xlu0 %10118
      %10120 = vrot.lane.b32.xlu0 %v9969, 64
      %v10121 = vpop.permute.xlu0 %10120
      %10122 = vrot.lane.b32.xlu0 %v9981, 64
      %v10123 = vpop.permute.xlu0 %10122
      %10124 = vrot.lane.b32.xlu0 %v9993, 64
      %v10125 = vpop.permute.xlu0 %10124
      %10126 = vrot.lane.b32.xlu0 %v10005, 64
      %v10127 = vpop.permute.xlu0 %10126
      %10128 = vrot.lane.b32.xlu0 %v10017, 64
      %v10129 = vpop.permute.xlu0 %10128
      %10130 = vrot.lane.b32.xlu0 %v10029, 64
      %v10131 = vpop.permute.xlu0 %10130
      %10132 = vrot.lane.b32.xlu0 %v10041, 64
      %v10133 = vpop.permute.xlu0 %10132
      %10134 = vrot.lane.b32.xlu0 %v10053, 64
      %v10135 = vpop.permute.xlu0 %10134
      %10136 = vrot.lane.b32.xlu0 %v10065, 64
      %v10137 = vpop.permute.xlu0 %10136
      %10138 = vrot.lane.b32.xlu0 %v10077, 64
      %v10139 = vpop.permute.xlu0 %10138
      %10140 = vrot.lane.b32.xlu0 %v10089, 64
      %v10141 = vpop.permute.xlu0 %10140
      %10142 = vrot.lane.b32.xlu0 %v10101, 64
      %v10143 = vpop.permute.xlu0 %10142
      %10144 = vrot.lane.b32.xlu0 %v10113, 64
      %v10145 = vpop.permute.xlu0 %10144
      %v10146 = vrot.slane %v9858, 1
      %v10147 = vrot.slane %v9906, 1
      %v10148 = vsel %vm6819, %v10146, %v10147
      %v10149 = vrot.slane %v9859, 1
      %v10150 = vrot.slane %v9907, 1
      %v10151 = vsel %vm6819, %v10149, %v10150
      %v10152 = vrot.slane %v9860, 1
      %v10153 = vrot.slane %v9908, 1
      %v10154 = vsel %vm6819, %v10152, %v10153
      %v10155 = vrot.slane %v9861, 1
      %v10156 = vrot.slane %v9909, 1
      %v10157 = vsel %vm6819, %v10155, %v10156
      %v10158 = vrot.slane %v9862, 1
      %v10159 = vrot.slane %v9910, 1
      %v10160 = vsel %vm6819, %v10158, %v10159
      %v10161 = vrot.slane %v9863, 1
      %v10162 = vrot.slane %v9911, 1
      %v10163 = vsel %vm6819, %v10161, %v10162
      %v10164 = vrot.slane %v9864, 1
      %v10165 = vrot.slane %v9912, 1
      %v10166 = vsel %vm6819, %v10164, %v10165
      %v10167 = vrot.slane %v9865, 1
      %v10168 = vrot.slane %v9913, 1
      %v10169 = vsel %vm6819, %v10167, %v10168
      %v10170 = vrot.slane %v9866, 1
      %v10171 = vrot.slane %v9914, 1
      %v10172 = vsel %vm6819, %v10170, %v10171
      %v10173 = vrot.slane %v9867, 1
      %v10174 = vrot.slane %v9915, 1
      %v10175 = vsel %vm6819, %v10173, %v10174
      %v10176 = vrot.slane %v9868, 1
      %v10177 = vrot.slane %v9916, 1
      %v10178 = vsel %vm6819, %v10176, %v10177
      %v10179 = vrot.slane %v9869, 1
      %v10180 = vrot.slane %v9917, 1
      %v10181 = vsel %vm6819, %v10179, %v10180
      %v10182 = vrot.slane %v9870, 1
      %v10183 = vrot.slane %v9918, 1
      %v10184 = vsel %vm6819, %v10182, %v10183
      %v10185 = vrot.slane %v9871, 1
      %v10186 = vrot.slane %v9919, 1
      %v10187 = vsel %vm6819, %v10185, %v10186
      %v10188 = vrot.slane %v9872, 1
      %v10189 = vrot.slane %v9920, 1
      %v10190 = vsel %vm6819, %v10188, %v10189
      %v10191 = vrot.slane %v9873, 1
      %v10192 = vrot.slane %v9921, 1
      %v10193 = vsel %vm6819, %v10191, %v10192
      %v10195 = vsel %vm401, %v9858, %v10115
      %v10198 = vsel %vm401, %v9859, %v10117
      %v10201 = vsel %vm401, %v9860, %v10119
      %v10204 = vsel %vm401, %v9861, %v10121
      %v10207 = vsel %vm401, %v9862, %v10123
      %v10210 = vsel %vm401, %v9863, %v10125
      %v10213 = vsel %vm401, %v9864, %v10127
      %v10216 = vsel %vm401, %v9865, %v10129
      %v10219 = vsel %vm401, %v9866, %v10131
      %v10222 = vsel %vm401, %v9867, %v10133
      %v10225 = vsel %vm401, %v9868, %v10135
      %v10228 = vsel %vm401, %v9869, %v10137
      %v10231 = vsel %vm401, %v9870, %v10139
      %v10234 = vsel %vm401, %v9871, %v10141
      %v10237 = vsel %vm401, %v9872, %v10143
      %v10240 = vsel %vm401, %v9873, %v10145
      %v10242 = vld [vmem:[#allocation3] sm:$0xff]
      %v10243 = vld [vmem:[#allocation3 + $0x8] sm:$0xff]
      %v10244 = vld [vmem:[#allocation3 + $0x10] sm:$0xff]
      %v10245 = vld [vmem:[#allocation3 + $0x18] sm:$0xff]
      %v10246 = vld [vmem:[#allocation3 + $0x20] sm:$0xff]
      %v10247 = vld [vmem:[#allocation3 + $0x28] sm:$0xff]
      %v10248 = vld [vmem:[#allocation3 + $0x30] sm:$0xff]
      %v10249 = vld [vmem:[#allocation3 + $0x38] sm:$0xff]
      %v10250 = vld [vmem:[#allocation3 + $0x40] sm:$0xff]
      %v10251 = vld [vmem:[#allocation3 + $0x48] sm:$0xff]
      %v10252 = vld [vmem:[#allocation3 + $0x50] sm:$0xff]
      %v10253 = vld [vmem:[#allocation3 + $0x58] sm:$0xff]
      %v10254 = vld [vmem:[#allocation3 + $0x60] sm:$0xff]
      %v10255 = vld [vmem:[#allocation3 + $0x68] sm:$0xff]
      %v10256 = vld [vmem:[#allocation3 + $0x70] sm:$0xff]
      %v10257 = vld [vmem:[#allocation3 + $0x78] sm:$0xff]
      %v10258 = vld [vmem:[#allocation3 + $0x80] sm:$0xff]
      %v10259 = vld [vmem:[#allocation3 + $0x88] sm:$0xff]
      %v10260 = vld [vmem:[#allocation3 + $0x90] sm:$0xff]
      %v10261 = vld [vmem:[#allocation3 + $0x98] sm:$0xff]
      %v10262 = vld [vmem:[#allocation3 + $0xa0] sm:$0xff]
      %v10263 = vld [vmem:[#allocation3 + $0xa8] sm:$0xff]
      %v10264 = vld [vmem:[#allocation3 + $0xb0] sm:$0xff]
      %v10265 = vld [vmem:[#allocation3 + $0xb8] sm:$0xff]
      %v10266 = vld [vmem:[#allocation3 + $0xc0] sm:$0xff]
      %v10267 = vld [vmem:[#allocation3 + $0xc8] sm:$0xff]
      %v10268 = vld [vmem:[#allocation3 + $0xd0] sm:$0xff]
      %v10269 = vld [vmem:[#allocation3 + $0xd8] sm:$0xff]
      %v10270 = vld [vmem:[#allocation3 + $0xe0] sm:$0xff]
      %v10271 = vld [vmem:[#allocation3 + $0xe8] sm:$0xff]
      %v10272 = vld [vmem:[#allocation3 + $0xf0] sm:$0xff]
      %v10273 = vld [vmem:[#allocation3 + $0xf8] sm:$0xff]
      %v10274 = vld [vmem:[%s5] sm:$0xf]
      %v10275 = vld [vmem:[%s5 + $0x4] sm:$0xf]
      %v10276 = vld [vmem:[%s5 + $0x8] sm:$0xf]
      %v10277 = vld [vmem:[%s5 + $0xc] sm:$0xf]
      %v10278 = vld [vmem:[%s5 + $0x10] sm:$0xf]
      %v10279 = vld [vmem:[%s5 + $0x14] sm:$0xf]
      %v10280 = vld [vmem:[%s5 + $0x18] sm:$0xf]
      %v10281 = vld [vmem:[%s5 + $0x1c] sm:$0xf]
      %v10282 = vld [vmem:[%s5 + $0x20] sm:$0xf]
      %v10283 = vld [vmem:[%s5 + $0x24] sm:$0xf]
      %v10284 = vld [vmem:[%s5 + $0x28] sm:$0xf]
      %v10285 = vld [vmem:[%s5 + $0x2c] sm:$0xf]
      %v10286 = vld [vmem:[%s5 + $0x30] sm:$0xf]
      %v10287 = vld [vmem:[%s5 + $0x34] sm:$0xf]
      %v10288 = vld [vmem:[%s5 + $0x38] sm:$0xf]
      %v10289 = vld [vmem:[%s5 + $0x3c] sm:$0xf]
      %v10290 = vld [vmem:[%s5 + $0x40] sm:$0xf]
      %v10291 = vld [vmem:[%s5 + $0x44] sm:$0xf]
      %v10292 = vld [vmem:[%s5 + $0x48] sm:$0xf]
      %v10293 = vld [vmem:[%s5 + $0x4c] sm:$0xf]
      %v10294 = vld [vmem:[%s5 + $0x50] sm:$0xf]
      %v10295 = vld [vmem:[%s5 + $0x54] sm:$0xf]
      %v10296 = vld [vmem:[%s5 + $0x58] sm:$0xf]
      %v10297 = vld [vmem:[%s5 + $0x5c] sm:$0xf]
      %v10322 = vunpack.c.l.b16 %v10274
      %v10323 = vunpack.c.l.b16 %v10275
      %v10324 = vunpack.c.l.b16 %v10276
      %v10325 = vunpack.c.l.b16 %v10277
      %v10326 = vunpack.c.l.b16 %v10278
      %v10327 = vunpack.c.l.b16 %v10279
      %v10328 = vunpack.c.l.b16 %v10280
      %v10329 = vunpack.c.l.b16 %v10281
      %v10330 = vunpack.c.l.b16 %v10282
      %v10331 = vunpack.c.l.b16 %v10283
      %v10332 = vunpack.c.l.b16 %v10284
      %v10333 = vunpack.c.l.b16 %v10285
      %v10334 = vunpack.c.l.b16 %v10286
      %v10335 = vunpack.c.l.b16 %v10287
      %v10336 = vunpack.c.l.b16 %v10288
      %v10337 = vunpack.c.l.b16 %v10289
      %v10338 = vunpack.c.l.b16 %v10290
      %v10339 = vunpack.c.l.b16 %v10291
      %v10340 = vunpack.c.l.b16 %v10292
      %v10341 = vunpack.c.l.b16 %v10293
      %v10342 = vunpack.c.l.b16 %v10294
      %v10343 = vunpack.c.l.b16 %v10295
      %v10344 = vunpack.c.l.b16 %v10296
      %v10345 = vunpack.c.l.b16 %v10297
      %v10346 = vpack.c.b16 %v10323, %v10322
      %v10347 = vpack.c.b16 %v10325, %v10324
      %v10348 = vpack.c.b16 %v10327, %v10326
      %v10349 = vpack.c.b16 %v10329, %v10328
      %v10350 = vpack.c.b16 %v10331, %v10330
      %v10351 = vpack.c.b16 %v10333, %v10332
      %v10352 = vpack.c.b16 %v10335, %v10334
      %v10353 = vpack.c.b16 %v10337, %v10336
      %v10354 = vpack.c.b16 %v10339, %v10338
      %v10355 = vpack.c.b16 %v10341, %v10340
      %v10356 = vpack.c.b16 %v10343, %v10342
      %v10357 = vpack.c.b16 %v10345, %v10344
      %v10371 = vsel %vm401, %v10148, 0
      %v10374 = vsel %vm401, %v10151, 0
      %v10377 = vsel %vm401, %v10154, 0
      %v10380 = vsel %vm401, %v10157, 0
      %v10383 = vsel %vm401, %v10160, 0
      %v10386 = vsel %vm401, %v10163, 0
      %v10389 = vsel %vm401, %v10166, 0
      %v10392 = vsel %vm401, %v10169, 0
      %v10395 = vsel %vm401, %v10172, 0
      %v10398 = vsel %vm401, %v10175, 0
      %v10401 = vsel %vm401, %v10178, 0
      %v10404 = vsel %vm401, %v10181, 0
      %v10407 = vsel %vm401, %v10184, 0
      %v10410 = vsel %vm401, %v10187, 0
      %v10413 = vsel %vm401, %v10190, 0
      %v10416 = vsel %vm401, %v10193, 0
      %10418 = vmatprep.subr.bf16.mxu0 0
      %10419 = vmatpush1.bf16.msra.mxu0 %v10346
      %10420 = vmatprep.subr.bf16.mxu0 0
      %10421 = vmatpush1.bf16.msra.mxu0 %v10347
      %10422 = vmatprep.subr.bf16.mxu0 0
      %10423 = vmatpush1.bf16.msra.mxu0 %v10348
      %10424 = vmatprep.subr.bf16.mxu0 0
      %10425 = vmatpush1.bf16.msra.mxu0 %v10349
      %10426 = vmatprep.subr.bf16.mxu0 0
      %10427 = vmatpush1.bf16.msra.mxu0 %v10350
      %10428 = vmatprep.subr.bf16.mxu0 0
      %10429 = vmatpush1.bf16.msra.mxu0 %v10351
      %10430 = vmatprep.subr.bf16.mxu0 0
      %10431 = vmatpush1.bf16.msra.mxu0 %v10352
      %10432 = vmatprep.subr.bf16.mxu0 0
      %10433 = vmatpush1.bf16.msra.mxu0 %v10353
      %10434 = vmatprep.subr.bf16.mxu0 0
      %10435 = vmatpush1.bf16.msra.mxu0 %v10354
      %10436 = vmatprep.subr.bf16.mxu0 0
      %10437 = vmatpush1.bf16.msra.mxu0 %v10355
      %10438 = vmatprep.subr.bf16.mxu0 0
      %10439 = vmatpush1.bf16.msra.mxu0 %v10356
      %10440 = vmatprep.subr.bf16.mxu0 0
      %10441 = vmatpush1.bf16.msra.mxu0 %v10357
      %10442 = vmatprep.subr.bf16.mxu0 0
      %10443 = vmatpush1.bf16.msra.mxu0 0
      %10444 = vmatprep.subr.bf16.mxu0 0
      %10445 = vmatpush1.bf16.msra.mxu0 0
      %10446 = vmatprep.subr.bf16.mxu0 0
      %10447 = vmatpush1.bf16.msra.mxu0 0
      %10448 = vmatprep.subr.bf16.mxu0 0
      %10449 = vmatpush1.bf16.msra.mxu0 0
      %10450 = vmatprep.mubr.bf16.mxu0 %v10371
      %10451 = vmatmul.mubr.bf16.gmra.mrb[0].mxu0 %v10195
      %v10452 = vpop.f32.mrb[0].mxu0
      %v10453 = vadd.f32 0.0, %v10452
      %v10454 = vpop.f32.mrb[0].mxu0
      %v10455 = vpop.f32.mrb[0].mxu0
      %v10456 = vadd.f32 0.0, %v10455
      %v10457 = vpop.f32.mrb[0].mxu0
      %10458 = vmatprep.mubr.bf16.mxu0 %v10374
      %10459 = vmatmul.mubr.bf16.gmra.mrb[0].mxu0 %v10198
      %v10460 = vpop.f32.mrb[0].mxu0
      %v10461 = vadd.f32 0.0, %v10460
      %v10462 = vpop.f32.mrb[0].mxu0
      %v10463 = vpop.f32.mrb[0].mxu0
      %v10464 = vadd.f32 0.0, %v10463
      %v10465 = vpop.f32.mrb[0].mxu0
      %10466 = vmatprep.mubr.bf16.mxu0 %v10377
      %10467 = vmatmul.mubr.bf16.gmra.mrb[0].mxu0 %v10201
      %v10468 = vpop.f32.mrb[0].mxu0
      %v10469 = vadd.f32 0.0, %v10468
      %v10470 = vpop.f32.mrb[0].mxu0
      %v10471 = vpop.f32.mrb[0].mxu0
      %v10472 = vadd.f32 0.0, %v10471
      %v10473 = vpop.f32.mrb[0].mxu0
      %10474 = vmatprep.mubr.bf16.mxu0 %v10380
      %10475 = vmatmul.mubr.bf16.gmra.mrb[0].mxu0 %v10204
      %v10476 = vpop.f32.mrb[0].mxu0
      %v10477 = vadd.f32 0.0, %v10476
      %v10478 = vpop.f32.mrb[0].mxu0
      %v10479 = vpop.f32.mrb[0].mxu0
      %v10480 = vadd.f32 0.0, %v10479
      %v10481 = vpop.f32.mrb[0].mxu0
      %10482 = vmatprep.mubr.bf16.mxu0 %v10383
      %10483 = vmatmul.mubr.bf16.gmra.mrb[0].mxu0 %v10207
      %v10484 = vpop.f32.mrb[0].mxu0
      %v10485 = vadd.f32 0.0, %v10484
      %v10486 = vpop.f32.mrb[0].mxu0
      %v10487 = vpop.f32.mrb[0].mxu0
      %v10488 = vadd.f32 0.0, %v10487
      %v10489 = vpop.f32.mrb[0].mxu0
      %10490 = vmatprep.mubr.bf16.mxu0 %v10386
      %10491 = vmatmul.mubr.bf16.gmra.mrb[0].mxu0 %v10210
      %v10492 = vpop.f32.mrb[0].mxu0
      %v10493 = vadd.f32 0.0, %v10492
      %v10494 = vpop.f32.mrb[0].mxu0
      %v10495 = vpop.f32.mrb[0].mxu0
      %v10496 = vadd.f32 0.0, %v10495
      %v10497 = vpop.f32.mrb[0].mxu0
      %10498 = vmatprep.mubr.bf16.mxu0 %v10389
      %10499 = vmatmul.mubr.bf16.gmra.mrb[0].mxu0 %v10213
      %v10500 = vpop.f32.mrb[0].mxu0
      %v10501 = vadd.f32 0.0, %v10500
      %v10502 = vpop.f32.mrb[0].mxu0
      %v10503 = vpop.f32.mrb[0].mxu0
      %v10504 = vadd.f32 0.0, %v10503
      %v10505 = vpop.f32.mrb[0].mxu0
      %10506 = vmatprep.mubr.bf16.mxu0 %v10392
      %10507 = vmatmul.mubr.bf16.gmra.mrb[0].mxu0 %v10216
      %v10508 = vpop.f32.mrb[0].mxu0
      %v10509 = vadd.f32 0.0, %v10508
      %v10510 = vpop.f32.mrb[0].mxu0
      %v10511 = vpop.f32.mrb[0].mxu0
      %v10512 = vadd.f32 0.0, %v10511
      %v10513 = vpop.f32.mrb[0].mxu0
      %10514 = vmatprep.mubr.bf16.mxu0 %v10395
      %10515 = vmatmul.mubr.bf16.gmra.mrb[0].mxu0 %v10219
      %v10516 = vpop.f32.mrb[0].mxu0
      %v10517 = vadd.f32 0.0, %v10516
      %v10518 = vpop.f32.mrb[0].mxu0
      %v10519 = vpop.f32.mrb[0].mxu0
      %v10520 = vadd.f32 0.0, %v10519
      %v10521 = vpop.f32.mrb[0].mxu0
      %10522 = vmatprep.mubr.bf16.mxu0 %v10398
      %10523 = vmatmul.mubr.bf16.gmra.mrb[0].mxu0 %v10222
      %v10524 = vpop.f32.mrb[0].mxu0
      %v10525 = vadd.f32 0.0, %v10524
      %v10526 = vpop.f32.mrb[0].mxu0
      %v10527 = vpop.f32.mrb[0].mxu0
      %v10528 = vadd.f32 0.0, %v10527
      %v10529 = vpop.f32.mrb[0].mxu0
      %10530 = vmatprep.mubr.bf16.mxu0 %v10401
      %10531 = vmatmul.mubr.bf16.gmra.mrb[0].mxu0 %v10225
      %v10532 = vpop.f32.mrb[0].mxu0
      %v10533 = vadd.f32 0.0, %v10532
      %v10534 = vpop.f32.mrb[0].mxu0
      %v10535 = vpop.f32.mrb[0].mxu0
      %v10536 = vadd.f32 0.0, %v10535
      %v10537 = vpop.f32.mrb[0].mxu0
      %10538 = vmatprep.mubr.bf16.mxu0 %v10404
      %10539 = vmatmul.mubr.bf16.gmra.mrb[0].mxu0 %v10228
      %v10540 = vpop.f32.mrb[0].mxu0
      %v10541 = vadd.f32 0.0, %v10540
      %v10542 = vpop.f32.mrb[0].mxu0
      %v10543 = vpop.f32.mrb[0].mxu0
      %v10544 = vadd.f32 0.0, %v10543
      %v10545 = vpop.f32.mrb[0].mxu0
      %10546 = vmatprep.mubr.bf16.mxu0 %v10407
      %10547 = vmatmul.mubr.bf16.gmra.mrb[0].mxu0 %v10231
      %v10548 = vpop.f32.mrb[0].mxu0
      %v10549 = vadd.f32 0.0, %v10548
      %v10550 = vpop.f32.mrb[0].mxu0
      %v10551 = vpop.f32.mrb[0].mxu0
      %v10552 = vadd.f32 0.0, %v10551
      %v10553 = vpop.f32.mrb[0].mxu0
      %10554 = vmatprep.mubr.bf16.mxu0 %v10410
      %10555 = vmatmul.mubr.bf16.gmra.mrb[0].mxu0 %v10234
      %v10556 = vpop.f32.mrb[0].mxu0
      %v10557 = vadd.f32 0.0, %v10556
      %v10558 = vpop.f32.mrb[0].mxu0
      %v10559 = vpop.f32.mrb[0].mxu0
      %v10560 = vadd.f32 0.0, %v10559
      %v10561 = vpop.f32.mrb[0].mxu0
      %10562 = vmatprep.mubr.bf16.mxu0 %v10413
      %10563 = vmatmul.mubr.bf16.gmra.mrb[0].mxu0 %v10237
      %v10564 = vpop.f32.mrb[0].mxu0
      %v10565 = vadd.f32 0.0, %v10564
      %v10566 = vpop.f32.mrb[0].mxu0
      %v10567 = vpop.f32.mrb[0].mxu0
      %v10568 = vadd.f32 0.0, %v10567
      %v10569 = vpop.f32.mrb[0].mxu0
      %10570 = vmatprep.mubr.bf16.mxu0 %v10416
      %10571 = vmatmul.mubr.bf16.gmra.mrb[0].mxu0 %v10240
      %v10572 = vpop.f32.mrb[0].mxu0
      %v10573 = vadd.f32 0.0, %v10572
      %v10574 = vpop.f32.mrb[0].mxu0
      %v10575 = vpop.f32.mrb[0].mxu0
      %v10576 = vadd.f32 0.0, %v10575
      %v10577 = vpop.f32.mrb[0].mxu0
      %10578 = vdwg.mxu0
      %v10579 = vadd.f32 %v10242, %v10453
      %v10580 = vadd.f32 %v10243, %v10456
      %v10581 = vadd.f32 %v10244, %v10461
      %v10582 = vadd.f32 %v10245, %v10464
      %v10583 = vadd.f32 %v10246, %v10469
      %v10584 = vadd.f32 %v10247, %v10472
      %v10585 = vadd.f32 %v10248, %v10477
      %v10586 = vadd.f32 %v10249, %v10480
      %v10587 = vadd.f32 %v10250, %v10485
      %v10588 = vadd.f32 %v10251, %v10488
      %v10589 = vadd.f32 %v10252, %v10493
      %v10590 = vadd.f32 %v10253, %v10496
      %v10591 = vadd.f32 %v10254, %v10501
      %v10592 = vadd.f32 %v10255, %v10504
      %v10593 = vadd.f32 %v10256, %v10509
      %v10594 = vadd.f32 %v10257, %v10512
      %v10595 = vadd.f32 %v10258, %v10517
      %v10596 = vadd.f32 %v10259, %v10520
      %v10597 = vadd.f32 %v10260, %v10525
      %v10598 = vadd.f32 %v10261, %v10528
      %v10599 = vadd.f32 %v10262, %v10533
      %v10600 = vadd.f32 %v10263, %v10536
      %v10601 = vadd.f32 %v10264, %v10541
      %v10602 = vadd.f32 %v10265, %v10544
      %v10603 = vadd.f32 %v10266, %v10549
      %v10604 = vadd.f32 %v10267, %v10552
      %v10605 = vadd.f32 %v10268, %v10557
      %v10606 = vadd.f32 %v10269, %v10560
      %v10607 = vadd.f32 %v10270, %v10565
      %v10608 = vadd.f32 %v10271, %v10568
      %v10609 = vadd.f32 %v10272, %v10573
      %v10610 = vadd.f32 %v10273, %v10576
      %10611 = vst.msk [vmem:[#allocation3] sm:$0xff] %vm579, %v10579
      %10612 = vst.msk [vmem:[#allocation3 + $0x8] sm:$0xff] %vm579, %v10580
      %10613 = vst.msk [vmem:[#allocation3 + $0x10] sm:$0xff] %vm579, %v10581
      %10614 = vst.msk [vmem:[#allocation3 + $0x18] sm:$0xff] %vm579, %v10582
      %10615 = vst.msk [vmem:[#allocation3 + $0x20] sm:$0xff] %vm579, %v10583
      %10616 = vst.msk [vmem:[#allocation3 + $0x28] sm:$0xff] %vm579, %v10584
      %10617 = vst.msk [vmem:[#allocation3 + $0x30] sm:$0xff] %vm579, %v10585
      %10618 = vst.msk [vmem:[#allocation3 + $0x38] sm:$0xff] %vm579, %v10586
      %10619 = vst.msk [vmem:[#allocation3 + $0x40] sm:$0xff] %vm579, %v10587
      %10620 = vst.msk [vmem:[#allocation3 + $0x48] sm:$0xff] %vm579, %v10588
      %10621 = vst.msk [vmem:[#allocation3 + $0x50] sm:$0xff] %vm579, %v10589
      %10622 = vst.msk [vmem:[#allocation3 + $0x58] sm:$0xff] %vm579, %v10590
      %10623 = vst.msk [vmem:[#allocation3 + $0x60] sm:$0xff] %vm579, %v10591
      %10624 = vst.msk [vmem:[#allocation3 + $0x68] sm:$0xff] %vm579, %v10592
      %10625 = vst.msk [vmem:[#allocation3 + $0x70] sm:$0xff] %vm579, %v10593
      %10626 = vst.msk [vmem:[#allocation3 + $0x78] sm:$0xff] %vm579, %v10594
      %10627 = vst.msk [vmem:[#allocation3 + $0x80] sm:$0xff] %vm579, %v10595
      %10628 = vst.msk [vmem:[#allocation3 + $0x88] sm:$0xff] %vm579, %v10596
      %10629 = vst.msk [vmem:[#allocation3 + $0x90] sm:$0xff] %vm579, %v10597
      %10630 = vst.msk [vmem:[#allocation3 + $0x98] sm:$0xff] %vm579, %v10598
      %10631 = vst.msk [vmem:[#allocation3 + $0xa0] sm:$0xff] %vm579, %v10599
      %10632 = vst.msk [vmem:[#allocation3 + $0xa8] sm:$0xff] %vm579, %v10600
      %10633 = vst.msk [vmem:[#allocation3 + $0xb0] sm:$0xff] %vm579, %v10601
      %10634 = vst.msk [vmem:[#allocation3 + $0xb8] sm:$0xff] %vm579, %v10602
      %10635 = vst.msk [vmem:[#allocation3 + $0xc0] sm:$0xff] %vm579, %v10603
      %10636 = vst.msk [vmem:[#allocation3 + $0xc8] sm:$0xff] %vm579, %v10604
      %10637 = vst.msk [vmem:[#allocation3 + $0xd0] sm:$0xff] %vm579, %v10605
      %10638 = vst.msk [vmem:[#allocation3 + $0xd8] sm:$0xff] %vm579, %v10606
      %10639 = vst.msk [vmem:[#allocation3 + $0xe0] sm:$0xff] %vm579, %v10607
      %10640 = vst.msk [vmem:[#allocation3 + $0xe8] sm:$0xff] %vm579, %v10608
      %10641 = vst.msk [vmem:[#allocation3 + $0xf0] sm:$0xff] %vm579, %v10609
      %10642 = vst.msk [vmem:[#allocation3 + $0xf8] sm:$0xff] %vm579, %v10610
      %v10643 = vld [vmem:[%s9594] sm:$0xf]
      %v10644 = vld [vmem:[%s9594 + $0x4] sm:$0xf]
      %v10645 = vld [vmem:[%s9594 + $0x8] sm:$0x1]
      %v10646 = vld [vmem:[%s9594 + $0xc] sm:$0xf]
      %v10647 = vld [vmem:[%s9594 + $0x10] sm:$0xf]
      %v10648 = vld [vmem:[%s9594 + $0x14] sm:$0x1]
      %v10649 = vld [vmem:[%s9594 + $0x18] sm:$0xf]
      %v10650 = vld [vmem:[%s9594 + $0x1c] sm:$0xf]
      %v10651 = vld [vmem:[%s9594 + $0x20] sm:$0x1]
      %v10652 = vld [vmem:[%s9594 + $0x24] sm:$0xf]
      %v10653 = vld [vmem:[%s9594 + $0x28] sm:$0xf]
      %v10654 = vld [vmem:[%s9594 + $0x2c] sm:$0x1]
      %v10655 = vld [vmem:[%s9594 + $0x30] sm:$0xf]
      %v10656 = vld [vmem:[%s9594 + $0x34] sm:$0xf]
      %v10657 = vld [vmem:[%s9594 + $0x38] sm:$0x1]
      %v10658 = vld [vmem:[%s9594 + $0x3c] sm:$0xf]
      %v10659 = vld [vmem:[%s9594 + $0x40] sm:$0xf]
      %v10660 = vld [vmem:[%s9594 + $0x44] sm:$0x1]
      %v10661 = vld [vmem:[%s9594 + $0x48] sm:$0xf]
      %v10662 = vld [vmem:[%s9594 + $0x4c] sm:$0xf]
      %v10663 = vld [vmem:[%s9594 + $0x50] sm:$0x1]
      %v10664 = vld [vmem:[%s9594 + $0x54] sm:$0xf]
      %v10665 = vld [vmem:[%s9594 + $0x58] sm:$0xf]
      %v10666 = vld [vmem:[%s9594 + $0x5c] sm:$0x1]
      %v10667 = vld [vmem:[%s9594 + $0x60] sm:$0xf]
      %v10668 = vld [vmem:[%s9594 + $0x64] sm:$0xf]
      %v10669 = vld [vmem:[%s9594 + $0x68] sm:$0x1]
      %v10670 = vld [vmem:[%s9594 + $0x6c] sm:$0xf]
      %v10671 = vld [vmem:[%s9594 + $0x70] sm:$0xf]
      %v10672 = vld [vmem:[%s9594 + $0x74] sm:$0x1]
      %v10673 = vld [vmem:[%s9594 + $0x78] sm:$0xf]
      %v10674 = vld [vmem:[%s9594 + $0x7c] sm:$0xf]
      %v10675 = vld [vmem:[%s9594 + $0x80] sm:$0x1]
      %v10676 = vld [vmem:[%s9594 + $0x84] sm:$0xf]
      %v10677 = vld [vmem:[%s9594 + $0x88] sm:$0xf]
      %v10678 = vld [vmem:[%s9594 + $0x8c] sm:$0x1]
      %v10679 = vld [vmem:[%s9594 + $0x90] sm:$0xf]
      %v10680 = vld [vmem:[%s9594 + $0x94] sm:$0xf]
      %v10681 = vld [vmem:[%s9594 + $0x98] sm:$0x1]
      %v10682 = vld [vmem:[%s9594 + $0x9c] sm:$0xf]
      %v10683 = vld [vmem:[%s9594 + $0xa0] sm:$0xf]
      %v10684 = vld [vmem:[%s9594 + $0xa4] sm:$0x1]
      %v10685 = vld [vmem:[%s9594 + $0xa8] sm:$0xf]
      %v10686 = vld [vmem:[%s9594 + $0xac] sm:$0xf]
      %v10687 = vld [vmem:[%s9594 + $0xb0] sm:$0x1]
      %v10688 = vld [vmem:[%s9594 + $0xb4] sm:$0xf]
      %v10689 = vld [vmem:[%s9594 + $0xb8] sm:$0xf]
      %v10690 = vld [vmem:[%s9594 + $0xbc] sm:$0x1]
      %v10723 = vunpack.c.l.b16 %v10643
      %v10724 = vunpack.c.l.b16 %v10644
      %v10725 = vunpack.c.l.b16 %v10646
      %v10726 = vunpack.c.l.b16 %v10647
      %v10727 = vunpack.c.l.b16 %v10649
      %v10728 = vunpack.c.l.b16 %v10650
      %v10729 = vunpack.c.l.b16 %v10652
      %v10730 = vunpack.c.l.b16 %v10653
      %v10731 = vunpack.c.l.b16 %v10655
      %v10732 = vunpack.c.l.b16 %v10656
      %v10733 = vunpack.c.l.b16 %v10658
      %v10734 = vunpack.c.l.b16 %v10659
      %v10735 = vunpack.c.l.b16 %v10661
      %v10736 = vunpack.c.l.b16 %v10662
      %v10737 = vunpack.c.l.b16 %v10664
      %v10738 = vunpack.c.l.b16 %v10665
      %v10739 = vunpack.c.l.b16 %v10667
      %v10740 = vunpack.c.l.b16 %v10668
      %v10741 = vunpack.c.l.b16 %v10670
      %v10742 = vunpack.c.l.b16 %v10671
      %v10743 = vunpack.c.l.b16 %v10673
      %v10744 = vunpack.c.l.b16 %v10674
      %v10745 = vunpack.c.l.b16 %v10676
      %v10746 = vunpack.c.l.b16 %v10677
      %v10747 = vunpack.c.l.b16 %v10679
      %v10748 = vunpack.c.l.b16 %v10680
      %v10749 = vunpack.c.l.b16 %v10682
      %v10750 = vunpack.c.l.b16 %v10683
      %v10751 = vunpack.c.l.b16 %v10685
      %v10752 = vunpack.c.l.b16 %v10686
      %v10753 = vunpack.c.l.b16 %v10688
      %v10754 = vunpack.c.l.b16 %v10689
      %v10755 = vpack.c.b16 %v10724, %v10723
      %v10756 = vpack.c.b16 %v10726, %v10725
      %v10757 = vpack.c.b16 %v10728, %v10727
      %v10758 = vpack.c.b16 %v10730, %v10729
      %v10759 = vpack.c.b16 %v10732, %v10731
      %v10760 = vpack.c.b16 %v10734, %v10733
      %v10761 = vpack.c.b16 %v10736, %v10735
      %v10762 = vpack.c.b16 %v10738, %v10737
      %v10763 = vpack.c.b16 %v10740, %v10739
      %v10764 = vpack.c.b16 %v10742, %v10741
      %v10765 = vpack.c.b16 %v10744, %v10743
      %v10766 = vpack.c.b16 %v10746, %v10745
      %v10767 = vpack.c.b16 %v10748, %v10747
      %v10768 = vpack.c.b16 %v10750, %v10749
      %v10769 = vpack.c.b16 %v10752, %v10751
      %v10770 = vpack.c.b16 %v10754, %v10753
      %v10787 = vunpack.c.l.b16 %v10645
      %v10788 = vunpack.c.l.b16 %v10648
      %v10789 = vunpack.c.l.b16 %v10651
      %v10790 = vunpack.c.l.b16 %v10654
      %v10791 = vunpack.c.l.b16 %v10657
      %v10792 = vunpack.c.l.b16 %v10660
      %v10793 = vunpack.c.l.b16 %v10663
      %v10794 = vunpack.c.l.b16 %v10666
      %v10795 = vunpack.c.l.b16 %v10669
      %v10796 = vunpack.c.l.b16 %v10672
      %v10797 = vunpack.c.l.b16 %v10675
      %v10798 = vunpack.c.l.b16 %v10678
      %v10799 = vunpack.c.l.b16 %v10681
      %v10800 = vunpack.c.l.b16 %v10684
      %v10801 = vunpack.c.l.b16 %v10687
      %v10802 = vunpack.c.l.b16 %v10690
      %v10803 = vpack.c.b16 %v10787, %v10787
      %v10804 = vpack.c.b16 %v10788, %v10788
      %v10805 = vpack.c.b16 %v10789, %v10789
      %v10806 = vpack.c.b16 %v10790, %v10790
      %v10807 = vpack.c.b16 %v10791, %v10791
      %v10808 = vpack.c.b16 %v10792, %v10792
      %v10809 = vpack.c.b16 %v10793, %v10793
      %v10810 = vpack.c.b16 %v10794, %v10794
      %v10811 = vpack.c.b16 %v10795, %v10795
      %v10812 = vpack.c.b16 %v10796, %v10796
      %v10813 = vpack.c.b16 %v10797, %v10797
      %v10814 = vpack.c.b16 %v10798, %v10798
      %v10815 = vpack.c.b16 %v10799, %v10799
      %v10816 = vpack.c.b16 %v10800, %v10800
      %v10817 = vpack.c.b16 %v10801, %v10801
      %v10818 = vpack.c.b16 %v10802, %v10802
      %v10820 = vshrl.u32 %v10755, 16
      %v10822 = vshll.u32 %v10755, 16
      %v10824 = vrot.slane %v10822, 1
      %v10825 = vor.u32 %v10820, %v10824
      %v10827 = vshll.u32 %v10803, 16
      %v10829 = vrot.slane %v10827, 1
      %v10830 = vsel %vm6594, %v10825, %v10829
      %v10832 = vshrl.u32 %v10756, 16
      %v10834 = vshll.u32 %v10756, 16
      %v10836 = vrot.slane %v10834, 1
      %v10837 = vor.u32 %v10832, %v10836
      %v10839 = vshll.u32 %v10804, 16
      %v10841 = vrot.slane %v10839, 1
      %v10842 = vsel %vm6594, %v10837, %v10841
      %v10844 = vshrl.u32 %v10757, 16
      %v10846 = vshll.u32 %v10757, 16
      %v10848 = vrot.slane %v10846, 1
      %v10849 = vor.u32 %v10844, %v10848
      %v10851 = vshll.u32 %v10805, 16
      %v10853 = vrot.slane %v10851, 1
      %v10854 = vsel %vm6594, %v10849, %v10853
      %v10856 = vshrl.u32 %v10758, 16
      %v10858 = vshll.u32 %v10758, 16
      %v10860 = vrot.slane %v10858, 1
      %v10861 = vor.u32 %v10856, %v10860
      %v10863 = vshll.u32 %v10806, 16
      %v10865 = vrot.slane %v10863, 1
      %v10866 = vsel %vm6594, %v10861, %v10865
      %v10868 = vshrl.u32 %v10759, 16
      %v10870 = vshll.u32 %v10759, 16
      %v10872 = vrot.slane %v10870, 1
      %v10873 = vor.u32 %v10868, %v10872
      %v10875 = vshll.u32 %v10807, 16
      %v10877 = vrot.slane %v10875, 1
      %v10878 = vsel %vm6594, %v10873, %v10877
      %v10880 = vshrl.u32 %v10760, 16
      %v10882 = vshll.u32 %v10760, 16
      %v10884 = vrot.slane %v10882, 1
      %v10885 = vor.u32 %v10880, %v10884
      %v10887 = vshll.u32 %v10808, 16
      %v10889 = vrot.slane %v10887, 1
      %v10890 = vsel %vm6594, %v10885, %v10889
      %v10892 = vshrl.u32 %v10761, 16
      %v10894 = vshll.u32 %v10761, 16
      %v10896 = vrot.slane %v10894, 1
      %v10897 = vor.u32 %v10892, %v10896
      %v10899 = vshll.u32 %v10809, 16
      %v10901 = vrot.slane %v10899, 1
      %v10902 = vsel %vm6594, %v10897, %v10901
      %v10904 = vshrl.u32 %v10762, 16
      %v10906 = vshll.u32 %v10762, 16
      %v10908 = vrot.slane %v10906, 1
      %v10909 = vor.u32 %v10904, %v10908
      %v10911 = vshll.u32 %v10810, 16
      %v10913 = vrot.slane %v10911, 1
      %v10914 = vsel %vm6594, %v10909, %v10913
      %v10916 = vshrl.u32 %v10763, 16
      %v10918 = vshll.u32 %v10763, 16
      %v10920 = vrot.slane %v10918, 1
      %v10921 = vor.u32 %v10916, %v10920
      %v10923 = vshll.u32 %v10811, 16
      %v10925 = vrot.slane %v10923, 1
      %v10926 = vsel %vm6594, %v10921, %v10925
      %v10928 = vshrl.u32 %v10764, 16
      %v10930 = vshll.u32 %v10764, 16
      %v10932 = vrot.slane %v10930, 1
      %v10933 = vor.u32 %v10928, %v10932
      %v10935 = vshll.u32 %v10812, 16
      %v10937 = vrot.slane %v10935, 1
      %v10938 = vsel %vm6594, %v10933, %v10937
      %v10940 = vshrl.u32 %v10765, 16
      %v10942 = vshll.u32 %v10765, 16
      %v10944 = vrot.slane %v10942, 1
      %v10945 = vor.u32 %v10940, %v10944
      %v10947 = vshll.u32 %v10813, 16
      %v10949 = vrot.slane %v10947, 1
      %v10950 = vsel %vm6594, %v10945, %v10949
      %v10952 = vshrl.u32 %v10766, 16
      %v10954 = vshll.u32 %v10766, 16
      %v10956 = vrot.slane %v10954, 1
      %v10957 = vor.u32 %v10952, %v10956
      %v10959 = vshll.u32 %v10814, 16
      %v10961 = vrot.slane %v10959, 1
      %v10962 = vsel %vm6594, %v10957, %v10961
      %v10964 = vshrl.u32 %v10767, 16
      %v10966 = vshll.u32 %v10767, 16
      %v10968 = vrot.slane %v10966, 1
      %v10969 = vor.u32 %v10964, %v10968
      %v10971 = vshll.u32 %v10815, 16
      %v10973 = vrot.slane %v10971, 1
      %v10974 = vsel %vm6594, %v10969, %v10973
      %v10976 = vshrl.u32 %v10768, 16
      %v10978 = vshll.u32 %v10768, 16
      %v10980 = vrot.slane %v10978, 1
      %v10981 = vor.u32 %v10976, %v10980
      %v10983 = vshll.u32 %v10816, 16
      %v10985 = vrot.slane %v10983, 1
      %v10986 = vsel %vm6594, %v10981, %v10985
      %v10988 = vshrl.u32 %v10769, 16
      %v10990 = vshll.u32 %v10769, 16
      %v10992 = vrot.slane %v10990, 1
      %v10993 = vor.u32 %v10988, %v10992
      %v10995 = vshll.u32 %v10817, 16
      %v10997 = vrot.slane %v10995, 1
      %v10998 = vsel %vm6594, %v10993, %v10997
      %v11000 = vshrl.u32 %v10770, 16
      %v11002 = vshll.u32 %v10770, 16
      %v11004 = vrot.slane %v11002, 1
      %v11005 = vor.u32 %v11000, %v11004
      %v11007 = vshll.u32 %v10818, 16
      %v11009 = vrot.slane %v11007, 1
      %v11010 = vsel %vm6594, %v11005, %v11009
      %11011 = vrot.lane.b32.xlu0 %v10830, 64
      %v11012 = vpop.permute.xlu0 %11011
      %11013 = vrot.lane.b32.xlu0 %v10842, 64
      %v11014 = vpop.permute.xlu0 %11013
      %11015 = vrot.lane.b32.xlu0 %v10854, 64
      %v11016 = vpop.permute.xlu0 %11015
      %11017 = vrot.lane.b32.xlu0 %v10866, 64
      %v11018 = vpop.permute.xlu0 %11017
      %11019 = vrot.lane.b32.xlu0 %v10878, 64
      %v11020 = vpop.permute.xlu0 %11019
      %11021 = vrot.lane.b32.xlu0 %v10890, 64
      %v11022 = vpop.permute.xlu0 %11021
      %11023 = vrot.lane.b32.xlu0 %v10902, 64
      %v11024 = vpop.permute.xlu0 %11023
      %11025 = vrot.lane.b32.xlu0 %v10914, 64
      %v11026 = vpop.permute.xlu0 %11025
      %11027 = vrot.lane.b32.xlu0 %v10926, 64
      %v11028 = vpop.permute.xlu0 %11027
      %11029 = vrot.lane.b32.xlu0 %v10938, 64
      %v11030 = vpop.permute.xlu0 %11029
      %11031 = vrot.lane.b32.xlu0 %v10950, 64
      %v11032 = vpop.permute.xlu0 %11031
      %11033 = vrot.lane.b32.xlu0 %v10962, 64
      %v11034 = vpop.permute.xlu0 %11033
      %11035 = vrot.lane.b32.xlu0 %v10974, 64
      %v11036 = vpop.permute.xlu0 %11035
      %11037 = vrot.lane.b32.xlu0 %v10986, 64
      %v11038 = vpop.permute.xlu0 %11037
      %11039 = vrot.lane.b32.xlu0 %v10998, 64
      %v11040 = vpop.permute.xlu0 %11039
      %11041 = vrot.lane.b32.xlu0 %v11010, 64
      %v11042 = vpop.permute.xlu0 %11041
      %v11043 = vrot.slane %v10755, 1
      %v11044 = vrot.slane %v10803, 1
      %v11045 = vsel %vm6819, %v11043, %v11044
      %v11046 = vrot.slane %v10756, 1
      %v11047 = vrot.slane %v10804, 1
      %v11048 = vsel %vm6819, %v11046, %v11047
      %v11049 = vrot.slane %v10757, 1
      %v11050 = vrot.slane %v10805, 1
      %v11051 = vsel %vm6819, %v11049, %v11050
      %v11052 = vrot.slane %v10758, 1
      %v11053 = vrot.slane %v10806, 1
      %v11054 = vsel %vm6819, %v11052, %v11053
      %v11055 = vrot.slane %v10759, 1
      %v11056 = vrot.slane %v10807, 1
      %v11057 = vsel %vm6819, %v11055, %v11056
      %v11058 = vrot.slane %v10760, 1
      %v11059 = vrot.slane %v10808, 1
      %v11060 = vsel %vm6819, %v11058, %v11059
      %v11061 = vrot.slane %v10761, 1
      %v11062 = vrot.slane %v10809, 1
      %v11063 = vsel %vm6819, %v11061, %v11062
      %v11064 = vrot.slane %v10762, 1
      %v11065 = vrot.slane %v10810, 1
      %v11066 = vsel %vm6819, %v11064, %v11065
      %v11067 = vrot.slane %v10763, 1
      %v11068 = vrot.slane %v10811, 1
      %v11069 = vsel %vm6819, %v11067, %v11068
      %v11070 = vrot.slane %v10764, 1
      %v11071 = vrot.slane %v10812, 1
      %v11072 = vsel %vm6819, %v11070, %v11071
      %v11073 = vrot.slane %v10765, 1
      %v11074 = vrot.slane %v10813, 1
      %v11075 = vsel %vm6819, %v11073, %v11074
      %v11076 = vrot.slane %v10766, 1
      %v11077 = vrot.slane %v10814, 1
      %v11078 = vsel %vm6819, %v11076, %v11077
      %v11079 = vrot.slane %v10767, 1
      %v11080 = vrot.slane %v10815, 1
      %v11081 = vsel %vm6819, %v11079, %v11080
      %v11082 = vrot.slane %v10768, 1
      %v11083 = vrot.slane %v10816, 1
      %v11084 = vsel %vm6819, %v11082, %v11083
      %v11085 = vrot.slane %v10769, 1
      %v11086 = vrot.slane %v10817, 1
      %v11087 = vsel %vm6819, %v11085, %v11086
      %v11088 = vrot.slane %v10770, 1
      %v11089 = vrot.slane %v10818, 1
      %v11090 = vsel %vm6819, %v11088, %v11089
      %v11092 = vsel %vm401, %v10755, %v11012
      %v11095 = vsel %vm401, %v10756, %v11014
      %v11098 = vsel %vm401, %v10757, %v11016
      %v11101 = vsel %vm401, %v10758, %v11018
      %v11104 = vsel %vm401, %v10759, %v11020
      %v11107 = vsel %vm401, %v10760, %v11022
      %v11110 = vsel %vm401, %v10761, %v11024
      %v11113 = vsel %vm401, %v10762, %v11026
      %v11116 = vsel %vm401, %v10763, %v11028
      %v11119 = vsel %vm401, %v10764, %v11030
      %v11122 = vsel %vm401, %v10765, %v11032
      %v11125 = vsel %vm401, %v10766, %v11034
      %v11128 = vsel %vm401, %v10767, %v11036
      %v11131 = vsel %vm401, %v10768, %v11038
      %v11134 = vsel %vm401, %v10769, %v11040
      %v11137 = vsel %vm401, %v10770, %v11042
      %v11139 = vld [vmem:[#allocation3] sm:$0xff]
      %v11140 = vld [vmem:[#allocation3 + $0x8] sm:$0xff]
      %v11141 = vld [vmem:[#allocation3 + $0x10] sm:$0xff]
      %v11142 = vld [vmem:[#allocation3 + $0x18] sm:$0xff]
      %v11143 = vld [vmem:[#allocation3 + $0x20] sm:$0xff]
      %v11144 = vld [vmem:[#allocation3 + $0x28] sm:$0xff]
      %v11145 = vld [vmem:[#allocation3 + $0x30] sm:$0xff]
      %v11146 = vld [vmem:[#allocation3 + $0x38] sm:$0xff]
      %v11147 = vld [vmem:[#allocation3 + $0x40] sm:$0xff]
      %v11148 = vld [vmem:[#allocation3 + $0x48] sm:$0xff]
      %v11149 = vld [vmem:[#allocation3 + $0x50] sm:$0xff]
      %v11150 = vld [vmem:[#allocation3 + $0x58] sm:$0xff]
      %v11151 = vld [vmem:[#allocation3 + $0x60] sm:$0xff]
      %v11152 = vld [vmem:[#allocation3 + $0x68] sm:$0xff]
      %v11153 = vld [vmem:[#allocation3 + $0x70] sm:$0xff]
      %v11154 = vld [vmem:[#allocation3 + $0x78] sm:$0xff]
      %v11155 = vld [vmem:[#allocation3 + $0x80] sm:$0xff]
      %v11156 = vld [vmem:[#allocation3 + $0x88] sm:$0xff]
      %v11157 = vld [vmem:[#allocation3 + $0x90] sm:$0xff]
      %v11158 = vld [vmem:[#allocation3 + $0x98] sm:$0xff]
      %v11159 = vld [vmem:[#allocation3 + $0xa0] sm:$0xff]
      %v11160 = vld [vmem:[#allocation3 + $0xa8] sm:$0xff]
      %v11161 = vld [vmem:[#allocation3 + $0xb0] sm:$0xff]
      %v11162 = vld [vmem:[#allocation3 + $0xb8] sm:$0xff]
      %v11163 = vld [vmem:[#allocation3 + $0xc0] sm:$0xff]
      %v11164 = vld [vmem:[#allocation3 + $0xc8] sm:$0xff]
      %v11165 = vld [vmem:[#allocation3 + $0xd0] sm:$0xff]
      %v11166 = vld [vmem:[#allocation3 + $0xd8] sm:$0xff]
      %v11167 = vld [vmem:[#allocation3 + $0xe0] sm:$0xff]
      %v11168 = vld [vmem:[#allocation3 + $0xe8] sm:$0xff]
      %v11169 = vld [vmem:[#allocation3 + $0xf0] sm:$0xff]
      %v11170 = vld [vmem:[#allocation3 + $0xf8] sm:$0xff]
      %s11171 = scalar_lea.vmem %s5, 96
      %v11172 = vld [vmem:[%s11171] sm:$0xf]
      %v11173 = vld [vmem:[%s11171 + $0x4] sm:$0xf]
      %v11174 = vld [vmem:[%s11171 + $0x8] sm:$0xf]
      %v11175 = vld [vmem:[%s11171 + $0xc] sm:$0xf]
      %v11176 = vld [vmem:[%s11171 + $0x10] sm:$0xf]
      %v11177 = vld [vmem:[%s11171 + $0x14] sm:$0xf]
      %v11178 = vld [vmem:[%s11171 + $0x18] sm:$0xf]
      %v11179 = vld [vmem:[%s11171 + $0x1c] sm:$0xf]
      %v11180 = vld [vmem:[%s11171 + $0x20] sm:$0xf]
      %v11181 = vld [vmem:[%s11171 + $0x24] sm:$0xf]
      %v11182 = vld [vmem:[%s11171 + $0x28] sm:$0xf]
      %v11183 = vld [vmem:[%s11171 + $0x2c] sm:$0xf]
      %v11184 = vld [vmem:[%s11171 + $0x30] sm:$0xf]
      %v11185 = vld [vmem:[%s11171 + $0x34] sm:$0xf]
      %v11186 = vld [vmem:[%s11171 + $0x38] sm:$0xf]
      %v11187 = vld [vmem:[%s11171 + $0x3c] sm:$0xf]
      %v11188 = vld [vmem:[%s11171 + $0x40] sm:$0xf]
      %v11189 = vld [vmem:[%s11171 + $0x44] sm:$0xf]
      %v11190 = vld [vmem:[%s11171 + $0x48] sm:$0xf]
      %v11191 = vld [vmem:[%s11171 + $0x4c] sm:$0xf]
      %v11192 = vld [vmem:[%s11171 + $0x50] sm:$0xf]
      %v11193 = vld [vmem:[%s11171 + $0x54] sm:$0xf]
      %v11194 = vld [vmem:[%s11171 + $0x58] sm:$0xf]
      %v11195 = vld [vmem:[%s11171 + $0x5c] sm:$0xf]
      %v11220 = vunpack.c.l.b16 %v11172
      %v11221 = vunpack.c.l.b16 %v11173
      %v11222 = vunpack.c.l.b16 %v11174
      %v11223 = vunpack.c.l.b16 %v11175
      %v11224 = vunpack.c.l.b16 %v11176
      %v11225 = vunpack.c.l.b16 %v11177
      %v11226 = vunpack.c.l.b16 %v11178
      %v11227 = vunpack.c.l.b16 %v11179
      %v11228 = vunpack.c.l.b16 %v11180
      %v11229 = vunpack.c.l.b16 %v11181
      %v11230 = vunpack.c.l.b16 %v11182
      %v11231 = vunpack.c.l.b16 %v11183
      %v11232 = vunpack.c.l.b16 %v11184
      %v11233 = vunpack.c.l.b16 %v11185
      %v11234 = vunpack.c.l.b16 %v11186
      %v11235 = vunpack.c.l.b16 %v11187
      %v11236 = vunpack.c.l.b16 %v11188
      %v11237 = vunpack.c.l.b16 %v11189
      %v11238 = vunpack.c.l.b16 %v11190
      %v11239 = vunpack.c.l.b16 %v11191
      %v11240 = vunpack.c.l.b16 %v11192
      %v11241 = vunpack.c.l.b16 %v11193
      %v11242 = vunpack.c.l.b16 %v11194
      %v11243 = vunpack.c.l.b16 %v11195
      %v11244 = vpack.c.b16 %v11221, %v11220
      %v11245 = vpack.c.b16 %v11223, %v11222
      %v11246 = vpack.c.b16 %v11225, %v11224
      %v11247 = vpack.c.b16 %v11227, %v11226
      %v11248 = vpack.c.b16 %v11229, %v11228
      %v11249 = vpack.c.b16 %v11231, %v11230
      %v11250 = vpack.c.b16 %v11233, %v11232
      %v11251 = vpack.c.b16 %v11235, %v11234
      %v11252 = vpack.c.b16 %v11237, %v11236
      %v11253 = vpack.c.b16 %v11239, %v11238
      %v11254 = vpack.c.b16 %v11241, %v11240
      %v11255 = vpack.c.b16 %v11243, %v11242
      %v11269 = vsel %vm401, %v11045, 0
      %v11272 = vsel %vm401, %v11048, 0
      %v11275 = vsel %vm401, %v11051, 0
      %v11278 = vsel %vm401, %v11054, 0
      %v11281 = vsel %vm401, %v11057, 0
      %v11284 = vsel %vm401, %v11060, 0
      %v11287 = vsel %vm401, %v11063, 0
      %v11290 = vsel %vm401, %v11066, 0
      %v11293 = vsel %vm401, %v11069, 0
      %v11296 = vsel %vm401, %v11072, 0
      %v11299 = vsel %vm401, %v11075, 0
      %v11302 = vsel %vm401, %v11078, 0
      %v11305 = vsel %vm401, %v11081, 0
      %v11308 = vsel %vm401, %v11084, 0
      %v11311 = vsel %vm401, %v11087, 0
      %v11314 = vsel %vm401, %v11090, 0
      %11316 = vmatprep.subr.bf16.mxu0 0
      %11317 = vmatpush1.bf16.msra.mxu0 %v11244
      %11318 = vmatprep.subr.bf16.mxu0 0
      %11319 = vmatpush1.bf16.msra.mxu0 %v11245
      %11320 = vmatprep.subr.bf16.mxu0 0
      %11321 = vmatpush1.bf16.msra.mxu0 %v11246
      %11322 = vmatprep.subr.bf16.mxu0 0
      %11323 = vmatpush1.bf16.msra.mxu0 %v11247
      %11324 = vmatprep.subr.bf16.mxu0 0
      %11325 = vmatpush1.bf16.msra.mxu0 %v11248
      %11326 = vmatprep.subr.bf16.mxu0 0
      %11327 = vmatpush1.bf16.msra.mxu0 %v11249
      %11328 = vmatprep.subr.bf16.mxu0 0
      %11329 = vmatpush1.bf16.msra.mxu0 %v11250
      %11330 = vmatprep.subr.bf16.mxu0 0
      %11331 = vmatpush1.bf16.msra.mxu0 %v11251
      %11332 = vmatprep.subr.bf16.mxu0 0
      %11333 = vmatpush1.bf16.msra.mxu0 %v11252
      %11334 = vmatprep.subr.bf16.mxu0 0
      %11335 = vmatpush1.bf16.msra.mxu0 %v11253
      %11336 = vmatprep.subr.bf16.mxu0 0
      %11337 = vmatpush1.bf16.msra.mxu0 %v11254
      %11338 = vmatprep.subr.bf16.mxu0 0
      %11339 = vmatpush1.bf16.msra.mxu0 %v11255
      %11340 = vmatprep.subr.bf16.mxu0 0
      %11341 = vmatpush1.bf16.msra.mxu0 0
      %11342 = vmatprep.subr.bf16.mxu0 0
      %11343 = vmatpush1.bf16.msra.mxu0 0
      %11344 = vmatprep.subr.bf16.mxu0 0
      %11345 = vmatpush1.bf16.msra.mxu0 0
      %11346 = vmatprep.subr.bf16.mxu0 0
      %11347 = vmatpush1.bf16.msra.mxu0 0
      %11348 = vmatprep.mubr.bf16.mxu0 %v11269
      %11349 = vmatmul.mubr.bf16.gmra.mrb[0].mxu0 %v11092
      %v11350 = vpop.f32.mrb[0].mxu0
      %v11351 = vadd.f32 0.0, %v11350
      %v11352 = vpop.f32.mrb[0].mxu0
      %v11353 = vpop.f32.mrb[0].mxu0
      %v11354 = vadd.f32 0.0, %v11353
      %v11355 = vpop.f32.mrb[0].mxu0
      %11356 = vmatprep.mubr.bf16.mxu0 %v11272
      %11357 = vmatmul.mubr.bf16.gmra.mrb[0].mxu0 %v11095
      %v11358 = vpop.f32.mrb[0].mxu0
      %v11359 = vadd.f32 0.0, %v11358
      %v11360 = vpop.f32.mrb[0].mxu0
      %v11361 = vpop.f32.mrb[0].mxu0
      %v11362 = vadd.f32 0.0, %v11361
      %v11363 = vpop.f32.mrb[0].mxu0
      %11364 = vmatprep.mubr.bf16.mxu0 %v11275
      %11365 = vmatmul.mubr.bf16.gmra.mrb[0].mxu0 %v11098
      %v11366 = vpop.f32.mrb[0].mxu0
      %v11367 = vadd.f32 0.0, %v11366
      %v11368 = vpop.f32.mrb[0].mxu0
      %v11369 = vpop.f32.mrb[0].mxu0
      %v11370 = vadd.f32 0.0, %v11369
      %v11371 = vpop.f32.mrb[0].mxu0
      %11372 = vmatprep.mubr.bf16.mxu0 %v11278
      %11373 = vmatmul.mubr.bf16.gmra.mrb[0].mxu0 %v11101
      %v11374 = vpop.f32.mrb[0].mxu0
      %v11375 = vadd.f32 0.0, %v11374
      %v11376 = vpop.f32.mrb[0].mxu0
      %v11377 = vpop.f32.mrb[0].mxu0
      %v11378 = vadd.f32 0.0, %v11377
      %v11379 = vpop.f32.mrb[0].mxu0
      %11380 = vmatprep.mubr.bf16.mxu0 %v11281
      %11381 = vmatmul.mubr.bf16.gmra.mrb[0].mxu0 %v11104
      %v11382 = vpop.f32.mrb[0].mxu0
      %v11383 = vadd.f32 0.0, %v11382
      %v11384 = vpop.f32.mrb[0].mxu0
      %v11385 = vpop.f32.mrb[0].mxu0
      %v11386 = vadd.f32 0.0, %v11385
      %v11387 = vpop.f32.mrb[0].mxu0
      %11388 = vmatprep.mubr.bf16.mxu0 %v11284
      %11389 = vmatmul.mubr.bf16.gmra.mrb[0].mxu0 %v11107
      %v11390 = vpop.f32.mrb[0].mxu0
      %v11391 = vadd.f32 0.0, %v11390
      %v11392 = vpop.f32.mrb[0].mxu0
      %v11393 = vpop.f32.mrb[0].mxu0
      %v11394 = vadd.f32 0.0, %v11393
      %v11395 = vpop.f32.mrb[0].mxu0
      %11396 = vmatprep.mubr.bf16.mxu0 %v11287
      %11397 = vmatmul.mubr.bf16.gmra.mrb[0].mxu0 %v11110
      %v11398 = vpop.f32.mrb[0].mxu0
      %v11399 = vadd.f32 0.0, %v11398
      %v11400 = vpop.f32.mrb[0].mxu0
      %v11401 = vpop.f32.mrb[0].mxu0
      %v11402 = vadd.f32 0.0, %v11401
      %v11403 = vpop.f32.mrb[0].mxu0
      %11404 = vmatprep.mubr.bf16.mxu0 %v11290
      %11405 = vmatmul.mubr.bf16.gmra.mrb[0].mxu0 %v11113
      %v11406 = vpop.f32.mrb[0].mxu0
      %v11407 = vadd.f32 0.0, %v11406
      %v11408 = vpop.f32.mrb[0].mxu0
      %v11409 = vpop.f32.mrb[0].mxu0
      %v11410 = vadd.f32 0.0, %v11409
      %v11411 = vpop.f32.mrb[0].mxu0
      %11412 = vmatprep.mubr.bf16.mxu0 %v11293
      %11413 = vmatmul.mubr.bf16.gmra.mrb[0].mxu0 %v11116
      %v11414 = vpop.f32.mrb[0].mxu0
      %v11415 = vadd.f32 0.0, %v11414
      %v11416 = vpop.f32.mrb[0].mxu0
      %v11417 = vpop.f32.mrb[0].mxu0
      %v11418 = vadd.f32 0.0, %v11417
      %v11419 = vpop.f32.mrb[0].mxu0
      %11420 = vmatprep.mubr.bf16.mxu0 %v11296
      %11421 = vmatmul.mubr.bf16.gmra.mrb[0].mxu0 %v11119
      %v11422 = vpop.f32.mrb[0].mxu0
      %v11423 = vadd.f32 0.0, %v11422
      %v11424 = vpop.f32.mrb[0].mxu0
      %v11425 = vpop.f32.mrb[0].mxu0
      %v11426 = vadd.f32 0.0, %v11425
      %v11427 = vpop.f32.mrb[0].mxu0
      %11428 = vmatprep.mubr.bf16.mxu0 %v11299
      %11429 = vmatmul.mubr.bf16.gmra.mrb[0].mxu0 %v11122
      %v11430 = vpop.f32.mrb[0].mxu0
      %v11431 = vadd.f32 0.0, %v11430
      %v11432 = vpop.f32.mrb[0].mxu0
      %v11433 = vpop.f32.mrb[0].mxu0
      %v11434 = vadd.f32 0.0, %v11433
      %v11435 = vpop.f32.mrb[0].mxu0
      %11436 = vmatprep.mubr.bf16.mxu0 %v11302
      %11437 = vmatmul.mubr.bf16.gmra.mrb[0].mxu0 %v11125
      %v11438 = vpop.f32.mrb[0].mxu0
      %v11439 = vadd.f32 0.0, %v11438
      %v11440 = vpop.f32.mrb[0].mxu0
      %v11441 = vpop.f32.mrb[0].mxu0
      %v11442 = vadd.f32 0.0, %v11441
      %v11443 = vpop.f32.mrb[0].mxu0
      %11444 = vmatprep.mubr.bf16.mxu0 %v11305
      %11445 = vmatmul.mubr.bf16.gmra.mrb[0].mxu0 %v11128
      %v11446 = vpop.f32.mrb[0].mxu0
      %v11447 = vadd.f32 0.0, %v11446
      %v11448 = vpop.f32.mrb[0].mxu0
      %v11449 = vpop.f32.mrb[0].mxu0
      %v11450 = vadd.f32 0.0, %v11449
      %v11451 = vpop.f32.mrb[0].mxu0
      %11452 = vmatprep.mubr.bf16.mxu0 %v11308
      %11453 = vmatmul.mubr.bf16.gmra.mrb[0].mxu0 %v11131
      %v11454 = vpop.f32.mrb[0].mxu0
      %v11455 = vadd.f32 0.0, %v11454
      %v11456 = vpop.f32.mrb[0].mxu0
      %v11457 = vpop.f32.mrb[0].mxu0
      %v11458 = vadd.f32 0.0, %v11457
      %v11459 = vpop.f32.mrb[0].mxu0
      %11460 = vmatprep.mubr.bf16.mxu0 %v11311
      %11461 = vmatmul.mubr.bf16.gmra.mrb[0].mxu0 %v11134
      %v11462 = vpop.f32.mrb[0].mxu0
      %v11463 = vadd.f32 0.0, %v11462
      %v11464 = vpop.f32.mrb[0].mxu0
      %v11465 = vpop.f32.mrb[0].mxu0
      %v11466 = vadd.f32 0.0, %v11465
      %v11467 = vpop.f32.mrb[0].mxu0
      %11468 = vmatprep.mubr.bf16.mxu0 %v11314
      %11469 = vmatmul.mubr.bf16.gmra.mrb[0].mxu0 %v11137
      %v11470 = vpop.f32.mrb[0].mxu0
      %v11471 = vadd.f32 0.0, %v11470
      %v11472 = vpop.f32.mrb[0].mxu0
      %v11473 = vpop.f32.mrb[0].mxu0
      %v11474 = vadd.f32 0.0, %v11473
      %v11475 = vpop.f32.mrb[0].mxu0
      %11476 = vdwg.mxu0
      %v11477 = vadd.f32 %v11139, %v11351
      %v11478 = vadd.f32 %v11140, %v11354
      %v11479 = vadd.f32 %v11141, %v11359
      %v11480 = vadd.f32 %v11142, %v11362
      %v11481 = vadd.f32 %v11143, %v11367
      %v11482 = vadd.f32 %v11144, %v11370
      %v11483 = vadd.f32 %v11145, %v11375
      %v11484 = vadd.f32 %v11146, %v11378
      %v11485 = vadd.f32 %v11147, %v11383
      %v11486 = vadd.f32 %v11148, %v11386
      %v11487 = vadd.f32 %v11149, %v11391
      %v11488 = vadd.f32 %v11150, %v11394
      %v11489 = vadd.f32 %v11151, %v11399
      %v11490 = vadd.f32 %v11152, %v11402
      %v11491 = vadd.f32 %v11153, %v11407
      %v11492 = vadd.f32 %v11154, %v11410
      %v11493 = vadd.f32 %v11155, %v11415
      %v11494 = vadd.f32 %v11156, %v11418
      %v11495 = vadd.f32 %v11157, %v11423
      %v11496 = vadd.f32 %v11158, %v11426
      %v11497 = vadd.f32 %v11159, %v11431
      %v11498 = vadd.f32 %v11160, %v11434
      %v11499 = vadd.f32 %v11161, %v11439
      %v11500 = vadd.f32 %v11162, %v11442
      %v11501 = vadd.f32 %v11163, %v11447
      %v11502 = vadd.f32 %v11164, %v11450
      %v11503 = vadd.f32 %v11165, %v11455
      %v11504 = vadd.f32 %v11166, %v11458
      %v11505 = vadd.f32 %v11167, %v11463
      %v11506 = vadd.f32 %v11168, %v11466
      %v11507 = vadd.f32 %v11169, %v11471
      %v11508 = vadd.f32 %v11170, %v11474
      %11509 = vst.msk [vmem:[#allocation3] sm:$0xff] %vm579, %v11477
      %11510 = vst.msk [vmem:[#allocation3 + $0x8] sm:$0xff] %vm579, %v11478
      %11511 = vst.msk [vmem:[#allocation3 + $0x10] sm:$0xff] %vm579, %v11479
      %11512 = vst.msk [vmem:[#allocation3 + $0x18] sm:$0xff] %vm579, %v11480
      %11513 = vst.msk [vmem:[#allocation3 + $0x20] sm:$0xff] %vm579, %v11481
      %11514 = vst.msk [vmem:[#allocation3 + $0x28] sm:$0xff] %vm579, %v11482
      %11515 = vst.msk [vmem:[#allocation3 + $0x30] sm:$0xff] %vm579, %v11483
      %11516 = vst.msk [vmem:[#allocation3 + $0x38] sm:$0xff] %vm579, %v11484
      %11517 = vst.msk [vmem:[#allocation3 + $0x40] sm:$0xff] %vm579, %v11485
      %11518 = vst.msk [vmem:[#allocation3 + $0x48] sm:$0xff] %vm579, %v11486
      %11519 = vst.msk [vmem:[#allocation3 + $0x50] sm:$0xff] %vm579, %v11487
      %11520 = vst.msk [vmem:[#allocation3 + $0x58] sm:$0xff] %vm579, %v11488
      %11521 = vst.msk [vmem:[#allocation3 + $0x60] sm:$0xff] %vm579, %v11489
      %11522 = vst.msk [vmem:[#allocation3 + $0x68] sm:$0xff] %vm579, %v11490
      %11523 = vst.msk [vmem:[#allocation3 + $0x70] sm:$0xff] %vm579, %v11491
      %11524 = vst.msk [vmem:[#allocation3 + $0x78] sm:$0xff] %vm579, %v11492
      %11525 = vst.msk [vmem:[#allocation3 + $0x80] sm:$0xff] %vm579, %v11493
      %11526 = vst.msk [vmem:[#allocation3 + $0x88] sm:$0xff] %vm579, %v11494
      %11527 = vst.msk [vmem:[#allocation3 + $0x90] sm:$0xff] %vm579, %v11495
      %11528 = vst.msk [vmem:[#allocation3 + $0x98] sm:$0xff] %vm579, %v11496
      %11529 = vst.msk [vmem:[#allocation3 + $0xa0] sm:$0xff] %vm579, %v11497
      %11530 = vst.msk [vmem:[#allocation3 + $0xa8] sm:$0xff] %vm579, %v11498
      %11531 = vst.msk [vmem:[#allocation3 + $0xb0] sm:$0xff] %vm579, %v11499
      %11532 = vst.msk [vmem:[#allocation3 + $0xb8] sm:$0xff] %vm579, %v11500
      %11533 = vst.msk [vmem:[#allocation3 + $0xc0] sm:$0xff] %vm579, %v11501
      %11534 = vst.msk [vmem:[#allocation3 + $0xc8] sm:$0xff] %vm579, %v11502
      %11535 = vst.msk [vmem:[#allocation3 + $0xd0] sm:$0xff] %vm579, %v11503
      %11536 = vst.msk [vmem:[#allocation3 + $0xd8] sm:$0xff] %vm579, %v11504
      %11537 = vst.msk [vmem:[#allocation3 + $0xe0] sm:$0xff] %vm579, %v11505
      %11538 = vst.msk [vmem:[#allocation3 + $0xe8] sm:$0xff] %vm579, %v11506
      %11539 = vst.msk [vmem:[#allocation3 + $0xf0] sm:$0xff] %vm579, %v11507
      %11540 = vst.msk [vmem:[#allocation3 + $0xf8] sm:$0xff] %vm579, %v11508
      %s11541 = scalar_lea.vmem [#allocation5], 24
      %v11542 = vld [vmem:[%s11541] sm:$0xf]
      %v11543 = vld [vmem:[%s11541 + $0x4] sm:$0xf]
      %v11544 = vld [vmem:[%s11541 + $0x8] sm:$0x1]
      %v11545 = vld [vmem:[%s11541 + $0xc] sm:$0xf]
      %v11546 = vld [vmem:[%s11541 + $0x10] sm:$0xf]
      %v11547 = vld [vmem:[%s11541 + $0x14] sm:$0x1]
      %v11548 = vld [vmem:[%s11541 + $0x18] sm:$0xf]
      %v11549 = vld [vmem:[%s11541 + $0x1c] sm:$0xf]
      %v11550 = vld [vmem:[%s11541 + $0x20] sm:$0x1]
      %v11551 = vld [vmem:[%s11541 + $0x24] sm:$0xf]
      %v11552 = vld [vmem:[%s11541 + $0x28] sm:$0xf]
      %v11553 = vld [vmem:[%s11541 + $0x2c] sm:$0x1]
      %v11554 = vld [vmem:[%s11541 + $0x30] sm:$0xf]
      %v11555 = vld [vmem:[%s11541 + $0x34] sm:$0xf]
      %v11556 = vld [vmem:[%s11541 + $0x38] sm:$0x1]
      %v11557 = vld [vmem:[%s11541 + $0x3c] sm:$0xf]
      %v11558 = vld [vmem:[%s11541 + $0x40] sm:$0xf]
      %v11559 = vld [vmem:[%s11541 + $0x44] sm:$0x1]
      %v11560 = vld [vmem:[%s11541 + $0x48] sm:$0xf]
      %v11561 = vld [vmem:[%s11541 + $0x4c] sm:$0xf]
      %v11562 = vld [vmem:[%s11541 + $0x50] sm:$0x1]
      %v11563 = vld [vmem:[%s11541 + $0x54] sm:$0xf]
      %v11564 = vld [vmem:[%s11541 + $0x58] sm:$0xf]
      %v11565 = vld [vmem:[%s11541 + $0x5c] sm:$0x1]
      %v11566 = vld [vmem:[%s11541 + $0x60] sm:$0xf]
      %v11567 = vld [vmem:[%s11541 + $0x64] sm:$0xf]
      %v11568 = vld [vmem:[%s11541 + $0x68] sm:$0x1]
      %v11569 = vld [vmem:[%s11541 + $0x6c] sm:$0xf]
      %v11570 = vld [vmem:[%s11541 + $0x70] sm:$0xf]
      %v11571 = vld [vmem:[%s11541 + $0x74] sm:$0x1]
      %v11572 = vld [vmem:[%s11541 + $0x78] sm:$0xf]
      %v11573 = vld [vmem:[%s11541 + $0x7c] sm:$0xf]
      %v11574 = vld [vmem:[%s11541 + $0x80] sm:$0x1]
      %v11575 = vld [vmem:[%s11541 + $0x84] sm:$0xf]
      %v11576 = vld [vmem:[%s11541 + $0x88] sm:$0xf]
      %v11577 = vld [vmem:[%s11541 + $0x8c] sm:$0x1]
      %v11578 = vld [vmem:[%s11541 + $0x90] sm:$0xf]
      %v11579 = vld [vmem:[%s11541 + $0x94] sm:$0xf]
      %v11580 = vld [vmem:[%s11541 + $0x98] sm:$0x1]
      %v11581 = vld [vmem:[%s11541 + $0x9c] sm:$0xf]
      %v11582 = vld [vmem:[%s11541 + $0xa0] sm:$0xf]
      %v11583 = vld [vmem:[%s11541 + $0xa4] sm:$0x1]
      %v11584 = vld [vmem:[%s11541 + $0xa8] sm:$0xf]
      %v11585 = vld [vmem:[%s11541 + $0xac] sm:$0xf]
      %v11586 = vld [vmem:[%s11541 + $0xb0] sm:$0x1]
      %v11587 = vld [vmem:[%s11541 + $0xb4] sm:$0xf]
      %v11588 = vld [vmem:[%s11541 + $0xb8] sm:$0xf]
      %v11589 = vld [vmem:[%s11541 + $0xbc] sm:$0x1]
      %v11622 = vunpack.c.l.b16 %v11542
      %v11623 = vunpack.c.l.b16 %v11543
      %v11624 = vunpack.c.l.b16 %v11545
      %v11625 = vunpack.c.l.b16 %v11546
      %v11626 = vunpack.c.l.b16 %v11548
      %v11627 = vunpack.c.l.b16 %v11549
      %v11628 = vunpack.c.l.b16 %v11551
      %v11629 = vunpack.c.l.b16 %v11552
      %v11630 = vunpack.c.l.b16 %v11554
      %v11631 = vunpack.c.l.b16 %v11555
      %v11632 = vunpack.c.l.b16 %v11557
      %v11633 = vunpack.c.l.b16 %v11558
      %v11634 = vunpack.c.l.b16 %v11560
      %v11635 = vunpack.c.l.b16 %v11561
      %v11636 = vunpack.c.l.b16 %v11563
      %v11637 = vunpack.c.l.b16 %v11564
      %v11638 = vunpack.c.l.b16 %v11566
      %v11639 = vunpack.c.l.b16 %v11567
      %v11640 = vunpack.c.l.b16 %v11569
      %v11641 = vunpack.c.l.b16 %v11570
      %v11642 = vunpack.c.l.b16 %v11572
      %v11643 = vunpack.c.l.b16 %v11573
      %v11644 = vunpack.c.l.b16 %v11575
      %v11645 = vunpack.c.l.b16 %v11576
      %v11646 = vunpack.c.l.b16 %v11578
      %v11647 = vunpack.c.l.b16 %v11579
      %v11648 = vunpack.c.l.b16 %v11581
      %v11649 = vunpack.c.l.b16 %v11582
      %v11650 = vunpack.c.l.b16 %v11584
      %v11651 = vunpack.c.l.b16 %v11585
      %v11652 = vunpack.c.l.b16 %v11587
      %v11653 = vunpack.c.l.b16 %v11588
      %v11654 = vpack.c.b16 %v11623, %v11622
      %v11655 = vpack.c.b16 %v11625, %v11624
      %v11656 = vpack.c.b16 %v11627, %v11626
      %v11657 = vpack.c.b16 %v11629, %v11628
      %v11658 = vpack.c.b16 %v11631, %v11630
      %v11659 = vpack.c.b16 %v11633, %v11632
      %v11660 = vpack.c.b16 %v11635, %v11634
      %v11661 = vpack.c.b16 %v11637, %v11636
      %v11662 = vpack.c.b16 %v11639, %v11638
      %v11663 = vpack.c.b16 %v11641, %v11640
      %v11664 = vpack.c.b16 %v11643, %v11642
      %v11665 = vpack.c.b16 %v11645, %v11644
      %v11666 = vpack.c.b16 %v11647, %v11646
      %v11667 = vpack.c.b16 %v11649, %v11648
      %v11668 = vpack.c.b16 %v11651, %v11650
      %v11669 = vpack.c.b16 %v11653, %v11652
      %v11686 = vunpack.c.l.b16 %v11544
      %v11687 = vunpack.c.l.b16 %v11547
      %v11688 = vunpack.c.l.b16 %v11550
      %v11689 = vunpack.c.l.b16 %v11553
      %v11690 = vunpack.c.l.b16 %v11556
      %v11691 = vunpack.c.l.b16 %v11559
      %v11692 = vunpack.c.l.b16 %v11562
      %v11693 = vunpack.c.l.b16 %v11565
      %v11694 = vunpack.c.l.b16 %v11568
      %v11695 = vunpack.c.l.b16 %v11571
      %v11696 = vunpack.c.l.b16 %v11574
      %v11697 = vunpack.c.l.b16 %v11577
      %v11698 = vunpack.c.l.b16 %v11580
      %v11699 = vunpack.c.l.b16 %v11583
      %v11700 = vunpack.c.l.b16 %v11586
      %v11701 = vunpack.c.l.b16 %v11589
      %v11702 = vpack.c.b16 %v11686, %v11686
      %v11703 = vpack.c.b16 %v11687, %v11687
      %v11704 = vpack.c.b16 %v11688, %v11688
      %v11705 = vpack.c.b16 %v11689, %v11689
      %v11706 = vpack.c.b16 %v11690, %v11690
      %v11707 = vpack.c.b16 %v11691, %v11691
      %v11708 = vpack.c.b16 %v11692, %v11692
      %v11709 = vpack.c.b16 %v11693, %v11693
      %v11710 = vpack.c.b16 %v11694, %v11694
      %v11711 = vpack.c.b16 %v11695, %v11695
      %v11712 = vpack.c.b16 %v11696, %v11696
      %v11713 = vpack.c.b16 %v11697, %v11697
      %v11714 = vpack.c.b16 %v11698, %v11698
      %v11715 = vpack.c.b16 %v11699, %v11699
      %v11716 = vpack.c.b16 %v11700, %v11700
      %v11717 = vpack.c.b16 %v11701, %v11701
      %v11719 = vshrl.u32 %v11654, 16
      %v11721 = vshll.u32 %v11654, 16
      %v11723 = vrot.slane %v11721, 1
      %v11724 = vor.u32 %v11719, %v11723
      %v11726 = vshll.u32 %v11702, 16
      %v11728 = vrot.slane %v11726, 1
      %v11729 = vsel %vm6594, %v11724, %v11728
      %v11731 = vshrl.u32 %v11655, 16
      %v11733 = vshll.u32 %v11655, 16
      %v11735 = vrot.slane %v11733, 1
      %v11736 = vor.u32 %v11731, %v11735
      %v11738 = vshll.u32 %v11703, 16
      %v11740 = vrot.slane %v11738, 1
      %v11741 = vsel %vm6594, %v11736, %v11740
      %v11743 = vshrl.u32 %v11656, 16
      %v11745 = vshll.u32 %v11656, 16
      %v11747 = vrot.slane %v11745, 1
      %v11748 = vor.u32 %v11743, %v11747
      %v11750 = vshll.u32 %v11704, 16
      %v11752 = vrot.slane %v11750, 1
      %v11753 = vsel %vm6594, %v11748, %v11752
      %v11755 = vshrl.u32 %v11657, 16
      %v11757 = vshll.u32 %v11657, 16
      %v11759 = vrot.slane %v11757, 1
      %v11760 = vor.u32 %v11755, %v11759
      %v11762 = vshll.u32 %v11705, 16
      %v11764 = vrot.slane %v11762, 1
      %v11765 = vsel %vm6594, %v11760, %v11764
      %v11767 = vshrl.u32 %v11658, 16
      %v11769 = vshll.u32 %v11658, 16
      %v11771 = vrot.slane %v11769, 1
      %v11772 = vor.u32 %v11767, %v11771
      %v11774 = vshll.u32 %v11706, 16
      %v11776 = vrot.slane %v11774, 1
      %v11777 = vsel %vm6594, %v11772, %v11776
      %v11779 = vshrl.u32 %v11659, 16
      %v11781 = vshll.u32 %v11659, 16
      %v11783 = vrot.slane %v11781, 1
      %v11784 = vor.u32 %v11779, %v11783
      %v11786 = vshll.u32 %v11707, 16
      %v11788 = vrot.slane %v11786, 1
      %v11789 = vsel %vm6594, %v11784, %v11788
      %v11791 = vshrl.u32 %v11660, 16
      %v11793 = vshll.u32 %v11660, 16
      %v11795 = vrot.slane %v11793, 1
      %v11796 = vor.u32 %v11791, %v11795
      %v11798 = vshll.u32 %v11708, 16
      %v11800 = vrot.slane %v11798, 1
      %v11801 = vsel %vm6594, %v11796, %v11800
      %v11803 = vshrl.u32 %v11661, 16
      %v11805 = vshll.u32 %v11661, 16
      %v11807 = vrot.slane %v11805, 1
      %v11808 = vor.u32 %v11803, %v11807
      %v11810 = vshll.u32 %v11709, 16
      %v11812 = vrot.slane %v11810, 1
      %v11813 = vsel %vm6594, %v11808, %v11812
      %v11815 = vshrl.u32 %v11662, 16
      %v11817 = vshll.u32 %v11662, 16
      %v11819 = vrot.slane %v11817, 1
      %v11820 = vor.u32 %v11815, %v11819
      %v11822 = vshll.u32 %v11710, 16
      %v11824 = vrot.slane %v11822, 1
      %v11825 = vsel %vm6594, %v11820, %v11824
      %v11827 = vshrl.u32 %v11663, 16
      %v11829 = vshll.u32 %v11663, 16
      %v11831 = vrot.slane %v11829, 1
      %v11832 = vor.u32 %v11827, %v11831
      %v11834 = vshll.u32 %v11711, 16
      %v11836 = vrot.slane %v11834, 1
      %v11837 = vsel %vm6594, %v11832, %v11836
      %v11839 = vshrl.u32 %v11664, 16
      %v11841 = vshll.u32 %v11664, 16
      %v11843 = vrot.slane %v11841, 1
      %v11844 = vor.u32 %v11839, %v11843
      %v11846 = vshll.u32 %v11712, 16
      %v11848 = vrot.slane %v11846, 1
      %v11849 = vsel %vm6594, %v11844, %v11848
      %v11851 = vshrl.u32 %v11665, 16
      %v11853 = vshll.u32 %v11665, 16
      %v11855 = vrot.slane %v11853, 1
      %v11856 = vor.u32 %v11851, %v11855
      %v11858 = vshll.u32 %v11713, 16
      %v11860 = vrot.slane %v11858, 1
      %v11861 = vsel %vm6594, %v11856, %v11860
      %v11863 = vshrl.u32 %v11666, 16
      %v11865 = vshll.u32 %v11666, 16
      %v11867 = vrot.slane %v11865, 1
      %v11868 = vor.u32 %v11863, %v11867
      %v11870 = vshll.u32 %v11714, 16
      %v11872 = vrot.slane %v11870, 1
      %v11873 = vsel %vm6594, %v11868, %v11872
      %v11875 = vshrl.u32 %v11667, 16
      %v11877 = vshll.u32 %v11667, 16
      %v11879 = vrot.slane %v11877, 1
      %v11880 = vor.u32 %v11875, %v11879
      %v11882 = vshll.u32 %v11715, 16
      %v11884 = vrot.slane %v11882, 1
      %v11885 = vsel %vm6594, %v11880, %v11884
      %v11887 = vshrl.u32 %v11668, 16
      %v11889 = vshll.u32 %v11668, 16
      %v11891 = vrot.slane %v11889, 1
      %v11892 = vor.u32 %v11887, %v11891
      %v11894 = vshll.u32 %v11716, 16
      %v11896 = vrot.slane %v11894, 1
      %v11897 = vsel %vm6594, %v11892, %v11896
      %v11899 = vshrl.u32 %v11669, 16
      %v11901 = vshll.u32 %v11669, 16
      %v11903 = vrot.slane %v11901, 1
      %v11904 = vor.u32 %v11899, %v11903
      %v11906 = vshll.u32 %v11717, 16
      %v11908 = vrot.slane %v11906, 1
      %v11909 = vsel %vm6594, %v11904, %v11908
      %11910 = vrot.lane.b32.xlu0 %v11729, 64
      %v11911 = vpop.permute.xlu0 %11910
      %11912 = vrot.lane.b32.xlu0 %v11741, 64
      %v11913 = vpop.permute.xlu0 %11912
      %11914 = vrot.lane.b32.xlu0 %v11753, 64
      %v11915 = vpop.permute.xlu0 %11914
      %11916 = vrot.lane.b32.xlu0 %v11765, 64
      %v11917 = vpop.permute.xlu0 %11916
      %11918 = vrot.lane.b32.xlu0 %v11777, 64
      %v11919 = vpop.permute.xlu0 %11918
      %11920 = vrot.lane.b32.xlu0 %v11789, 64
      %v11921 = vpop.permute.xlu0 %11920
      %11922 = vrot.lane.b32.xlu0 %v11801, 64
      %v11923 = vpop.permute.xlu0 %11922
      %11924 = vrot.lane.b32.xlu0 %v11813, 64
      %v11925 = vpop.permute.xlu0 %11924
      %11926 = vrot.lane.b32.xlu0 %v11825, 64
      %v11927 = vpop.permute.xlu0 %11926
      %11928 = vrot.lane.b32.xlu0 %v11837, 64
      %v11929 = vpop.permute.xlu0 %11928
      %11930 = vrot.lane.b32.xlu0 %v11849, 64
      %v11931 = vpop.permute.xlu0 %11930
      %11932 = vrot.lane.b32.xlu0 %v11861, 64
      %v11933 = vpop.permute.xlu0 %11932
      %11934 = vrot.lane.b32.xlu0 %v11873, 64
      %v11935 = vpop.permute.xlu0 %11934
      %11936 = vrot.lane.b32.xlu0 %v11885, 64
      %v11937 = vpop.permute.xlu0 %11936
      %11938 = vrot.lane.b32.xlu0 %v11897, 64
      %v11939 = vpop.permute.xlu0 %11938
      %11940 = vrot.lane.b32.xlu0 %v11909, 64
      %v11941 = vpop.permute.xlu0 %11940
      %v11942 = vrot.slane %v11654, 1
      %v11943 = vrot.slane %v11702, 1
      %v11944 = vsel %vm6819, %v11942, %v11943
      %v11945 = vrot.slane %v11655, 1
      %v11946 = vrot.slane %v11703, 1
      %v11947 = vsel %vm6819, %v11945, %v11946
      %v11948 = vrot.slane %v11656, 1
      %v11949 = vrot.slane %v11704, 1
      %v11950 = vsel %vm6819, %v11948, %v11949
      %v11951 = vrot.slane %v11657, 1
      %v11952 = vrot.slane %v11705, 1
      %v11953 = vsel %vm6819, %v11951, %v11952
      %v11954 = vrot.slane %v11658, 1
      %v11955 = vrot.slane %v11706, 1
      %v11956 = vsel %vm6819, %v11954, %v11955
      %v11957 = vrot.slane %v11659, 1
      %v11958 = vrot.slane %v11707, 1
      %v11959 = vsel %vm6819, %v11957, %v11958
      %v11960 = vrot.slane %v11660, 1
      %v11961 = vrot.slane %v11708, 1
      %v11962 = vsel %vm6819, %v11960, %v11961
      %v11963 = vrot.slane %v11661, 1
      %v11964 = vrot.slane %v11709, 1
      %v11965 = vsel %vm6819, %v11963, %v11964
      %v11966 = vrot.slane %v11662, 1
      %v11967 = vrot.slane %v11710, 1
      %v11968 = vsel %vm6819, %v11966, %v11967
      %v11969 = vrot.slane %v11663, 1
      %v11970 = vrot.slane %v11711, 1
      %v11971 = vsel %vm6819, %v11969, %v11970
      %v11972 = vrot.slane %v11664, 1
      %v11973 = vrot.slane %v11712, 1
      %v11974 = vsel %vm6819, %v11972, %v11973
      %v11975 = vrot.slane %v11665, 1
      %v11976 = vrot.slane %v11713, 1
      %v11977 = vsel %vm6819, %v11975, %v11976
      %v11978 = vrot.slane %v11666, 1
      %v11979 = vrot.slane %v11714, 1
      %v11980 = vsel %vm6819, %v11978, %v11979
      %v11981 = vrot.slane %v11667, 1
      %v11982 = vrot.slane %v11715, 1
      %v11983 = vsel %vm6819, %v11981, %v11982
      %v11984 = vrot.slane %v11668, 1
      %v11985 = vrot.slane %v11716, 1
      %v11986 = vsel %vm6819, %v11984, %v11985
      %v11987 = vrot.slane %v11669, 1
      %v11988 = vrot.slane %v11717, 1
      %v11989 = vsel %vm6819, %v11987, %v11988
      %v11991 = vsel %vm401, %v11654, %v11911
      %v11994 = vsel %vm401, %v11655, %v11913
      %v11997 = vsel %vm401, %v11656, %v11915
      %v12000 = vsel %vm401, %v11657, %v11917
      %v12003 = vsel %vm401, %v11658, %v11919
      %v12006 = vsel %vm401, %v11659, %v11921
      %v12009 = vsel %vm401, %v11660, %v11923
      %v12012 = vsel %vm401, %v11661, %v11925
      %v12015 = vsel %vm401, %v11662, %v11927
      %v12018 = vsel %vm401, %v11663, %v11929
      %v12021 = vsel %vm401, %v11664, %v11931
      %v12024 = vsel %vm401, %v11665, %v11933
      %v12027 = vsel %vm401, %v11666, %v11935
      %v12030 = vsel %vm401, %v11667, %v11937
      %v12033 = vsel %vm401, %v11668, %v11939
      %v12036 = vsel %vm401, %v11669, %v11941
      %v12038 = vld [vmem:[#allocation3] sm:$0xff]
      %v12039 = vld [vmem:[#allocation3 + $0x8] sm:$0xff]
      %v12040 = vld [vmem:[#allocation3 + $0x10] sm:$0xff]
      %v12041 = vld [vmem:[#allocation3 + $0x18] sm:$0xff]
      %v12042 = vld [vmem:[#allocation3 + $0x20] sm:$0xff]
      %v12043 = vld [vmem:[#allocation3 + $0x28] sm:$0xff]
      %v12044 = vld [vmem:[#allocation3 + $0x30] sm:$0xff]
      %v12045 = vld [vmem:[#allocation3 + $0x38] sm:$0xff]
      %v12046 = vld [vmem:[#allocation3 + $0x40] sm:$0xff]
      %v12047 = vld [vmem:[#allocation3 + $0x48] sm:$0xff]
      %v12048 = vld [vmem:[#allocation3 + $0x50] sm:$0xff]
      %v12049 = vld [vmem:[#allocation3 + $0x58] sm:$0xff]
      %v12050 = vld [vmem:[#allocation3 + $0x60] sm:$0xff]
      %v12051 = vld [vmem:[#allocation3 + $0x68] sm:$0xff]
      %v12052 = vld [vmem:[#allocation3 + $0x70] sm:$0xff]
      %v12053 = vld [vmem:[#allocation3 + $0x78] sm:$0xff]
      %v12054 = vld [vmem:[#allocation3 + $0x80] sm:$0xff]
      %v12055 = vld [vmem:[#allocation3 + $0x88] sm:$0xff]
      %v12056 = vld [vmem:[#allocation3 + $0x90] sm:$0xff]
      %v12057 = vld [vmem:[#allocation3 + $0x98] sm:$0xff]
      %v12058 = vld [vmem:[#allocation3 + $0xa0] sm:$0xff]
      %v12059 = vld [vmem:[#allocation3 + $0xa8] sm:$0xff]
      %v12060 = vld [vmem:[#allocation3 + $0xb0] sm:$0xff]
      %v12061 = vld [vmem:[#allocation3 + $0xb8] sm:$0xff]
      %v12062 = vld [vmem:[#allocation3 + $0xc0] sm:$0xff]
      %v12063 = vld [vmem:[#allocation3 + $0xc8] sm:$0xff]
      %v12064 = vld [vmem:[#allocation3 + $0xd0] sm:$0xff]
      %v12065 = vld [vmem:[#allocation3 + $0xd8] sm:$0xff]
      %v12066 = vld [vmem:[#allocation3 + $0xe0] sm:$0xff]
      %v12067 = vld [vmem:[#allocation3 + $0xe8] sm:$0xff]
      %v12068 = vld [vmem:[#allocation3 + $0xf0] sm:$0xff]
      %v12069 = vld [vmem:[#allocation3 + $0xf8] sm:$0xff]
      %s12070 = scalar_lea.vmem %s5, 192
      %v12071 = vld [vmem:[%s12070] sm:$0xf]
      %v12072 = vld [vmem:[%s12070 + $0x4] sm:$0xf]
      %v12073 = vld [vmem:[%s12070 + $0x8] sm:$0xf]
      %v12074 = vld [vmem:[%s12070 + $0xc] sm:$0xf]
      %v12075 = vld [vmem:[%s12070 + $0x10] sm:$0xf]
      %v12076 = vld [vmem:[%s12070 + $0x14] sm:$0xf]
      %v12077 = vld [vmem:[%s12070 + $0x18] sm:$0xf]
      %v12078 = vld [vmem:[%s12070 + $0x1c] sm:$0xf]
      %v12079 = vld [vmem:[%s12070 + $0x20] sm:$0xf]
      %v12080 = vld [vmem:[%s12070 + $0x24] sm:$0xf]
      %v12081 = vld [vmem:[%s12070 + $0x28] sm:$0xf]
      %v12082 = vld [vmem:[%s12070 + $0x2c] sm:$0xf]
      %v12083 = vld [vmem:[%s12070 + $0x30] sm:$0xf]
      %v12084 = vld [vmem:[%s12070 + $0x34] sm:$0xf]
      %v12085 = vld [vmem:[%s12070 + $0x38] sm:$0xf]
      %v12086 = vld [vmem:[%s12070 + $0x3c] sm:$0xf]
      %v12087 = vld [vmem:[%s12070 + $0x40] sm:$0xf]
      %v12088 = vld [vmem:[%s12070 + $0x44] sm:$0xf]
      %v12089 = vld [vmem:[%s12070 + $0x48] sm:$0xf]
      %v12090 = vld [vmem:[%s12070 + $0x4c] sm:$0xf]
      %v12091 = vld [vmem:[%s12070 + $0x50] sm:$0xf]
      %v12092 = vld [vmem:[%s12070 + $0x54] sm:$0xf]
      %v12093 = vld [vmem:[%s12070 + $0x58] sm:$0xf]
      %v12094 = vld [vmem:[%s12070 + $0x5c] sm:$0xf]
      %v12119 = vunpack.c.l.b16 %v12071
      %v12120 = vunpack.c.l.b16 %v12072
      %v12121 = vunpack.c.l.b16 %v12073
      %v12122 = vunpack.c.l.b16 %v12074
      %v12123 = vunpack.c.l.b16 %v12075
      %v12124 = vunpack.c.l.b16 %v12076
      %v12125 = vunpack.c.l.b16 %v12077
      %v12126 = vunpack.c.l.b16 %v12078
      %v12127 = vunpack.c.l.b16 %v12079
      %v12128 = vunpack.c.l.b16 %v12080
      %v12129 = vunpack.c.l.b16 %v12081
      %v12130 = vunpack.c.l.b16 %v12082
      %v12131 = vunpack.c.l.b16 %v12083
      %v12132 = vunpack.c.l.b16 %v12084
      %v12133 = vunpack.c.l.b16 %v12085
      %v12134 = vunpack.c.l.b16 %v12086
      %v12135 = vunpack.c.l.b16 %v12087
      %v12136 = vunpack.c.l.b16 %v12088
      %v12137 = vunpack.c.l.b16 %v12089
      %v12138 = vunpack.c.l.b16 %v12090
      %v12139 = vunpack.c.l.b16 %v12091
      %v12140 = vunpack.c.l.b16 %v12092
      %v12141 = vunpack.c.l.b16 %v12093
      %v12142 = vunpack.c.l.b16 %v12094
      %v12143 = vpack.c.b16 %v12120, %v12119
      %v12144 = vpack.c.b16 %v12122, %v12121
      %v12145 = vpack.c.b16 %v12124, %v12123
      %v12146 = vpack.c.b16 %v12126, %v12125
      %v12147 = vpack.c.b16 %v12128, %v12127
      %v12148 = vpack.c.b16 %v12130, %v12129
      %v12149 = vpack.c.b16 %v12132, %v12131
      %v12150 = vpack.c.b16 %v12134, %v12133
      %v12151 = vpack.c.b16 %v12136, %v12135
      %v12152 = vpack.c.b16 %v12138, %v12137
      %v12153 = vpack.c.b16 %v12140, %v12139
      %v12154 = vpack.c.b16 %v12142, %v12141
      %v12168 = vsel %vm401, %v11944, 0
      %v12171 = vsel %vm401, %v11947, 0
      %v12174 = vsel %vm401, %v11950, 0
      %v12177 = vsel %vm401, %v11953, 0
      %v12180 = vsel %vm401, %v11956, 0
      %v12183 = vsel %vm401, %v11959, 0
      %v12186 = vsel %vm401, %v11962, 0
      %v12189 = vsel %vm401, %v11965, 0
      %v12192 = vsel %vm401, %v11968, 0
      %v12195 = vsel %vm401, %v11971, 0
      %v12198 = vsel %vm401, %v11974, 0
      %v12201 = vsel %vm401, %v11977, 0
      %v12204 = vsel %vm401, %v11980, 0
      %v12207 = vsel %vm401, %v11983, 0
      %v12210 = vsel %vm401, %v11986, 0
      %v12213 = vsel %vm401, %v11989, 0
      %12215 = vmatprep.subr.bf16.mxu0 0
      %12216 = vmatpush1.bf16.msra.mxu0 %v12143
      %12217 = vmatprep.subr.bf16.mxu0 0
      %12218 = vmatpush1.bf16.msra.mxu0 %v12144
      %12219 = vmatprep.subr.bf16.mxu0 0
      %12220 = vmatpush1.bf16.msra.mxu0 %v12145
      %12221 = vmatprep.subr.bf16.mxu0 0
      %12222 = vmatpush1.bf16.msra.mxu0 %v12146
      %12223 = vmatprep.subr.bf16.mxu0 0
      %12224 = vmatpush1.bf16.msra.mxu0 %v12147
      %12225 = vmatprep.subr.bf16.mxu0 0
      %12226 = vmatpush1.bf16.msra.mxu0 %v12148
      %12227 = vmatprep.subr.bf16.mxu0 0
      %12228 = vmatpush1.bf16.msra.mxu0 %v12149
      %12229 = vmatprep.subr.bf16.mxu0 0
      %12230 = vmatpush1.bf16.msra.mxu0 %v12150
      %12231 = vmatprep.subr.bf16.mxu0 0
      %12232 = vmatpush1.bf16.msra.mxu0 %v12151
      %12233 = vmatprep.subr.bf16.mxu0 0
      %12234 = vmatpush1.bf16.msra.mxu0 %v12152
      %12235 = vmatprep.subr.bf16.mxu0 0
      %12236 = vmatpush1.bf16.msra.mxu0 %v12153
      %12237 = vmatprep.subr.bf16.mxu0 0
      %12238 = vmatpush1.bf16.msra.mxu0 %v12154
      %12239 = vmatprep.subr.bf16.mxu0 0
      %12240 = vmatpush1.bf16.msra.mxu0 0
      %12241 = vmatprep.subr.bf16.mxu0 0
      %12242 = vmatpush1.bf16.msra.mxu0 0
      %12243 = vmatprep.subr.bf16.mxu0 0
      %12244 = vmatpush1.bf16.msra.mxu0 0
      %12245 = vmatprep.subr.bf16.mxu0 0
      %12246 = vmatpush1.bf16.msra.mxu0 0
      %12247 = vmatprep.mubr.bf16.mxu0 %v12168
      %12248 = vmatmul.mubr.bf16.gmra.mrb[0].mxu0 %v11991
      %v12249 = vpop.f32.mrb[0].mxu0
      %v12250 = vadd.f32 0.0, %v12249
      %v12251 = vpop.f32.mrb[0].mxu0
      %v12252 = vpop.f32.mrb[0].mxu0
      %v12253 = vadd.f32 0.0, %v12252
      %v12254 = vpop.f32.mrb[0].mxu0
      %12255 = vmatprep.mubr.bf16.mxu0 %v12171
      %12256 = vmatmul.mubr.bf16.gmra.mrb[0].mxu0 %v11994
      %v12257 = vpop.f32.mrb[0].mxu0
      %v12258 = vadd.f32 0.0, %v12257
      %v12259 = vpop.f32.mrb[0].mxu0
      %v12260 = vpop.f32.mrb[0].mxu0
      %v12261 = vadd.f32 0.0, %v12260
      %v12262 = vpop.f32.mrb[0].mxu0
      %12263 = vmatprep.mubr.bf16.mxu0 %v12174
      %12264 = vmatmul.mubr.bf16.gmra.mrb[0].mxu0 %v11997
      %v12265 = vpop.f32.mrb[0].mxu0
      %v12266 = vadd.f32 0.0, %v12265
      %v12267 = vpop.f32.mrb[0].mxu0
      %v12268 = vpop.f32.mrb[0].mxu0
      %v12269 = vadd.f32 0.0, %v12268
      %v12270 = vpop.f32.mrb[0].mxu0
      %12271 = vmatprep.mubr.bf16.mxu0 %v12177
      %12272 = vmatmul.mubr.bf16.gmra.mrb[0].mxu0 %v12000
      %v12273 = vpop.f32.mrb[0].mxu0
      %v12274 = vadd.f32 0.0, %v12273
      %v12275 = vpop.f32.mrb[0].mxu0
      %v12276 = vpop.f32.mrb[0].mxu0
      %v12277 = vadd.f32 0.0, %v12276
      %v12278 = vpop.f32.mrb[0].mxu0
      %12279 = vmatprep.mubr.bf16.mxu0 %v12180
      %12280 = vmatmul.mubr.bf16.gmra.mrb[0].mxu0 %v12003
      %v12281 = vpop.f32.mrb[0].mxu0
      %v12282 = vadd.f32 0.0, %v12281
      %v12283 = vpop.f32.mrb[0].mxu0
      %v12284 = vpop.f32.mrb[0].mxu0
      %v12285 = vadd.f32 0.0, %v12284
      %v12286 = vpop.f32.mrb[0].mxu0
      %12287 = vmatprep.mubr.bf16.mxu0 %v12183
      %12288 = vmatmul.mubr.bf16.gmra.mrb[0].mxu0 %v12006
      %v12289 = vpop.f32.mrb[0].mxu0
      %v12290 = vadd.f32 0.0, %v12289
      %v12291 = vpop.f32.mrb[0].mxu0
      %v12292 = vpop.f32.mrb[0].mxu0
      %v12293 = vadd.f32 0.0, %v12292
      %v12294 = vpop.f32.mrb[0].mxu0
      %12295 = vmatprep.mubr.bf16.mxu0 %v12186
      %12296 = vmatmul.mubr.bf16.gmra.mrb[0].mxu0 %v12009
      %v12297 = vpop.f32.mrb[0].mxu0
      %v12298 = vadd.f32 0.0, %v12297
      %v12299 = vpop.f32.mrb[0].mxu0
      %v12300 = vpop.f32.mrb[0].mxu0
      %v12301 = vadd.f32 0.0, %v12300
      %v12302 = vpop.f32.mrb[0].mxu0
      %12303 = vmatprep.mubr.bf16.mxu0 %v12189
      %12304 = vmatmul.mubr.bf16.gmra.mrb[0].mxu0 %v12012
      %v12305 = vpop.f32.mrb[0].mxu0
      %v12306 = vadd.f32 0.0, %v12305
      %v12307 = vpop.f32.mrb[0].mxu0
      %v12308 = vpop.f32.mrb[0].mxu0
      %v12309 = vadd.f32 0.0, %v12308
      %v12310 = vpop.f32.mrb[0].mxu0
      %12311 = vmatprep.mubr.bf16.mxu0 %v12192
      %12312 = vmatmul.mubr.bf16.gmra.mrb[0].mxu0 %v12015
      %v12313 = vpop.f32.mrb[0].mxu0
      %v12314 = vadd.f32 0.0, %v12313
      %v12315 = vpop.f32.mrb[0].mxu0
      %v12316 = vpop.f32.mrb[0].mxu0
      %v12317 = vadd.f32 0.0, %v12316
      %v12318 = vpop.f32.mrb[0].mxu0
      %12319 = vmatprep.mubr.bf16.mxu0 %v12195
      %12320 = vmatmul.mubr.bf16.gmra.mrb[0].mxu0 %v12018
      %v12321 = vpop.f32.mrb[0].mxu0
      %v12322 = vadd.f32 0.0, %v12321
      %v12323 = vpop.f32.mrb[0].mxu0
      %v12324 = vpop.f32.mrb[0].mxu0
      %v12325 = vadd.f32 0.0, %v12324
      %v12326 = vpop.f32.mrb[0].mxu0
      %12327 = vmatprep.mubr.bf16.mxu0 %v12198
      %12328 = vmatmul.mubr.bf16.gmra.mrb[0].mxu0 %v12021
      %v12329 = vpop.f32.mrb[0].mxu0
      %v12330 = vadd.f32 0.0, %v12329
      %v12331 = vpop.f32.mrb[0].mxu0
      %v12332 = vpop.f32.mrb[0].mxu0
      %v12333 = vadd.f32 0.0, %v12332
      %v12334 = vpop.f32.mrb[0].mxu0
      %12335 = vmatprep.mubr.bf16.mxu0 %v12201
      %12336 = vmatmul.mubr.bf16.gmra.mrb[0].mxu0 %v12024
      %v12337 = vpop.f32.mrb[0].mxu0
      %v12338 = vadd.f32 0.0, %v12337
      %v12339 = vpop.f32.mrb[0].mxu0
      %v12340 = vpop.f32.mrb[0].mxu0
      %v12341 = vadd.f32 0.0, %v12340
      %v12342 = vpop.f32.mrb[0].mxu0
      %12343 = vmatprep.mubr.bf16.mxu0 %v12204
      %12344 = vmatmul.mubr.bf16.gmra.mrb[0].mxu0 %v12027
      %v12345 = vpop.f32.mrb[0].mxu0
      %v12346 = vadd.f32 0.0, %v12345
      %v12347 = vpop.f32.mrb[0].mxu0
      %v12348 = vpop.f32.mrb[0].mxu0
      %v12349 = vadd.f32 0.0, %v12348
      %v12350 = vpop.f32.mrb[0].mxu0
      %12351 = vmatprep.mubr.bf16.mxu0 %v12207
      %12352 = vmatmul.mubr.bf16.gmra.mrb[0].mxu0 %v12030
      %v12353 = vpop.f32.mrb[0].mxu0
      %v12354 = vadd.f32 0.0, %v12353
      %v12355 = vpop.f32.mrb[0].mxu0
      %v12356 = vpop.f32.mrb[0].mxu0
      %v12357 = vadd.f32 0.0, %v12356
      %v12358 = vpop.f32.mrb[0].mxu0
      %12359 = vmatprep.mubr.bf16.mxu0 %v12210
      %12360 = vmatmul.mubr.bf16.gmra.mrb[0].mxu0 %v12033
      %v12361 = vpop.f32.mrb[0].mxu0
      %v12362 = vadd.f32 0.0, %v12361
      %v12363 = vpop.f32.mrb[0].mxu0
      %v12364 = vpop.f32.mrb[0].mxu0
      %v12365 = vadd.f32 0.0, %v12364
      %v12366 = vpop.f32.mrb[0].mxu0
      %12367 = vmatprep.mubr.bf16.mxu0 %v12213
      %12368 = vmatmul.mubr.bf16.gmra.mrb[0].mxu0 %v12036
      %v12369 = vpop.f32.mrb[0].mxu0
      %v12370 = vadd.f32 0.0, %v12369
      %v12371 = vpop.f32.mrb[0].mxu0
      %v12372 = vpop.f32.mrb[0].mxu0
      %v12373 = vadd.f32 0.0, %v12372
      %v12374 = vpop.f32.mrb[0].mxu0
      %12375 = vdwg.mxu0
      %v12376 = vadd.f32 %v12038, %v12250
      %v12377 = vadd.f32 %v12039, %v12253
      %v12378 = vadd.f32 %v12040, %v12258
      %v12379 = vadd.f32 %v12041, %v12261
      %v12380 = vadd.f32 %v12042, %v12266
      %v12381 = vadd.f32 %v12043, %v12269
      %v12382 = vadd.f32 %v12044, %v12274
      %v12383 = vadd.f32 %v12045, %v12277
      %v12384 = vadd.f32 %v12046, %v12282
      %v12385 = vadd.f32 %v12047, %v12285
      %v12386 = vadd.f32 %v12048, %v12290
      %v12387 = vadd.f32 %v12049, %v12293
      %v12388 = vadd.f32 %v12050, %v12298
      %v12389 = vadd.f32 %v12051, %v12301
      %v12390 = vadd.f32 %v12052, %v12306
      %v12391 = vadd.f32 %v12053, %v12309
      %v12392 = vadd.f32 %v12054, %v12314
      %v12393 = vadd.f32 %v12055, %v12317
      %v12394 = vadd.f32 %v12056, %v12322
      %v12395 = vadd.f32 %v12057, %v12325
      %v12396 = vadd.f32 %v12058, %v12330
      %v12397 = vadd.f32 %v12059, %v12333
      %v12398 = vadd.f32 %v12060, %v12338
      %v12399 = vadd.f32 %v12061, %v12341
      %v12400 = vadd.f32 %v12062, %v12346
      %v12401 = vadd.f32 %v12063, %v12349
      %v12402 = vadd.f32 %v12064, %v12354
      %v12403 = vadd.f32 %v12065, %v12357
      %v12404 = vadd.f32 %v12066, %v12362
      %v12405 = vadd.f32 %v12067, %v12365
      %v12406 = vadd.f32 %v12068, %v12370
      %v12407 = vadd.f32 %v12069, %v12373
      %12408 = vst.msk [vmem:[#allocation3] sm:$0xff] %vm579, %v12376
      %12409 = vst.msk [vmem:[#allocation3 + $0x8] sm:$0xff] %vm579, %v12377
      %12410 = vst.msk [vmem:[#allocation3 + $0x10] sm:$0xff] %vm579, %v12378
      %12411 = vst.msk [vmem:[#allocation3 + $0x18] sm:$0xff] %vm579, %v12379
      %12412 = vst.msk [vmem:[#allocation3 + $0x20] sm:$0xff] %vm579, %v12380
      %12413 = vst.msk [vmem:[#allocation3 + $0x28] sm:$0xff] %vm579, %v12381
      %12414 = vst.msk [vmem:[#allocation3 + $0x30] sm:$0xff] %vm579, %v12382
      %12415 = vst.msk [vmem:[#allocation3 + $0x38] sm:$0xff] %vm579, %v12383
      %12416 = vst.msk [vmem:[#allocation3 + $0x40] sm:$0xff] %vm579, %v12384
      %12417 = vst.msk [vmem:[#allocation3 + $0x48] sm:$0xff] %vm579, %v12385
      %12418 = vst.msk [vmem:[#allocation3 + $0x50] sm:$0xff] %vm579, %v12386
      %12419 = vst.msk [vmem:[#allocation3 + $0x58] sm:$0xff] %vm579, %v12387
      %12420 = vst.msk [vmem:[#allocation3 + $0x60] sm:$0xff] %vm579, %v12388
      %12421 = vst.msk [vmem:[#allocation3 + $0x68] sm:$0xff] %vm579, %v12389
      %12422 = vst.msk [vmem:[#allocation3 + $0x70] sm:$0xff] %vm579, %v12390
      %12423 = vst.msk [vmem:[#allocation3 + $0x78] sm:$0xff] %vm579, %v12391
      %12424 = vst.msk [vmem:[#allocation3 + $0x80] sm:$0xff] %vm579, %v12392
      %12425 = vst.msk [vmem:[#allocation3 + $0x88] sm:$0xff] %vm579, %v12393
      %12426 = vst.msk [vmem:[#allocation3 + $0x90] sm:$0xff] %vm579, %v12394
      %12427 = vst.msk [vmem:[#allocation3 + $0x98] sm:$0xff] %vm579, %v12395
      %12428 = vst.msk [vmem:[#allocation3 + $0xa0] sm:$0xff] %vm579, %v12396
      %12429 = vst.msk [vmem:[#allocation3 + $0xa8] sm:$0xff] %vm579, %v12397
      %12430 = vst.msk [vmem:[#allocation3 + $0xb0] sm:$0xff] %vm579, %v12398
      %12431 = vst.msk [vmem:[#allocation3 + $0xb8] sm:$0xff] %vm579, %v12399
      %12432 = vst.msk [vmem:[#allocation3 + $0xc0] sm:$0xff] %vm579, %v12400
      %12433 = vst.msk [vmem:[#allocation3 + $0xc8] sm:$0xff] %vm579, %v12401
      %12434 = vst.msk [vmem:[#allocation3 + $0xd0] sm:$0xff] %vm579, %v12402
      %12435 = vst.msk [vmem:[#allocation3 + $0xd8] sm:$0xff] %vm579, %v12403
      %12436 = vst.msk [vmem:[#allocation3 + $0xe0] sm:$0xff] %vm579, %v12404
      %12437 = vst.msk [vmem:[#allocation3 + $0xe8] sm:$0xff] %vm579, %v12405
      %12438 = vst.msk [vmem:[#allocation3 + $0xf0] sm:$0xff] %vm579, %v12406
      %12439 = vst.msk [vmem:[#allocation3 + $0xf8] sm:$0xff] %vm579, %v12407
      %v12440 = vld [vmem:[#allocation3] sm:$0xff]
      %v12441 = vld [vmem:[#allocation3 + $0x8] sm:$0xff]
      %v12442 = vld [vmem:[#allocation3 + $0x10] sm:$0xff]
      %v12443 = vld [vmem:[#allocation3 + $0x18] sm:$0xff]
      %v12444 = vld [vmem:[#allocation3 + $0x20] sm:$0xff]
      %v12445 = vld [vmem:[#allocation3 + $0x28] sm:$0xff]
      %v12446 = vld [vmem:[#allocation3 + $0x30] sm:$0xff]
      %v12447 = vld [vmem:[#allocation3 + $0x38] sm:$0xff]
      %v12448 = vld [vmem:[#allocation3 + $0x40] sm:$0xff]
      %v12449 = vld [vmem:[#allocation3 + $0x48] sm:$0xff]
      %v12450 = vld [vmem:[#allocation3 + $0x50] sm:$0xff]
      %v12451 = vld [vmem:[#allocation3 + $0x58] sm:$0xff]
      %v12452 = vld [vmem:[#allocation3 + $0x60] sm:$0xff]
      %v12453 = vld [vmem:[#allocation3 + $0x68] sm:$0xff]
      %v12454 = vld [vmem:[#allocation3 + $0x70] sm:$0xff]
      %v12455 = vld [vmem:[#allocation3 + $0x78] sm:$0xff]
      %v12456 = vld [vmem:[#allocation3 + $0x80] sm:$0xff]
      %v12457 = vld [vmem:[#allocation3 + $0x88] sm:$0xff]
      %v12458 = vld [vmem:[#allocation3 + $0x90] sm:$0xff]
      %v12459 = vld [vmem:[#allocation3 + $0x98] sm:$0xff]
      %v12460 = vld [vmem:[#allocation3 + $0xa0] sm:$0xff]
      %v12461 = vld [vmem:[#allocation3 + $0xa8] sm:$0xff]
      %v12462 = vld [vmem:[#allocation3 + $0xb0] sm:$0xff]
      %v12463 = vld [vmem:[#allocation3 + $0xb8] sm:$0xff]
      %v12464 = vld [vmem:[#allocation3 + $0xc0] sm:$0xff]
      %v12465 = vld [vmem:[#allocation3 + $0xc8] sm:$0xff]
      %v12466 = vld [vmem:[#allocation3 + $0xd0] sm:$0xff]
      %v12467 = vld [vmem:[#allocation3 + $0xd8] sm:$0xff]
      %v12468 = vld [vmem:[#allocation3 + $0xe0] sm:$0xff]
      %v12469 = vld [vmem:[#allocation3 + $0xe8] sm:$0xff]
      %v12470 = vld [vmem:[#allocation3 + $0xf0] sm:$0xff]
      %v12471 = vld [vmem:[#allocation3 + $0xf8] sm:$0xff]
      %12472 = vst.msk [vmem:[%s278] sm:$0xff] %vm579, %v12440
      %12473 = vst.msk [vmem:[%s278 + $0x8] sm:$0xff] %vm579, %v12441
      %12474 = vst.msk [vmem:[%s278 + $0x10] sm:$0xff] %vm579, %v12442
      %12475 = vst.msk [vmem:[%s278 + $0x18] sm:$0xff] %vm579, %v12443
      %12476 = vst.msk [vmem:[%s278 + $0x20] sm:$0xff] %vm579, %v12444
      %12477 = vst.msk [vmem:[%s278 + $0x28] sm:$0xff] %vm579, %v12445
      %12478 = vst.msk [vmem:[%s278 + $0x30] sm:$0xff] %vm579, %v12446
      %12479 = vst.msk [vmem:[%s278 + $0x38] sm:$0xff] %vm579, %v12447
      %12480 = vst.msk [vmem:[%s278 + $0x40] sm:$0xff] %vm579, %v12448
      %12481 = vst.msk [vmem:[%s278 + $0x48] sm:$0xff] %vm579, %v12449
      %12482 = vst.msk [vmem:[%s278 + $0x50] sm:$0xff] %vm579, %v12450
      %12483 = vst.msk [vmem:[%s278 + $0x58] sm:$0xff] %vm579, %v12451
      %12484 = vst.msk [vmem:[%s278 + $0x60] sm:$0xff] %vm579, %v12452
      %12485 = vst.msk [vmem:[%s278 + $0x68] sm:$0xff] %vm579, %v12453
      %12486 = vst.msk [vmem:[%s278 + $0x70] sm:$0xff] %vm579, %v12454
      %12487 = vst.msk [vmem:[%s278 + $0x78] sm:$0xff] %vm579, %v12455
      %12488 = vst.msk [vmem:[%s278 + $0x80] sm:$0xff] %vm579, %v12456
      %12489 = vst.msk [vmem:[%s278 + $0x88] sm:$0xff] %vm579, %v12457
      %12490 = vst.msk [vmem:[%s278 + $0x90] sm:$0xff] %vm579, %v12458
      %12491 = vst.msk [vmem:[%s278 + $0x98] sm:$0xff] %vm579, %v12459
      %12492 = vst.msk [vmem:[%s278 + $0xa0] sm:$0xff] %vm579, %v12460
      %12493 = vst.msk [vmem:[%s278 + $0xa8] sm:$0xff] %vm579, %v12461
      %12494 = vst.msk [vmem:[%s278 + $0xb0] sm:$0xff] %vm579, %v12462
      %12495 = vst.msk [vmem:[%s278 + $0xb8] sm:$0xff] %vm579, %v12463
      %12496 = vst.msk [vmem:[%s278 + $0xc0] sm:$0xff] %vm579, %v12464
      %12497 = vst.msk [vmem:[%s278 + $0xc8] sm:$0xff] %vm579, %v12465
      %12498 = vst.msk [vmem:[%s278 + $0xd0] sm:$0xff] %vm579, %v12466
      %12499 = vst.msk [vmem:[%s278 + $0xd8] sm:$0xff] %vm579, %v12467
      %12500 = vst.msk [vmem:[%s278 + $0xe0] sm:$0xff] %vm579, %v12468
      %12501 = vst.msk [vmem:[%s278 + $0xe8] sm:$0xff] %vm579, %v12469
      %12502 = vst.msk [vmem:[%s278 + $0xf0] sm:$0xff] %vm579, %v12470
      %12503 = vst.msk [vmem:[%s278 + $0xf8] sm:$0xff] %vm579, %v12471
      %p12504 = scmp.lt.s32.totalorder %s18, 1
      %s12505 = scalar_select %p12504, %s18, 1
      %s12506 = smul.addr %s12505, 32
      %s12507 = smul.addr %s12506, 8
      %s12508 = scalar_lea.vmem %s7, %s12507
      // Predicated region
      $region53: #{hiding_network.1} parent=47 // pred_check
        %p12509 = pneg %p188
      $region54: #{hiding_network.1} parent=47 // pred_check_branch
        %12511 = sbr.rel (%p12509) target = $region56
      $region55: #{hiding_network.1} parent=47 // pred_region
        _
      $region56: #{hiding_network.1} parent=47 // pred_fallthru
        _
    $region48: #{hiding_network.1} parent=5 // pred_fallthru
      _
    %p12512 = scmp.le.s32.totalorder 2, %s13
    // Predicated region
    $region57: #{hiding_network.1} parent=5 // pred_check
      %p12513 = pneg %p12512
    $region58: #{hiding_network.1} parent=5 // pred_check_branch
      %12515 = sbr.rel (%p12513) target = $region60
    $region59: #{hiding_network.1} parent=5 // pred_region
      %s12516 = ssub.s32 %s13, 2
      // Predicated region
      $region61: #{hiding_network.1} parent=59 // pred_check
        %p12517 = pneg %p194
      $region62: #{hiding_network.1} parent=59 // pred_check_branch
        %12519 = sbr.rel (%p12517) target = $region64
      $region63: #{hiding_network.1} parent=59 // pred_region
        %p12520 = scmp.lt.s32.totalorder %s19, 1
        %s12521 = scalar_select %p12520, %s19, 1
        %s12522 = smul.addr %s12521, 32
        %s12523 = smul.addr %s12522, 8
        %s12524 = scalar_lea.vmem %s7, %s12523
      $region64: #{hiding_network.1} parent=59 // pred_fallthru
        _
    $region60: #{hiding_network.1} parent=5 // pred_fallthru
      _
  $region6: #{hiding_network.1} parent=0 // loop_footer
    %s17 = sadd.s32 1, %s13
  $region7: #{hiding_network.1} parent=0 // loop_footer_branch
    %12 = sbr.rel target = $region3
  $region8: #{hiding_network.1} parent=0 // loop_exit
    _

</llo_original>
